<compile_context>
chip_gen: v7x
topology: tpu7x:2x2x1
jax: 0.10.0
libtpu: 0.0.40
codegen_flags: <defaults>
</compile_context>

<pallas_src>
import functools
import math

import jax
import jax.numpy as jnp
from jax.experimental import pallas as pl
from jax.experimental.pallas import tpu as pltpu

_EPS = 1e-5  # nn.BatchNorm2d default eps


# ----------------------------- fused ConvBlock kernel -----------------------

def _conv_bn_relu_kernel(x_ref, w_ref, b_ref, g_ref, bt_ref, mask_ref,
                         o_ref, y_buf, sum_buf, ssq_buf,
                         *, ho, wo, wp, hopw, cout, m_total, eps):
    """One ConvBlock (minus pool), fused.

    x_ref   : (1, Lp, Cin)  bf16   flat padded image (Lp = (Hp+1)*Wp)
    w_ref   : (9, Cin, Cout) bf16  3x3 taps, (kh, kw) major
    b/g/bt  : (1, Cout) f32        conv bias, BN gamma, BN beta
    mask_ref: (hopw, 1) f32        1.0 for valid flat output rows (wo < Wo)
    o_ref   : (1, Ho, Wo, Cout) bf16
    y_buf   : (N, hopw, Cout) f32  VMEM-resident conv result
    sum/ssq : (1, Cout) f32        global batch-stat accumulators
    """
    s = pl.program_id(0)      # sweep: 0 conv+sum, 1 centered ssq, 2 affine+relu
    n = pl.program_id(1)      # image index

    # ---- sweep 0: conv as 9 shifted flat-slab matmuls + masked channel sums
    @pl.when(s == 0)
    def _():
        @pl.when(n == 0)
        def _():
            sum_buf[...] = jnp.zeros_like(sum_buf)

        acc = jnp.zeros((hopw, cout), jnp.float32)
        for t in range(9):                               # static 3x3 tap unroll
            off = (t // 3) * wp + (t % 3)                # flat halo offset
            tap = x_ref[0, pl.ds(off, hopw), :]          # (hopw, Cin) bf16
            acc = acc + jnp.dot(tap, w_ref[t],
                                preferred_element_type=jnp.float32)
        acc = acc + b_ref[...]
        y_buf[n] = acc
        vacc = acc * mask_ref[...]                       # drop wrap-around cols
        sum_buf[...] += jnp.sum(vacc, axis=0, keepdims=True)

    # ---- sweep 1: centered sum of squares (stable two-pass variance) -------
    @pl.when(s == 1)
    def _():
        @pl.when(n == 0)
        def _():
            ssq_buf[...] = jnp.zeros_like(ssq_buf)
        mean = sum_buf[...] * (1.0 / m_total)
        d = (y_buf[n] - mean) * mask_ref[...]
        ssq_buf[...] += jnp.sum(d * d, axis=0, keepdims=True)

    # ---- sweep 2: BN affine + ReLU, compact NHWC store ---------------------
    @pl.when(s == 2)
    def _():
        mean = sum_buf[...] * (1.0 / m_total)
        var = ssq_buf[...] * (1.0 / m_total)             # biased (training BN)
        inv = jax.lax.rsqrt(var + eps)
        scale = g_ref[...] * inv
        shift = bt_ref[...] - mean * scale
        z = jnp.maximum(y_buf[n] * scale + shift, 0.0)   # (hopw, Cout) f32
        for h in range(ho):                              # static unroll (small H)
            o_ref[0, h] = z[h * wp:h * wp + wo, :].astype(o_ref.dtype)


def conv_block_forward(x_nhwc, p, *, padding, pool):
    """One ConvBlock: Conv3x3(bias) -> BN(batch stats) -> ReLU -> [MaxPool2]."""
    n, h, w, cin = x_nhwc.shape
    cout = p['w'].shape[-1]
    ho, wo = h + 2 * padding - 2, w + 2 * padding - 2    # conv output spatial
    hp, wp = h + 2 * padding, w + 2 * padding            # padded spatial
    hopw = ho * wp                                       # flat output rows

    # Zero-pad: (padding) on each side + ONE extra bottom row so every flat
    # tap slice [off, off + hopw) stays in bounds (off <= 2*wp + 2).
    xp = jnp.pad(x_nhwc, ((0, 0), (padding, padding + 1),
                          (padding, padding), (0, 0)))
    lp = (hp + 1) * wp
    x_flat = xp.reshape(n, lp, cin)                      # contiguous -> free

    # Validity mask over flat output rows: (row % Wp) < Wo.
    mask = (jnp.arange(hopw) % wp < wo).astype(jnp.float32).reshape(hopw, 1)

    wmat = p['w'].reshape(9, cin, cout).astype(jnp.bfloat16)
    m_total = float(n * ho * wo)
    nb = n                                               # batch size (for maps)

    kernel = functools.partial(
        _conv_bn_relu_kernel, ho=ho, wo=wo, wp=wp, hopw=hopw, cout=cout,
        m_total=m_total, eps=_EPS)

    out = pl.pallas_call(
        kernel,
        out_shape=jax.ShapeDtypeStruct((n, ho, wo, cout), jnp.bfloat16),
        grid=(3, n),
        in_specs=[
            # x only needed in sweep 0; keep the last block resident afterwards
            # so no redundant DMAs are issued during sweeps 1-2.
            pl.BlockSpec((1, lp, cin),
                         lambda s, i: (jnp.where(s == 0, i, nb - 1), 0, 0)),
            pl.BlockSpec((9, cin, cout), lambda s, i: (0, 0, 0)),   # resident
            pl.BlockSpec((1, cout), lambda s, i: (0, 0)),           # bias
            pl.BlockSpec((1, cout), lambda s, i: (0, 0)),           # gamma
            pl.BlockSpec((1, cout), lambda s, i: (0, 0)),           # beta
            pl.BlockSpec((hopw, 1), lambda s, i: (0, 0)),           # row mask
        ],
        # Output only written in sweep 2; park on block 0 before that so every
        # output block has exactly one contiguous live range (no revisits).
        out_specs=pl.BlockSpec((1, ho, wo, cout),
                               lambda s, i: (jnp.where(s == 2, i, 0), 0, 0, 0)),
        scratch_shapes=[pltpu.VMEM((n, hopw, cout), jnp.float32),   # conv result
                        pltpu.VMEM((1, cout), jnp.float32),         # sum
                        pltpu.VMEM((1, cout), jnp.float32)],        # centered ssq
        compiler_params=pltpu.CompilerParams(
            dimension_semantics=("arbitrary", "arbitrary")),
    )(x_flat, wmat, p['b'].reshape(1, cout).astype(jnp.float32),
      p['gamma'].reshape(1, cout), p['beta'].reshape(1, cout), mask)

    if pool:
        # TODO(synk): fuse the 2x2 max-pool (floor mode) into sweep 2.
        hp2, wp2 = ho // 2, wo // 2
        z = out[:, :2 * hp2, :2 * wp2, :].reshape(n, hp2, 2, wp2, 2, cout)
        out = jnp.max(z, axis=(2, 4))
    return out


def convnet_nopool_forward(x_nchw, params):
    """ConvNetNopool.forward: blocks 0,1 use padding=0 + MaxPool2d(2); later
    blocks use padding=1, no pool.  BN uses batch statistics (training-mode
    forward, as the module does)."""
    x = jnp.transpose(x_nchw, (0, 2, 3, 1)).astype(jnp.bfloat16)   # NHWC bf16
    for i, p in enumerate(params):
        x = conv_block_forward(x, p, padding=0 if i in (0, 1) else 1,
                               pool=i in (0, 1))
    return jnp.transpose(x, (0, 3, 1, 2)).astype(jnp.float32)      # NCHW f32


def init_params(key, depth):
    """Mirror init_layer: conv weight ~ N(0, sqrt(2/(3*3*out))), conv bias
    PyTorch-default uniform, BN weight=1 / bias=0."""
    params = []
    for i in range(depth):
        indim = 3 if i == 0 else 64
        outdim = 64
        key, kw, kb = jax.random.split(key, 3)
        std = math.sqrt(2.0 / float(3 * 3 * outdim))
        bound = 1.0 / math.sqrt(9.0 * indim)
        params.append(dict(
            w=jax.random.normal(kw, (3, 3, indim, outdim), jnp.float32) * std,
            b=jax.random.uniform(kb, (outdim,), jnp.float32, -bound, bound),
            gamma=jnp.ones((outdim,), jnp.float32),
            beta=jnp.zeros((outdim,), jnp.float32),
        ))
    return params


# ----------------------------- pure-JAX reference ---------------------------

def reference_forward(x_nchw, params):
    x = jnp.transpose(x_nchw, (0, 2, 3, 1)).astype(jnp.float32)
    dn = ('NHWC', 'HWIO', 'NHWC')
    for i, p in enumerate(params):
        pad = 0 if i in (0, 1) else 1
        y = jax.lax.conv_general_dilated(
            x, p['w'], (1, 1), ((pad, pad), (pad, pad)), dimension_numbers=dn)
        y = y + p['b']
        mean = y.mean(axis=(0, 1, 2), keepdims=True)
        var = ((y - mean) ** 2).mean(axis=(0, 1, 2), keepdims=True)
        y = (y - mean) * jax.lax.rsqrt(var + _EPS) * p['gamma'] + p['beta']
        y = jax.nn.relu(y)
        if i in (0, 1):
            y = jax.lax.reduce_window(y, -jnp.inf, jax.lax.max,
                                      (1, 2, 2, 1), (1, 2, 2, 1), 'VALID')
        x = y
    return jnp.transpose(x, (0, 3, 1, 2))


# ----------------------------- main -----------------------------------------

if __name__ == "__main__":
    key = jax.random.PRNGKey(0)
    kx, kp = jax.random.split(key)

    depth = 4
    n, cin, hw = 2, 3, 16                       # module expects RGB input
    x = jax.random.normal(kx, (n, cin, hw, hw), jnp.float32)
    params = init_params(kp, depth)

    forward = jax.jit(convnet_nopool_forward)
    out = jax.block_until_ready(forward(x, params))

    # 16 -conv-> 14 -pool-> 7 -conv-> 5 -pool-> 2 -conv(p=1)-> 2 -conv(p=1)-> 2
    assert out.shape == (n, 64, 2, 2), out.shape

    ref = reference_forward(x, params)
    # Tolerance accounts for bf16 activation/weight storage (all accumulation,
    # statistics and the BN affine are f32); real bugs give O(0.1-1) errors.
    assert jnp.allclose(out, ref, rtol=3e-2, atol=3e-2), \
        float(jnp.max(jnp.abs(out - ref)))

    print("KERNEL_OK")
</pallas_src>

<mosaic_0001>
module attributes {stable_mosaic.version = 11 : i64} {
  func.func @_conv_bn_relu_kernel(%arg0: i32, %arg1: i32, %arg2: memref<1x272x3xbf16, #tpu.memory_space<vmem>>, %arg3: memref<9x3x64xbf16, #tpu.memory_space<vmem>>, %arg4: memref<1x64xf32, #tpu.memory_space<vmem>>, %arg5: memref<1x64xf32, #tpu.memory_space<vmem>>, %arg6: memref<1x64xf32, #tpu.memory_space<vmem>>, %arg7: memref<224x1xf32, #tpu.memory_space<vmem>>, %arg8: memref<1x14x14x64xbf16, #tpu.memory_space<vmem>>, %arg9: memref<2x224x64xf32, #tpu.memory_space<vmem>>, %arg10: memref<1x64xf32, #tpu.memory_space<vmem>>, %arg11: memref<1x64xf32, #tpu.memory_space<vmem>>) attributes {dimension_semantics = [#tpu.dimension_semantics<arbitrary>, #tpu.dimension_semantics<arbitrary>], iteration_bounds = array<i64: 3, 2>, scalar_prefetch = 0 : i64, scratch_operands = 3 : i64, tpu.core_type = #tpu.core_type<tc>, window_params = [{transform_indices = @transform_0, window_bounds = array<i64: 1, 272, 3>}, {pipeline_mode = #tpu.pipeline_mode<synchronous>, transform_indices = @transform_1, window_bounds = array<i64: 9, 3, 64>}, {pipeline_mode = #tpu.pipeline_mode<synchronous>, transform_indices = @transform_2, window_bounds = array<i64: 1, 64>}, {pipeline_mode = #tpu.pipeline_mode<synchronous>, transform_indices = @transform_3, window_bounds = array<i64: 1, 64>}, {pipeline_mode = #tpu.pipeline_mode<synchronous>, transform_indices = @transform_4, window_bounds = array<i64: 1, 64>}, {pipeline_mode = #tpu.pipeline_mode<synchronous>, transform_indices = @transform_5, window_bounds = array<i64: 224, 1>}, {transform_indices = @transform_6, window_bounds = array<i64: 1, 14, 14, 64>}]} {
    %c0_i32 = arith.constant 0 : i32
    %0 = arith.cmpi eq, %arg0, %c0_i32 : i32
    %1 = arith.extui %0 : i1 to i32
    %c0_i32_0 = arith.constant 0 : i32
    %2 = arith.cmpi ne, %1, %c0_i32_0 : i32
    scf.if %2 {
      %c0_i32_3 = arith.constant 0 : i32
      %9 = arith.cmpi eq, %arg1, %c0_i32_3 : i32
      %10 = arith.extui %9 : i1 to i32
      %c0_i32_4 = arith.constant 0 : i32
      %11 = arith.cmpi ne, %10, %c0_i32_4 : i32
      scf.if %11 {
        %cst_64 = arith.constant 0.000000e+00 : f32
        %82 = vector.broadcast %cst_64 : f32 to vector<1x64xf32>
        %c0_65 = arith.constant 0 : index
        %c0_66 = arith.constant 0 : index
        %83 = vector.load %arg10[%c0_65, %c0_66] : memref<1x64xf32, #tpu.memory_space<vmem>>, vector<1x64xf32>
        tpu.vector_store %arg10[%c0_65, %c0_66], %82 {strides = array<i32>} : memref<1x64xf32, #tpu.memory_space<vmem>>, vector<1x64xf32>,
      } else {
      }
      %cst = arith.constant 0.000000e+00 : f32
      %12 = vector.broadcast %cst : f32 to vector<224x64xf32>
      %c0 = arith.constant 0 : index
      %c0_5 = arith.constant 0 : index
      %c0_6 = arith.constant 0 : index
      %13 = vector.load %arg2[%c0, %c0_5, %c0_6] : memref<1x272x3xbf16, #tpu.memory_space<vmem>>, vector<1x224x3xbf16>
      %14 = vector.shape_cast %13 : vector<1x224x3xbf16> to vector<224x3xbf16>
      %c0_7 = arith.constant 0 : index
      %c0_8 = arith.constant 0 : index
      %c0_9 = arith.constant 0 : index
      %15 = vector.load %arg3[%c0_7, %c0_8, %c0_9] : memref<9x3x64xbf16, #tpu.memory_space<vmem>>, vector<1x3x64xbf16>
      %16 = vector.shape_cast %15 : vector<1x3x64xbf16> to vector<3x64xbf16>
      %cst_10 = arith.constant dense<0.000000e+00> : vector<224x64xf32>
      %17 = tpu.matmul %14, %16, %cst_10 {dimension_numbers = #tpu.dot_dimension_numbers<[1], [0], [0], [1], [0, 0, 1, 1], [], []>} : vector<224x3xbf16>, vector<3x64xbf16>, vector<224x64xf32> -> vector<224x64xf32>
      %18 = arith.addf %12, %17 : vector<224x64xf32>
      %c0_11 = arith.constant 0 : index
      %c1 = arith.constant 1 : index
      %c0_12 = arith.constant 0 : index
      %19 = vector.load %arg2[%c0_11, %c1, %c0_12] : memref<1x272x3xbf16, #tpu.memory_space<vmem>>, vector<1x224x3xbf16>
      %20 = vector.shape_cast %19 : vector<1x224x3xbf16> to vector<224x3xbf16>
      %c1_13 = arith.constant 1 : index
      %c0_14 = arith.constant 0 : index
      %c0_15 = arith.constant 0 : index
      %21 = vector.load %arg3[%c1_13, %c0_14, %c0_15] : memref<9x3x64xbf16, #tpu.memory_space<vmem>>, vector<1x3x64xbf16>
      %22 = vector.shape_cast %21 : vector<1x3x64xbf16> to vector<3x64xbf16>
      %cst_16 = arith.constant dense<0.000000e+00> : vector<224x64xf32>
      %23 = tpu.matmul %20, %22, %cst_16 {dimension_numbers = #tpu.dot_dimension_numbers<[1], [0], [0], [1], [0, 0, 1, 1], [], []>} : vector<224x3xbf16>, vector<3x64xbf16>, vector<224x64xf32> -> vector<224x64xf32>
      %24 = arith.addf %18, %23 : vector<224x64xf32>
      %c0_17 = arith.constant 0 : index
      %c2 = arith.constant 2 : index
      %c0_18 = arith.constant 0 : index
      %25 = vector.load %arg2[%c0_17, %c2, %c0_18] : memref<1x272x3xbf16, #tpu.memory_space<vmem>>, vector<1x224x3xbf16>
      %26 = vector.shape_cast %25 : vector<1x224x3xbf16> to vector<224x3xbf16>
      %c2_19 = arith.constant 2 : index
      %c0_20 = arith.constant 0 : index
      %c0_21 = arith.constant 0 : index
      %27 = vector.load %arg3[%c2_19, %c0_20, %c0_21] : memref<9x3x64xbf16, #tpu.memory_space<vmem>>, vector<1x3x64xbf16>
      %28 = vector.shape_cast %27 : vector<1x3x64xbf16> to vector<3x64xbf16>
      %cst_22 = arith.constant dense<0.000000e+00> : vector<224x64xf32>
      %29 = tpu.matmul %26, %28, %cst_22 {dimension_numbers = #tpu.dot_dimension_numbers<[1], [0], [0], [1], [0, 0, 1, 1], [], []>} : vector<224x3xbf16>, vector<3x64xbf16>, vector<224x64xf32> -> vector<224x64xf32>
      %30 = arith.addf %24, %29 : vector<224x64xf32>
      %c0_23 = arith.constant 0 : index
      %c16 = arith.constant 16 : index
      %c0_24 = arith.constant 0 : index
      %31 = vector.load %arg2[%c0_23, %c16, %c0_24] : memref<1x272x3xbf16, #tpu.memory_space<vmem>>, vector<1x224x3xbf16>
      %32 = vector.shape_cast %31 : vector<1x224x3xbf16> to vector<224x3xbf16>
      %c3 = arith.constant 3 : index
      %c0_25 = arith.constant 0 : index
      %c0_26 = arith.constant 0 : index
      %33 = vector.load %arg3[%c3, %c0_25, %c0_26] : memref<9x3x64xbf16, #tpu.memory_space<vmem>>, vector<1x3x64xbf16>
      %34 = vector.shape_cast %33 : vector<1x3x64xbf16> to vector<3x64xbf16>
      %cst_27 = arith.constant dense<0.000000e+00> : vector<224x64xf32>
      %35 = tpu.matmul %32, %34, %cst_27 {dimension_numbers = #tpu.dot_dimension_numbers<[1], [0], [0], [1], [0, 0, 1, 1], [], []>} : vector<224x3xbf16>, vector<3x64xbf16>, vector<224x64xf32> -> vector<224x64xf32>
      %36 = arith.addf %30, %35 : vector<224x64xf32>
      %c0_28 = arith.constant 0 : index
      %c17 = arith.constant 17 : index
      %c0_29 = arith.constant 0 : index
      %37 = vector.load %arg2[%c0_28, %c17, %c0_29] : memref<1x272x3xbf16, #tpu.memory_space<vmem>>, vector<1x224x3xbf16>
      %38 = vector.shape_cast %37 : vector<1x224x3xbf16> to vector<224x3xbf16>
      %c4 = arith.constant 4 : index
      %c0_30 = arith.constant 0 : index
      %c0_31 = arith.constant 0 : index
      %39 = vector.load %arg3[%c4, %c0_30, %c0_31] : memref<9x3x64xbf16, #tpu.memory_space<vmem>>, vector<1x3x64xbf16>
      %40 = vector.shape_cast %39 : vector<1x3x64xbf16> to vector<3x64xbf16>
      %cst_32 = arith.constant dense<0.000000e+00> : vector<224x64xf32>
      %41 = tpu.matmul %38, %40, %cst_32 {dimension_numbers = #tpu.dot_dimension_numbers<[1], [0], [0], [1], [0, 0, 1, 1], [], []>} : vector<224x3xbf16>, vector<3x64xbf16>, vector<224x64xf32> -> vector<224x64xf32>
      %42 = arith.addf %36, %41 : vector<224x64xf32>
      %c0_33 = arith.constant 0 : index
      %c18 = arith.constant 18 : index
      %c0_34 = arith.constant 0 : index
      %43 = vector.load %arg2[%c0_33, %c18, %c0_34] : memref<1x272x3xbf16, #tpu.memory_space<vmem>>, vector<1x224x3xbf16>
      %44 = vector.shape_cast %43 : vector<1x224x3xbf16> to vector<224x3xbf16>
      %c5 = arith.constant 5 : index
      %c0_35 = arith.constant 0 : index
      %c0_36 = arith.constant 0 : index
      %45 = vector.load %arg3[%c5, %c0_35, %c0_36] : memref<9x3x64xbf16, #tpu.memory_space<vmem>>, vector<1x3x64xbf16>
      %46 = vector.shape_cast %45 : vector<1x3x64xbf16> to vector<3x64xbf16>
      %cst_37 = arith.constant dense<0.000000e+00> : vector<224x64xf32>
      %47 = tpu.matmul %44, %46, %cst_37 {dimension_numbers = #tpu.dot_dimension_numbers<[1], [0], [0], [1], [0, 0, 1, 1], [], []>} : vector<224x3xbf16>, vector<3x64xbf16>, vector<224x64xf32> -> vector<224x64xf32>
      %48 = arith.addf %42, %47 : vector<224x64xf32>
      %c0_38 = arith.constant 0 : index
      %c32 = arith.constant 32 : index
      %c0_39 = arith.constant 0 : index
      %49 = vector.load %arg2[%c0_38, %c32, %c0_39] : memref<1x272x3xbf16, #tpu.memory_space<vmem>>, vector<1x224x3xbf16>
      %50 = vector.shape_cast %49 : vector<1x224x3xbf16> to vector<224x3xbf16>
      %c6 = arith.constant 6 : index
      %c0_40 = arith.constant 0 : index
      %c0_41 = arith.constant 0 : index
      %51 = vector.load %arg3[%c6, %c0_40, %c0_41] : memref<9x3x64xbf16, #tpu.memory_space<vmem>>, vector<1x3x64xbf16>
      %52 = vector.shape_cast %51 : vector<1x3x64xbf16> to vector<3x64xbf16>
      %cst_42 = arith.constant dense<0.000000e+00> : vector<224x64xf32>
      %53 = tpu.matmul %50, %52, %cst_42 {dimension_numbers = #tpu.dot_dimension_numbers<[1], [0], [0], [1], [0, 0, 1, 1], [], []>} : vector<224x3xbf16>, vector<3x64xbf16>, vector<224x64xf32> -> vector<224x64xf32>
      %54 = arith.addf %48, %53 : vector<224x64xf32>
      %c0_43 = arith.constant 0 : index
      %c33 = arith.constant 33 : index
      %c0_44 = arith.constant 0 : index
      %55 = vector.load %arg2[%c0_43, %c33, %c0_44] : memref<1x272x3xbf16, #tpu.memory_space<vmem>>, vector<1x224x3xbf16>
      %56 = vector.shape_cast %55 : vector<1x224x3xbf16> to vector<224x3xbf16>
      %c7 = arith.constant 7 : index
      %c0_45 = arith.constant 0 : index
      %c0_46 = arith.constant 0 : index
      %57 = vector.load %arg3[%c7, %c0_45, %c0_46] : memref<9x3x64xbf16, #tpu.memory_space<vmem>>, vector<1x3x64xbf16>
      %58 = vector.shape_cast %57 : vector<1x3x64xbf16> to vector<3x64xbf16>
      %cst_47 = arith.constant dense<0.000000e+00> : vector<224x64xf32>
      %59 = tpu.matmul %56, %58, %cst_47 {dimension_numbers = #tpu.dot_dimension_numbers<[1], [0], [0], [1], [0, 0, 1, 1], [], []>} : vector<224x3xbf16>, vector<3x64xbf16>, vector<224x64xf32> -> vector<224x64xf32>
      %60 = arith.addf %54, %59 : vector<224x64xf32>
      %c0_48 = arith.constant 0 : index
      %c34 = arith.constant 34 : index
      %c0_49 = arith.constant 0 : index
      %61 = vector.load %arg2[%c0_48, %c34, %c0_49] : memref<1x272x3xbf16, #tpu.memory_space<vmem>>, vector<1x224x3xbf16>
      %62 = vector.shape_cast %61 : vector<1x224x3xbf16> to vector<224x3xbf16>
      %c8 = arith.constant 8 : index
      %c0_50 = arith.constant 0 : index
      %c0_51 = arith.constant 0 : index
      %63 = vector.load %arg3[%c8, %c0_50, %c0_51] : memref<9x3x64xbf16, #tpu.memory_space<vmem>>, vector<1x3x64xbf16>
      %64 = vector.shape_cast %63 : vector<1x3x64xbf16> to vector<3x64xbf16>
      %cst_52 = arith.constant dense<0.000000e+00> : vector<224x64xf32>
      %65 = tpu.matmul %62, %64, %cst_52 {dimension_numbers = #tpu.dot_dimension_numbers<[1], [0], [0], [1], [0, 0, 1, 1], [], []>} : vector<224x3xbf16>, vector<3x64xbf16>, vector<224x64xf32> -> vector<224x64xf32>
      %66 = arith.addf %60, %65 : vector<224x64xf32>
      %c0_53 = arith.constant 0 : index
      %c0_54 = arith.constant 0 : index
      %67 = vector.load %arg4[%c0_53, %c0_54] : memref<1x64xf32, #tpu.memory_space<vmem>>, vector<1x64xf32>
      %68 = vector.broadcast %67 : vector<1x64xf32> to vector<224x64xf32>
      %69 = arith.addf %66, %68 : vector<224x64xf32>
      %70 = arith.index_cast %arg1 : i32 to index
      %c0_55 = arith.constant 0 : index
      %c0_56 = arith.constant 0 : index
      %71 = vector.load %arg9[%70, %c0_55, %c0_56] : memref<2x224x64xf32, #tpu.memory_space<vmem>>, vector<1x224x64xf32>
      %72 = vector.shape_cast %71 : vector<1x224x64xf32> to vector<224x64xf32>
      %73 = vector.shape_cast %69 : vector<224x64xf32> to vector<1x224x64xf32>
      tpu.vector_store %arg9[%70, %c0_55, %c0_56], %73 {strides = array<i32>} : memref<2x224x64xf32, #tpu.memory_space<vmem>>, vector<1x224x64xf32>,
      %c0_57 = arith.constant 0 : index
      %c0_58 = arith.constant 0 : index
      %74 = vector.load %arg7[%c0_57, %c0_58] : memref<224x1xf32, #tpu.memory_space<vmem>>, vector<224x1xf32>
      %75 = vector.broadcast %74 : vector<224x1xf32> to vector<224x64xf32>
      %76 = arith.mulf %69, %75 : vector<224x64xf32>
      %c0_59 = arith.constant 0 : index
      %c0_60 = arith.constant 0 : index
      %77 = vector.load %arg10[%c0_59, %c0_60] : memref<1x64xf32, #tpu.memory_space<vmem>>, vector<1x64xf32>
      %cst_61 = arith.constant dense<0.000000e+00> : vector<64xf32>
      %78 = vector.multi_reduction <add>, %76, %cst_61 [0] : vector<224x64xf32> to vector<64xf32>
      %79 = vector.shape_cast %78 : vector<64xf32> to vector<1x64xf32>
      %80 = arith.addf %77, %79 : vector<1x64xf32>
      %c0_62 = arith.constant 0 : index
      %c0_63 = arith.constant 0 : index
      %81 = vector.load %arg10[%c0_62, %c0_63] : memref<1x64xf32, #tpu.memory_space<vmem>>, vector<1x64xf32>
      tpu.vector_store %arg10[%c0_62, %c0_63], %80 {strides = array<i32>} : memref<1x64xf32, #tpu.memory_space<vmem>>, vector<1x64xf32>,
    } else {
    }
    %c1_i32 = arith.constant 1 : i32
    %3 = arith.cmpi eq, %arg0, %c1_i32 : i32
    %4 = arith.extui %3 : i1 to i32
    %c0_i32_1 = arith.constant 0 : i32
    %5 = arith.cmpi ne, %4, %c0_i32_1 : i32
    scf.if %5 {
      %c0_i32_3 = arith.constant 0 : i32
      %9 = arith.cmpi eq, %arg1, %c0_i32_3 : i32
      %10 = arith.extui %9 : i1 to i32
      %c0_i32_4 = arith.constant 0 : i32
      %11 = arith.cmpi ne, %10, %c0_i32_4 : i32
      scf.if %11 {
        %cst_15 = arith.constant 0.000000e+00 : f32
        %29 = vector.broadcast %cst_15 : f32 to vector<1x64xf32>
        %c0_16 = arith.constant 0 : index
        %c0_17 = arith.constant 0 : index
        %30 = vector.load %arg11[%c0_16, %c0_17] : memref<1x64xf32, #tpu.memory_space<vmem>>, vector<1x64xf32>
        tpu.vector_store %arg11[%c0_16, %c0_17], %29 {strides = array<i32>} : memref<1x64xf32, #tpu.memory_space<vmem>>, vector<1x64xf32>,
      } else {
      }
      %c0 = arith.constant 0 : index
      %c0_5 = arith.constant 0 : index
      %12 = vector.load %arg10[%c0, %c0_5] : memref<1x64xf32, #tpu.memory_space<vmem>>, vector<1x64xf32>
      %cst = arith.constant 0.00255102036 : f32
      %13 = vector.broadcast %cst : f32 to vector<1x64xf32>
      %14 = arith.mulf %12, %13 : vector<1x64xf32>
      %15 = arith.index_cast %arg1 : i32 to index
      %c0_6 = arith.constant 0 : index
      %c0_7 = arith.constant 0 : index
      %16 = vector.load %arg9[%15, %c0_6, %c0_7] : memref<2x224x64xf32, #tpu.memory_space<vmem>>, vector<1x224x64xf32>
      %17 = vector.shape_cast %16 : vector<1x224x64xf32> to vector<224x64xf32>
      %18 = vector.broadcast %14 : vector<1x64xf32> to vector<224x64xf32>
      %19 = arith.subf %17, %18 : vector<224x64xf32>
      %c0_8 = arith.constant 0 : index
      %c0_9 = arith.constant 0 : index
      %20 = vector.load %arg7[%c0_8, %c0_9] : memref<224x1xf32, #tpu.memory_space<vmem>>, vector<224x1xf32>
      %21 = vector.broadcast %20 : vector<224x1xf32> to vector<224x64xf32>
      %22 = arith.mulf %19, %21 : vector<224x64xf32>
      %c0_10 = arith.constant 0 : index
      %c0_11 = arith.constant 0 : index
      %23 = vector.load %arg11[%c0_10, %c0_11] : memref<1x64xf32, #tpu.memory_space<vmem>>, vector<1x64xf32>
      %24 = arith.mulf %22, %22 : vector<224x64xf32>
      %cst_12 = arith.constant dense<0.000000e+00> : vector<64xf32>
      %25 = vector.multi_reduction <add>, %24, %cst_12 [0] : vector<224x64xf32> to vector<64xf32>
      %26 = vector.shape_cast %25 : vector<64xf32> to vector<1x64xf32>
      %27 = arith.addf %23, %26 : vector<1x64xf32>
      %c0_13 = arith.constant 0 : index
      %c0_14 = arith.constant 0 : index
      %28 = vector.load %arg11[%c0_13, %c0_14] : memref<1x64xf32, #tpu.memory_space<vmem>>, vector<1x64xf32>
      tpu.vector_store %arg11[%c0_13, %c0_14], %27 {strides = array<i32>} : memref<1x64xf32, #tpu.memory_space<vmem>>, vector<1x64xf32>,
    } else {
    }
    %c2_i32 = arith.constant 2 : i32
    %6 = arith.cmpi eq, %arg0, %c2_i32 : i32
    %7 = arith.extui %6 : i1 to i32
    %c0_i32_2 = arith.constant 0 : i32
    %8 = arith.cmpi ne, %7, %c0_i32_2 : i32
    scf.if %8 {
      %c0 = arith.constant 0 : index
      %c0_3 = arith.constant 0 : index
      %9 = vector.load %arg10[%c0, %c0_3] : memref<1x64xf32, #tpu.memory_space<vmem>>, vector<1x64xf32>
      %cst = arith.constant 0.00255102036 : f32
      %10 = vector.broadcast %cst : f32 to vector<1x64xf32>
      %11 = arith.mulf %9, %10 : vector<1x64xf32>
      %c0_4 = arith.constant 0 : index
      %c0_5 = arith.constant 0 : index
      %12 = vector.load %arg11[%c0_4, %c0_5] : memref<1x64xf32, #tpu.memory_space<vmem>>, vector<1x64xf32>
      %cst_6 = arith.constant 0.00255102036 : f32
      %13 = vector.broadcast %cst_6 : f32 to vector<1x64xf32>
      %14 = arith.mulf %12, %13 : vector<1x64xf32>
      %cst_7 = arith.constant 9.99999974E-6 : f32
      %15 = vector.broadcast %cst_7 : f32 to vector<1x64xf32>
      %16 = arith.addf %14, %15 : vector<1x64xf32>
      %17 = math.rsqrt %16 : vector<1x64xf32>
      %c0_8 = arith.constant 0 : index
      %c0_9 = arith.constant 0 : index
      %18 = vector.load %arg5[%c0_8, %c0_9] : memref<1x64xf32, #tpu.memory_space<vmem>>, vector<1x64xf32>
      %19 = arith.mulf %18, %17 : vector<1x64xf32>
      %c0_10 = arith.constant 0 : index
      %c0_11 = arith.constant 0 : index
      %20 = vector.load %arg6[%c0_10, %c0_11] : memref<1x64xf32, #tpu.memory_space<vmem>>, vector<1x64xf32>
      %21 = arith.mulf %11, %19 : vector<1x64xf32>
      %22 = arith.subf %20, %21 : vector<1x64xf32>
      %23 = arith.index_cast %arg1 : i32 to index
      %c0_12 = arith.constant 0 : index
      %c0_13 = arith.constant 0 : index
      %24 = vector.load %arg9[%23, %c0_12, %c0_13] : memref<2x224x64xf32, #tpu.memory_space<vmem>>, vector<1x224x64xf32>
      %25 = vector.shape_cast %24 : vector<1x224x64xf32> to vector<224x64xf32>
      %26 = vector.broadcast %19 : vector<1x64xf32> to vector<224x64xf32>
      %27 = arith.mulf %25, %26 : vector<224x64xf32>
      %28 = vector.broadcast %22 : vector<1x64xf32> to vector<224x64xf32>
      %29 = arith.addf %27, %28 : vector<224x64xf32>
      %cst_14 = arith.constant 0.000000e+00 : f32
      %30 = vector.broadcast %cst_14 : f32 to vector<224x64xf32>
      %31 = arith.maximumf %29, %30 : vector<224x64xf32>
      %32 = vector.extract_strided_slice %31 {offsets = [0, 0], sizes = [14, 64], strides = [1, 1]} : vector<224x64xf32> to vector<14x64xf32>
      %33 = arith.truncf %32 : vector<14x64xf32> to vector<14x64xbf16>
      %c0_15 = arith.constant 0 : index
      %c0_16 = arith.constant 0 : index
      %c0_17 = arith.constant 0 : index
      %c0_18 = arith.constant 0 : index
      %34 = vector.load %arg8[%c0_15, %c0_16, %c0_17, %c0_18] : memref<1x14x14x64xbf16, #tpu.memory_space<vmem>>, vector<1x1x14x64xbf16>
      %35 = vector.shape_cast %34 : vector<1x1x14x64xbf16> to vector<14x64xbf16>
      %36 = vector.shape_cast %33 : vector<14x64xbf16> to vector<1x1x14x64xbf16>
      tpu.vector_store %arg8[%c0_15, %c0_16, %c0_17, %c0_18], %36 {strides = array<i32>} : memref<1x14x14x64xbf16, #tpu.memory_space<vmem>>, vector<1x1x14x64xbf16>,
      %37 = vector.extract_strided_slice %31 {offsets = [16, 0], sizes = [14, 64], strides = [1, 1]} : vector<224x64xf32> to vector<14x64xf32>
      %38 = arith.truncf %37 : vector<14x64xf32> to vector<14x64xbf16>
      %c0_19 = arith.constant 0 : index
      %c1 = arith.constant 1 : index
      %c0_20 = arith.constant 0 : index
      %c0_21 = arith.constant 0 : index
      %39 = vector.load %arg8[%c0_19, %c1, %c0_20, %c0_21] : memref<1x14x14x64xbf16, #tpu.memory_space<vmem>>, vector<1x1x14x64xbf16>
      %40 = vector.shape_cast %39 : vector<1x1x14x64xbf16> to vector<14x64xbf16>
      %41 = vector.shape_cast %38 : vector<14x64xbf16> to vector<1x1x14x64xbf16>
      tpu.vector_store %arg8[%c0_19, %c1, %c0_20, %c0_21], %41 {strides = array<i32>} : memref<1x14x14x64xbf16, #tpu.memory_space<vmem>>, vector<1x1x14x64xbf16>,
      %42 = vector.extract_strided_slice %31 {offsets = [32, 0], sizes = [14, 64], strides = [1, 1]} : vector<224x64xf32> to vector<14x64xf32>
      %43 = arith.truncf %42 : vector<14x64xf32> to vector<14x64xbf16>
      %c0_22 = arith.constant 0 : index
      %c2 = arith.constant 2 : index
      %c0_23 = arith.constant 0 : index
      %c0_24 = arith.constant 0 : index
      %44 = vector.load %arg8[%c0_22, %c2, %c0_23, %c0_24] : memref<1x14x14x64xbf16, #tpu.memory_space<vmem>>, vector<1x1x14x64xbf16>
      %45 = vector.shape_cast %44 : vector<1x1x14x64xbf16> to vector<14x64xbf16>
      %46 = vector.shape_cast %43 : vector<14x64xbf16> to vector<1x1x14x64xbf16>
      tpu.vector_store %arg8[%c0_22, %c2, %c0_23, %c0_24], %46 {strides = array<i32>} : memref<1x14x14x64xbf16, #tpu.memory_space<vmem>>, vector<1x1x14x64xbf16>,
      %47 = vector.extract_strided_slice %31 {offsets = [48, 0], sizes = [14, 64], strides = [1, 1]} : vector<224x64xf32> to vector<14x64xf32>
      %48 = arith.truncf %47 : vector<14x64xf32> to vector<14x64xbf16>
      %c0_25 = arith.constant 0 : index
      %c3 = arith.constant 3 : index
      %c0_26 = arith.constant 0 : index
      %c0_27 = arith.constant 0 : index
      %49 = vector.load %arg8[%c0_25, %c3, %c0_26, %c0_27] : memref<1x14x14x64xbf16, #tpu.memory_space<vmem>>, vector<1x1x14x64xbf16>
      %50 = vector.shape_cast %49 : vector<1x1x14x64xbf16> to vector<14x64xbf16>
      %51 = vector.shape_cast %48 : vector<14x64xbf16> to vector<1x1x14x64xbf16>
      tpu.vector_store %arg8[%c0_25, %c3, %c0_26, %c0_27], %51 {strides = array<i32>} : memref<1x14x14x64xbf16, #tpu.memory_space<vmem>>, vector<1x1x14x64xbf16>,
      %52 = vector.extract_strided_slice %31 {offsets = [64, 0], sizes = [14, 64], strides = [1, 1]} : vector<224x64xf32> to vector<14x64xf32>
      %53 = arith.truncf %52 : vector<14x64xf32> to vector<14x64xbf16>
      %c0_28 = arith.constant 0 : index
      %c4 = arith.constant 4 : index
      %c0_29 = arith.constant 0 : index
      %c0_30 = arith.constant 0 : index
      %54 = vector.load %arg8[%c0_28, %c4, %c0_29, %c0_30] : memref<1x14x14x64xbf16, #tpu.memory_space<vmem>>, vector<1x1x14x64xbf16>
      %55 = vector.shape_cast %54 : vector<1x1x14x64xbf16> to vector<14x64xbf16>
      %56 = vector.shape_cast %53 : vector<14x64xbf16> to vector<1x1x14x64xbf16>
      tpu.vector_store %arg8[%c0_28, %c4, %c0_29, %c0_30], %56 {strides = array<i32>} : memref<1x14x14x64xbf16, #tpu.memory_space<vmem>>, vector<1x1x14x64xbf16>,
      %57 = vector.extract_strided_slice %31 {offsets = [80, 0], sizes = [14, 64], strides = [1, 1]} : vector<224x64xf32> to vector<14x64xf32>
      %58 = arith.truncf %57 : vector<14x64xf32> to vector<14x64xbf16>
      %c0_31 = arith.constant 0 : index
      %c5 = arith.constant 5 : index
      %c0_32 = arith.constant 0 : index
      %c0_33 = arith.constant 0 : index
      %59 = vector.load %arg8[%c0_31, %c5, %c0_32, %c0_33] : memref<1x14x14x64xbf16, #tpu.memory_space<vmem>>, vector<1x1x14x64xbf16>
      %60 = vector.shape_cast %59 : vector<1x1x14x64xbf16> to vector<14x64xbf16>
      %61 = vector.shape_cast %58 : vector<14x64xbf16> to vector<1x1x14x64xbf16>
      tpu.vector_store %arg8[%c0_31, %c5, %c0_32, %c0_33], %61 {strides = array<i32>} : memref<1x14x14x64xbf16, #tpu.memory_space<vmem>>, vector<1x1x14x64xbf16>,
      %62 = vector.extract_strided_slice %31 {offsets = [96, 0], sizes = [14, 64], strides = [1, 1]} : vector<224x64xf32> to vector<14x64xf32>
      %63 = arith.truncf %62 : vector<14x64xf32> to vector<14x64xbf16>
      %c0_34 = arith.constant 0 : index
      %c6 = arith.constant 6 : index
      %c0_35 = arith.constant 0 : index
      %c0_36 = arith.constant 0 : index
      %64 = vector.load %arg8[%c0_34, %c6, %c0_35, %c0_36] : memref<1x14x14x64xbf16, #tpu.memory_space<vmem>>, vector<1x1x14x64xbf16>
      %65 = vector.shape_cast %64 : vector<1x1x14x64xbf16> to vector<14x64xbf16>
      %66 = vector.shape_cast %63 : vector<14x64xbf16> to vector<1x1x14x64xbf16>
      tpu.vector_store %arg8[%c0_34, %c6, %c0_35, %c0_36], %66 {strides = array<i32>} : memref<1x14x14x64xbf16, #tpu.memory_space<vmem>>, vector<1x1x14x64xbf16>,
      %67 = vector.extract_strided_slice %31 {offsets = [112, 0], sizes = [14, 64], strides = [1, 1]} : vector<224x64xf32> to vector<14x64xf32>
      %68 = arith.truncf %67 : vector<14x64xf32> to vector<14x64xbf16>
      %c0_37 = arith.constant 0 : index
      %c7 = arith.constant 7 : index
      %c0_38 = arith.constant 0 : index
      %c0_39 = arith.constant 0 : index
      %69 = vector.load %arg8[%c0_37, %c7, %c0_38, %c0_39] : memref<1x14x14x64xbf16, #tpu.memory_space<vmem>>, vector<1x1x14x64xbf16>
      %70 = vector.shape_cast %69 : vector<1x1x14x64xbf16> to vector<14x64xbf16>
      %71 = vector.shape_cast %68 : vector<14x64xbf16> to vector<1x1x14x64xbf16>
      tpu.vector_store %arg8[%c0_37, %c7, %c0_38, %c0_39], %71 {strides = array<i32>} : memref<1x14x14x64xbf16, #tpu.memory_space<vmem>>, vector<1x1x14x64xbf16>,
      %72 = vector.extract_strided_slice %31 {offsets = [128, 0], sizes = [14, 64], strides = [1, 1]} : vector<224x64xf32> to vector<14x64xf32>
      %73 = arith.truncf %72 : vector<14x64xf32> to vector<14x64xbf16>
      %c0_40 = arith.constant 0 : index
      %c8 = arith.constant 8 : index
      %c0_41 = arith.constant 0 : index
      %c0_42 = arith.constant 0 : index
      %74 = vector.load %arg8[%c0_40, %c8, %c0_41, %c0_42] : memref<1x14x14x64xbf16, #tpu.memory_space<vmem>>, vector<1x1x14x64xbf16>
      %75 = vector.shape_cast %74 : vector<1x1x14x64xbf16> to vector<14x64xbf16>
      %76 = vector.shape_cast %73 : vector<14x64xbf16> to vector<1x1x14x64xbf16>
      tpu.vector_store %arg8[%c0_40, %c8, %c0_41, %c0_42], %76 {strides = array<i32>} : memref<1x14x14x64xbf16, #tpu.memory_space<vmem>>, vector<1x1x14x64xbf16>,
      %77 = vector.extract_strided_slice %31 {offsets = [144, 0], sizes = [14, 64], strides = [1, 1]} : vector<224x64xf32> to vector<14x64xf32>
      %78 = arith.truncf %77 : vector<14x64xf32> to vector<14x64xbf16>
      %c0_43 = arith.constant 0 : index
      %c9 = arith.constant 9 : index
      %c0_44 = arith.constant 0 : index
      %c0_45 = arith.constant 0 : index
      %79 = vector.load %arg8[%c0_43, %c9, %c0_44, %c0_45] : memref<1x14x14x64xbf16, #tpu.memory_space<vmem>>, vector<1x1x14x64xbf16>
      %80 = vector.shape_cast %79 : vector<1x1x14x64xbf16> to vector<14x64xbf16>
      %81 = vector.shape_cast %78 : vector<14x64xbf16> to vector<1x1x14x64xbf16>
      tpu.vector_store %arg8[%c0_43, %c9, %c0_44, %c0_45], %81 {strides = array<i32>} : memref<1x14x14x64xbf16, #tpu.memory_space<vmem>>, vector<1x1x14x64xbf16>,
      %82 = vector.extract_strided_slice %31 {offsets = [160, 0], sizes = [14, 64], strides = [1, 1]} : vector<224x64xf32> to vector<14x64xf32>
      %83 = arith.truncf %82 : vector<14x64xf32> to vector<14x64xbf16>
      %c0_46 = arith.constant 0 : index
      %c10 = arith.constant 10 : index
      %c0_47 = arith.constant 0 : index
      %c0_48 = arith.constant 0 : index
      %84 = vector.load %arg8[%c0_46, %c10, %c0_47, %c0_48] : memref<1x14x14x64xbf16, #tpu.memory_space<vmem>>, vector<1x1x14x64xbf16>
      %85 = vector.shape_cast %84 : vector<1x1x14x64xbf16> to vector<14x64xbf16>
      %86 = vector.shape_cast %83 : vector<14x64xbf16> to vector<1x1x14x64xbf16>
      tpu.vector_store %arg8[%c0_46, %c10, %c0_47, %c0_48], %86 {strides = array<i32>} : memref<1x14x14x64xbf16, #tpu.memory_space<vmem>>, vector<1x1x14x64xbf16>,
      %87 = vector.extract_strided_slice %31 {offsets = [176, 0], sizes = [14, 64], strides = [1, 1]} : vector<224x64xf32> to vector<14x64xf32>
      %88 = arith.truncf %87 : vector<14x64xf32> to vector<14x64xbf16>
      %c0_49 = arith.constant 0 : index
      %c11 = arith.constant 11 : index
      %c0_50 = arith.constant 0 : index
      %c0_51 = arith.constant 0 : index
      %89 = vector.load %arg8[%c0_49, %c11, %c0_50, %c0_51] : memref<1x14x14x64xbf16, #tpu.memory_space<vmem>>, vector<1x1x14x64xbf16>
      %90 = vector.shape_cast %89 : vector<1x1x14x64xbf16> to vector<14x64xbf16>
      %91 = vector.shape_cast %88 : vector<14x64xbf16> to vector<1x1x14x64xbf16>
      tpu.vector_store %arg8[%c0_49, %c11, %c0_50, %c0_51], %91 {strides = array<i32>} : memref<1x14x14x64xbf16, #tpu.memory_space<vmem>>, vector<1x1x14x64xbf16>,
      %92 = vector.extract_strided_slice %31 {offsets = [192, 0], sizes = [14, 64], strides = [1, 1]} : vector<224x64xf32> to vector<14x64xf32>
      %93 = arith.truncf %92 : vector<14x64xf32> to vector<14x64xbf16>
      %c0_52 = arith.constant 0 : index
      %c12 = arith.constant 12 : index
      %c0_53 = arith.constant 0 : index
      %c0_54 = arith.constant 0 : index
      %94 = vector.load %arg8[%c0_52, %c12, %c0_53, %c0_54] : memref<1x14x14x64xbf16, #tpu.memory_space<vmem>>, vector<1x1x14x64xbf16>
      %95 = vector.shape_cast %94 : vector<1x1x14x64xbf16> to vector<14x64xbf16>
      %96 = vector.shape_cast %93 : vector<14x64xbf16> to vector<1x1x14x64xbf16>
      tpu.vector_store %arg8[%c0_52, %c12, %c0_53, %c0_54], %96 {strides = array<i32>} : memref<1x14x14x64xbf16, #tpu.memory_space<vmem>>, vector<1x1x14x64xbf16>,
      %97 = vector.extract_strided_slice %31 {offsets = [208, 0], sizes = [14, 64], strides = [1, 1]} : vector<224x64xf32> to vector<14x64xf32>
      %98 = arith.truncf %97 : vector<14x64xf32> to vector<14x64xbf16>
      %c0_55 = arith.constant 0 : index
      %c13 = arith.constant 13 : index
      %c0_56 = arith.constant 0 : index
      %c0_57 = arith.constant 0 : index
      %99 = vector.load %arg8[%c0_55, %c13, %c0_56, %c0_57] : memref<1x14x14x64xbf16, #tpu.memory_space<vmem>>, vector<1x1x14x64xbf16>
      %100 = vector.shape_cast %99 : vector<1x1x14x64xbf16> to vector<14x64xbf16>
      %101 = vector.shape_cast %98 : vector<14x64xbf16> to vector<1x1x14x64xbf16>
      tpu.vector_store %arg8[%c0_55, %c13, %c0_56, %c0_57], %101 {strides = array<i32>} : memref<1x14x14x64xbf16, #tpu.memory_space<vmem>>, vector<1x1x14x64xbf16>,
    } else {
    }
    return
  }
  func.func @transform_0(%arg0: i32, %arg1: i32) -> (i32, i32, i32) {
    %c0_i32 = arith.constant 0 : i32
    %0 = arith.cmpi eq, %arg0, %c0_i32 : i32
    %c1_i32 = arith.constant 1 : i32
    %1 = arith.select %0, %arg1, %c1_i32 : i32
    %c0_i32_0 = arith.constant 0 : i32
    %c0_i32_1 = arith.constant 0 : i32
    %c0_i32_2 = arith.constant 0 : i32
    return %1, %c0_i32_0, %c0_i32_1 : i32, i32, i32
  }
  func.func @transform_1(%arg0: i32, %arg1: i32) -> (i32, i32, i32) {
    %c0_i32 = arith.constant 0 : i32
    %c0_i32_0 = arith.constant 0 : i32
    %c0_i32_1 = arith.constant 0 : i32
    %c0_i32_2 = arith.constant 0 : i32
    return %c0_i32, %c0_i32_0, %c0_i32_1 : i32, i32, i32
  }
  func.func @transform_2(%arg0: i32, %arg1: i32) -> (i32, i32) {
    %c0_i32 = arith.constant 0 : i32
    %c0_i32_0 = arith.constant 0 : i32
    %c0_i32_1 = arith.constant 0 : i32
    return %c0_i32, %c0_i32_0 : i32, i32
  }
  func.func @transform_3(%arg0: i32, %arg1: i32) -> (i32, i32) {
    %c0_i32 = arith.constant 0 : i32
    %c0_i32_0 = arith.constant 0 : i32
    %c0_i32_1 = arith.constant 0 : i32
    return %c0_i32, %c0_i32_0 : i32, i32
  }
  func.func @transform_4(%arg0: i32, %arg1: i32) -> (i32, i32) {
    %c0_i32 = arith.constant 0 : i32
    %c0_i32_0 = arith.constant 0 : i32
    %c0_i32_1 = arith.constant 0 : i32
    return %c0_i32, %c0_i32_0 : i32, i32
  }
  func.func @transform_5(%arg0: i32, %arg1: i32) -> (i32, i32) {
    %c0_i32 = arith.constant 0 : i32
    %c0_i32_0 = arith.constant 0 : i32
    %c0_i32_1 = arith.constant 0 : i32
    return %c0_i32, %c0_i32_0 : i32, i32
  }
  func.func @transform_6(%arg0: i32, %arg1: i32) -> (i32, i32, i32, i32) {
    %c2_i32 = arith.constant 2 : i32
    %0 = arith.cmpi eq, %arg0, %c2_i32 : i32
    %c0_i32 = arith.constant 0 : i32
    %1 = arith.select %0, %arg1, %c0_i32 : i32
    %c0_i32_0 = arith.constant 0 : i32
    %c0_i32_1 = arith.constant 0 : i32
    %c0_i32_2 = arith.constant 0 : i32
    %c0_i32_3 = arith.constant 0 : i32
    return %1, %c0_i32_0, %c0_i32_1, %c0_i32_2 : i32, i32, i32, i32
  }
}

module attributes {stable_mosaic.version = 11 : i64} {
  func.func @_conv_bn_relu_kernel(%arg0: i32, %arg1: i32, %arg2: memref<1x56x64xbf16, #tpu.memory_space<vmem>>, %arg3: memref<9x64x64xbf16, #tpu.memory_space<vmem>>, %arg4: memref<1x64xf32, #tpu.memory_space<vmem>>, %arg5: memref<1x64xf32, #tpu.memory_space<vmem>>, %arg6: memref<1x64xf32, #tpu.memory_space<vmem>>, %arg7: memref<35x1xf32, #tpu.memory_space<vmem>>, %arg8: memref<1x5x5x64xbf16, #tpu.memory_space<vmem>>, %arg9: memref<2x35x64xf32, #tpu.memory_space<vmem>>, %arg10: memref<1x64xf32, #tpu.memory_space<vmem>>, %arg11: memref<1x64xf32, #tpu.memory_space<vmem>>) attributes {dimension_semantics = [#tpu.dimension_semantics<arbitrary>, #tpu.dimension_semantics<arbitrary>], iteration_bounds = array<i64: 3, 2>, scalar_prefetch = 0 : i64, scratch_operands = 3 : i64, tpu.core_type = #tpu.core_type<tc>, window_params = [{transform_indices = @transform_0, window_bounds = array<i64: 1, 56, 64>}, {pipeline_mode = #tpu.pipeline_mode<synchronous>, transform_indices = @transform_1, window_bounds = array<i64: 9, 64, 64>}, {pipeline_mode = #tpu.pipeline_mode<synchronous>, transform_indices = @transform_2, window_bounds = array<i64: 1, 64>}, {pipeline_mode = #tpu.pipeline_mode<synchronous>, transform_indices = @transform_3, window_bounds = array<i64: 1, 64>}, {pipeline_mode = #tpu.pipeline_mode<synchronous>, transform_indices = @transform_4, window_bounds = array<i64: 1, 64>}, {pipeline_mode = #tpu.pipeline_mode<synchronous>, transform_indices = @transform_5, window_bounds = array<i64: 35, 1>}, {transform_indices = @transform_6, window_bounds = array<i64: 1, 5, 5, 64>}]} {
    %c0_i32 = arith.constant 0 : i32
    %0 = arith.cmpi eq, %arg0, %c0_i32 : i32
    %1 = arith.extui %0 : i1 to i32
    %c0_i32_0 = arith.constant 0 : i32
    %2 = arith.cmpi ne, %1, %c0_i32_0 : i32
    scf.if %2 {
      %c0_i32_3 = arith.constant 0 : i32
      %9 = arith.cmpi eq, %arg1, %c0_i32_3 : i32
      %10 = arith.extui %9 : i1 to i32
      %c0_i32_4 = arith.constant 0 : i32
      %11 = arith.cmpi ne, %10, %c0_i32_4 : i32
      scf.if %11 {
        %cst_66 = arith.constant 0.000000e+00 : f32
        %82 = vector.broadcast %cst_66 : f32 to vector<1x64xf32>
        %c0_67 = arith.constant 0 : index
        %c0_68 = arith.constant 0 : index
        %83 = vector.load %arg10[%c0_67, %c0_68] : memref<1x64xf32, #tpu.memory_space<vmem>>, vector<1x64xf32>
        tpu.vector_store %arg10[%c0_67, %c0_68], %82 {strides = array<i32>} : memref<1x64xf32, #tpu.memory_space<vmem>>, vector<1x64xf32>,
      } else {
      }
      %cst = arith.constant 0.000000e+00 : f32
      %12 = vector.broadcast %cst : f32 to vector<35x64xf32>
      %c0 = arith.constant 0 : index
      %c0_5 = arith.constant 0 : index
      %c0_6 = arith.constant 0 : index
      %13 = vector.load %arg2[%c0, %c0_5, %c0_6] : memref<1x56x64xbf16, #tpu.memory_space<vmem>>, vector<1x35x64xbf16>
      %14 = vector.shape_cast %13 : vector<1x35x64xbf16> to vector<35x64xbf16>
      %c0_7 = arith.constant 0 : index
      %c0_8 = arith.constant 0 : index
      %c0_9 = arith.constant 0 : index
      %15 = vector.load %arg3[%c0_7, %c0_8, %c0_9] : memref<9x64x64xbf16, #tpu.memory_space<vmem>>, vector<1x64x64xbf16>
      %16 = vector.shape_cast %15 : vector<1x64x64xbf16> to vector<64x64xbf16>
      %cst_10 = arith.constant dense<0.000000e+00> : vector<35x64xf32>
      %17 = tpu.matmul %14, %16, %cst_10 {dimension_numbers = #tpu.dot_dimension_numbers<[1], [0], [0], [1], [0, 0, 1, 1], [], []>} : vector<35x64xbf16>, vector<64x64xbf16>, vector<35x64xf32> -> vector<35x64xf32>
      %18 = arith.addf %12, %17 : vector<35x64xf32>
      %c0_11 = arith.constant 0 : index
      %c1 = arith.constant 1 : index
      %c0_12 = arith.constant 0 : index
      %19 = vector.load %arg2[%c0_11, %c1, %c0_12] : memref<1x56x64xbf16, #tpu.memory_space<vmem>>, vector<1x35x64xbf16>
      %20 = vector.shape_cast %19 : vector<1x35x64xbf16> to vector<35x64xbf16>
      %c1_13 = arith.constant 1 : index
      %c0_14 = arith.constant 0 : index
      %c0_15 = arith.constant 0 : index
      %21 = vector.load %arg3[%c1_13, %c0_14, %c0_15] : memref<9x64x64xbf16, #tpu.memory_space<vmem>>, vector<1x64x64xbf16>
      %22 = vector.shape_cast %21 : vector<1x64x64xbf16> to vector<64x64xbf16>
      %cst_16 = arith.constant dense<0.000000e+00> : vector<35x64xf32>
      %23 = tpu.matmul %20, %22, %cst_16 {dimension_numbers = #tpu.dot_dimension_numbers<[1], [0], [0], [1], [0, 0, 1, 1], [], []>} : vector<35x64xbf16>, vector<64x64xbf16>, vector<35x64xf32> -> vector<35x64xf32>
      %24 = arith.addf %18, %23 : vector<35x64xf32>
      %c0_17 = arith.constant 0 : index
      %c2 = arith.constant 2 : index
      %c0_18 = arith.constant 0 : index
      %25 = vector.load %arg2[%c0_17, %c2, %c0_18] : memref<1x56x64xbf16, #tpu.memory_space<vmem>>, vector<1x35x64xbf16>
      %26 = vector.shape_cast %25 : vector<1x35x64xbf16> to vector<35x64xbf16>
      %c2_19 = arith.constant 2 : index
      %c0_20 = arith.constant 0 : index
      %c0_21 = arith.constant 0 : index
      %27 = vector.load %arg3[%c2_19, %c0_20, %c0_21] : memref<9x64x64xbf16, #tpu.memory_space<vmem>>, vector<1x64x64xbf16>
      %28 = vector.shape_cast %27 : vector<1x64x64xbf16> to vector<64x64xbf16>
      %cst_22 = arith.constant dense<0.000000e+00> : vector<35x64xf32>
      %29 = tpu.matmul %26, %28, %cst_22 {dimension_numbers = #tpu.dot_dimension_numbers<[1], [0], [0], [1], [0, 0, 1, 1], [], []>} : vector<35x64xbf16>, vector<64x64xbf16>, vector<35x64xf32> -> vector<35x64xf32>
      %30 = arith.addf %24, %29 : vector<35x64xf32>
      %c0_23 = arith.constant 0 : index
      %c7 = arith.constant 7 : index
      %c0_24 = arith.constant 0 : index
      %31 = vector.load %arg2[%c0_23, %c7, %c0_24] : memref<1x56x64xbf16, #tpu.memory_space<vmem>>, vector<1x35x64xbf16>
      %32 = vector.shape_cast %31 : vector<1x35x64xbf16> to vector<35x64xbf16>
      %c3 = arith.constant 3 : index
      %c0_25 = arith.constant 0 : index
      %c0_26 = arith.constant 0 : index
      %33 = vector.load %arg3[%c3, %c0_25, %c0_26] : memref<9x64x64xbf16, #tpu.memory_space<vmem>>, vector<1x64x64xbf16>
      %34 = vector.shape_cast %33 : vector<1x64x64xbf16> to vector<64x64xbf16>
      %cst_27 = arith.constant dense<0.000000e+00> : vector<35x64xf32>
      %35 = tpu.matmul %32, %34, %cst_27 {dimension_numbers = #tpu.dot_dimension_numbers<[1], [0], [0], [1], [0, 0, 1, 1], [], []>} : vector<35x64xbf16>, vector<64x64xbf16>, vector<35x64xf32> -> vector<35x64xf32>
      %36 = arith.addf %30, %35 : vector<35x64xf32>
      %c0_28 = arith.constant 0 : index
      %c8 = arith.constant 8 : index
      %c0_29 = arith.constant 0 : index
      %37 = vector.load %arg2[%c0_28, %c8, %c0_29] : memref<1x56x64xbf16, #tpu.memory_space<vmem>>, vector<1x35x64xbf16>
      %38 = vector.shape_cast %37 : vector<1x35x64xbf16> to vector<35x64xbf16>
      %c4 = arith.constant 4 : index
      %c0_30 = arith.constant 0 : index
      %c0_31 = arith.constant 0 : index
      %39 = vector.load %arg3[%c4, %c0_30, %c0_31] : memref<9x64x64xbf16, #tpu.memory_space<vmem>>, vector<1x64x64xbf16>
      %40 = vector.shape_cast %39 : vector<1x64x64xbf16> to vector<64x64xbf16>
      %cst_32 = arith.constant dense<0.000000e+00> : vector<35x64xf32>
      %41 = tpu.matmul %38, %40, %cst_32 {dimension_numbers = #tpu.dot_dimension_numbers<[1], [0], [0], [1], [0, 0, 1, 1], [], []>} : vector<35x64xbf16>, vector<64x64xbf16>, vector<35x64xf32> -> vector<35x64xf32>
      %42 = arith.addf %36, %41 : vector<35x64xf32>
      %c0_33 = arith.constant 0 : index
      %c9 = arith.constant 9 : index
      %c0_34 = arith.constant 0 : index
      %43 = vector.load %arg2[%c0_33, %c9, %c0_34] : memref<1x56x64xbf16, #tpu.memory_space<vmem>>, vector<1x35x64xbf16>
      %44 = vector.shape_cast %43 : vector<1x35x64xbf16> to vector<35x64xbf16>
      %c5 = arith.constant 5 : index
      %c0_35 = arith.constant 0 : index
      %c0_36 = arith.constant 0 : index
      %45 = vector.load %arg3[%c5, %c0_35, %c0_36] : memref<9x64x64xbf16, #tpu.memory_space<vmem>>, vector<1x64x64xbf16>
      %46 = vector.shape_cast %45 : vector<1x64x64xbf16> to vector<64x64xbf16>
      %cst_37 = arith.constant dense<0.000000e+00> : vector<35x64xf32>
      %47 = tpu.matmul %44, %46, %cst_37 {dimension_numbers = #tpu.dot_dimension_numbers<[1], [0], [0], [1], [0, 0, 1, 1], [], []>} : vector<35x64xbf16>, vector<64x64xbf16>, vector<35x64xf32> -> vector<35x64xf32>
      %48 = arith.addf %42, %47 : vector<35x64xf32>
      %c0_38 = arith.constant 0 : index
      %c14 = arith.constant 14 : index
      %c0_39 = arith.constant 0 : index
      %49 = vector.load %arg2[%c0_38, %c14, %c0_39] : memref<1x56x64xbf16, #tpu.memory_space<vmem>>, vector<1x35x64xbf16>
      %50 = vector.shape_cast %49 : vector<1x35x64xbf16> to vector<35x64xbf16>
      %c6 = arith.constant 6 : index
      %c0_40 = arith.constant 0 : index
      %c0_41 = arith.constant 0 : index
      %51 = vector.load %arg3[%c6, %c0_40, %c0_41] : memref<9x64x64xbf16, #tpu.memory_space<vmem>>, vector<1x64x64xbf16>
      %52 = vector.shape_cast %51 : vector<1x64x64xbf16> to vector<64x64xbf16>
      %cst_42 = arith.constant dense<0.000000e+00> : vector<35x64xf32>
      %53 = tpu.matmul %50, %52, %cst_42 {dimension_numbers = #tpu.dot_dimension_numbers<[1], [0], [0], [1], [0, 0, 1, 1], [], []>} : vector<35x64xbf16>, vector<64x64xbf16>, vector<35x64xf32> -> vector<35x64xf32>
      %54 = arith.addf %48, %53 : vector<35x64xf32>
      %c0_43 = arith.constant 0 : index
      %c15 = arith.constant 15 : index
      %c0_44 = arith.constant 0 : index
      %55 = vector.load %arg2[%c0_43, %c15, %c0_44] : memref<1x56x64xbf16, #tpu.memory_space<vmem>>, vector<1x35x64xbf16>
      %56 = vector.shape_cast %55 : vector<1x35x64xbf16> to vector<35x64xbf16>
      %c7_45 = arith.constant 7 : index
      %c0_46 = arith.constant 0 : index
      %c0_47 = arith.constant 0 : index
      %57 = vector.load %arg3[%c7_45, %c0_46, %c0_47] : memref<9x64x64xbf16, #tpu.memory_space<vmem>>, vector<1x64x64xbf16>
      %58 = vector.shape_cast %57 : vector<1x64x64xbf16> to vector<64x64xbf16>
      %cst_48 = arith.constant dense<0.000000e+00> : vector<35x64xf32>
      %59 = tpu.matmul %56, %58, %cst_48 {dimension_numbers = #tpu.dot_dimension_numbers<[1], [0], [0], [1], [0, 0, 1, 1], [], []>} : vector<35x64xbf16>, vector<64x64xbf16>, vector<35x64xf32> -> vector<35x64xf32>
      %60 = arith.addf %54, %59 : vector<35x64xf32>
      %c0_49 = arith.constant 0 : index
      %c16 = arith.constant 16 : index
      %c0_50 = arith.constant 0 : index
      %61 = vector.load %arg2[%c0_49, %c16, %c0_50] : memref<1x56x64xbf16, #tpu.memory_space<vmem>>, vector<1x35x64xbf16>
      %62 = vector.shape_cast %61 : vector<1x35x64xbf16> to vector<35x64xbf16>
      %c8_51 = arith.constant 8 : index
      %c0_52 = arith.constant 0 : index
      %c0_53 = arith.constant 0 : index
      %63 = vector.load %arg3[%c8_51, %c0_52, %c0_53] : memref<9x64x64xbf16, #tpu.memory_space<vmem>>, vector<1x64x64xbf16>
      %64 = vector.shape_cast %63 : vector<1x64x64xbf16> to vector<64x64xbf16>
      %cst_54 = arith.constant dense<0.000000e+00> : vector<35x64xf32>
      %65 = tpu.matmul %62, %64, %cst_54 {dimension_numbers = #tpu.dot_dimension_numbers<[1], [0], [0], [1], [0, 0, 1, 1], [], []>} : vector<35x64xbf16>, vector<64x64xbf16>, vector<35x64xf32> -> vector<35x64xf32>
      %66 = arith.addf %60, %65 : vector<35x64xf32>
      %c0_55 = arith.constant 0 : index
      %c0_56 = arith.constant 0 : index
      %67 = vector.load %arg4[%c0_55, %c0_56] : memref<1x64xf32, #tpu.memory_space<vmem>>, vector<1x64xf32>
      %68 = vector.broadcast %67 : vector<1x64xf32> to vector<35x64xf32>
      %69 = arith.addf %66, %68 : vector<35x64xf32>
      %70 = arith.index_cast %arg1 : i32 to index
      %c0_57 = arith.constant 0 : index
      %c0_58 = arith.constant 0 : index
      %71 = vector.load %arg9[%70, %c0_57, %c0_58] : memref<2x35x64xf32, #tpu.memory_space<vmem>>, vector<1x35x64xf32>
      %72 = vector.shape_cast %71 : vector<1x35x64xf32> to vector<35x64xf32>
      %73 = vector.shape_cast %69 : vector<35x64xf32> to vector<1x35x64xf32>
      tpu.vector_store %arg9[%70, %c0_57, %c0_58], %73 {strides = array<i32>} : memref<2x35x64xf32, #tpu.memory_space<vmem>>, vector<1x35x64xf32>,
      %c0_59 = arith.constant 0 : index
      %c0_60 = arith.constant 0 : index
      %74 = vector.load %arg7[%c0_59, %c0_60] : memref<35x1xf32, #tpu.memory_space<vmem>>, vector<35x1xf32>
      %75 = vector.broadcast %74 : vector<35x1xf32> to vector<35x64xf32>
      %76 = arith.mulf %69, %75 : vector<35x64xf32>
      %c0_61 = arith.constant 0 : index
      %c0_62 = arith.constant 0 : index
      %77 = vector.load %arg10[%c0_61, %c0_62] : memref<1x64xf32, #tpu.memory_space<vmem>>, vector<1x64xf32>
      %cst_63 = arith.constant dense<0.000000e+00> : vector<64xf32>
      %78 = vector.multi_reduction <add>, %76, %cst_63 [0] : vector<35x64xf32> to vector<64xf32>
      %79 = vector.shape_cast %78 : vector<64xf32> to vector<1x64xf32>
      %80 = arith.addf %77, %79 : vector<1x64xf32>
      %c0_64 = arith.constant 0 : index
      %c0_65 = arith.constant 0 : index
      %81 = vector.load %arg10[%c0_64, %c0_65] : memref<1x64xf32, #tpu.memory_space<vmem>>, vector<1x64xf32>
      tpu.vector_store %arg10[%c0_64, %c0_65], %80 {strides = array<i32>} : memref<1x64xf32, #tpu.memory_space<vmem>>, vector<1x64xf32>,
    } else {
    }
    %c1_i32 = arith.constant 1 : i32
    %3 = arith.cmpi eq, %arg0, %c1_i32 : i32
    %4 = arith.extui %3 : i1 to i32
    %c0_i32_1 = arith.constant 0 : i32
    %5 = arith.cmpi ne, %4, %c0_i32_1 : i32
    scf.if %5 {
      %c0_i32_3 = arith.constant 0 : i32
      %9 = arith.cmpi eq, %arg1, %c0_i32_3 : i32
      %10 = arith.extui %9 : i1 to i32
      %c0_i32_4 = arith.constant 0 : i32
      %11 = arith.cmpi ne, %10, %c0_i32_4 : i32
      scf.if %11 {
        %cst_15 = arith.constant 0.000000e+00 : f32
        %29 = vector.broadcast %cst_15 : f32 to vector<1x64xf32>
        %c0_16 = arith.constant 0 : index
        %c0_17 = arith.constant 0 : index
        %30 = vector.load %arg11[%c0_16, %c0_17] : memref<1x64xf32, #tpu.memory_space<vmem>>, vector<1x64xf32>
        tpu.vector_store %arg11[%c0_16, %c0_17], %29 {strides = array<i32>} : memref<1x64xf32, #tpu.memory_space<vmem>>, vector<1x64xf32>,
      } else {
      }
      %c0 = arith.constant 0 : index
      %c0_5 = arith.constant 0 : index
      %12 = vector.load %arg10[%c0, %c0_5] : memref<1x64xf32, #tpu.memory_space<vmem>>, vector<1x64xf32>
      %cst = arith.constant 2.000000e-02 : f32
      %13 = vector.broadcast %cst : f32 to vector<1x64xf32>
      %14 = arith.mulf %12, %13 : vector<1x64xf32>
      %15 = arith.index_cast %arg1 : i32 to index
      %c0_6 = arith.constant 0 : index
      %c0_7 = arith.constant 0 : index
      %16 = vector.load %arg9[%15, %c0_6, %c0_7] : memref<2x35x64xf32, #tpu.memory_space<vmem>>, vector<1x35x64xf32>
      %17 = vector.shape_cast %16 : vector<1x35x64xf32> to vector<35x64xf32>
      %18 = vector.broadcast %14 : vector<1x64xf32> to vector<35x64xf32>
      %19 = arith.subf %17, %18 : vector<35x64xf32>
      %c0_8 = arith.constant 0 : index
      %c0_9 = arith.constant 0 : index
      %20 = vector.load %arg7[%c0_8, %c0_9] : memref<35x1xf32, #tpu.memory_space<vmem>>, vector<35x1xf32>
      %21 = vector.broadcast %20 : vector<35x1xf32> to vector<35x64xf32>
      %22 = arith.mulf %19, %21 : vector<35x64xf32>
      %c0_10 = arith.constant 0 : index
      %c0_11 = arith.constant 0 : index
      %23 = vector.load %arg11[%c0_10, %c0_11] : memref<1x64xf32, #tpu.memory_space<vmem>>, vector<1x64xf32>
      %24 = arith.mulf %22, %22 : vector<35x64xf32>
      %cst_12 = arith.constant dense<0.000000e+00> : vector<64xf32>
      %25 = vector.multi_reduction <add>, %24, %cst_12 [0] : vector<35x64xf32> to vector<64xf32>
      %26 = vector.shape_cast %25 : vector<64xf32> to vector<1x64xf32>
      %27 = arith.addf %23, %26 : vector<1x64xf32>
      %c0_13 = arith.constant 0 : index
      %c0_14 = arith.constant 0 : index
      %28 = vector.load %arg11[%c0_13, %c0_14] : memref<1x64xf32, #tpu.memory_space<vmem>>, vector<1x64xf32>
      tpu.vector_store %arg11[%c0_13, %c0_14], %27 {strides = array<i32>} : memref<1x64xf32, #tpu.memory_space<vmem>>, vector<1x64xf32>,
    } else {
    }
    %c2_i32 = arith.constant 2 : i32
    %6 = arith.cmpi eq, %arg0, %c2_i32 : i32
    %7 = arith.extui %6 : i1 to i32
    %c0_i32_2 = arith.constant 0 : i32
    %8 = arith.cmpi ne, %7, %c0_i32_2 : i32
    scf.if %8 {
      %c0 = arith.constant 0 : index
      %c0_3 = arith.constant 0 : index
      %9 = vector.load %arg10[%c0, %c0_3] : memref<1x64xf32, #tpu.memory_space<vmem>>, vector<1x64xf32>
      %cst = arith.constant 2.000000e-02 : f32
      %10 = vector.broadcast %cst : f32 to vector<1x64xf32>
      %11 = arith.mulf %9, %10 : vector<1x64xf32>
      %c0_4 = arith.constant 0 : index
      %c0_5 = arith.constant 0 : index
      %12 = vector.load %arg11[%c0_4, %c0_5] : memref<1x64xf32, #tpu.memory_space<vmem>>, vector<1x64xf32>
      %cst_6 = arith.constant 2.000000e-02 : f32
      %13 = vector.broadcast %cst_6 : f32 to vector<1x64xf32>
      %14 = arith.mulf %12, %13 : vector<1x64xf32>
      %cst_7 = arith.constant 9.99999974E-6 : f32
      %15 = vector.broadcast %cst_7 : f32 to vector<1x64xf32>
      %16 = arith.addf %14, %15 : vector<1x64xf32>
      %17 = math.rsqrt %16 : vector<1x64xf32>
      %c0_8 = arith.constant 0 : index
      %c0_9 = arith.constant 0 : index
      %18 = vector.load %arg5[%c0_8, %c0_9] : memref<1x64xf32, #tpu.memory_space<vmem>>, vector<1x64xf32>
      %19 = arith.mulf %18, %17 : vector<1x64xf32>
      %c0_10 = arith.constant 0 : index
      %c0_11 = arith.constant 0 : index
      %20 = vector.load %arg6[%c0_10, %c0_11] : memref<1x64xf32, #tpu.memory_space<vmem>>, vector<1x64xf32>
      %21 = arith.mulf %11, %19 : vector<1x64xf32>
      %22 = arith.subf %20, %21 : vector<1x64xf32>
      %23 = arith.index_cast %arg1 : i32 to index
      %c0_12 = arith.constant 0 : index
      %c0_13 = arith.constant 0 : index
      %24 = vector.load %arg9[%23, %c0_12, %c0_13] : memref<2x35x64xf32, #tpu.memory_space<vmem>>, vector<1x35x64xf32>
      %25 = vector.shape_cast %24 : vector<1x35x64xf32> to vector<35x64xf32>
      %26 = vector.broadcast %19 : vector<1x64xf32> to vector<35x64xf32>
      %27 = arith.mulf %25, %26 : vector<35x64xf32>
      %28 = vector.broadcast %22 : vector<1x64xf32> to vector<35x64xf32>
      %29 = arith.addf %27, %28 : vector<35x64xf32>
      %cst_14 = arith.constant 0.000000e+00 : f32
      %30 = vector.broadcast %cst_14 : f32 to vector<35x64xf32>
      %31 = arith.maximumf %29, %30 : vector<35x64xf32>
      %32 = vector.extract_strided_slice %31 {offsets = [0, 0], sizes = [5, 64], strides = [1, 1]} : vector<35x64xf32> to vector<5x64xf32>
      %33 = arith.truncf %32 : vector<5x64xf32> to vector<5x64xbf16>
      %c0_15 = arith.constant 0 : index
      %c0_16 = arith.constant 0 : index
      %c0_17 = arith.constant 0 : index
      %c0_18 = arith.constant 0 : index
      %34 = vector.load %arg8[%c0_15, %c0_16, %c0_17, %c0_18] : memref<1x5x5x64xbf16, #tpu.memory_space<vmem>>, vector<1x1x5x64xbf16>
      %35 = vector.shape_cast %34 : vector<1x1x5x64xbf16> to vector<5x64xbf16>
      %36 = vector.shape_cast %33 : vector<5x64xbf16> to vector<1x1x5x64xbf16>
      tpu.vector_store %arg8[%c0_15, %c0_16, %c0_17, %c0_18], %36 {strides = array<i32>} : memref<1x5x5x64xbf16, #tpu.memory_space<vmem>>, vector<1x1x5x64xbf16>,
      %37 = vector.extract_strided_slice %31 {offsets = [7, 0], sizes = [5, 64], strides = [1, 1]} : vector<35x64xf32> to vector<5x64xf32>
      %38 = arith.truncf %37 : vector<5x64xf32> to vector<5x64xbf16>
      %c0_19 = arith.constant 0 : index
      %c1 = arith.constant 1 : index
      %c0_20 = arith.constant 0 : index
      %c0_21 = arith.constant 0 : index
      %39 = vector.load %arg8[%c0_19, %c1, %c0_20, %c0_21] : memref<1x5x5x64xbf16, #tpu.memory_space<vmem>>, vector<1x1x5x64xbf16>
      %40 = vector.shape_cast %39 : vector<1x1x5x64xbf16> to vector<5x64xbf16>
      %41 = vector.shape_cast %38 : vector<5x64xbf16> to vector<1x1x5x64xbf16>
      tpu.vector_store %arg8[%c0_19, %c1, %c0_20, %c0_21], %41 {strides = array<i32>} : memref<1x5x5x64xbf16, #tpu.memory_space<vmem>>, vector<1x1x5x64xbf16>,
      %42 = vector.extract_strided_slice %31 {offsets = [14, 0], sizes = [5, 64], strides = [1, 1]} : vector<35x64xf32> to vector<5x64xf32>
      %43 = arith.truncf %42 : vector<5x64xf32> to vector<5x64xbf16>
      %c0_22 = arith.constant 0 : index
      %c2 = arith.constant 2 : index
      %c0_23 = arith.constant 0 : index
      %c0_24 = arith.constant 0 : index
      %44 = vector.load %arg8[%c0_22, %c2, %c0_23, %c0_24] : memref<1x5x5x64xbf16, #tpu.memory_space<vmem>>, vector<1x1x5x64xbf16>
      %45 = vector.shape_cast %44 : vector<1x1x5x64xbf16> to vector<5x64xbf16>
      %46 = vector.shape_cast %43 : vector<5x64xbf16> to vector<1x1x5x64xbf16>
      tpu.vector_store %arg8[%c0_22, %c2, %c0_23, %c0_24], %46 {strides = array<i32>} : memref<1x5x5x64xbf16, #tpu.memory_space<vmem>>, vector<1x1x5x64xbf16>,
      %47 = vector.extract_strided_slice %31 {offsets = [21, 0], sizes = [5, 64], strides = [1, 1]} : vector<35x64xf32> to vector<5x64xf32>
      %48 = arith.truncf %47 : vector<5x64xf32> to vector<5x64xbf16>
      %c0_25 = arith.constant 0 : index
      %c3 = arith.constant 3 : index
      %c0_26 = arith.constant 0 : index
      %c0_27 = arith.constant 0 : index
      %49 = vector.load %arg8[%c0_25, %c3, %c0_26, %c0_27] : memref<1x5x5x64xbf16, #tpu.memory_space<vmem>>, vector<1x1x5x64xbf16>
      %50 = vector.shape_cast %49 : vector<1x1x5x64xbf16> to vector<5x64xbf16>
      %51 = vector.shape_cast %48 : vector<5x64xbf16> to vector<1x1x5x64xbf16>
      tpu.vector_store %arg8[%c0_25, %c3, %c0_26, %c0_27], %51 {strides = array<i32>} : memref<1x5x5x64xbf16, #tpu.memory_space<vmem>>, vector<1x1x5x64xbf16>,
      %52 = vector.extract_strided_slice %31 {offsets = [28, 0], sizes = [5, 64], strides = [1, 1]} : vector<35x64xf32> to vector<5x64xf32>
      %53 = arith.truncf %52 : vector<5x64xf32> to vector<5x64xbf16>
      %c0_28 = arith.constant 0 : index
      %c4 = arith.constant 4 : index
      %c0_29 = arith.constant 0 : index
      %c0_30 = arith.constant 0 : index
      %54 = vector.load %arg8[%c0_28, %c4, %c0_29, %c0_30] : memref<1x5x5x64xbf16, #tpu.memory_space<vmem>>, vector<1x1x5x64xbf16>
      %55 = vector.shape_cast %54 : vector<1x1x5x64xbf16> to vector<5x64xbf16>
      %56 = vector.shape_cast %53 : vector<5x64xbf16> to vector<1x1x5x64xbf16>
      tpu.vector_store %arg8[%c0_28, %c4, %c0_29, %c0_30], %56 {strides = array<i32>} : memref<1x5x5x64xbf16, #tpu.memory_space<vmem>>, vector<1x1x5x64xbf16>,
    } else {
    }
    return
  }
  func.func @transform_0(%arg0: i32, %arg1: i32) -> (i32, i32, i32) {
    %c0_i32 = arith.constant 0 : i32
    %0 = arith.cmpi eq, %arg0, %c0_i32 : i32
    %c1_i32 = arith.constant 1 : i32
    %1 = arith.select %0, %arg1, %c1_i32 : i32
    %c0_i32_0 = arith.constant 0 : i32
    %c0_i32_1 = arith.constant 0 : i32
    %c0_i32_2 = arith.constant 0 : i32
    return %1, %c0_i32_0, %c0_i32_1 : i32, i32, i32
  }
  func.func @transform_1(%arg0: i32, %arg1: i32) -> (i32, i32, i32) {
    %c0_i32 = arith.constant 0 : i32
    %c0_i32_0 = arith.constant 0 : i32
    %c0_i32_1 = arith.constant 0 : i32
    %c0_i32_2 = arith.constant 0 : i32
    return %c0_i32, %c0_i32_0, %c0_i32_1 : i32, i32, i32
  }
  func.func @transform_2(%arg0: i32, %arg1: i32) -> (i32, i32) {
    %c0_i32 = arith.constant 0 : i32
    %c0_i32_0 = arith.constant 0 : i32
    %c0_i32_1 = arith.constant 0 : i32
    return %c0_i32, %c0_i32_0 : i32, i32
  }
  func.func @transform_3(%arg0: i32, %arg1: i32) -> (i32, i32) {
    %c0_i32 = arith.constant 0 : i32
    %c0_i32_0 = arith.constant 0 : i32
    %c0_i32_1 = arith.constant 0 : i32
    return %c0_i32, %c0_i32_0 : i32, i32
  }
  func.func @transform_4(%arg0: i32, %arg1: i32) -> (i32, i32) {
    %c0_i32 = arith.constant 0 : i32
    %c0_i32_0 = arith.constant 0 : i32
    %c0_i32_1 = arith.constant 0 : i32
    return %c0_i32, %c0_i32_0 : i32, i32
  }
  func.func @transform_5(%arg0: i32, %arg1: i32) -> (i32, i32) {
    %c0_i32 = arith.constant 0 : i32
    %c0_i32_0 = arith.constant 0 : i32
    %c0_i32_1 = arith.constant 0 : i32
    return %c0_i32, %c0_i32_0 : i32, i32
  }
  func.func @transform_6(%arg0: i32, %arg1: i32) -> (i32, i32, i32, i32) {
    %c2_i32 = arith.constant 2 : i32
    %0 = arith.cmpi eq, %arg0, %c2_i32 : i32
    %c0_i32 = arith.constant 0 : i32
    %1 = arith.select %0, %arg1, %c0_i32 : i32
    %c0_i32_0 = arith.constant 0 : i32
    %c0_i32_1 = arith.constant 0 : i32
    %c0_i32_2 = arith.constant 0 : i32
    %c0_i32_3 = arith.constant 0 : i32
    return %1, %c0_i32_0, %c0_i32_1, %c0_i32_2 : i32, i32, i32, i32
  }
}

module attributes {stable_mosaic.version = 11 : i64} {
  func.func @_conv_bn_relu_kernel(%arg0: i32, %arg1: i32, %arg2: memref<1x20x64xbf16, #tpu.memory_space<vmem>>, %arg3: memref<9x64x64xbf16, #tpu.memory_space<vmem>>, %arg4: memref<1x64xf32, #tpu.memory_space<vmem>>, %arg5: memref<1x64xf32, #tpu.memory_space<vmem>>, %arg6: memref<1x64xf32, #tpu.memory_space<vmem>>, %arg7: memref<8x1xf32, #tpu.memory_space<vmem>>, %arg8: memref<1x2x2x64xbf16, #tpu.memory_space<vmem>>, %arg9: memref<2x8x64xf32, #tpu.memory_space<vmem>>, %arg10: memref<1x64xf32, #tpu.memory_space<vmem>>, %arg11: memref<1x64xf32, #tpu.memory_space<vmem>>) attributes {dimension_semantics = [#tpu.dimension_semantics<arbitrary>, #tpu.dimension_semantics<arbitrary>], iteration_bounds = array<i64: 3, 2>, scalar_prefetch = 0 : i64, scratch_operands = 3 : i64, tpu.core_type = #tpu.core_type<tc>, window_params = [{transform_indices = @transform_0, window_bounds = array<i64: 1, 20, 64>}, {pipeline_mode = #tpu.pipeline_mode<synchronous>, transform_indices = @transform_1, window_bounds = array<i64: 9, 64, 64>}, {pipeline_mode = #tpu.pipeline_mode<synchronous>, transform_indices = @transform_2, window_bounds = array<i64: 1, 64>}, {pipeline_mode = #tpu.pipeline_mode<synchronous>, transform_indices = @transform_3, window_bounds = array<i64: 1, 64>}, {pipeline_mode = #tpu.pipeline_mode<synchronous>, transform_indices = @transform_4, window_bounds = array<i64: 1, 64>}, {pipeline_mode = #tpu.pipeline_mode<synchronous>, transform_indices = @transform_5, window_bounds = array<i64: 8, 1>}, {transform_indices = @transform_6, window_bounds = array<i64: 1, 2, 2, 64>}]} {
    %c0_i32 = arith.constant 0 : i32
    %0 = arith.cmpi eq, %arg0, %c0_i32 : i32
    %1 = arith.extui %0 : i1 to i32
    %c0_i32_0 = arith.constant 0 : i32
    %2 = arith.cmpi ne, %1, %c0_i32_0 : i32
    scf.if %2 {
      %c0_i32_3 = arith.constant 0 : i32
      %9 = arith.cmpi eq, %arg1, %c0_i32_3 : i32
      %10 = arith.extui %9 : i1 to i32
      %c0_i32_4 = arith.constant 0 : i32
      %11 = arith.cmpi ne, %10, %c0_i32_4 : i32
      scf.if %11 {
        %cst_68 = arith.constant 0.000000e+00 : f32
        %82 = vector.broadcast %cst_68 : f32 to vector<1x64xf32>
        %c0_69 = arith.constant 0 : index
        %c0_70 = arith.constant 0 : index
        %83 = vector.load %arg10[%c0_69, %c0_70] : memref<1x64xf32, #tpu.memory_space<vmem>>, vector<1x64xf32>
        tpu.vector_store %arg10[%c0_69, %c0_70], %82 {strides = array<i32>} : memref<1x64xf32, #tpu.memory_space<vmem>>, vector<1x64xf32>,
      } else {
      }
      %cst = arith.constant 0.000000e+00 : f32
      %12 = vector.broadcast %cst : f32 to vector<8x64xf32>
      %c0 = arith.constant 0 : index
      %c0_5 = arith.constant 0 : index
      %c0_6 = arith.constant 0 : index
      %13 = vector.load %arg2[%c0, %c0_5, %c0_6] : memref<1x20x64xbf16, #tpu.memory_space<vmem>>, vector<1x8x64xbf16>
      %14 = vector.shape_cast %13 : vector<1x8x64xbf16> to vector<8x64xbf16>
      %c0_7 = arith.constant 0 : index
      %c0_8 = arith.constant 0 : index
      %c0_9 = arith.constant 0 : index
      %15 = vector.load %arg3[%c0_7, %c0_8, %c0_9] : memref<9x64x64xbf16, #tpu.memory_space<vmem>>, vector<1x64x64xbf16>
      %16 = vector.shape_cast %15 : vector<1x64x64xbf16> to vector<64x64xbf16>
      %cst_10 = arith.constant dense<0.000000e+00> : vector<8x64xf32>
      %17 = tpu.matmul %14, %16, %cst_10 {dimension_numbers = #tpu.dot_dimension_numbers<[1], [0], [0], [1], [0, 0, 1, 1], [], []>} : vector<8x64xbf16>, vector<64x64xbf16>, vector<8x64xf32> -> vector<8x64xf32>
      %18 = arith.addf %12, %17 : vector<8x64xf32>
      %c0_11 = arith.constant 0 : index
      %c1 = arith.constant 1 : index
      %c0_12 = arith.constant 0 : index
      %19 = vector.load %arg2[%c0_11, %c1, %c0_12] : memref<1x20x64xbf16, #tpu.memory_space<vmem>>, vector<1x8x64xbf16>
      %20 = vector.shape_cast %19 : vector<1x8x64xbf16> to vector<8x64xbf16>
      %c1_13 = arith.constant 1 : index
      %c0_14 = arith.constant 0 : index
      %c0_15 = arith.constant 0 : index
      %21 = vector.load %arg3[%c1_13, %c0_14, %c0_15] : memref<9x64x64xbf16, #tpu.memory_space<vmem>>, vector<1x64x64xbf16>
      %22 = vector.shape_cast %21 : vector<1x64x64xbf16> to vector<64x64xbf16>
      %cst_16 = arith.constant dense<0.000000e+00> : vector<8x64xf32>
      %23 = tpu.matmul %20, %22, %cst_16 {dimension_numbers = #tpu.dot_dimension_numbers<[1], [0], [0], [1], [0, 0, 1, 1], [], []>} : vector<8x64xbf16>, vector<64x64xbf16>, vector<8x64xf32> -> vector<8x64xf32>
      %24 = arith.addf %18, %23 : vector<8x64xf32>
      %c0_17 = arith.constant 0 : index
      %c2 = arith.constant 2 : index
      %c0_18 = arith.constant 0 : index
      %25 = vector.load %arg2[%c0_17, %c2, %c0_18] : memref<1x20x64xbf16, #tpu.memory_space<vmem>>, vector<1x8x64xbf16>
      %26 = vector.shape_cast %25 : vector<1x8x64xbf16> to vector<8x64xbf16>
      %c2_19 = arith.constant 2 : index
      %c0_20 = arith.constant 0 : index
      %c0_21 = arith.constant 0 : index
      %27 = vector.load %arg3[%c2_19, %c0_20, %c0_21] : memref<9x64x64xbf16, #tpu.memory_space<vmem>>, vector<1x64x64xbf16>
      %28 = vector.shape_cast %27 : vector<1x64x64xbf16> to vector<64x64xbf16>
      %cst_22 = arith.constant dense<0.000000e+00> : vector<8x64xf32>
      %29 = tpu.matmul %26, %28, %cst_22 {dimension_numbers = #tpu.dot_dimension_numbers<[1], [0], [0], [1], [0, 0, 1, 1], [], []>} : vector<8x64xbf16>, vector<64x64xbf16>, vector<8x64xf32> -> vector<8x64xf32>
      %30 = arith.addf %24, %29 : vector<8x64xf32>
      %c0_23 = arith.constant 0 : index
      %c4 = arith.constant 4 : index
      %c0_24 = arith.constant 0 : index
      %31 = vector.load %arg2[%c0_23, %c4, %c0_24] : memref<1x20x64xbf16, #tpu.memory_space<vmem>>, vector<1x8x64xbf16>
      %32 = vector.shape_cast %31 : vector<1x8x64xbf16> to vector<8x64xbf16>
      %c3 = arith.constant 3 : index
      %c0_25 = arith.constant 0 : index
      %c0_26 = arith.constant 0 : index
      %33 = vector.load %arg3[%c3, %c0_25, %c0_26] : memref<9x64x64xbf16, #tpu.memory_space<vmem>>, vector<1x64x64xbf16>
      %34 = vector.shape_cast %33 : vector<1x64x64xbf16> to vector<64x64xbf16>
      %cst_27 = arith.constant dense<0.000000e+00> : vector<8x64xf32>
      %35 = tpu.matmul %32, %34, %cst_27 {dimension_numbers = #tpu.dot_dimension_numbers<[1], [0], [0], [1], [0, 0, 1, 1], [], []>} : vector<8x64xbf16>, vector<64x64xbf16>, vector<8x64xf32> -> vector<8x64xf32>
      %36 = arith.addf %30, %35 : vector<8x64xf32>
      %c0_28 = arith.constant 0 : index
      %c5 = arith.constant 5 : index
      %c0_29 = arith.constant 0 : index
      %37 = vector.load %arg2[%c0_28, %c5, %c0_29] : memref<1x20x64xbf16, #tpu.memory_space<vmem>>, vector<1x8x64xbf16>
      %38 = vector.shape_cast %37 : vector<1x8x64xbf16> to vector<8x64xbf16>
      %c4_30 = arith.constant 4 : index
      %c0_31 = arith.constant 0 : index
      %c0_32 = arith.constant 0 : index
      %39 = vector.load %arg3[%c4_30, %c0_31, %c0_32] : memref<9x64x64xbf16, #tpu.memory_space<vmem>>, vector<1x64x64xbf16>
      %40 = vector.shape_cast %39 : vector<1x64x64xbf16> to vector<64x64xbf16>
      %cst_33 = arith.constant dense<0.000000e+00> : vector<8x64xf32>
      %41 = tpu.matmul %38, %40, %cst_33 {dimension_numbers = #tpu.dot_dimension_numbers<[1], [0], [0], [1], [0, 0, 1, 1], [], []>} : vector<8x64xbf16>, vector<64x64xbf16>, vector<8x64xf32> -> vector<8x64xf32>
      %42 = arith.addf %36, %41 : vector<8x64xf32>
      %c0_34 = arith.constant 0 : index
      %c6 = arith.constant 6 : index
      %c0_35 = arith.constant 0 : index
      %43 = vector.load %arg2[%c0_34, %c6, %c0_35] : memref<1x20x64xbf16, #tpu.memory_space<vmem>>, vector<1x8x64xbf16>
      %44 = vector.shape_cast %43 : vector<1x8x64xbf16> to vector<8x64xbf16>
      %c5_36 = arith.constant 5 : index
      %c0_37 = arith.constant 0 : index
      %c0_38 = arith.constant 0 : index
      %45 = vector.load %arg3[%c5_36, %c0_37, %c0_38] : memref<9x64x64xbf16, #tpu.memory_space<vmem>>, vector<1x64x64xbf16>
      %46 = vector.shape_cast %45 : vector<1x64x64xbf16> to vector<64x64xbf16>
      %cst_39 = arith.constant dense<0.000000e+00> : vector<8x64xf32>
      %47 = tpu.matmul %44, %46, %cst_39 {dimension_numbers = #tpu.dot_dimension_numbers<[1], [0], [0], [1], [0, 0, 1, 1], [], []>} : vector<8x64xbf16>, vector<64x64xbf16>, vector<8x64xf32> -> vector<8x64xf32>
      %48 = arith.addf %42, %47 : vector<8x64xf32>
      %c0_40 = arith.constant 0 : index
      %c8 = arith.constant 8 : index
      %c0_41 = arith.constant 0 : index
      %49 = vector.load %arg2[%c0_40, %c8, %c0_41] : memref<1x20x64xbf16, #tpu.memory_space<vmem>>, vector<1x8x64xbf16>
      %50 = vector.shape_cast %49 : vector<1x8x64xbf16> to vector<8x64xbf16>
      %c6_42 = arith.constant 6 : index
      %c0_43 = arith.constant 0 : index
      %c0_44 = arith.constant 0 : index
      %51 = vector.load %arg3[%c6_42, %c0_43, %c0_44] : memref<9x64x64xbf16, #tpu.memory_space<vmem>>, vector<1x64x64xbf16>
      %52 = vector.shape_cast %51 : vector<1x64x64xbf16> to vector<64x64xbf16>
      %cst_45 = arith.constant dense<0.000000e+00> : vector<8x64xf32>
      %53 = tpu.matmul %50, %52, %cst_45 {dimension_numbers = #tpu.dot_dimension_numbers<[1], [0], [0], [1], [0, 0, 1, 1], [], []>} : vector<8x64xbf16>, vector<64x64xbf16>, vector<8x64xf32> -> vector<8x64xf32>
      %54 = arith.addf %48, %53 : vector<8x64xf32>
      %c0_46 = arith.constant 0 : index
      %c9 = arith.constant 9 : index
      %c0_47 = arith.constant 0 : index
      %55 = vector.load %arg2[%c0_46, %c9, %c0_47] : memref<1x20x64xbf16, #tpu.memory_space<vmem>>, vector<1x8x64xbf16>
      %56 = vector.shape_cast %55 : vector<1x8x64xbf16> to vector<8x64xbf16>
      %c7 = arith.constant 7 : index
      %c0_48 = arith.constant 0 : index
      %c0_49 = arith.constant 0 : index
      %57 = vector.load %arg3[%c7, %c0_48, %c0_49] : memref<9x64x64xbf16, #tpu.memory_space<vmem>>, vector<1x64x64xbf16>
      %58 = vector.shape_cast %57 : vector<1x64x64xbf16> to vector<64x64xbf16>
      %cst_50 = arith.constant dense<0.000000e+00> : vector<8x64xf32>
      %59 = tpu.matmul %56, %58, %cst_50 {dimension_numbers = #tpu.dot_dimension_numbers<[1], [0], [0], [1], [0, 0, 1, 1], [], []>} : vector<8x64xbf16>, vector<64x64xbf16>, vector<8x64xf32> -> vector<8x64xf32>
      %60 = arith.addf %54, %59 : vector<8x64xf32>
      %c0_51 = arith.constant 0 : index
      %c10 = arith.constant 10 : index
      %c0_52 = arith.constant 0 : index
      %61 = vector.load %arg2[%c0_51, %c10, %c0_52] : memref<1x20x64xbf16, #tpu.memory_space<vmem>>, vector<1x8x64xbf16>
      %62 = vector.shape_cast %61 : vector<1x8x64xbf16> to vector<8x64xbf16>
      %c8_53 = arith.constant 8 : index
      %c0_54 = arith.constant 0 : index
      %c0_55 = arith.constant 0 : index
      %63 = vector.load %arg3[%c8_53, %c0_54, %c0_55] : memref<9x64x64xbf16, #tpu.memory_space<vmem>>, vector<1x64x64xbf16>
      %64 = vector.shape_cast %63 : vector<1x64x64xbf16> to vector<64x64xbf16>
      %cst_56 = arith.constant dense<0.000000e+00> : vector<8x64xf32>
      %65 = tpu.matmul %62, %64, %cst_56 {dimension_numbers = #tpu.dot_dimension_numbers<[1], [0], [0], [1], [0, 0, 1, 1], [], []>} : vector<8x64xbf16>, vector<64x64xbf16>, vector<8x64xf32> -> vector<8x64xf32>
      %66 = arith.addf %60, %65 : vector<8x64xf32>
      %c0_57 = arith.constant 0 : index
      %c0_58 = arith.constant 0 : index
      %67 = vector.load %arg4[%c0_57, %c0_58] : memref<1x64xf32, #tpu.memory_space<vmem>>, vector<1x64xf32>
      %68 = vector.broadcast %67 : vector<1x64xf32> to vector<8x64xf32>
      %69 = arith.addf %66, %68 : vector<8x64xf32>
      %70 = arith.index_cast %arg1 : i32 to index
      %c0_59 = arith.constant 0 : index
      %c0_60 = arith.constant 0 : index
      %71 = vector.load %arg9[%70, %c0_59, %c0_60] : memref<2x8x64xf32, #tpu.memory_space<vmem>>, vector<1x8x64xf32>
      %72 = vector.shape_cast %71 : vector<1x8x64xf32> to vector<8x64xf32>
      %73 = vector.shape_cast %69 : vector<8x64xf32> to vector<1x8x64xf32>
      tpu.vector_store %arg9[%70, %c0_59, %c0_60], %73 {strides = array<i32>} : memref<2x8x64xf32, #tpu.memory_space<vmem>>, vector<1x8x64xf32>,
      %c0_61 = arith.constant 0 : index
      %c0_62 = arith.constant 0 : index
      %74 = vector.load %arg7[%c0_61, %c0_62] : memref<8x1xf32, #tpu.memory_space<vmem>>, vector<8x1xf32>
      %75 = vector.broadcast %74 : vector<8x1xf32> to vector<8x64xf32>
      %76 = arith.mulf %69, %75 : vector<8x64xf32>
      %c0_63 = arith.constant 0 : index
      %c0_64 = arith.constant 0 : index
      %77 = vector.load %arg10[%c0_63, %c0_64] : memref<1x64xf32, #tpu.memory_space<vmem>>, vector<1x64xf32>
      %cst_65 = arith.constant dense<0.000000e+00> : vector<64xf32>
      %78 = vector.multi_reduction <add>, %76, %cst_65 [0] : vector<8x64xf32> to vector<64xf32>
      %79 = vector.shape_cast %78 : vector<64xf32> to vector<1x64xf32>
      %80 = arith.addf %77, %79 : vector<1x64xf32>
      %c0_66 = arith.constant 0 : index
      %c0_67 = arith.constant 0 : index
      %81 = vector.load %arg10[%c0_66, %c0_67] : memref<1x64xf32, #tpu.memory_space<vmem>>, vector<1x64xf32>
      tpu.vector_store %arg10[%c0_66, %c0_67], %80 {strides = array<i32>} : memref<1x64xf32, #tpu.memory_space<vmem>>, vector<1x64xf32>,
    } else {
    }
    %c1_i32 = arith.constant 1 : i32
    %3 = arith.cmpi eq, %arg0, %c1_i32 : i32
    %4 = arith.extui %3 : i1 to i32
    %c0_i32_1 = arith.constant 0 : i32
    %5 = arith.cmpi ne, %4, %c0_i32_1 : i32
    scf.if %5 {
      %c0_i32_3 = arith.constant 0 : i32
      %9 = arith.cmpi eq, %arg1, %c0_i32_3 : i32
      %10 = arith.extui %9 : i1 to i32
      %c0_i32_4 = arith.constant 0 : i32
      %11 = arith.cmpi ne, %10, %c0_i32_4 : i32
      scf.if %11 {
        %cst_15 = arith.constant 0.000000e+00 : f32
        %29 = vector.broadcast %cst_15 : f32 to vector<1x64xf32>
        %c0_16 = arith.constant 0 : index
        %c0_17 = arith.constant 0 : index
        %30 = vector.load %arg11[%c0_16, %c0_17] : memref<1x64xf32, #tpu.memory_space<vmem>>, vector<1x64xf32>
        tpu.vector_store %arg11[%c0_16, %c0_17], %29 {strides = array<i32>} : memref<1x64xf32, #tpu.memory_space<vmem>>, vector<1x64xf32>,
      } else {
      }
      %c0 = arith.constant 0 : index
      %c0_5 = arith.constant 0 : index
      %12 = vector.load %arg10[%c0, %c0_5] : memref<1x64xf32, #tpu.memory_space<vmem>>, vector<1x64xf32>
      %cst = arith.constant 1.250000e-01 : f32
      %13 = vector.broadcast %cst : f32 to vector<1x64xf32>
      %14 = arith.mulf %12, %13 : vector<1x64xf32>
      %15 = arith.index_cast %arg1 : i32 to index
      %c0_6 = arith.constant 0 : index
      %c0_7 = arith.constant 0 : index
      %16 = vector.load %arg9[%15, %c0_6, %c0_7] : memref<2x8x64xf32, #tpu.memory_space<vmem>>, vector<1x8x64xf32>
      %17 = vector.shape_cast %16 : vector<1x8x64xf32> to vector<8x64xf32>
      %18 = vector.broadcast %14 : vector<1x64xf32> to vector<8x64xf32>
      %19 = arith.subf %17, %18 : vector<8x64xf32>
      %c0_8 = arith.constant 0 : index
      %c0_9 = arith.constant 0 : index
      %20 = vector.load %arg7[%c0_8, %c0_9] : memref<8x1xf32, #tpu.memory_space<vmem>>, vector<8x1xf32>
      %21 = vector.broadcast %20 : vector<8x1xf32> to vector<8x64xf32>
      %22 = arith.mulf %19, %21 : vector<8x64xf32>
      %c0_10 = arith.constant 0 : index
      %c0_11 = arith.constant 0 : index
      %23 = vector.load %arg11[%c0_10, %c0_11] : memref<1x64xf32, #tpu.memory_space<vmem>>, vector<1x64xf32>
      %24 = arith.mulf %22, %22 : vector<8x64xf32>
      %cst_12 = arith.constant dense<0.000000e+00> : vector<64xf32>
      %25 = vector.multi_reduction <add>, %24, %cst_12 [0] : vector<8x64xf32> to vector<64xf32>
      %26 = vector.shape_cast %25 : vector<64xf32> to vector<1x64xf32>
      %27 = arith.addf %23, %26 : vector<1x64xf32>
      %c0_13 = arith.constant 0 : index
      %c0_14 = arith.constant 0 : index
      %28 = vector.load %arg11[%c0_13, %c0_14] : memref<1x64xf32, #tpu.memory_space<vmem>>, vector<1x64xf32>
      tpu.vector_store %arg11[%c0_13, %c0_14], %27 {strides = array<i32>} : memref<1x64xf32, #tpu.memory_space<vmem>>, vector<1x64xf32>,
    } else {
    }
    %c2_i32 = arith.constant 2 : i32
    %6 = arith.cmpi eq, %arg0, %c2_i32 : i32
    %7 = arith.extui %6 : i1 to i32
    %c0_i32_2 = arith.constant 0 : i32
    %8 = arith.cmpi ne, %7, %c0_i32_2 : i32
    scf.if %8 {
      %c0 = arith.constant 0 : index
      %c0_3 = arith.constant 0 : index
      %9 = vector.load %arg10[%c0, %c0_3] : memref<1x64xf32, #tpu.memory_space<vmem>>, vector<1x64xf32>
      %cst = arith.constant 1.250000e-01 : f32
      %10 = vector.broadcast %cst : f32 to vector<1x64xf32>
      %11 = arith.mulf %9, %10 : vector<1x64xf32>
      %c0_4 = arith.constant 0 : index
      %c0_5 = arith.constant 0 : index
      %12 = vector.load %arg11[%c0_4, %c0_5] : memref<1x64xf32, #tpu.memory_space<vmem>>, vector<1x64xf32>
      %cst_6 = arith.constant 1.250000e-01 : f32
      %13 = vector.broadcast %cst_6 : f32 to vector<1x64xf32>
      %14 = arith.mulf %12, %13 : vector<1x64xf32>
      %cst_7 = arith.constant 9.99999974E-6 : f32
      %15 = vector.broadcast %cst_7 : f32 to vector<1x64xf32>
      %16 = arith.addf %14, %15 : vector<1x64xf32>
      %17 = math.rsqrt %16 : vector<1x64xf32>
      %c0_8 = arith.constant 0 : index
      %c0_9 = arith.constant 0 : index
      %18 = vector.load %arg5[%c0_8, %c0_9] : memref<1x64xf32, #tpu.memory_space<vmem>>, vector<1x64xf32>
      %19 = arith.mulf %18, %17 : vector<1x64xf32>
      %c0_10 = arith.constant 0 : index
      %c0_11 = arith.constant 0 : index
      %20 = vector.load %arg6[%c0_10, %c0_11] : memref<1x64xf32, #tpu.memory_space<vmem>>, vector<1x64xf32>
      %21 = arith.mulf %11, %19 : vector<1x64xf32>
      %22 = arith.subf %20, %21 : vector<1x64xf32>
      %23 = arith.index_cast %arg1 : i32 to index
      %c0_12 = arith.constant 0 : index
      %c0_13 = arith.constant 0 : index
      %24 = vector.load %arg9[%23, %c0_12, %c0_13] : memref<2x8x64xf32, #tpu.memory_space<vmem>>, vector<1x8x64xf32>
      %25 = vector.shape_cast %24 : vector<1x8x64xf32> to vector<8x64xf32>
      %26 = vector.broadcast %19 : vector<1x64xf32> to vector<8x64xf32>
      %27 = arith.mulf %25, %26 : vector<8x64xf32>
      %28 = vector.broadcast %22 : vector<1x64xf32> to vector<8x64xf32>
      %29 = arith.addf %27, %28 : vector<8x64xf32>
      %cst_14 = arith.constant 0.000000e+00 : f32
      %30 = vector.broadcast %cst_14 : f32 to vector<8x64xf32>
      %31 = arith.maximumf %29, %30 : vector<8x64xf32>
      %32 = vector.extract_strided_slice %31 {offsets = [0, 0], sizes = [2, 64], strides = [1, 1]} : vector<8x64xf32> to vector<2x64xf32>
      %33 = arith.truncf %32 : vector<2x64xf32> to vector<2x64xbf16>
      %c0_15 = arith.constant 0 : index
      %c0_16 = arith.constant 0 : index
      %c0_17 = arith.constant 0 : index
      %c0_18 = arith.constant 0 : index
      %34 = vector.load %arg8[%c0_15, %c0_16, %c0_17, %c0_18] : memref<1x2x2x64xbf16, #tpu.memory_space<vmem>>, vector<1x1x2x64xbf16>
      %35 = vector.shape_cast %34 : vector<1x1x2x64xbf16> to vector<2x64xbf16>
      %36 = vector.shape_cast %33 : vector<2x64xbf16> to vector<1x1x2x64xbf16>
      tpu.vector_store %arg8[%c0_15, %c0_16, %c0_17, %c0_18], %36 {strides = array<i32>} : memref<1x2x2x64xbf16, #tpu.memory_space<vmem>>, vector<1x1x2x64xbf16>,
      %37 = vector.extract_strided_slice %31 {offsets = [4, 0], sizes = [2, 64], strides = [1, 1]} : vector<8x64xf32> to vector<2x64xf32>
      %38 = arith.truncf %37 : vector<2x64xf32> to vector<2x64xbf16>
      %c0_19 = arith.constant 0 : index
      %c1 = arith.constant 1 : index
      %c0_20 = arith.constant 0 : index
      %c0_21 = arith.constant 0 : index
      %39 = vector.load %arg8[%c0_19, %c1, %c0_20, %c0_21] : memref<1x2x2x64xbf16, #tpu.memory_space<vmem>>, vector<1x1x2x64xbf16>
      %40 = vector.shape_cast %39 : vector<1x1x2x64xbf16> to vector<2x64xbf16>
      %41 = vector.shape_cast %38 : vector<2x64xbf16> to vector<1x1x2x64xbf16>
      tpu.vector_store %arg8[%c0_19, %c1, %c0_20, %c0_21], %41 {strides = array<i32>} : memref<1x2x2x64xbf16, #tpu.memory_space<vmem>>, vector<1x1x2x64xbf16>,
    } else {
    }
    return
  }
  func.func @transform_0(%arg0: i32, %arg1: i32) -> (i32, i32, i32) {
    %c0_i32 = arith.constant 0 : i32
    %0 = arith.cmpi eq, %arg0, %c0_i32 : i32
    %c1_i32 = arith.constant 1 : i32
    %1 = arith.select %0, %arg1, %c1_i32 : i32
    %c0_i32_0 = arith.constant 0 : i32
    %c0_i32_1 = arith.constant 0 : i32
    %c0_i32_2 = arith.constant 0 : i32
    return %1, %c0_i32_0, %c0_i32_1 : i32, i32, i32
  }
  func.func @transform_1(%arg0: i32, %arg1: i32) -> (i32, i32, i32) {
    %c0_i32 = arith.constant 0 : i32
    %c0_i32_0 = arith.constant 0 : i32
    %c0_i32_1 = arith.constant 0 : i32
    %c0_i32_2 = arith.constant 0 : i32
    return %c0_i32, %c0_i32_0, %c0_i32_1 : i32, i32, i32
  }
  func.func @transform_2(%arg0: i32, %arg1: i32) -> (i32, i32) {
    %c0_i32 = arith.constant 0 : i32
    %c0_i32_0 = arith.constant 0 : i32
    %c0_i32_1 = arith.constant 0 : i32
    return %c0_i32, %c0_i32_0 : i32, i32
  }
  func.func @transform_3(%arg0: i32, %arg1: i32) -> (i32, i32) {
    %c0_i32 = arith.constant 0 : i32
    %c0_i32_0 = arith.constant 0 : i32
    %c0_i32_1 = arith.constant 0 : i32
    return %c0_i32, %c0_i32_0 : i32, i32
  }
  func.func @transform_4(%arg0: i32, %arg1: i32) -> (i32, i32) {
    %c0_i32 = arith.constant 0 : i32
    %c0_i32_0 = arith.constant 0 : i32
    %c0_i32_1 = arith.constant 0 : i32
    return %c0_i32, %c0_i32_0 : i32, i32
  }
  func.func @transform_5(%arg0: i32, %arg1: i32) -> (i32, i32) {
    %c0_i32 = arith.constant 0 : i32
    %c0_i32_0 = arith.constant 0 : i32
    %c0_i32_1 = arith.constant 0 : i32
    return %c0_i32, %c0_i32_0 : i32, i32
  }
  func.func @transform_6(%arg0: i32, %arg1: i32) -> (i32, i32, i32, i32) {
    %c2_i32 = arith.constant 2 : i32
    %0 = arith.cmpi eq, %arg0, %c2_i32 : i32
    %c0_i32 = arith.constant 0 : i32
    %1 = arith.select %0, %arg1, %c0_i32 : i32
    %c0_i32_0 = arith.constant 0 : i32
    %c0_i32_1 = arith.constant 0 : i32
    %c0_i32_2 = arith.constant 0 : i32
    %c0_i32_3 = arith.constant 0 : i32
    return %1, %c0_i32_0, %c0_i32_1, %c0_i32_2 : i32, i32, i32, i32
  }
}

</mosaic_0001>

<llo_original>
// kernel: convnet_nopool_forward.5
$region0: #{convnet_nopool_forward.5}
  #allocation0 [shape = 'u32[]', space=smem, size = 0x4, offset = 0x4, fixed_abs, tag = 'smem constant byte address 0x4 - core index']
  #allocation1 [shape = 'u32[144,128]{1,0:T(1,128)}', space=vmem, size = 0x12000, scoped, tag = 'internal scratch']
  #allocation2 [shape = 'f32[2,35,64]{2,1,0:T(8,128)}', space=vmem, size = 0xa000, scoped, tag = 'scratch operand']
  #allocation3 [shape = 'f32[1,64]{1,0:T(1,128)}', space=vmem, size = 0x200, scoped, tag = 'scratch operand']
  #allocation4 [shape = 'f32[1,64]{1,0:T(1,128)}', space=vmem, size = 0x200, scoped, tag = 'scratch operand']
  %s0 = inlined_call_operand.vmem [shape: bf16[2,56,64], index: 0, kind: input, shape index: {}]
  %s1 = inlined_call_operand.vmem [shape: bf16[9,64,64], index: 1, kind: input, shape index: {}]
  %s2 = inlined_call_operand.vmem [shape: f32[1,64], index: 2, kind: input, shape index: {}]
  %s3 = inlined_call_operand.vmem [shape: f32[1,64], index: 3, kind: input, shape index: {}]
  %s4 = inlined_call_operand.vmem [shape: f32[1,64], index: 4, kind: input, shape index: {}]
  %s5 = inlined_call_operand.vmem [shape: f32[35,1], index: 5, kind: input, shape index: {}]
  %s6 = inlined_call_operand.vmem [shape: bf16[2,5,5,64], index: 6, kind: output, shape index: {}]
  %s7 = sld [smem:[#allocation0]]
  $region77: #{convnet_nopool_forward.5} parent=0
    _
  %s9 = ssub.s32 1, %s7
  %s10 = scalar_select 0, %s9, %s7
  loop: start=0, step=1, limit=8
  $region2: #{convnet_nopool_forward.5} parent=0 // loop_pre_header
    _
  $region3: #{convnet_nopool_forward.5} parent=0 // loop_header
    %s12 = sphi 0, %s16
    %p13 = scmp.ge.s32.totalorder %s12, 8
    %s19 = sphi 0, %s31
    %s20 = sphi 0, %s27
    %s21 = sphi 0, %s19
    %s22 = sphi 0, %s20
    %s23 = sphi 0, %s21
    %s24 = sphi 0, %s22
    %s38 = sphi 0, %s40
    %s41 = sphi 0, %s38
    %s42 = sphi 0, %s41
    %s58 = sphi 0, %s42
    %s62 = sphi 0, %s62
    %s64 = sphi 0, %s62
    %s65 = sphi 0, %s64
    %s79 = sphi 0, %s65
    %s83 = sphi 0, %s83
    %s85 = sphi 0, %s83
    %s86 = sphi 0, %s85
    %s100 = sphi 0, %s86
    %s104 = sphi 0, %s104
    %s106 = sphi 0, %s104
    %s107 = sphi 0, %s106
    %s121 = sphi 0, %s107
    %s125 = sphi 0, %s125
    %s127 = sphi 0, %s125
    %s128 = sphi 0, %s127
    %s142 = sphi 0, %s128
    %s146 = sphi 0, %s146
    %s148 = sphi 0, %s146
    %s149 = sphi 0, %s148
    %s163 = sphi 0, %s149
    %s173 = sphi 0, %s175
    %s176 = sphi 0, %s173
    %s177 = sphi 0, %s176
    %s193 = sphi 0, %s177
  $region4: #{convnet_nopool_forward.5} parent=0 // loop_header_branch
    %15 = sbr.rel (%p13) target = $region8
  $region5: #{convnet_nopool_forward.5} parent=0 // loop_body
    %s17 = ssub.s32 %s12, 1
    %s18 = ssub.s32 %s12, 2
    %s25 = sadd.s32 1, %s20
    %p26 = scmp.ge.s32.totalorder %s25, 2
    %s27 = scalar_select %p26, 0, %s25
    %s28 = sadd.s32 1, %s19
    %s29 = scalar_select %p26, %s28, %s19
    %p30 = scmp.ge.s32.totalorder %s29, 3
    %s31 = scalar_select %p30, 0, %s29
    %p32 = scmp.eq.s32.totalorder %s19, 0
    %s33 = scalar_select %p32, %s20, 1
    %p34 = scmp.eq.s32.totalorder %s31, 0
    %s35 = scalar_select %p34, %s27, 1
    %s36 = ssub.s32 %s33, %s35
    %p37 = scmp.eq.s32.totalorder %s36, 0
    %s39 = sadd.s32 %s38, 1
    %s40 = scalar_select %p37, %s38, %s39
    %p43 = pneg %p37
    %p44 = scmp.eq.s32.totalorder %s12, 5
    %p45 = por %p43, %p44
    %p46 = scmp.ne.s32.totalorder %s38, %s41
    %p47 = scmp.eq.s32.totalorder %s12, 0
    %p48 = por %p46, %p47
    %p49 = scmp.ne.s32.totalorder %s38, %s41
    %p50 = scmp.eq.s32.totalorder %s17, 5
    %p51 = por %p49, %p50
    %p52 = scmp.ne.s32.totalorder %s41, %s42
    %p53 = scmp.eq.s32.totalorder %s17, 0
    %p54 = por %p52, %p53
    %p55 = scmp.ne.s32.totalorder %s41, %s42
    %p56 = scmp.eq.s32.totalorder %s18, 5
    %p57 = por %p55, %p56
    %p59 = scmp.ne.s32.totalorder %s42, %s58
    %p60 = scmp.eq.s32.totalorder %s18, 0
    %p61 = por %p59, %p60
    %s63 = sadd.s32 %s62, 1
    %p66 = scmp.eq.s32.totalorder %s12, 5
    %p67 = scmp.ne.s32.totalorder %s62, %s64
    %p68 = scmp.eq.s32.totalorder %s12, 0
    %p69 = por %p67, %p68
    %p70 = scmp.ne.s32.totalorder %s62, %s64
    %p71 = scmp.eq.s32.totalorder %s17, 5
    %p72 = por %p70, %p71
    %p73 = scmp.ne.s32.totalorder %s64, %s65
    %p74 = scmp.eq.s32.totalorder %s17, 0
    %p75 = por %p73, %p74
    %p76 = scmp.ne.s32.totalorder %s64, %s65
    %p77 = scmp.eq.s32.totalorder %s18, 5
    %p78 = por %p76, %p77
    %p80 = scmp.ne.s32.totalorder %s65, %s79
    %p81 = scmp.eq.s32.totalorder %s18, 0
    %p82 = por %p80, %p81
    %s84 = sadd.s32 %s83, 1
    %p87 = scmp.eq.s32.totalorder %s12, 5
    %p88 = scmp.ne.s32.totalorder %s83, %s85
    %p89 = scmp.eq.s32.totalorder %s12, 0
    %p90 = por %p88, %p89
    %p91 = scmp.ne.s32.totalorder %s83, %s85
    %p92 = scmp.eq.s32.totalorder %s17, 5
    %p93 = por %p91, %p92
    %p94 = scmp.ne.s32.totalorder %s85, %s86
    %p95 = scmp.eq.s32.totalorder %s17, 0
    %p96 = por %p94, %p95
    %p97 = scmp.ne.s32.totalorder %s85, %s86
    %p98 = scmp.eq.s32.totalorder %s18, 5
    %p99 = por %p97, %p98
    %p101 = scmp.ne.s32.totalorder %s86, %s100
    %p102 = scmp.eq.s32.totalorder %s18, 0
    %p103 = por %p101, %p102
    %s105 = sadd.s32 %s104, 1
    %p108 = scmp.eq.s32.totalorder %s12, 5
    %p109 = scmp.ne.s32.totalorder %s104, %s106
    %p110 = scmp.eq.s32.totalorder %s12, 0
    %p111 = por %p109, %p110
    %p112 = scmp.ne.s32.totalorder %s104, %s106
    %p113 = scmp.eq.s32.totalorder %s17, 5
    %p114 = por %p112, %p113
    %p115 = scmp.ne.s32.totalorder %s106, %s107
    %p116 = scmp.eq.s32.totalorder %s17, 0
    %p117 = por %p115, %p116
    %p118 = scmp.ne.s32.totalorder %s106, %s107
    %p119 = scmp.eq.s32.totalorder %s18, 5
    %p120 = por %p118, %p119
    %p122 = scmp.ne.s32.totalorder %s107, %s121
    %p123 = scmp.eq.s32.totalorder %s18, 0
    %p124 = por %p122, %p123
    %s126 = sadd.s32 %s125, 1
    %p129 = scmp.eq.s32.totalorder %s12, 5
    %p130 = scmp.ne.s32.totalorder %s125, %s127
    %p131 = scmp.eq.s32.totalorder %s12, 0
    %p132 = por %p130, %p131
    %p133 = scmp.ne.s32.totalorder %s125, %s127
    %p134 = scmp.eq.s32.totalorder %s17, 5
    %p135 = por %p133, %p134
    %p136 = scmp.ne.s32.totalorder %s127, %s128
    %p137 = scmp.eq.s32.totalorder %s17, 0
    %p138 = por %p136, %p137
    %p139 = scmp.ne.s32.totalorder %s127, %s128
    %p140 = scmp.eq.s32.totalorder %s18, 5
    %p141 = por %p139, %p140
    %p143 = scmp.ne.s32.totalorder %s128, %s142
    %p144 = scmp.eq.s32.totalorder %s18, 0
    %p145 = por %p143, %p144
    %s147 = sadd.s32 %s146, 1
    %p150 = scmp.eq.s32.totalorder %s12, 5
    %p151 = scmp.ne.s32.totalorder %s146, %s148
    %p152 = scmp.eq.s32.totalorder %s12, 0
    %p153 = por %p151, %p152
    %p154 = scmp.ne.s32.totalorder %s146, %s148
    %p155 = scmp.eq.s32.totalorder %s17, 5
    %p156 = por %p154, %p155
    %p157 = scmp.ne.s32.totalorder %s148, %s149
    %p158 = scmp.eq.s32.totalorder %s17, 0
    %p159 = por %p157, %p158
    %p160 = scmp.ne.s32.totalorder %s148, %s149
    %p161 = scmp.eq.s32.totalorder %s18, 5
    %p162 = por %p160, %p161
    %p164 = scmp.ne.s32.totalorder %s149, %s163
    %p165 = scmp.eq.s32.totalorder %s18, 0
    %p166 = por %p164, %p165
    %p167 = scmp.eq.s32.totalorder %s19, 2
    %s168 = scalar_select %p167, %s20, 0
    %p169 = scmp.eq.s32.totalorder %s31, 2
    %s170 = scalar_select %p169, %s27, 0
    %s171 = ssub.s32 %s168, %s170
    %p172 = scmp.eq.s32.totalorder %s171, 0
    %s174 = sadd.s32 %s173, 1
    %s175 = scalar_select %p172, %s173, %s174
    %p178 = pneg %p172
    %p179 = scmp.eq.s32.totalorder %s12, 5
    %p180 = por %p178, %p179
    %p181 = scmp.ne.s32.totalorder %s173, %s176
    %p182 = scmp.eq.s32.totalorder %s12, 0
    %p183 = por %p181, %p182
    %p184 = scmp.ne.s32.totalorder %s173, %s176
    %p185 = scmp.eq.s32.totalorder %s17, 5
    %p186 = por %p184, %p185
    %p187 = scmp.ne.s32.totalorder %s176, %s177
    %p188 = scmp.eq.s32.totalorder %s17, 0
    %p189 = por %p187, %p188
    %p190 = scmp.ne.s32.totalorder %s176, %s177
    %p191 = scmp.eq.s32.totalorder %s18, 5
    %p192 = por %p190, %p191
    %p194 = scmp.ne.s32.totalorder %s177, %s193
    %p195 = scmp.eq.s32.totalorder %s18, 0
    %p196 = por %p194, %p195
    %p197 = scmp.le.s32.totalorder 1, %s12
    %p198 = scmp.lt.s32.totalorder %s12, 7
    %p199 = pnand %p197, %p198
    %p200 = pneg %p199
    // Predicated region
    $region9: #{convnet_nopool_forward.5} parent=5 // pred_check
      _
    $region10: #{convnet_nopool_forward.5} parent=5 // pred_check_branch
      %202 = sbr.rel (%p199) target = $region12
    $region11: #{convnet_nopool_forward.5} parent=5 // pred_region
      %s203 = ssub.s32 %s12, 1
      // Predicated region
      $region13: #{convnet_nopool_forward.5} parent=11 // pred_check
        %p204 = pneg %p75
      $region14: #{convnet_nopool_forward.5} parent=11 // pred_check_branch
        %206 = sbr.rel (%p204) target = $region16
      $region15: #{convnet_nopool_forward.5} parent=11 // pred_region
        _
      $region16: #{convnet_nopool_forward.5} parent=11 // pred_fallthru
        _
      // Predicated region
      $region17: #{convnet_nopool_forward.5} parent=11 // pred_check
        %p207 = pneg %p96
      $region18: #{convnet_nopool_forward.5} parent=11 // pred_check_branch
        %209 = sbr.rel (%p207) target = $region20
      $region19: #{convnet_nopool_forward.5} parent=11 // pred_region
        _
      $region20: #{convnet_nopool_forward.5} parent=11 // pred_fallthru
        _
      // Predicated region
      $region21: #{convnet_nopool_forward.5} parent=11 // pred_check
        %p210 = pneg %p117
      $region22: #{convnet_nopool_forward.5} parent=11 // pred_check_branch
        %212 = sbr.rel (%p210) target = $region24
      $region23: #{convnet_nopool_forward.5} parent=11 // pred_region
        _
      $region24: #{convnet_nopool_forward.5} parent=11 // pred_fallthru
        _
      // Predicated region
      $region25: #{convnet_nopool_forward.5} parent=11 // pred_check
        %p213 = pneg %p138
      $region26: #{convnet_nopool_forward.5} parent=11 // pred_check_branch
        %215 = sbr.rel (%p213) target = $region28
      $region27: #{convnet_nopool_forward.5} parent=11 // pred_region
        _
      $region28: #{convnet_nopool_forward.5} parent=11 // pred_fallthru
        _
      // Predicated region
      $region29: #{convnet_nopool_forward.5} parent=11 // pred_check
        %p216 = pneg %p159
      $region30: #{convnet_nopool_forward.5} parent=11 // pred_check_branch
        %218 = sbr.rel (%p216) target = $region32
      $region31: #{convnet_nopool_forward.5} parent=11 // pred_region
        _
      $region32: #{convnet_nopool_forward.5} parent=11 // pred_fallthru
        _
    $region12: #{convnet_nopool_forward.5} parent=5 // pred_fallthru
      _
    %p219 = scmp.lt.s32.totalorder %s12, 6
    // Predicated region
    $region33: #{convnet_nopool_forward.5} parent=5 // pred_check
      %p220 = pneg %p219
    $region34: #{convnet_nopool_forward.5} parent=5 // pred_check_branch
      %222 = sbr.rel (%p220) target = $region36
    $region35: #{convnet_nopool_forward.5} parent=5 // pred_region
      // Predicated region
      $region37: #{convnet_nopool_forward.5} parent=35 // pred_check
        %p223 = pneg %p48
      $region38: #{convnet_nopool_forward.5} parent=35 // pred_check_branch
        %225 = sbr.rel (%p223) target = $region40
      $region39: #{convnet_nopool_forward.5} parent=35 // pred_region
        %p226 = scmp.eq.s32.totalorder %s19, 0
        %s227 = scalar_select %p226, %s20, 1
        %p228 = scmp.lt.s32.totalorder %s227, 1
        %s229 = scalar_select %p228, %s227, 1
        %s230 = smul.addr %s229, 7
        %s231 = smul.addr %s230, 4
        %s232 = scalar_lea.vmem %s0, %s231
        %p233 = scmp.eq.s32.totalorder %s19, 0
        %s234 = scalar_select %p233, %s20, 1
      $region40: #{convnet_nopool_forward.5} parent=35 // pred_fallthru
        _
    $region36: #{convnet_nopool_forward.5} parent=5 // pred_fallthru
      _
    %p235 = scmp.le.s32.totalorder 1, %s12
    %p236 = scmp.lt.s32.totalorder %s12, 7
    %p237 = pnand %p235, %p236
    %p238 = pneg %p237
    // Predicated region
    $region41: #{convnet_nopool_forward.5} parent=5 // pred_check
      _
    $region42: #{convnet_nopool_forward.5} parent=5 // pred_check_branch
      %240 = sbr.rel (%p237) target = $region44
    $region43: #{convnet_nopool_forward.5} parent=5 // pred_region
      %s241 = ssub.s32 %s12, 1
      %p242 = scmp.eq.s32.totalorder %s21, 0
      %s243 = scalar_select %p242, %s22, 1
      %p244 = scmp.lt.s32.totalorder %s243, 1
      %s245 = scalar_select %p244, %s243, 1
      %s246 = smul.addr %s245, 7
      %s247 = smul.addr %s246, 4
      %s248 = scalar_lea.vmem %s0, %s247
      %p249 = pneg %p54
      %p250 = pneg %p51
      %p251 = pneg %p75
      %p252 = pneg %p72
      %p253 = pneg %p96
      %p254 = pneg %p93
      %p255 = pneg %p117
      %p256 = pneg %p114
      %p257 = pneg %p138
      %p258 = pneg %p135
      %p259 = pneg %p159
      %p260 = pneg %p156
      %p261 = pneg %p189
      %p262 = pneg %p186
      %p263 = scmp.eq.s32.totalorder %s21, 2
      %s264 = scalar_select %p263, %s22, 0
      %p265 = scmp.lt.s32.totalorder %s264, 1
      %s266 = scalar_select %p265, %s264, 1
      %s267 = smul.addr %s266, 5
      %s268 = smul.addr %s267, 4
      %s269 = scalar_lea.vmem %s6, %s268
      %p270 = scmp.eq.s32.totalorder %s21, 0
      %s271 = scalar_select %p270, %s22, 1
      %p272 = scmp.lt.s32.totalorder %s271, 1
      %s273 = scalar_select %p272, %s271, 1
      %s274 = smul.addr %s273, 7
      %s275 = smul.addr %s274, 4
      %s276 = scalar_lea.vmem %s0, %s275
      %p277 = scmp.eq.s32.totalorder %s21, 0
      %s278 = scalar_select %p277, %s22, 1
      %p279 = scmp.eq.s32.totalorder %s21, 2
      %s280 = scalar_select %p279, %s22, 0
      %p281 = scmp.lt.s32.totalorder %s280, 1
      %s282 = scalar_select %p281, %s280, 1
      %s283 = smul.addr %s282, 5
      %s284 = smul.addr %s283, 4
      %s285 = scalar_lea.vmem %s6, %s284
      %p286 = scmp.eq.s32.totalorder %s21, 2
      %s287 = scalar_select %p286, %s22, 0
      %p289 = scmp.eq.s32.totalorder %s21, 0
      // Predicated region
      $region45: #{convnet_nopool_forward.5} parent=43 // pred_check
        %p290 = pneg %p289
      $region46: #{convnet_nopool_forward.5} parent=43 // pred_check_branch
        %292 = sbr.rel (%p290) target = $region48
      $region47: #{convnet_nopool_forward.5} parent=43 // pred_region
        %p293 = scmp.eq.s32.totalorder %s22, 0
        // Predicated region
        $region49: #{convnet_nopool_forward.5} parent=47 // pred_check
          %p294 = pneg %p293
        $region50: #{convnet_nopool_forward.5} parent=47 // pred_check_branch
          %296 = sbr.rel (%p294) target = $region52
        $region51: #{convnet_nopool_forward.5} parent=47 // pred_region
          %vm297 = vcmask 516096
          %298 = vst.msk [vmem:[#allocation3] sm:$0x1] %vm297, 0.0
        $region52: #{convnet_nopool_forward.5} parent=47 // pred_fallthru
          _
        %v299 = vld [vmem:[%s276] sm:$0xf]
        %v300 = vld [vmem:[%s276 + $0x4] sm:$0xf]
        %v301 = vld [vmem:[%s276 + $0x8] sm:$0xf]
        %v302 = vld [vmem:[%s276 + $0xc] sm:$0xf]
        %v303 = vld [vmem:[%s276 + $0x10] sm:$0x3]
        %v304 = vld [vmem:[%s1] sm:$0xf]
        %v305 = vld [vmem:[%s1 + $0x4] sm:$0xf]
        %v306 = vld [vmem:[%s1 + $0x8] sm:$0xf]
        %v307 = vld [vmem:[%s1 + $0xc] sm:$0xf]
        %v308 = vld [vmem:[%s1 + $0x10] sm:$0xf]
        %v309 = vld [vmem:[%s1 + $0x14] sm:$0xf]
        %v310 = vld [vmem:[%s1 + $0x18] sm:$0xf]
        %v311 = vld [vmem:[%s1 + $0x1c] sm:$0xf]
        %s312 = scalar_lea.vmem %s1, 32
        %v313 = vld [vmem:[%s312] sm:$0xf]
        %v314 = vld [vmem:[%s312 + $0x4] sm:$0xf]
        %v315 = vld [vmem:[%s312 + $0x8] sm:$0xf]
        %v316 = vld [vmem:[%s312 + $0xc] sm:$0xf]
        %v317 = vld [vmem:[%s312 + $0x10] sm:$0xf]
        %v318 = vld [vmem:[%s312 + $0x14] sm:$0xf]
        %v319 = vld [vmem:[%s312 + $0x18] sm:$0xf]
        %v320 = vld [vmem:[%s312 + $0x1c] sm:$0xf]
        %v326 = vunpack.c.l.b16 %v299
        %v327 = vunpack.c.l.b16 %v300
        %v328 = vunpack.c.l.b16 %v301
        %v329 = vunpack.c.l.b16 %v302
        %v330 = vunpack.c.l.b16 %v303
        %v331 = vpack.c.b16 %v327, %v326
        %v332 = vpack.c.b16 %v329, %v328
        %v333 = vpack.c.b16 %v330, %v330
        %vm334 = vsmask.f32 7424
        %v336 = vshrl.u32 %v331, 16
        %v338 = vshll.u32 %v331, 16
        %v340 = vrot.slane %v338, 1
        %v341 = vor.u32 %v336, %v340
        %v343 = vshll.u32 %v332, 16
        %v345 = vrot.slane %v343, 1
        %v346 = vsel %vm334, %v341, %v345
        %v347 = vshrl.u32 %v332, 16
        %v349 = vor.u32 %v347, %v345
        %v351 = vshll.u32 %v333, 16
        %v353 = vrot.slane %v351, 1
        %v354 = vsel %vm334, %v349, %v353
        %v355 = vshrl.u32 %v333, 16
        %v357 = vor.u32 %v355, %v353
        %v366 = vunpack.c.l.b16 %v313
        %v367 = vunpack.c.l.b16 %v314
        %v368 = vunpack.c.l.b16 %v315
        %v369 = vunpack.c.l.b16 %v316
        %v370 = vunpack.c.l.b16 %v317
        %v371 = vunpack.c.l.b16 %v318
        %v372 = vunpack.c.l.b16 %v319
        %v373 = vunpack.c.l.b16 %v320
        %v374 = vpack.c.b16 %v367, %v366
        %v375 = vpack.c.b16 %v369, %v368
        %v376 = vpack.c.b16 %v371, %v370
        %v377 = vpack.c.b16 %v373, %v372
        %vm382 = vcmask 523264
        %v384 = vsel %vm382, %v346, 0
        %v387 = vsel %vm382, %v354, 0
        %v390 = vsel %vm382, %v357, 0
        %392 = vmatprep.subr.bf16.mxu0 0
        %393 = vmatpush1.bf16.msra.mxu0 %v374
        %394 = vmatprep.subr.bf16.mxu0 0
        %395 = vmatpush1.bf16.msra.mxu0 %v375
        %396 = vmatprep.subr.bf16.mxu0 0
        %397 = vmatpush1.bf16.msra.mxu0 %v376
        %398 = vmatprep.subr.bf16.mxu0 0
        %399 = vmatpush1.bf16.msra.mxu0 %v377
        %400 = vmatprep.subr.bf16.mxu0 0
        %401 = vmatpush1.bf16.msra.mxu0 0
        %402 = vmatprep.subr.bf16.mxu0 0
        %403 = vmatpush1.bf16.msra.mxu0 0
        %404 = vmatprep.subr.bf16.mxu0 0
        %405 = vmatpush1.bf16.msra.mxu0 0
        %406 = vmatprep.subr.bf16.mxu0 0
        %407 = vmatpush1.bf16.msra.mxu0 0
        %408 = vmatprep.subr.bf16.mxu0 0
        %409 = vmatpush1.bf16.msra.mxu0 0
        %410 = vmatprep.subr.bf16.mxu0 0
        %411 = vmatpush1.bf16.msra.mxu0 0
        %412 = vmatprep.subr.bf16.mxu0 0
        %413 = vmatpush1.bf16.msra.mxu0 0
        %414 = vmatprep.subr.bf16.mxu0 0
        %415 = vmatpush1.bf16.msra.mxu0 0
        %416 = vmatprep.subr.bf16.mxu0 0
        %417 = vmatpush1.bf16.msra.mxu0 0
        %418 = vmatprep.subr.bf16.mxu0 0
        %419 = vmatpush1.bf16.msra.mxu0 0
        %420 = vmatprep.subr.bf16.mxu0 0
        %421 = vmatpush1.bf16.msra.mxu0 0
        %422 = vmatprep.subr.bf16.mxu0 0
        %423 = vmatpush1.bf16.msra.mxu0 0
        %424 = vmatprep.mubr.bf16.mxu0 0
        %425 = vmatmul.mubr.bf16.gmra.mrb[0].mxu0 %v384
        %v426 = vpop.f32.mrb[0].mxu0
        %v427 = vadd.f32 0.0, %v426
        %v428 = vpop.f32.mrb[0].mxu0
        %v429 = vpop.f32.mrb[0].mxu0
        %v430 = vadd.f32 0.0, %v429
        %v431 = vpop.f32.mrb[0].mxu0
        %432 = vmatprep.mubr.bf16.mxu0 0
        %433 = vmatmul.mubr.bf16.gmra.mrb[0].mxu0 %v387
        %v434 = vpop.f32.mrb[0].mxu0
        %v435 = vadd.f32 0.0, %v434
        %v436 = vpop.f32.mrb[0].mxu0
        %v437 = vpop.f32.mrb[0].mxu0
        %v438 = vadd.f32 0.0, %v437
        %v439 = vpop.f32.mrb[0].mxu0
        %440 = vmatprep.mubr.bf16.mxu0 0
        %441 = vmatmul.mubr.bf16.gmra.mrb[0].mxu0 %v390
        %v442 = vpop.f32.mrb[0].mxu0
        %v443 = vadd.f32 0.0, %v442
        %v444 = vpop.f32.mrb[0].mxu0
        %v445 = vpop.f32.mrb[0].mxu0
        %v446 = vpop.f32.mrb[0].mxu0
        %447 = vdwg.mxu0
        %v456 = vunpack.c.l.b16 %v304
        %v457 = vunpack.c.l.b16 %v305
        %v458 = vunpack.c.l.b16 %v306
        %v459 = vunpack.c.l.b16 %v307
        %v460 = vunpack.c.l.b16 %v308
        %v461 = vunpack.c.l.b16 %v309
        %v462 = vunpack.c.l.b16 %v310
        %v463 = vunpack.c.l.b16 %v311
        %v464 = vpack.c.b16 %v457, %v456
        %v465 = vpack.c.b16 %v459, %v458
        %v466 = vpack.c.b16 %v461, %v460
        %v467 = vpack.c.b16 %v463, %v462
        %v472 = vsel %vm382, %v331, 0
        %v474 = vsel %vm382, %v332, 0
        %v476 = vsel %vm382, %v333, 0
        %478 = vmatprep.subr.bf16.mxu0 0
        %479 = vmatpush1.bf16.msra.mxu0 %v464
        %480 = vmatprep.subr.bf16.mxu0 0
        %481 = vmatpush1.bf16.msra.mxu0 %v465
        %482 = vmatprep.subr.bf16.mxu0 0
        %483 = vmatpush1.bf16.msra.mxu0 %v466
        %484 = vmatprep.subr.bf16.mxu0 0
        %485 = vmatpush1.bf16.msra.mxu0 %v467
        %486 = vmatprep.subr.bf16.mxu0 0
        %487 = vmatpush1.bf16.msra.mxu0 0
        %488 = vmatprep.subr.bf16.mxu0 0
        %489 = vmatpush1.bf16.msra.mxu0 0
        %490 = vmatprep.subr.bf16.mxu0 0
        %491 = vmatpush1.bf16.msra.mxu0 0
        %492 = vmatprep.subr.bf16.mxu0 0
        %493 = vmatpush1.bf16.msra.mxu0 0
        %494 = vmatprep.subr.bf16.mxu0 0
        %495 = vmatpush1.bf16.msra.mxu0 0
        %496 = vmatprep.subr.bf16.mxu0 0
        %497 = vmatpush1.bf16.msra.mxu0 0
        %498 = vmatprep.subr.bf16.mxu0 0
        %499 = vmatpush1.bf16.msra.mxu0 0
        %500 = vmatprep.subr.bf16.mxu0 0
        %501 = vmatpush1.bf16.msra.mxu0 0
        %502 = vmatprep.subr.bf16.mxu0 0
        %503 = vmatpush1.bf16.msra.mxu0 0
        %504 = vmatprep.subr.bf16.mxu0 0
        %505 = vmatpush1.bf16.msra.mxu0 0
        %506 = vmatprep.subr.bf16.mxu0 0
        %507 = vmatpush1.bf16.msra.mxu0 0
        %508 = vmatprep.subr.bf16.mxu0 0
        %509 = vmatpush1.bf16.msra.mxu0 0
        %510 = vmatprep.mubr.bf16.mxu0 0
        %511 = vmatmul.mubr.bf16.gmra.mrb[0].mxu0 %v472
        %v512 = vpop.f32.mrb[0].mxu0
        %v513 = vadd.f32 %v427, %v512
        %v514 = vpop.f32.mrb[0].mxu0
        %v515 = vpop.f32.mrb[0].mxu0
        %v516 = vadd.f32 %v430, %v515
        %v517 = vpop.f32.mrb[0].mxu0
        %518 = vmatprep.mubr.bf16.mxu0 0
        %519 = vmatmul.mubr.bf16.gmra.mrb[0].mxu0 %v474
        %v520 = vpop.f32.mrb[0].mxu0
        %v521 = vadd.f32 %v435, %v520
        %v522 = vpop.f32.mrb[0].mxu0
        %v523 = vpop.f32.mrb[0].mxu0
        %v524 = vadd.f32 %v438, %v523
        %v525 = vpop.f32.mrb[0].mxu0
        %526 = vmatprep.mubr.bf16.mxu0 0
        %527 = vmatmul.mubr.bf16.gmra.mrb[0].mxu0 %v476
        %v528 = vpop.f32.mrb[0].mxu0
        %v529 = vadd.f32 %v443, %v528
        %v530 = vpop.f32.mrb[0].mxu0
        %v531 = vpop.f32.mrb[0].mxu0
        %v532 = vpop.f32.mrb[0].mxu0
        %533 = vdwg.mxu0
        %v534 = vld [vmem:[%s276] sm:$0xe]
        %v535 = vld [vmem:[%s276 + $0x10] sm:$0x7]
        %s536 = scalar_lea.vmem %s1, 64
        %v537 = vld [vmem:[%s536] sm:$0xf]
        %v538 = vld [vmem:[%s536 + $0x4] sm:$0xf]
        %v539 = vld [vmem:[%s536 + $0x8] sm:$0xf]
        %v540 = vld [vmem:[%s536 + $0xc] sm:$0xf]
        %v541 = vld [vmem:[%s536 + $0x10] sm:$0xf]
        %v542 = vld [vmem:[%s536 + $0x14] sm:$0xf]
        %v543 = vld [vmem:[%s536 + $0x18] sm:$0xf]
        %v544 = vld [vmem:[%s536 + $0x1c] sm:$0xf]
        %v547 = vunpack.c.l.b16 %v534
        %v548 = vunpack.c.l.b16 %v535
        %v549 = vpack.c.b16 %v327, %v547
        %v550 = vpack.c.b16 %v548, %v548
        %vm551 = vcmask 1046528
        %v552 = vrot.slane %v549, 1
        %v553 = vrot.slane %v332, 1
        %v554 = vsel %vm551, %v552, %v553
        %v555 = vrot.slane %v550, 1
        %v556 = vsel %vm551, %v553, %v555
        %v565 = vunpack.c.l.b16 %v537
        %v566 = vunpack.c.l.b16 %v538
        %v567 = vunpack.c.l.b16 %v539
        %v568 = vunpack.c.l.b16 %v540
        %v569 = vunpack.c.l.b16 %v541
        %v570 = vunpack.c.l.b16 %v542
        %v571 = vunpack.c.l.b16 %v543
        %v572 = vunpack.c.l.b16 %v544
        %v573 = vpack.c.b16 %v566, %v565
        %v574 = vpack.c.b16 %v568, %v567
        %v575 = vpack.c.b16 %v570, %v569
        %v576 = vpack.c.b16 %v572, %v571
        %v582 = vsel %vm382, %v554, 0
        %v585 = vsel %vm382, %v556, 0
        %v588 = vsel %vm382, %v555, 0
        %590 = vmatprep.subr.bf16.mxu0 0
        %591 = vmatpush1.bf16.msra.mxu0 %v573
        %592 = vmatprep.subr.bf16.mxu0 0
        %593 = vmatpush1.bf16.msra.mxu0 %v574
        %594 = vmatprep.subr.bf16.mxu0 0
        %595 = vmatpush1.bf16.msra.mxu0 %v575
        %596 = vmatprep.subr.bf16.mxu0 0
        %597 = vmatpush1.bf16.msra.mxu0 %v576
        %598 = vmatprep.subr.bf16.mxu0 0
        %599 = vmatpush1.bf16.msra.mxu0 0
        %600 = vmatprep.subr.bf16.mxu0 0
        %601 = vmatpush1.bf16.msra.mxu0 0
        %602 = vmatprep.subr.bf16.mxu0 0
        %603 = vmatpush1.bf16.msra.mxu0 0
        %604 = vmatprep.subr.bf16.mxu0 0
        %605 = vmatpush1.bf16.msra.mxu0 0
        %606 = vmatprep.subr.bf16.mxu0 0
        %607 = vmatpush1.bf16.msra.mxu0 0
        %608 = vmatprep.subr.bf16.mxu0 0
        %609 = vmatpush1.bf16.msra.mxu0 0
        %610 = vmatprep.subr.bf16.mxu0 0
        %611 = vmatpush1.bf16.msra.mxu0 0
        %612 = vmatprep.subr.bf16.mxu0 0
        %613 = vmatpush1.bf16.msra.mxu0 0
        %614 = vmatprep.subr.bf16.mxu0 0
        %615 = vmatpush1.bf16.msra.mxu0 0
        %616 = vmatprep.subr.bf16.mxu0 0
        %617 = vmatpush1.bf16.msra.mxu0 0
        %618 = vmatprep.subr.bf16.mxu0 0
        %619 = vmatpush1.bf16.msra.mxu0 0
        %620 = vmatprep.subr.bf16.mxu0 0
        %621 = vmatpush1.bf16.msra.mxu0 0
        %622 = vmatprep.mubr.bf16.mxu0 0
        %623 = vmatmul.mubr.bf16.gmra.mrb[0].mxu0 %v582
        %v624 = vpop.f32.mrb[0].mxu0
        %v625 = vadd.f32 0.0, %v624
        %v626 = vpop.f32.mrb[0].mxu0
        %v627 = vpop.f32.mrb[0].mxu0
        %v628 = vadd.f32 0.0, %v627
        %v629 = vpop.f32.mrb[0].mxu0
        %630 = vmatprep.mubr.bf16.mxu0 0
        %631 = vmatmul.mubr.bf16.gmra.mrb[0].mxu0 %v585
        %v632 = vpop.f32.mrb[0].mxu0
        %v633 = vadd.f32 0.0, %v632
        %v634 = vpop.f32.mrb[0].mxu0
        %v635 = vpop.f32.mrb[0].mxu0
        %v636 = vadd.f32 0.0, %v635
        %v637 = vpop.f32.mrb[0].mxu0
        %638 = vmatprep.mubr.bf16.mxu0 0
        %639 = vmatmul.mubr.bf16.gmra.mrb[0].mxu0 %v588
        %v640 = vpop.f32.mrb[0].mxu0
        %v641 = vadd.f32 0.0, %v640
        %v642 = vpop.f32.mrb[0].mxu0
        %v643 = vpop.f32.mrb[0].mxu0
        %v644 = vpop.f32.mrb[0].mxu0
        %645 = vdwg.mxu0
        %v646 = vadd.f32 %v513, %v625
        %v647 = vadd.f32 %v516, %v628
        %v648 = vadd.f32 %v521, %v633
        %v649 = vadd.f32 %v524, %v636
        %v650 = vadd.f32 %v529, %v641
        %v651 = vld [vmem:[%s276] sm:$0x8]
        %v652 = vld [vmem:[%s276 + $0x4] sm:$0xf]
        %v653 = vld [vmem:[%s276 + $0x8] sm:$0xf]
        %v654 = vld [vmem:[%s276 + $0xc] sm:$0xf]
        %v655 = vld [vmem:[%s276 + $0x10] sm:$0xf]
        %v656 = vld [vmem:[%s276 + $0x14] sm:$0x1]
        %s657 = scalar_lea.vmem %s1, 96
        %v658 = vld [vmem:[%s657] sm:$0xf]
        %v659 = vld [vmem:[%s657 + $0x4] sm:$0xf]
        %v660 = vld [vmem:[%s657 + $0x8] sm:$0xf]
        %v661 = vld [vmem:[%s657 + $0xc] sm:$0xf]
        %v662 = vld [vmem:[%s657 + $0x10] sm:$0xf]
        %v663 = vld [vmem:[%s657 + $0x14] sm:$0xf]
        %v664 = vld [vmem:[%s657 + $0x18] sm:$0xf]
        %v665 = vld [vmem:[%s657 + $0x1c] sm:$0xf]
        %v672 = vunpack.c.l.b16 %v651
        %v673 = vunpack.c.l.b16 %v652
        %v674 = vunpack.c.l.b16 %v653
        %v675 = vunpack.c.l.b16 %v654
        %v676 = vunpack.c.l.b16 %v655
        %v677 = vunpack.c.l.b16 %v656
        %v678 = vpack.c.b16 %v673, %v672
        %v679 = vpack.c.b16 %v675, %v674
        %v680 = vpack.c.b16 %v677, %v676
        %vm681 = vsmask.f32 4352
        %v683 = vshrl.u32 %v678, 16
        %v685 = vrot.slane %v683, 3
        %v686 = vshll.u32 %v678, 16
        %v688 = vrot.slane %v686, 4
        %v689 = vor.u32 %v685, %v688
        %v691 = vshrl.u32 %v679, 16
        %v693 = vrot.slane %v691, 3
        %v694 = vshll.u32 %v679, 16
        %v696 = vrot.slane %v694, 4
        %v697 = vor.u32 %v693, %v696
        %v698 = vsel %vm681, %v689, %v697
        %v700 = vshrl.u32 %v680, 16
        %v702 = vrot.slane %v700, 3
        %v703 = vshll.u32 %v680, 16
        %v705 = vrot.slane %v703, 4
        %v706 = vor.u32 %v702, %v705
        %v707 = vsel %vm681, %v697, %v706
        %v716 = vunpack.c.l.b16 %v658
        %v717 = vunpack.c.l.b16 %v659
        %v718 = vunpack.c.l.b16 %v660
        %v719 = vunpack.c.l.b16 %v661
        %v720 = vunpack.c.l.b16 %v662
        %v721 = vunpack.c.l.b16 %v663
        %v722 = vunpack.c.l.b16 %v664
        %v723 = vunpack.c.l.b16 %v665
        %v724 = vpack.c.b16 %v717, %v716
        %v725 = vpack.c.b16 %v719, %v718
        %v726 = vpack.c.b16 %v721, %v720
        %v727 = vpack.c.b16 %v723, %v722
        %v733 = vsel %vm382, %v698, 0
        %v736 = vsel %vm382, %v707, 0
        %v739 = vsel %vm382, %v706, 0
        %741 = vmatprep.subr.bf16.mxu0 0
        %742 = vmatpush1.bf16.msra.mxu0 %v724
        %743 = vmatprep.subr.bf16.mxu0 0
        %744 = vmatpush1.bf16.msra.mxu0 %v725
        %745 = vmatprep.subr.bf16.mxu0 0
        %746 = vmatpush1.bf16.msra.mxu0 %v726
        %747 = vmatprep.subr.bf16.mxu0 0
        %748 = vmatpush1.bf16.msra.mxu0 %v727
        %749 = vmatprep.subr.bf16.mxu0 0
        %750 = vmatpush1.bf16.msra.mxu0 0
        %751 = vmatprep.subr.bf16.mxu0 0
        %752 = vmatpush1.bf16.msra.mxu0 0
        %753 = vmatprep.subr.bf16.mxu0 0
        %754 = vmatpush1.bf16.msra.mxu0 0
        %755 = vmatprep.subr.bf16.mxu0 0
        %756 = vmatpush1.bf16.msra.mxu0 0
        %757 = vmatprep.subr.bf16.mxu0 0
        %758 = vmatpush1.bf16.msra.mxu0 0
        %759 = vmatprep.subr.bf16.mxu0 0
        %760 = vmatpush1.bf16.msra.mxu0 0
        %761 = vmatprep.subr.bf16.mxu0 0
        %762 = vmatpush1.bf16.msra.mxu0 0
        %763 = vmatprep.subr.bf16.mxu0 0
        %764 = vmatpush1.bf16.msra.mxu0 0
        %765 = vmatprep.subr.bf16.mxu0 0
        %766 = vmatpush1.bf16.msra.mxu0 0
        %767 = vmatprep.subr.bf16.mxu0 0
        %768 = vmatpush1.bf16.msra.mxu0 0
        %769 = vmatprep.subr.bf16.mxu0 0
        %770 = vmatpush1.bf16.msra.mxu0 0
        %771 = vmatprep.subr.bf16.mxu0 0
        %772 = vmatpush1.bf16.msra.mxu0 0
        %773 = vmatprep.mubr.bf16.mxu0 0
        %774 = vmatmul.mubr.bf16.gmra.mrb[0].mxu0 %v733
        %v775 = vpop.f32.mrb[0].mxu0
        %v776 = vadd.f32 0.0, %v775
        %v777 = vpop.f32.mrb[0].mxu0
        %v778 = vpop.f32.mrb[0].mxu0
        %v779 = vadd.f32 0.0, %v778
        %v780 = vpop.f32.mrb[0].mxu0
        %781 = vmatprep.mubr.bf16.mxu0 0
        %782 = vmatmul.mubr.bf16.gmra.mrb[0].mxu0 %v736
        %v783 = vpop.f32.mrb[0].mxu0
        %v784 = vadd.f32 0.0, %v783
        %v785 = vpop.f32.mrb[0].mxu0
        %v786 = vpop.f32.mrb[0].mxu0
        %v787 = vadd.f32 0.0, %v786
        %v788 = vpop.f32.mrb[0].mxu0
        %789 = vmatprep.mubr.bf16.mxu0 0
        %790 = vmatmul.mubr.bf16.gmra.mrb[0].mxu0 %v739
        %v791 = vpop.f32.mrb[0].mxu0
        %v792 = vadd.f32 0.0, %v791
        %v793 = vpop.f32.mrb[0].mxu0
        %v794 = vpop.f32.mrb[0].mxu0
        %v795 = vpop.f32.mrb[0].mxu0
        %796 = vdwg.mxu0
        %v797 = vadd.f32 %v646, %v776
        %v798 = vadd.f32 %v647, %v779
        %v799 = vadd.f32 %v648, %v784
        %v800 = vadd.f32 %v649, %v787
        %v801 = vadd.f32 %v650, %v792
        %v802 = vld [vmem:[%s276 + $0x14] sm:$0x3]
        %s803 = scalar_lea.vmem %s1, 128
        %v804 = vld [vmem:[%s803] sm:$0xf]
        %v805 = vld [vmem:[%s803 + $0x4] sm:$0xf]
        %v806 = vld [vmem:[%s803 + $0x8] sm:$0xf]
        %v807 = vld [vmem:[%s803 + $0xc] sm:$0xf]
        %v808 = vld [vmem:[%s803 + $0x10] sm:$0xf]
        %v809 = vld [vmem:[%s803 + $0x14] sm:$0xf]
        %v810 = vld [vmem:[%s803 + $0x18] sm:$0xf]
        %v811 = vld [vmem:[%s803 + $0x1c] sm:$0xf]
        %v813 = vunpack.c.l.b16 %v802
        %v814 = vpack.c.b16 %v674, %v673
        %v815 = vpack.c.b16 %v676, %v675
        %v816 = vpack.c.b16 %v813, %v813
        %v825 = vunpack.c.l.b16 %v804
        %v826 = vunpack.c.l.b16 %v805
        %v827 = vunpack.c.l.b16 %v806
        %v828 = vunpack.c.l.b16 %v807
        %v829 = vunpack.c.l.b16 %v808
        %v830 = vunpack.c.l.b16 %v809
        %v831 = vunpack.c.l.b16 %v810
        %v832 = vunpack.c.l.b16 %v811
        %v833 = vpack.c.b16 %v826, %v825
        %v834 = vpack.c.b16 %v828, %v827
        %v835 = vpack.c.b16 %v830, %v829
        %v836 = vpack.c.b16 %v832, %v831
        %v842 = vsel %vm382, %v814, 0
        %v845 = vsel %vm382, %v815, 0
        %v848 = vsel %vm382, %v816, 0
        %850 = vmatprep.subr.bf16.mxu0 0
        %851 = vmatpush1.bf16.msra.mxu0 %v833
        %852 = vmatprep.subr.bf16.mxu0 0
        %853 = vmatpush1.bf16.msra.mxu0 %v834
        %854 = vmatprep.subr.bf16.mxu0 0
        %855 = vmatpush1.bf16.msra.mxu0 %v835
        %856 = vmatprep.subr.bf16.mxu0 0
        %857 = vmatpush1.bf16.msra.mxu0 %v836
        %858 = vmatprep.subr.bf16.mxu0 0
        %859 = vmatpush1.bf16.msra.mxu0 0
        %860 = vmatprep.subr.bf16.mxu0 0
        %861 = vmatpush1.bf16.msra.mxu0 0
        %862 = vmatprep.subr.bf16.mxu0 0
        %863 = vmatpush1.bf16.msra.mxu0 0
        %864 = vmatprep.subr.bf16.mxu0 0
        %865 = vmatpush1.bf16.msra.mxu0 0
        %866 = vmatprep.subr.bf16.mxu0 0
        %867 = vmatpush1.bf16.msra.mxu0 0
        %868 = vmatprep.subr.bf16.mxu0 0
        %869 = vmatpush1.bf16.msra.mxu0 0
        %870 = vmatprep.subr.bf16.mxu0 0
        %871 = vmatpush1.bf16.msra.mxu0 0
        %872 = vmatprep.subr.bf16.mxu0 0
        %873 = vmatpush1.bf16.msra.mxu0 0
        %874 = vmatprep.subr.bf16.mxu0 0
        %875 = vmatpush1.bf16.msra.mxu0 0
        %876 = vmatprep.subr.bf16.mxu0 0
        %877 = vmatpush1.bf16.msra.mxu0 0
        %878 = vmatprep.subr.bf16.mxu0 0
        %879 = vmatpush1.bf16.msra.mxu0 0
        %880 = vmatprep.subr.bf16.mxu0 0
        %881 = vmatpush1.bf16.msra.mxu0 0
        %882 = vmatprep.mubr.bf16.mxu0 0
        %883 = vmatmul.mubr.bf16.gmra.mrb[0].mxu0 %v842
        %v884 = vpop.f32.mrb[0].mxu0
        %v885 = vadd.f32 0.0, %v884
        %v886 = vpop.f32.mrb[0].mxu0
        %v887 = vpop.f32.mrb[0].mxu0
        %v888 = vadd.f32 0.0, %v887
        %v889 = vpop.f32.mrb[0].mxu0
        %890 = vmatprep.mubr.bf16.mxu0 0
        %891 = vmatmul.mubr.bf16.gmra.mrb[0].mxu0 %v845
        %v892 = vpop.f32.mrb[0].mxu0
        %v893 = vadd.f32 0.0, %v892
        %v894 = vpop.f32.mrb[0].mxu0
        %v895 = vpop.f32.mrb[0].mxu0
        %v896 = vadd.f32 0.0, %v895
        %v897 = vpop.f32.mrb[0].mxu0
        %898 = vmatprep.mubr.bf16.mxu0 0
        %899 = vmatmul.mubr.bf16.gmra.mrb[0].mxu0 %v848
        %v900 = vpop.f32.mrb[0].mxu0
        %v901 = vadd.f32 0.0, %v900
        %v902 = vpop.f32.mrb[0].mxu0
        %v903 = vpop.f32.mrb[0].mxu0
        %v904 = vpop.f32.mrb[0].mxu0
        %905 = vdwg.mxu0
        %v906 = vadd.f32 %v797, %v885
        %v907 = vadd.f32 %v798, %v888
        %v908 = vadd.f32 %v799, %v893
        %v909 = vadd.f32 %v800, %v896
        %v910 = vadd.f32 %v801, %v901
        %s911 = scalar_lea.vmem %s1, 160
        %v912 = vld [vmem:[%s911] sm:$0xf]
        %v913 = vld [vmem:[%s911 + $0x4] sm:$0xf]
        %v914 = vld [vmem:[%s911 + $0x8] sm:$0xf]
        %v915 = vld [vmem:[%s911 + $0xc] sm:$0xf]
        %v916 = vld [vmem:[%s911 + $0x10] sm:$0xf]
        %v917 = vld [vmem:[%s911 + $0x14] sm:$0xf]
        %v918 = vld [vmem:[%s911 + $0x18] sm:$0xf]
        %v919 = vld [vmem:[%s911 + $0x1c] sm:$0xf]
        %v920 = vshrl.u32 %v814, 16
        %v922 = vshll.u32 %v814, 16
        %v924 = vrot.slane %v922, 1
        %v925 = vor.u32 %v920, %v924
        %v926 = vshll.u32 %v815, 16
        %v928 = vrot.slane %v926, 1
        %v929 = vsel %vm334, %v925, %v928
        %v930 = vshrl.u32 %v815, 16
        %v932 = vor.u32 %v930, %v928
        %v933 = vshll.u32 %v816, 16
        %v935 = vrot.slane %v933, 1
        %v936 = vsel %vm334, %v932, %v935
        %v937 = vshrl.u32 %v816, 16
        %v939 = vor.u32 %v937, %v935
        %v948 = vunpack.c.l.b16 %v912
        %v949 = vunpack.c.l.b16 %v913
        %v950 = vunpack.c.l.b16 %v914
        %v951 = vunpack.c.l.b16 %v915
        %v952 = vunpack.c.l.b16 %v916
        %v953 = vunpack.c.l.b16 %v917
        %v954 = vunpack.c.l.b16 %v918
        %v955 = vunpack.c.l.b16 %v919
        %v956 = vpack.c.b16 %v949, %v948
        %v957 = vpack.c.b16 %v951, %v950
        %v958 = vpack.c.b16 %v953, %v952
        %v959 = vpack.c.b16 %v955, %v954
        %v965 = vsel %vm382, %v929, 0
        %v968 = vsel %vm382, %v936, 0
        %v971 = vsel %vm382, %v939, 0
        %973 = vmatprep.subr.bf16.mxu0 0
        %974 = vmatpush1.bf16.msra.mxu0 %v956
        %975 = vmatprep.subr.bf16.mxu0 0
        %976 = vmatpush1.bf16.msra.mxu0 %v957
        %977 = vmatprep.subr.bf16.mxu0 0
        %978 = vmatpush1.bf16.msra.mxu0 %v958
        %979 = vmatprep.subr.bf16.mxu0 0
        %980 = vmatpush1.bf16.msra.mxu0 %v959
        %981 = vmatprep.subr.bf16.mxu0 0
        %982 = vmatpush1.bf16.msra.mxu0 0
        %983 = vmatprep.subr.bf16.mxu0 0
        %984 = vmatpush1.bf16.msra.mxu0 0
        %985 = vmatprep.subr.bf16.mxu0 0
        %986 = vmatpush1.bf16.msra.mxu0 0
        %987 = vmatprep.subr.bf16.mxu0 0
        %988 = vmatpush1.bf16.msra.mxu0 0
        %989 = vmatprep.subr.bf16.mxu0 0
        %990 = vmatpush1.bf16.msra.mxu0 0
        %991 = vmatprep.subr.bf16.mxu0 0
        %992 = vmatpush1.bf16.msra.mxu0 0
        %993 = vmatprep.subr.bf16.mxu0 0
        %994 = vmatpush1.bf16.msra.mxu0 0
        %995 = vmatprep.subr.bf16.mxu0 0
        %996 = vmatpush1.bf16.msra.mxu0 0
        %997 = vmatprep.subr.bf16.mxu0 0
        %998 = vmatpush1.bf16.msra.mxu0 0
        %999 = vmatprep.subr.bf16.mxu0 0
        %1000 = vmatpush1.bf16.msra.mxu0 0
        %1001 = vmatprep.subr.bf16.mxu0 0
        %1002 = vmatpush1.bf16.msra.mxu0 0
        %1003 = vmatprep.subr.bf16.mxu0 0
        %1004 = vmatpush1.bf16.msra.mxu0 0
        %1005 = vmatprep.mubr.bf16.mxu0 0
        %1006 = vmatmul.mubr.bf16.gmra.mrb[0].mxu0 %v965
        %v1007 = vpop.f32.mrb[0].mxu0
        %v1008 = vadd.f32 0.0, %v1007
        %v1009 = vpop.f32.mrb[0].mxu0
        %v1010 = vpop.f32.mrb[0].mxu0
        %v1011 = vadd.f32 0.0, %v1010
        %v1012 = vpop.f32.mrb[0].mxu0
        %1013 = vmatprep.mubr.bf16.mxu0 0
        %1014 = vmatmul.mubr.bf16.gmra.mrb[0].mxu0 %v968
        %v1015 = vpop.f32.mrb[0].mxu0
        %v1016 = vadd.f32 0.0, %v1015
        %v1017 = vpop.f32.mrb[0].mxu0
        %v1018 = vpop.f32.mrb[0].mxu0
        %v1019 = vadd.f32 0.0, %v1018
        %v1020 = vpop.f32.mrb[0].mxu0
        %1021 = vmatprep.mubr.bf16.mxu0 0
        %1022 = vmatmul.mubr.bf16.gmra.mrb[0].mxu0 %v971
        %v1023 = vpop.f32.mrb[0].mxu0
        %v1024 = vadd.f32 0.0, %v1023
        %v1025 = vpop.f32.mrb[0].mxu0
        %v1026 = vpop.f32.mrb[0].mxu0
        %v1027 = vpop.f32.mrb[0].mxu0
        %1028 = vdwg.mxu0
        %v1029 = vadd.f32 %v906, %v1008
        %v1030 = vadd.f32 %v907, %v1011
        %v1031 = vadd.f32 %v908, %v1016
        %v1032 = vadd.f32 %v909, %v1019
        %v1033 = vadd.f32 %v910, %v1024
        %v1034 = vld [vmem:[%s276 + $0x4] sm:$0x8]
        %v1035 = vld [vmem:[%s276 + $0x8] sm:$0xf]
        %v1036 = vld [vmem:[%s276 + $0xc] sm:$0xf]
        %v1037 = vld [vmem:[%s276 + $0x10] sm:$0xf]
        %v1038 = vld [vmem:[%s276 + $0x14] sm:$0xf]
        %v1039 = vld [vmem:[%s276 + $0x18] sm:$0x1]
        %s1040 = scalar_lea.vmem %s1, 192
        %v1041 = vld [vmem:[%s1040] sm:$0xf]
        %v1042 = vld [vmem:[%s1040 + $0x4] sm:$0xf]
        %v1043 = vld [vmem:[%s1040 + $0x8] sm:$0xf]
        %v1044 = vld [vmem:[%s1040 + $0xc] sm:$0xf]
        %v1045 = vld [vmem:[%s1040 + $0x10] sm:$0xf]
        %v1046 = vld [vmem:[%s1040 + $0x14] sm:$0xf]
        %v1047 = vld [vmem:[%s1040 + $0x18] sm:$0xf]
        %v1048 = vld [vmem:[%s1040 + $0x1c] sm:$0xf]
        %v1055 = vunpack.c.l.b16 %v1034
        %v1056 = vunpack.c.l.b16 %v1035
        %v1057 = vunpack.c.l.b16 %v1036
        %v1058 = vunpack.c.l.b16 %v1037
        %v1059 = vunpack.c.l.b16 %v1038
        %v1060 = vunpack.c.l.b16 %v1039
        %v1061 = vpack.c.b16 %v1056, %v1055
        %v1062 = vpack.c.b16 %v1058, %v1057
        %v1063 = vpack.c.b16 %v1060, %v1059
        %vm1064 = vcmask 1044480
        %v1065 = vrot.slane %v1061, 3
        %v1066 = vrot.slane %v1062, 3
        %v1067 = vsel %vm1064, %v1065, %v1066
        %v1068 = vrot.slane %v1063, 3
        %v1069 = vsel %vm1064, %v1066, %v1068
        %v1078 = vunpack.c.l.b16 %v1041
        %v1079 = vunpack.c.l.b16 %v1042
        %v1080 = vunpack.c.l.b16 %v1043
        %v1081 = vunpack.c.l.b16 %v1044
        %v1082 = vunpack.c.l.b16 %v1045
        %v1083 = vunpack.c.l.b16 %v1046
        %v1084 = vunpack.c.l.b16 %v1047
        %v1085 = vunpack.c.l.b16 %v1048
        %v1086 = vpack.c.b16 %v1079, %v1078
        %v1087 = vpack.c.b16 %v1081, %v1080
        %v1088 = vpack.c.b16 %v1083, %v1082
        %v1089 = vpack.c.b16 %v1085, %v1084
        %v1095 = vsel %vm382, %v1067, 0
        %v1098 = vsel %vm382, %v1069, 0
        %v1101 = vsel %vm382, %v1068, 0
        %1103 = vmatprep.subr.bf16.mxu0 0
        %1104 = vmatpush1.bf16.msra.mxu0 %v1086
        %1105 = vmatprep.subr.bf16.mxu0 0
        %1106 = vmatpush1.bf16.msra.mxu0 %v1087
        %1107 = vmatprep.subr.bf16.mxu0 0
        %1108 = vmatpush1.bf16.msra.mxu0 %v1088
        %1109 = vmatprep.subr.bf16.mxu0 0
        %1110 = vmatpush1.bf16.msra.mxu0 %v1089
        %1111 = vmatprep.subr.bf16.mxu0 0
        %1112 = vmatpush1.bf16.msra.mxu0 0
        %1113 = vmatprep.subr.bf16.mxu0 0
        %1114 = vmatpush1.bf16.msra.mxu0 0
        %1115 = vmatprep.subr.bf16.mxu0 0
        %1116 = vmatpush1.bf16.msra.mxu0 0
        %1117 = vmatprep.subr.bf16.mxu0 0
        %1118 = vmatpush1.bf16.msra.mxu0 0
        %1119 = vmatprep.subr.bf16.mxu0 0
        %1120 = vmatpush1.bf16.msra.mxu0 0
        %1121 = vmatprep.subr.bf16.mxu0 0
        %1122 = vmatpush1.bf16.msra.mxu0 0
        %1123 = vmatprep.subr.bf16.mxu0 0
        %1124 = vmatpush1.bf16.msra.mxu0 0
        %1125 = vmatprep.subr.bf16.mxu0 0
        %1126 = vmatpush1.bf16.msra.mxu0 0
        %1127 = vmatprep.subr.bf16.mxu0 0
        %1128 = vmatpush1.bf16.msra.mxu0 0
        %1129 = vmatprep.subr.bf16.mxu0 0
        %1130 = vmatpush1.bf16.msra.mxu0 0
        %1131 = vmatprep.subr.bf16.mxu0 0
        %1132 = vmatpush1.bf16.msra.mxu0 0
        %1133 = vmatprep.subr.bf16.mxu0 0
        %1134 = vmatpush1.bf16.msra.mxu0 0
        %1135 = vmatprep.mubr.bf16.mxu0 0
        %1136 = vmatmul.mubr.bf16.gmra.mrb[0].mxu0 %v1095
        %v1137 = vpop.f32.mrb[0].mxu0
        %v1138 = vadd.f32 0.0, %v1137
        %v1139 = vpop.f32.mrb[0].mxu0
        %v1140 = vpop.f32.mrb[0].mxu0
        %v1141 = vadd.f32 0.0, %v1140
        %v1142 = vpop.f32.mrb[0].mxu0
        %1143 = vmatprep.mubr.bf16.mxu0 0
        %1144 = vmatmul.mubr.bf16.gmra.mrb[0].mxu0 %v1098
        %v1145 = vpop.f32.mrb[0].mxu0
        %v1146 = vadd.f32 0.0, %v1145
        %v1147 = vpop.f32.mrb[0].mxu0
        %v1148 = vpop.f32.mrb[0].mxu0
        %v1149 = vadd.f32 0.0, %v1148
        %v1150 = vpop.f32.mrb[0].mxu0
        %1151 = vmatprep.mubr.bf16.mxu0 0
        %1152 = vmatmul.mubr.bf16.gmra.mrb[0].mxu0 %v1101
        %v1153 = vpop.f32.mrb[0].mxu0
        %v1154 = vadd.f32 0.0, %v1153
        %v1155 = vpop.f32.mrb[0].mxu0
        %v1156 = vpop.f32.mrb[0].mxu0
        %v1157 = vpop.f32.mrb[0].mxu0
        %1158 = vdwg.mxu0
        %v1159 = vadd.f32 %v1029, %v1138
        %v1160 = vadd.f32 %v1030, %v1141
        %v1161 = vadd.f32 %v1031, %v1146
        %v1162 = vadd.f32 %v1032, %v1149
        %v1163 = vadd.f32 %v1033, %v1154
        %s1164 = scalar_lea.vmem %s1, 224
        %v1165 = vld [vmem:[%s1164] sm:$0xf]
        %v1166 = vld [vmem:[%s1164 + $0x4] sm:$0xf]
        %v1167 = vld [vmem:[%s1164 + $0x8] sm:$0xf]
        %v1168 = vld [vmem:[%s1164 + $0xc] sm:$0xf]
        %v1169 = vld [vmem:[%s1164 + $0x10] sm:$0xf]
        %v1170 = vld [vmem:[%s1164 + $0x14] sm:$0xf]
        %v1171 = vld [vmem:[%s1164 + $0x18] sm:$0xf]
        %v1172 = vld [vmem:[%s1164 + $0x1c] sm:$0xf]
        %v1174 = vshrl.u32 %v1061, 16
        %v1176 = vrot.slane %v1174, 3
        %v1177 = vshll.u32 %v1061, 16
        %v1179 = vrot.slane %v1177, 4
        %v1180 = vor.u32 %v1176, %v1179
        %v1182 = vshrl.u32 %v1062, 16
        %v1184 = vrot.slane %v1182, 3
        %v1185 = vshll.u32 %v1062, 16
        %v1187 = vrot.slane %v1185, 4
        %v1188 = vor.u32 %v1184, %v1187
        %v1189 = vsel %vm681, %v1180, %v1188
        %v1191 = vshrl.u32 %v1063, 16
        %v1193 = vrot.slane %v1191, 3
        %v1194 = vshll.u32 %v1063, 16
        %v1196 = vrot.slane %v1194, 4
        %v1197 = vor.u32 %v1193, %v1196
        %v1198 = vsel %vm681, %v1188, %v1197
        %v1207 = vunpack.c.l.b16 %v1165
        %v1208 = vunpack.c.l.b16 %v1166
        %v1209 = vunpack.c.l.b16 %v1167
        %v1210 = vunpack.c.l.b16 %v1168
        %v1211 = vunpack.c.l.b16 %v1169
        %v1212 = vunpack.c.l.b16 %v1170
        %v1213 = vunpack.c.l.b16 %v1171
        %v1214 = vunpack.c.l.b16 %v1172
        %v1215 = vpack.c.b16 %v1208, %v1207
        %v1216 = vpack.c.b16 %v1210, %v1209
        %v1217 = vpack.c.b16 %v1212, %v1211
        %v1218 = vpack.c.b16 %v1214, %v1213
        %v1224 = vsel %vm382, %v1189, 0
        %v1227 = vsel %vm382, %v1198, 0
        %v1230 = vsel %vm382, %v1197, 0
        %1232 = vmatprep.subr.bf16.mxu0 0
        %1233 = vmatpush1.bf16.msra.mxu0 %v1215
        %1234 = vmatprep.subr.bf16.mxu0 0
        %1235 = vmatpush1.bf16.msra.mxu0 %v1216
        %1236 = vmatprep.subr.bf16.mxu0 0
        %1237 = vmatpush1.bf16.msra.mxu0 %v1217
        %1238 = vmatprep.subr.bf16.mxu0 0
        %1239 = vmatpush1.bf16.msra.mxu0 %v1218
        %1240 = vmatprep.subr.bf16.mxu0 0
        %1241 = vmatpush1.bf16.msra.mxu0 0
        %1242 = vmatprep.subr.bf16.mxu0 0
        %1243 = vmatpush1.bf16.msra.mxu0 0
        %1244 = vmatprep.subr.bf16.mxu0 0
        %1245 = vmatpush1.bf16.msra.mxu0 0
        %1246 = vmatprep.subr.bf16.mxu0 0
        %1247 = vmatpush1.bf16.msra.mxu0 0
        %1248 = vmatprep.subr.bf16.mxu0 0
        %1249 = vmatpush1.bf16.msra.mxu0 0
        %1250 = vmatprep.subr.bf16.mxu0 0
        %1251 = vmatpush1.bf16.msra.mxu0 0
        %1252 = vmatprep.subr.bf16.mxu0 0
        %1253 = vmatpush1.bf16.msra.mxu0 0
        %1254 = vmatprep.subr.bf16.mxu0 0
        %1255 = vmatpush1.bf16.msra.mxu0 0
        %1256 = vmatprep.subr.bf16.mxu0 0
        %1257 = vmatpush1.bf16.msra.mxu0 0
        %1258 = vmatprep.subr.bf16.mxu0 0
        %1259 = vmatpush1.bf16.msra.mxu0 0
        %1260 = vmatprep.subr.bf16.mxu0 0
        %1261 = vmatpush1.bf16.msra.mxu0 0
        %1262 = vmatprep.subr.bf16.mxu0 0
        %1263 = vmatpush1.bf16.msra.mxu0 0
        %1264 = vmatprep.mubr.bf16.mxu0 0
        %1265 = vmatmul.mubr.bf16.gmra.mrb[0].mxu0 %v1224
        %v1266 = vpop.f32.mrb[0].mxu0
        %v1267 = vadd.f32 0.0, %v1266
        %v1268 = vpop.f32.mrb[0].mxu0
        %v1269 = vpop.f32.mrb[0].mxu0
        %v1270 = vadd.f32 0.0, %v1269
        %v1271 = vpop.f32.mrb[0].mxu0
        %1272 = vmatprep.mubr.bf16.mxu0 0
        %1273 = vmatmul.mubr.bf16.gmra.mrb[0].mxu0 %v1227
        %v1274 = vpop.f32.mrb[0].mxu0
        %v1275 = vadd.f32 0.0, %v1274
        %v1276 = vpop.f32.mrb[0].mxu0
        %v1277 = vpop.f32.mrb[0].mxu0
        %v1278 = vadd.f32 0.0, %v1277
        %v1279 = vpop.f32.mrb[0].mxu0
        %1280 = vmatprep.mubr.bf16.mxu0 0
        %1281 = vmatmul.mubr.bf16.gmra.mrb[0].mxu0 %v1230
        %v1282 = vpop.f32.mrb[0].mxu0
        %v1283 = vadd.f32 0.0, %v1282
        %v1284 = vpop.f32.mrb[0].mxu0
        %v1285 = vpop.f32.mrb[0].mxu0
        %v1286 = vpop.f32.mrb[0].mxu0
        %1287 = vdwg.mxu0
        %v1288 = vadd.f32 %v1159, %v1267
        %v1289 = vadd.f32 %v1160, %v1270
        %v1290 = vadd.f32 %v1161, %v1275
        %v1291 = vadd.f32 %v1162, %v1278
        %v1292 = vadd.f32 %v1163, %v1283
        %v1293 = vld [vmem:[%s276 + $0x18] sm:$0x3]
        %s1294 = scalar_lea.vmem %s1, 256
        %v1295 = vld [vmem:[%s1294] sm:$0xf]
        %v1296 = vld [vmem:[%s1294 + $0x4] sm:$0xf]
        %v1297 = vld [vmem:[%s1294 + $0x8] sm:$0xf]
        %v1298 = vld [vmem:[%s1294 + $0xc] sm:$0xf]
        %v1299 = vld [vmem:[%s1294 + $0x10] sm:$0xf]
        %v1300 = vld [vmem:[%s1294 + $0x14] sm:$0xf]
        %v1301 = vld [vmem:[%s1294 + $0x18] sm:$0xf]
        %v1302 = vld [vmem:[%s1294 + $0x1c] sm:$0xf]
        %v1304 = vunpack.c.l.b16 %v1293
        %v1305 = vpack.c.b16 %v1057, %v1056
        %v1306 = vpack.c.b16 %v1059, %v1058
        %v1307 = vpack.c.b16 %v1304, %v1304
        %v1316 = vunpack.c.l.b16 %v1295
        %v1317 = vunpack.c.l.b16 %v1296
        %v1318 = vunpack.c.l.b16 %v1297
        %v1319 = vunpack.c.l.b16 %v1298
        %v1320 = vunpack.c.l.b16 %v1299
        %v1321 = vunpack.c.l.b16 %v1300
        %v1322 = vunpack.c.l.b16 %v1301
        %v1323 = vunpack.c.l.b16 %v1302
        %v1324 = vpack.c.b16 %v1317, %v1316
        %v1325 = vpack.c.b16 %v1319, %v1318
        %v1326 = vpack.c.b16 %v1321, %v1320
        %v1327 = vpack.c.b16 %v1323, %v1322
        %v1333 = vsel %vm382, %v1305, 0
        %v1336 = vsel %vm382, %v1306, 0
        %v1339 = vsel %vm382, %v1307, 0
        %1341 = vmatprep.subr.bf16.mxu0 0
        %1342 = vmatpush1.bf16.msra.mxu0 %v1324
        %1343 = vmatprep.subr.bf16.mxu0 0
        %1344 = vmatpush1.bf16.msra.mxu0 %v1325
        %1345 = vmatprep.subr.bf16.mxu0 0
        %1346 = vmatpush1.bf16.msra.mxu0 %v1326
        %1347 = vmatprep.subr.bf16.mxu0 0
        %1348 = vmatpush1.bf16.msra.mxu0 %v1327
        %1349 = vmatprep.subr.bf16.mxu0 0
        %1350 = vmatpush1.bf16.msra.mxu0 0
        %1351 = vmatprep.subr.bf16.mxu0 0
        %1352 = vmatpush1.bf16.msra.mxu0 0
        %1353 = vmatprep.subr.bf16.mxu0 0
        %1354 = vmatpush1.bf16.msra.mxu0 0
        %1355 = vmatprep.subr.bf16.mxu0 0
        %1356 = vmatpush1.bf16.msra.mxu0 0
        %1357 = vmatprep.subr.bf16.mxu0 0
        %1358 = vmatpush1.bf16.msra.mxu0 0
        %1359 = vmatprep.subr.bf16.mxu0 0
        %1360 = vmatpush1.bf16.msra.mxu0 0
        %1361 = vmatprep.subr.bf16.mxu0 0
        %1362 = vmatpush1.bf16.msra.mxu0 0
        %1363 = vmatprep.subr.bf16.mxu0 0
        %1364 = vmatpush1.bf16.msra.mxu0 0
        %1365 = vmatprep.subr.bf16.mxu0 0
        %1366 = vmatpush1.bf16.msra.mxu0 0
        %1367 = vmatprep.subr.bf16.mxu0 0
        %1368 = vmatpush1.bf16.msra.mxu0 0
        %1369 = vmatprep.subr.bf16.mxu0 0
        %1370 = vmatpush1.bf16.msra.mxu0 0
        %1371 = vmatprep.subr.bf16.mxu0 0
        %1372 = vmatpush1.bf16.msra.mxu0 0
        %1373 = vmatprep.mubr.bf16.mxu0 0
        %1374 = vmatmul.mubr.bf16.gmra.mrb[0].mxu0 %v1333
        %v1375 = vpop.f32.mrb[0].mxu0
        %v1376 = vadd.f32 0.0, %v1375
        %v1377 = vpop.f32.mrb[0].mxu0
        %v1378 = vpop.f32.mrb[0].mxu0
        %v1379 = vadd.f32 0.0, %v1378
        %v1380 = vpop.f32.mrb[0].mxu0
        %1381 = vmatprep.mubr.bf16.mxu0 0
        %1382 = vmatmul.mubr.bf16.gmra.mrb[0].mxu0 %v1336
        %v1383 = vpop.f32.mrb[0].mxu0
        %v1384 = vadd.f32 0.0, %v1383
        %v1385 = vpop.f32.mrb[0].mxu0
        %v1386 = vpop.f32.mrb[0].mxu0
        %v1387 = vadd.f32 0.0, %v1386
        %v1388 = vpop.f32.mrb[0].mxu0
        %1389 = vmatprep.mubr.bf16.mxu0 0
        %1390 = vmatmul.mubr.bf16.gmra.mrb[0].mxu0 %v1339
        %v1391 = vpop.f32.mrb[0].mxu0
        %v1392 = vadd.f32 0.0, %v1391
        %v1393 = vpop.f32.mrb[0].mxu0
        %v1394 = vpop.f32.mrb[0].mxu0
        %v1395 = vpop.f32.mrb[0].mxu0
        %1396 = vdwg.mxu0
        %v1397 = vadd.f32 %v1288, %v1376
        %v1398 = vadd.f32 %v1289, %v1379
        %v1399 = vadd.f32 %v1290, %v1384
        %v1400 = vadd.f32 %v1291, %v1387
        %v1401 = vadd.f32 %v1292, %v1392
        %v1402 = vld [vmem:[%s2] sm:$0x1]
        %v1404 = vlaneseq
        %v1405 = vshrl.u32 %v1404, 7
        %v1406 = vsub.s32 0, %v1405
        %v1407 = vrot.slane %v1402, %v1406
        %v1409 = vadd.f32 %v1397, %v1407
        %v1410 = vadd.f32 %v1398, %v1407
        %v1411 = vadd.f32 %v1399, %v1407
        %v1412 = vadd.f32 %v1400, %v1407
        %v1413 = vadd.f32 %v1401, %v1407
        %s1414 = smul.u32 %s22, 40
        %s1415 = scalar_lea.vmem [#allocation2], %s1414
        %1416 = vst.msk [vmem:[%s1415] sm:$0xff] %vm382, %v1409
        %1417 = vst.msk [vmem:[%s1415 + $0x8] sm:$0xff] %vm382, %v1410
        %1418 = vst.msk [vmem:[%s1415 + $0x10] sm:$0xff] %vm382, %v1411
        %1419 = vst.msk [vmem:[%s1415 + $0x18] sm:$0xff] %vm382, %v1412
        %vm1420 = vcmask 518144
        %1421 = vst.msk [vmem:[%s1415 + $0x20] sm:$0x7] %vm1420, %v1413
        %v1422 = vld [vmem:[%s5] sm:$0xff]
        %v1423 = vld [vmem:[%s5 + $0x8] sm:$0xff]
        %v1424 = vld [vmem:[%s5 + $0x10] sm:$0xff]
        %v1425 = vld [vmem:[%s5 + $0x18] sm:$0xff]
        %v1426 = vld [vmem:[%s5 + $0x20] sm:$0x7]
        %1428 = vset.pattern.permute.xlu0 0
        %1429 = vperm.xlu0 %1428, %v1422
        %v1430 = vpop.permute.xlu0 %1429
        %1433 = vset.pattern.permute.xlu0 0
        %1434 = vperm.xlu0 %1433, %v1423
        %v1435 = vpop.permute.xlu0 %1434
        %1438 = vset.pattern.permute.xlu0 0
        %1439 = vperm.xlu0 %1438, %v1424
        %v1440 = vpop.permute.xlu0 %1439
        %1443 = vset.pattern.permute.xlu0 0
        %1444 = vperm.xlu0 %1443, %v1425
        %v1445 = vpop.permute.xlu0 %1444
        %1448 = vset.pattern.permute.xlu0 0
        %1449 = vperm.xlu0 %1448, %v1426
        %v1450 = vpop.permute.xlu0 %1449
        %v1452 = vmul.f32 %v1409, %v1430
        %v1453 = vmul.f32 %v1410, %v1435
        %v1454 = vmul.f32 %v1411, %v1440
        %v1455 = vmul.f32 %v1412, %v1445
        %v1456 = vmul.f32 %v1413, %v1450
        %v1457 = vld [vmem:[#allocation3] sm:$0x1]
        %v1458 = vsel %vm382, %v1452, 0.0
        %v1459 = vsel %vm382, %v1453, 0.0
        %v1460 = vadd.f32 %v1458, %v1459
        %v1461 = vsel %vm382, %v1454, 0.0
        %v1462 = vadd.f32 %v1460, %v1461
        %v1463 = vsel %vm382, %v1455, 0.0
        %v1464 = vadd.f32 %v1462, %v1463
        %v1465 = vsel %vm1420, %v1456, 0.0
        %v1466 = vadd.f32 %v1464, %v1465
        %v1467 = vrot.slane %v1466, 4
        %v1468 = vadd.f32 %v1466, %v1467
        %v1469 = vrot.slane %v1468, 2
        %v1470 = vadd.f32 %v1468, %v1469
        %v1471 = vrot.slane %v1470, 1
        %v1472 = vadd.f32 %v1470, %v1471
        %v1473 = vadd.f32 %v1457, %v1472
        %vm1474 = vcmask 516096
        %1475 = vst.msk [vmem:[#allocation3] sm:$0x1] %vm1474, %v1473
      $region48: #{convnet_nopool_forward.5} parent=43 // pred_fallthru
        _
      %p1476 = scmp.eq.s32.totalorder %s21, 1
      // Predicated region
      $region53: #{convnet_nopool_forward.5} parent=43 // pred_check
        %p1477 = pneg %p1476
      $region54: #{convnet_nopool_forward.5} parent=43 // pred_check_branch
        %1479 = sbr.rel (%p1477) target = $region56
      $region55: #{convnet_nopool_forward.5} parent=43 // pred_region
        %p1480 = scmp.eq.s32.totalorder %s22, 0
        // Predicated region
        $region57: #{convnet_nopool_forward.5} parent=55 // pred_check
          %p1481 = pneg %p1480
        $region58: #{convnet_nopool_forward.5} parent=55 // pred_check_branch
          %1483 = sbr.rel (%p1481) target = $region60
        $region59: #{convnet_nopool_forward.5} parent=55 // pred_region
          %vm1484 = vcmask 516096
          %1485 = vst.msk [vmem:[#allocation4] sm:$0x1] %vm1484, 0.0
        $region60: #{convnet_nopool_forward.5} parent=55 // pred_fallthru
          _
        %v1486 = vld [vmem:[#allocation3] sm:$0x1]
        %v1487 = vmul.f32 %v1486, 0.02
        %s1488 = smul.u32 %s22, 40
        %s1489 = scalar_lea.vmem [#allocation2], %s1488
        %v1490 = vld [vmem:[%s1489] sm:$0xff]
        %v1491 = vld [vmem:[%s1489 + $0x8] sm:$0xff]
        %v1492 = vld [vmem:[%s1489 + $0x10] sm:$0xff]
        %v1493 = vld [vmem:[%s1489 + $0x18] sm:$0xff]
        %v1494 = vld [vmem:[%s1489 + $0x20] sm:$0x7]
        %v1496 = vlaneseq
        %v1497 = vshrl.u32 %v1496, 7
        %v1498 = vsub.s32 0, %v1497
        %v1499 = vrot.slane %v1487, %v1498
        %v1501 = vsub.f32 %v1490, %v1499
        %v1502 = vsub.f32 %v1491, %v1499
        %v1503 = vsub.f32 %v1492, %v1499
        %v1504 = vsub.f32 %v1493, %v1499
        %v1505 = vsub.f32 %v1494, %v1499
        %v1506 = vld [vmem:[%s5] sm:$0xff]
        %v1507 = vld [vmem:[%s5 + $0x8] sm:$0xff]
        %v1508 = vld [vmem:[%s5 + $0x10] sm:$0xff]
        %v1509 = vld [vmem:[%s5 + $0x18] sm:$0xff]
        %v1510 = vld [vmem:[%s5 + $0x20] sm:$0x7]
        %1512 = vset.pattern.permute.xlu0 0
        %1513 = vperm.xlu0 %1512, %v1506
        %v1514 = vpop.permute.xlu0 %1513
        %1517 = vset.pattern.permute.xlu0 0
        %1518 = vperm.xlu0 %1517, %v1507
        %v1519 = vpop.permute.xlu0 %1518
        %1522 = vset.pattern.permute.xlu0 0
        %1523 = vperm.xlu0 %1522, %v1508
        %v1524 = vpop.permute.xlu0 %1523
        %1527 = vset.pattern.permute.xlu0 0
        %1528 = vperm.xlu0 %1527, %v1509
        %v1529 = vpop.permute.xlu0 %1528
        %1532 = vset.pattern.permute.xlu0 0
        %1533 = vperm.xlu0 %1532, %v1510
        %v1534 = vpop.permute.xlu0 %1533
        %v1536 = vmul.f32 %v1501, %v1514
        %v1537 = vmul.f32 %v1502, %v1519
        %v1538 = vmul.f32 %v1503, %v1524
        %v1539 = vmul.f32 %v1504, %v1529
        %v1540 = vmul.f32 %v1505, %v1534
        %v1541 = vld [vmem:[#allocation4] sm:$0x1]
        %v1542 = vmul.f32 %v1536, %v1536
        %v1543 = vmul.f32 %v1537, %v1537
        %v1544 = vmul.f32 %v1538, %v1538
        %v1545 = vmul.f32 %v1539, %v1539
        %v1546 = vmul.f32 %v1540, %v1540
        %vm1547 = vcmask 523264
        %v1548 = vsel %vm1547, %v1542, 0.0
        %v1549 = vsel %vm1547, %v1543, 0.0
        %v1550 = vadd.f32 %v1548, %v1549
        %v1551 = vsel %vm1547, %v1544, 0.0
        %v1552 = vadd.f32 %v1550, %v1551
        %v1553 = vsel %vm1547, %v1545, 0.0
        %v1554 = vadd.f32 %v1552, %v1553
        %vm1555 = vcmask 518144
        %v1556 = vsel %vm1555, %v1546, 0.0
        %v1557 = vadd.f32 %v1554, %v1556
        %v1558 = vrot.slane %v1557, 4
        %v1559 = vadd.f32 %v1557, %v1558
        %v1560 = vrot.slane %v1559, 2
        %v1561 = vadd.f32 %v1559, %v1560
        %v1562 = vrot.slane %v1561, 1
        %v1563 = vadd.f32 %v1561, %v1562
        %v1564 = vadd.f32 %v1541, %v1563
        %vm1565 = vcmask 516096
        %1566 = vst.msk [vmem:[#allocation4] sm:$0x1] %vm1565, %v1564
      $region56: #{convnet_nopool_forward.5} parent=43 // pred_fallthru
        _
      %p1567 = scmp.eq.s32.totalorder %s21, 2
      // Predicated region
      $region61: #{convnet_nopool_forward.5} parent=43 // pred_check
        %p1568 = pneg %p1567
      $region62: #{convnet_nopool_forward.5} parent=43 // pred_check_branch
        %1570 = sbr.rel (%p1568) target = $region64
      $region63: #{convnet_nopool_forward.5} parent=43 // pred_region
        %v1571 = vld [vmem:[#allocation3] sm:$0x1]
        %v1572 = vmul.f32 %v1571, 0.02
        %v1573 = vld [vmem:[#allocation4] sm:$0x1]
        %v1574 = vmul.f32 %v1573, 0.02
        %v1575 = vadd.f32 %v1574, 1e-05
        %v1576 = vrsqrt.pop %v1575
        %v1577 = vld [vmem:[%s3] sm:$0x1]
        %v1578 = vmul.f32 %v1577, %v1576
        %v1579 = vld [vmem:[%s4] sm:$0x1]
        %v1580 = vmul.f32 %v1572, %v1578
        %v1581 = vsub.f32 %v1579, %v1580
        %s1582 = smul.u32 %s22, 40
        %s1583 = scalar_lea.vmem [#allocation2], %s1582
        %v1584 = vld [vmem:[%s1583] sm:$0xff]
        %v1585 = vld [vmem:[%s1583 + $0x8] sm:$0xff]
        %v1586 = vld [vmem:[%s1583 + $0x10] sm:$0xff]
        %v1587 = vld [vmem:[%s1583 + $0x18] sm:$0xff]
        %v1588 = vld [vmem:[%s1583 + $0x20] sm:$0x7]
        %v1590 = vlaneseq
        %v1591 = vshrl.u32 %v1590, 7
        %v1592 = vsub.s32 0, %v1591
        %v1593 = vrot.slane %v1578, %v1592
        %v1595 = vmul.f32 %v1584, %v1593
        %v1596 = vmul.f32 %v1585, %v1593
        %v1597 = vmul.f32 %v1586, %v1593
        %v1598 = vmul.f32 %v1587, %v1593
        %v1599 = vmul.f32 %v1588, %v1593
        %v1601 = vlaneseq
        %v1602 = vshrl.u32 %v1601, 7
        %v1603 = vsub.s32 0, %v1602
        %v1604 = vrot.slane %v1581, %v1603
        %v1606 = vadd.f32 %v1595, %v1604
        %v1607 = vadd.f32 %v1596, %v1604
        %v1608 = vadd.f32 %v1597, %v1604
        %v1609 = vadd.f32 %v1598, %v1604
        %v1610 = vadd.f32 %v1599, %v1604
        %v1611 = vmax.f32 %v1606, 0.0
        %v1612 = vmax.f32 %v1607, 0.0
        %v1613 = vmax.f32 %v1608, 0.0
        %v1614 = vmax.f32 %v1609, 0.0
        %v1615 = vmax.f32 %v1610, 0.0
        %v1616 = vpack.c.bf16 %v1611, %v1611
        %vm1617 = vcmask 518144
        %vm1618 = vsmask.f32 2304
        %vm1619 = vmand %vm1617, %vm1618
        %v1620 = vld [vmem:[%s285] sm:$0x7]
        %v1621 = vsel %vm1619, %v1616, %v1620
        %1622 = vst [vmem:[%s285] sm:$0x7] %v1621
        %v1623 = vpack.c.bf16 %v1612, %v1611
        %v1625 = vunpack.c.l.b16 %v1623
        %v1626 = vunpack.c.h.b16 %v1623
        %v1627 = vpack.c.b16 %v1625, %v1625
        %v1628 = vpack.c.b16 %v1626, %v1626
        %vm1629 = vsmask.f32 256
        %vm1630 = vsmask.f32 4368
        %vm1631 = vmor %vm1629, %vm1630
        %v1633 = vshrl.u32 %v1627, 16
        %v1635 = vrot.slane %v1633, 7
        %v1636 = vrot.slane %v1635, 4
        %v1638 = vshrl.u32 %v1628, 16
        %v1640 = vrot.slane %v1638, 7
        %v1641 = vshll.u32 %v1628, 16
        %v1643 = vor.u32 %v1640, %v1641
        %v1644 = vsel %vm1631, %v1636, %v1643
        %s1646 = scalar_lea.vmem %s285, 4
        %v1647 = vld [vmem:[%s1646] sm:$0x7]
        %v1648 = vsel %vm1619, %v1644, %v1647
        %1649 = vst [vmem:[%s1646] sm:$0x7] %v1648
        %v1650 = vpack.c.bf16 %v1613, %v1612
        %v1652 = vunpack.c.l.b16 %v1650
        %v1653 = vunpack.c.h.b16 %v1650
        %v1654 = vpack.c.b16 %v1652, %v1652
        %v1655 = vpack.c.b16 %v1653, %v1653
        %vm1656 = vcmask 1040384
        %vm1657 = vcmask 1044484
        %vm1658 = vmor %vm1656, %vm1657
        %v1659 = vrot.slane %v1654, 7
        %v1660 = vrot.slane %v1659, 4
        %v1661 = vrot.slane %v1655, 7
        %v1662 = vsel %vm1658, %v1660, %v1661
        %s1664 = scalar_lea.vmem %s285, 8
        %v1665 = vld [vmem:[%s1664] sm:$0x7]
        %v1666 = vsel %vm1619, %v1662, %v1665
        %1667 = vst [vmem:[%s1664] sm:$0x7] %v1666
        %v1668 = vpack.c.bf16 %v1614, %v1613
        %v1670 = vunpack.c.l.b16 %v1668
        %v1671 = vunpack.c.h.b16 %v1668
        %v1672 = vpack.c.b16 %v1670, %v1670
        %v1673 = vpack.c.b16 %v1671, %v1671
        %vm1674 = vsmask.f32 1280
        %vm1675 = vsmask.f32 5392
        %vm1676 = vmor %vm1674, %vm1675
        %v1678 = vshrl.u32 %v1672, 16
        %v1680 = vrot.slane %v1678, 6
        %v1681 = vshll.u32 %v1672, 16
        %v1683 = vrot.slane %v1681, 7
        %v1684 = vor.u32 %v1680, %v1683
        %v1685 = vrot.slane %v1684, 4
        %v1687 = vshrl.u32 %v1673, 16
        %v1689 = vrot.slane %v1687, 6
        %v1690 = vshll.u32 %v1673, 16
        %v1692 = vrot.slane %v1690, 7
        %v1693 = vor.u32 %v1689, %v1692
        %v1694 = vsel %vm1676, %v1685, %v1693
        %s1696 = scalar_lea.vmem %s285, 12
        %v1697 = vld [vmem:[%s1696] sm:$0x7]
        %v1698 = vsel %vm1619, %v1694, %v1697
        %1699 = vst [vmem:[%s1696] sm:$0x7] %v1698
        %v1700 = vpack.c.bf16 %v1615, %v1614
        %v1702 = vunpack.c.l.b16 %v1700
        %v1703 = vunpack.c.h.b16 %v1700
        %v1704 = vpack.c.b16 %v1702, %v1702
        %v1705 = vpack.c.b16 %v1703, %v1703
        %vm1706 = vcmask 1041408
        %vm1707 = vcmask 1045508
        %vm1708 = vmor %vm1706, %vm1707
        %v1709 = vrot.slane %v1704, 6
        %v1710 = vrot.slane %v1709, 4
        %v1711 = vrot.slane %v1705, 6
        %v1712 = vsel %vm1708, %v1710, %v1711
        %s1714 = scalar_lea.vmem %s285, 16
        %v1715 = vld [vmem:[%s1714] sm:$0x7]
        %v1716 = vsel %vm1619, %v1712, %v1715
        %1717 = vst [vmem:[%s1714] sm:$0x7] %v1716
      $region64: #{convnet_nopool_forward.5} parent=43 // pred_fallthru
        _
      %p1718 = scmp.eq.s32.totalorder %s21, 2
      %s1719 = scalar_select %p1718, %s22, 0
      %p1720 = scmp.lt.s32.totalorder %s1719, 1
      %s1721 = scalar_select %p1720, %s1719, 1
      %s1722 = smul.addr %s1721, 5
      %s1723 = smul.addr %s1722, 4
      %s1724 = scalar_lea.vmem %s6, %s1723
      // Predicated region
      $region65: #{convnet_nopool_forward.5} parent=43 // pred_check
        %p1725 = pneg %p186
      $region66: #{convnet_nopool_forward.5} parent=43 // pred_check_branch
        %1727 = sbr.rel (%p1725) target = $region68
      $region67: #{convnet_nopool_forward.5} parent=43 // pred_region
        %p1728 = scmp.eq.s32.totalorder %s21, 2
        %s1729 = scalar_select %p1728, %s22, 0
      $region68: #{convnet_nopool_forward.5} parent=43 // pred_fallthru
        _
    $region44: #{convnet_nopool_forward.5} parent=5 // pred_fallthru
      _
    %p1730 = scmp.le.s32.totalorder 2, %s12
    // Predicated region
    $region69: #{convnet_nopool_forward.5} parent=5 // pred_check
      %p1731 = pneg %p1730
    $region70: #{convnet_nopool_forward.5} parent=5 // pred_check_branch
      %1733 = sbr.rel (%p1731) target = $region72
    $region71: #{convnet_nopool_forward.5} parent=5 // pred_region
      %s1734 = ssub.s32 %s12, 2
      // Predicated region
      $region73: #{convnet_nopool_forward.5} parent=71 // pred_check
        %p1735 = pneg %p192
      $region74: #{convnet_nopool_forward.5} parent=71 // pred_check_branch
        %1737 = sbr.rel (%p1735) target = $region76
      $region75: #{convnet_nopool_forward.5} parent=71 // pred_region
        %p1738 = scmp.eq.s32.totalorder %s23, 2
        %s1739 = scalar_select %p1738, %s24, 0
        %p1740 = scmp.lt.s32.totalorder %s1739, 1
        %s1741 = scalar_select %p1740, %s1739, 1
        %s1742 = smul.addr %s1741, 5
        %s1743 = smul.addr %s1742, 4
        %s1744 = scalar_lea.vmem %s6, %s1743
      $region76: #{convnet_nopool_forward.5} parent=71 // pred_fallthru
        _
    $region72: #{convnet_nopool_forward.5} parent=5 // pred_fallthru
      _
  $region6: #{convnet_nopool_forward.5} parent=0 // loop_footer
    %s16 = sadd.s32 1, %s12
  $region7: #{convnet_nopool_forward.5} parent=0 // loop_footer_branch
    %11 = sbr.rel target = $region3
  $region8: #{convnet_nopool_forward.5} parent=0 // loop_exit
    _

// kernel: convnet_nopool_forward.6
$region0: #{convnet_nopool_forward.6}
  #allocation0 [shape = 'u32[]', space=smem, size = 0x4, offset = 0x4, fixed_abs, tag = 'smem constant byte address 0x4 - core index']
  #allocation1 [shape = 'u32[144,128]{1,0:T(1,128)}', space=vmem, size = 0x12000, scoped, tag = 'internal scratch']
  #allocation2 [shape = 'f32[2,8,64]{2,1,0:T(8,128)}', space=vmem, size = 0x2000, scoped, tag = 'scratch operand']
  #allocation3 [shape = 'f32[1,64]{1,0:T(1,128)}', space=vmem, size = 0x200, scoped, tag = 'scratch operand']
  #allocation4 [shape = 'f32[1,64]{1,0:T(1,128)}', space=vmem, size = 0x200, scoped, tag = 'scratch operand']
  %s0 = inlined_call_operand.vmem [shape: bf16[2,20,64], index: 0, kind: input, shape index: {}]
  %s1 = inlined_call_operand.vmem [shape: bf16[9,64,64], index: 1, kind: input, shape index: {}]
  %s2 = inlined_call_operand.vmem [shape: f32[1,64], index: 2, kind: input, shape index: {}]
  %s3 = inlined_call_operand.vmem [shape: f32[1,64], index: 3, kind: input, shape index: {}]
  %s4 = inlined_call_operand.vmem [shape: f32[1,64], index: 4, kind: input, shape index: {}]
  %s5 = inlined_call_operand.vmem [shape: f32[8,1], index: 5, kind: input, shape index: {}]
  %s6 = inlined_call_operand.vmem [shape: bf16[2,2,2,64], index: 6, kind: output, shape index: {}]
  %s7 = sld [smem:[#allocation0]]
  $region77: #{convnet_nopool_forward.6} parent=0
    _
  %s9 = ssub.s32 1, %s7
  %s10 = scalar_select 0, %s9, %s7
  loop: start=0, step=1, limit=8
  $region2: #{convnet_nopool_forward.6} parent=0 // loop_pre_header
    _
  $region3: #{convnet_nopool_forward.6} parent=0 // loop_header
    %s12 = sphi 0, %s16
    %p13 = scmp.ge.s32.totalorder %s12, 8
    %s19 = sphi 0, %s31
    %s20 = sphi 0, %s27
    %s21 = sphi 0, %s19
    %s22 = sphi 0, %s20
    %s23 = sphi 0, %s21
    %s24 = sphi 0, %s22
    %s38 = sphi 0, %s40
    %s41 = sphi 0, %s38
    %s42 = sphi 0, %s41
    %s58 = sphi 0, %s42
    %s62 = sphi 0, %s62
    %s64 = sphi 0, %s62
    %s65 = sphi 0, %s64
    %s79 = sphi 0, %s65
    %s83 = sphi 0, %s83
    %s85 = sphi 0, %s83
    %s86 = sphi 0, %s85
    %s100 = sphi 0, %s86
    %s104 = sphi 0, %s104
    %s106 = sphi 0, %s104
    %s107 = sphi 0, %s106
    %s121 = sphi 0, %s107
    %s125 = sphi 0, %s125
    %s127 = sphi 0, %s125
    %s128 = sphi 0, %s127
    %s142 = sphi 0, %s128
    %s146 = sphi 0, %s146
    %s148 = sphi 0, %s146
    %s149 = sphi 0, %s148
    %s163 = sphi 0, %s149
    %s173 = sphi 0, %s175
    %s176 = sphi 0, %s173
    %s177 = sphi 0, %s176
    %s193 = sphi 0, %s177
  $region4: #{convnet_nopool_forward.6} parent=0 // loop_header_branch
    %15 = sbr.rel (%p13) target = $region8
  $region5: #{convnet_nopool_forward.6} parent=0 // loop_body
    %s17 = ssub.s32 %s12, 1
    %s18 = ssub.s32 %s12, 2
    %s25 = sadd.s32 1, %s20
    %p26 = scmp.ge.s32.totalorder %s25, 2
    %s27 = scalar_select %p26, 0, %s25
    %s28 = sadd.s32 1, %s19
    %s29 = scalar_select %p26, %s28, %s19
    %p30 = scmp.ge.s32.totalorder %s29, 3
    %s31 = scalar_select %p30, 0, %s29
    %p32 = scmp.eq.s32.totalorder %s19, 0
    %s33 = scalar_select %p32, %s20, 1
    %p34 = scmp.eq.s32.totalorder %s31, 0
    %s35 = scalar_select %p34, %s27, 1
    %s36 = ssub.s32 %s33, %s35
    %p37 = scmp.eq.s32.totalorder %s36, 0
    %s39 = sadd.s32 %s38, 1
    %s40 = scalar_select %p37, %s38, %s39
    %p43 = pneg %p37
    %p44 = scmp.eq.s32.totalorder %s12, 5
    %p45 = por %p43, %p44
    %p46 = scmp.ne.s32.totalorder %s38, %s41
    %p47 = scmp.eq.s32.totalorder %s12, 0
    %p48 = por %p46, %p47
    %p49 = scmp.ne.s32.totalorder %s38, %s41
    %p50 = scmp.eq.s32.totalorder %s17, 5
    %p51 = por %p49, %p50
    %p52 = scmp.ne.s32.totalorder %s41, %s42
    %p53 = scmp.eq.s32.totalorder %s17, 0
    %p54 = por %p52, %p53
    %p55 = scmp.ne.s32.totalorder %s41, %s42
    %p56 = scmp.eq.s32.totalorder %s18, 5
    %p57 = por %p55, %p56
    %p59 = scmp.ne.s32.totalorder %s42, %s58
    %p60 = scmp.eq.s32.totalorder %s18, 0
    %p61 = por %p59, %p60
    %s63 = sadd.s32 %s62, 1
    %p66 = scmp.eq.s32.totalorder %s12, 5
    %p67 = scmp.ne.s32.totalorder %s62, %s64
    %p68 = scmp.eq.s32.totalorder %s12, 0
    %p69 = por %p67, %p68
    %p70 = scmp.ne.s32.totalorder %s62, %s64
    %p71 = scmp.eq.s32.totalorder %s17, 5
    %p72 = por %p70, %p71
    %p73 = scmp.ne.s32.totalorder %s64, %s65
    %p74 = scmp.eq.s32.totalorder %s17, 0
    %p75 = por %p73, %p74
    %p76 = scmp.ne.s32.totalorder %s64, %s65
    %p77 = scmp.eq.s32.totalorder %s18, 5
    %p78 = por %p76, %p77
    %p80 = scmp.ne.s32.totalorder %s65, %s79
    %p81 = scmp.eq.s32.totalorder %s18, 0
    %p82 = por %p80, %p81
    %s84 = sadd.s32 %s83, 1
    %p87 = scmp.eq.s32.totalorder %s12, 5
    %p88 = scmp.ne.s32.totalorder %s83, %s85
    %p89 = scmp.eq.s32.totalorder %s12, 0
    %p90 = por %p88, %p89
    %p91 = scmp.ne.s32.totalorder %s83, %s85
    %p92 = scmp.eq.s32.totalorder %s17, 5
    %p93 = por %p91, %p92
    %p94 = scmp.ne.s32.totalorder %s85, %s86
    %p95 = scmp.eq.s32.totalorder %s17, 0
    %p96 = por %p94, %p95
    %p97 = scmp.ne.s32.totalorder %s85, %s86
    %p98 = scmp.eq.s32.totalorder %s18, 5
    %p99 = por %p97, %p98
    %p101 = scmp.ne.s32.totalorder %s86, %s100
    %p102 = scmp.eq.s32.totalorder %s18, 0
    %p103 = por %p101, %p102
    %s105 = sadd.s32 %s104, 1
    %p108 = scmp.eq.s32.totalorder %s12, 5
    %p109 = scmp.ne.s32.totalorder %s104, %s106
    %p110 = scmp.eq.s32.totalorder %s12, 0
    %p111 = por %p109, %p110
    %p112 = scmp.ne.s32.totalorder %s104, %s106
    %p113 = scmp.eq.s32.totalorder %s17, 5
    %p114 = por %p112, %p113
    %p115 = scmp.ne.s32.totalorder %s106, %s107
    %p116 = scmp.eq.s32.totalorder %s17, 0
    %p117 = por %p115, %p116
    %p118 = scmp.ne.s32.totalorder %s106, %s107
    %p119 = scmp.eq.s32.totalorder %s18, 5
    %p120 = por %p118, %p119
    %p122 = scmp.ne.s32.totalorder %s107, %s121
    %p123 = scmp.eq.s32.totalorder %s18, 0
    %p124 = por %p122, %p123
    %s126 = sadd.s32 %s125, 1
    %p129 = scmp.eq.s32.totalorder %s12, 5
    %p130 = scmp.ne.s32.totalorder %s125, %s127
    %p131 = scmp.eq.s32.totalorder %s12, 0
    %p132 = por %p130, %p131
    %p133 = scmp.ne.s32.totalorder %s125, %s127
    %p134 = scmp.eq.s32.totalorder %s17, 5
    %p135 = por %p133, %p134
    %p136 = scmp.ne.s32.totalorder %s127, %s128
    %p137 = scmp.eq.s32.totalorder %s17, 0
    %p138 = por %p136, %p137
    %p139 = scmp.ne.s32.totalorder %s127, %s128
    %p140 = scmp.eq.s32.totalorder %s18, 5
    %p141 = por %p139, %p140
    %p143 = scmp.ne.s32.totalorder %s128, %s142
    %p144 = scmp.eq.s32.totalorder %s18, 0
    %p145 = por %p143, %p144
    %s147 = sadd.s32 %s146, 1
    %p150 = scmp.eq.s32.totalorder %s12, 5
    %p151 = scmp.ne.s32.totalorder %s146, %s148
    %p152 = scmp.eq.s32.totalorder %s12, 0
    %p153 = por %p151, %p152
    %p154 = scmp.ne.s32.totalorder %s146, %s148
    %p155 = scmp.eq.s32.totalorder %s17, 5
    %p156 = por %p154, %p155
    %p157 = scmp.ne.s32.totalorder %s148, %s149
    %p158 = scmp.eq.s32.totalorder %s17, 0
    %p159 = por %p157, %p158
    %p160 = scmp.ne.s32.totalorder %s148, %s149
    %p161 = scmp.eq.s32.totalorder %s18, 5
    %p162 = por %p160, %p161
    %p164 = scmp.ne.s32.totalorder %s149, %s163
    %p165 = scmp.eq.s32.totalorder %s18, 0
    %p166 = por %p164, %p165
    %p167 = scmp.eq.s32.totalorder %s19, 2
    %s168 = scalar_select %p167, %s20, 0
    %p169 = scmp.eq.s32.totalorder %s31, 2
    %s170 = scalar_select %p169, %s27, 0
    %s171 = ssub.s32 %s168, %s170
    %p172 = scmp.eq.s32.totalorder %s171, 0
    %s174 = sadd.s32 %s173, 1
    %s175 = scalar_select %p172, %s173, %s174
    %p178 = pneg %p172
    %p179 = scmp.eq.s32.totalorder %s12, 5
    %p180 = por %p178, %p179
    %p181 = scmp.ne.s32.totalorder %s173, %s176
    %p182 = scmp.eq.s32.totalorder %s12, 0
    %p183 = por %p181, %p182
    %p184 = scmp.ne.s32.totalorder %s173, %s176
    %p185 = scmp.eq.s32.totalorder %s17, 5
    %p186 = por %p184, %p185
    %p187 = scmp.ne.s32.totalorder %s176, %s177
    %p188 = scmp.eq.s32.totalorder %s17, 0
    %p189 = por %p187, %p188
    %p190 = scmp.ne.s32.totalorder %s176, %s177
    %p191 = scmp.eq.s32.totalorder %s18, 5
    %p192 = por %p190, %p191
    %p194 = scmp.ne.s32.totalorder %s177, %s193
    %p195 = scmp.eq.s32.totalorder %s18, 0
    %p196 = por %p194, %p195
    %p197 = scmp.le.s32.totalorder 1, %s12
    %p198 = scmp.lt.s32.totalorder %s12, 7
    %p199 = pnand %p197, %p198
    %p200 = pneg %p199
    // Predicated region
    $region9: #{convnet_nopool_forward.6} parent=5 // pred_check
      _
    $region10: #{convnet_nopool_forward.6} parent=5 // pred_check_branch
      %202 = sbr.rel (%p199) target = $region12
    $region11: #{convnet_nopool_forward.6} parent=5 // pred_region
      %s203 = ssub.s32 %s12, 1
      // Predicated region
      $region13: #{convnet_nopool_forward.6} parent=11 // pred_check
        %p204 = pneg %p75
      $region14: #{convnet_nopool_forward.6} parent=11 // pred_check_branch
        %206 = sbr.rel (%p204) target = $region16
      $region15: #{convnet_nopool_forward.6} parent=11 // pred_region
        _
      $region16: #{convnet_nopool_forward.6} parent=11 // pred_fallthru
        _
      // Predicated region
      $region17: #{convnet_nopool_forward.6} parent=11 // pred_check
        %p207 = pneg %p96
      $region18: #{convnet_nopool_forward.6} parent=11 // pred_check_branch
        %209 = sbr.rel (%p207) target = $region20
      $region19: #{convnet_nopool_forward.6} parent=11 // pred_region
        _
      $region20: #{convnet_nopool_forward.6} parent=11 // pred_fallthru
        _
      // Predicated region
      $region21: #{convnet_nopool_forward.6} parent=11 // pred_check
        %p210 = pneg %p117
      $region22: #{convnet_nopool_forward.6} parent=11 // pred_check_branch
        %212 = sbr.rel (%p210) target = $region24
      $region23: #{convnet_nopool_forward.6} parent=11 // pred_region
        _
      $region24: #{convnet_nopool_forward.6} parent=11 // pred_fallthru
        _
      // Predicated region
      $region25: #{convnet_nopool_forward.6} parent=11 // pred_check
        %p213 = pneg %p138
      $region26: #{convnet_nopool_forward.6} parent=11 // pred_check_branch
        %215 = sbr.rel (%p213) target = $region28
      $region27: #{convnet_nopool_forward.6} parent=11 // pred_region
        _
      $region28: #{convnet_nopool_forward.6} parent=11 // pred_fallthru
        _
      // Predicated region
      $region29: #{convnet_nopool_forward.6} parent=11 // pred_check
        %p216 = pneg %p159
      $region30: #{convnet_nopool_forward.6} parent=11 // pred_check_branch
        %218 = sbr.rel (%p216) target = $region32
      $region31: #{convnet_nopool_forward.6} parent=11 // pred_region
        _
      $region32: #{convnet_nopool_forward.6} parent=11 // pred_fallthru
        _
    $region12: #{convnet_nopool_forward.6} parent=5 // pred_fallthru
      _
    %p219 = scmp.lt.s32.totalorder %s12, 6
    // Predicated region
    $region33: #{convnet_nopool_forward.6} parent=5 // pred_check
      %p220 = pneg %p219
    $region34: #{convnet_nopool_forward.6} parent=5 // pred_check_branch
      %222 = sbr.rel (%p220) target = $region36
    $region35: #{convnet_nopool_forward.6} parent=5 // pred_region
      // Predicated region
      $region37: #{convnet_nopool_forward.6} parent=35 // pred_check
        %p223 = pneg %p48
      $region38: #{convnet_nopool_forward.6} parent=35 // pred_check_branch
        %225 = sbr.rel (%p223) target = $region40
      $region39: #{convnet_nopool_forward.6} parent=35 // pred_region
        %p226 = scmp.eq.s32.totalorder %s19, 0
        %s227 = scalar_select %p226, %s20, 1
        %p228 = scmp.lt.s32.totalorder %s227, 1
        %s229 = scalar_select %p228, %s227, 1
        %s230 = smul.addr %s229, 3
        %s231 = smul.addr %s230, 4
        %s232 = scalar_lea.vmem %s0, %s231
        %p233 = scmp.eq.s32.totalorder %s19, 0
        %s234 = scalar_select %p233, %s20, 1
      $region40: #{convnet_nopool_forward.6} parent=35 // pred_fallthru
        _
    $region36: #{convnet_nopool_forward.6} parent=5 // pred_fallthru
      _
    %p235 = scmp.le.s32.totalorder 1, %s12
    %p236 = scmp.lt.s32.totalorder %s12, 7
    %p237 = pnand %p235, %p236
    %p238 = pneg %p237
    // Predicated region
    $region41: #{convnet_nopool_forward.6} parent=5 // pred_check
      _
    $region42: #{convnet_nopool_forward.6} parent=5 // pred_check_branch
      %240 = sbr.rel (%p237) target = $region44
    $region43: #{convnet_nopool_forward.6} parent=5 // pred_region
      %s241 = ssub.s32 %s12, 1
      %p242 = scmp.eq.s32.totalorder %s21, 0
      %s243 = scalar_select %p242, %s22, 1
      %p244 = scmp.lt.s32.totalorder %s243, 1
      %s245 = scalar_select %p244, %s243, 1
      %s246 = smul.addr %s245, 3
      %s247 = smul.addr %s246, 4
      %s248 = scalar_lea.vmem %s0, %s247
      %p249 = pneg %p54
      %p250 = pneg %p51
      %p251 = pneg %p75
      %p252 = pneg %p72
      %p253 = pneg %p96
      %p254 = pneg %p93
      %p255 = pneg %p117
      %p256 = pneg %p114
      %p257 = pneg %p138
      %p258 = pneg %p135
      %p259 = pneg %p159
      %p260 = pneg %p156
      %p261 = pneg %p189
      %p262 = pneg %p186
      %p263 = scmp.eq.s32.totalorder %s21, 2
      %s264 = scalar_select %p263, %s22, 0
      %p265 = scmp.lt.s32.totalorder %s264, 1
      %s266 = scalar_select %p265, %s264, 1
      %s267 = smul.addr %s266, 2
      %s268 = scalar_lea.vmem %s6, %s267
      %p269 = scmp.eq.s32.totalorder %s21, 0
      %s270 = scalar_select %p269, %s22, 1
      %p271 = scmp.lt.s32.totalorder %s270, 1
      %s272 = scalar_select %p271, %s270, 1
      %s273 = smul.addr %s272, 3
      %s274 = smul.addr %s273, 4
      %s275 = scalar_lea.vmem %s0, %s274
      %p276 = scmp.eq.s32.totalorder %s21, 0
      %s277 = scalar_select %p276, %s22, 1
      %p278 = scmp.eq.s32.totalorder %s21, 2
      %s279 = scalar_select %p278, %s22, 0
      %p280 = scmp.lt.s32.totalorder %s279, 1
      %s281 = scalar_select %p280, %s279, 1
      %s282 = smul.addr %s281, 2
      %s283 = scalar_lea.vmem %s6, %s282
      %p284 = scmp.eq.s32.totalorder %s21, 2
      %s285 = scalar_select %p284, %s22, 0
      %p287 = scmp.eq.s32.totalorder %s21, 0
      // Predicated region
      $region45: #{convnet_nopool_forward.6} parent=43 // pred_check
        %p288 = pneg %p287
      $region46: #{convnet_nopool_forward.6} parent=43 // pred_check_branch
        %290 = sbr.rel (%p288) target = $region48
      $region47: #{convnet_nopool_forward.6} parent=43 // pred_region
        %p291 = scmp.eq.s32.totalorder %s22, 0
        // Predicated region
        $region49: #{convnet_nopool_forward.6} parent=47 // pred_check
          %p292 = pneg %p291
        $region50: #{convnet_nopool_forward.6} parent=47 // pred_check_branch
          %294 = sbr.rel (%p292) target = $region52
        $region51: #{convnet_nopool_forward.6} parent=47 // pred_region
          %vm295 = vcmask 516096
          %296 = vst.msk [vmem:[#allocation3] sm:$0x1] %vm295, 0.0
        $region52: #{convnet_nopool_forward.6} parent=47 // pred_fallthru
          _
        %v297 = vld [vmem:[%s275] sm:$0xf]
        %v298 = vld [vmem:[%s1] sm:$0xf]
        %v299 = vld [vmem:[%s1 + $0x4] sm:$0xf]
        %v300 = vld [vmem:[%s1 + $0x8] sm:$0xf]
        %v301 = vld [vmem:[%s1 + $0xc] sm:$0xf]
        %v302 = vld [vmem:[%s1 + $0x10] sm:$0xf]
        %v303 = vld [vmem:[%s1 + $0x14] sm:$0xf]
        %v304 = vld [vmem:[%s1 + $0x18] sm:$0xf]
        %v305 = vld [vmem:[%s1 + $0x1c] sm:$0xf]
        %v306 = vld [vmem:[%s275 + $0x4] sm:$0x1]
        %s307 = scalar_lea.vmem %s1, 32
        %v308 = vld [vmem:[%s307] sm:$0xf]
        %v309 = vld [vmem:[%s307 + $0x4] sm:$0xf]
        %v310 = vld [vmem:[%s307 + $0x8] sm:$0xf]
        %v311 = vld [vmem:[%s307 + $0xc] sm:$0xf]
        %v312 = vld [vmem:[%s307 + $0x10] sm:$0xf]
        %v313 = vld [vmem:[%s307 + $0x14] sm:$0xf]
        %v314 = vld [vmem:[%s307 + $0x18] sm:$0xf]
        %v315 = vld [vmem:[%s307 + $0x1c] sm:$0xf]
        %v318 = vunpack.c.l.b16 %v297
        %v319 = vunpack.c.l.b16 %v306
        %v320 = vpack.c.b16 %v319, %v318
        %v322 = vshrl.u32 %v320, 16
        %v324 = vshll.u32 %v320, 16
        %v326 = vrot.slane %v324, 1
        %v327 = vor.u32 %v322, %v326
        %v336 = vunpack.c.l.b16 %v308
        %v337 = vunpack.c.l.b16 %v309
        %v338 = vunpack.c.l.b16 %v310
        %v339 = vunpack.c.l.b16 %v311
        %v340 = vunpack.c.l.b16 %v312
        %v341 = vunpack.c.l.b16 %v313
        %v342 = vunpack.c.l.b16 %v314
        %v343 = vunpack.c.l.b16 %v315
        %v344 = vpack.c.b16 %v337, %v336
        %v345 = vpack.c.b16 %v339, %v338
        %v346 = vpack.c.b16 %v341, %v340
        %v347 = vpack.c.b16 %v343, %v342
        %vm352 = vcmask 523264
        %v354 = vsel %vm352, %v327, 0
        %356 = vmatprep.subr.bf16.mxu0 0
        %357 = vmatpush1.bf16.msra.mxu0 %v344
        %358 = vmatprep.subr.bf16.mxu0 0
        %359 = vmatpush1.bf16.msra.mxu0 %v345
        %360 = vmatprep.subr.bf16.mxu0 0
        %361 = vmatpush1.bf16.msra.mxu0 %v346
        %362 = vmatprep.subr.bf16.mxu0 0
        %363 = vmatpush1.bf16.msra.mxu0 %v347
        %364 = vmatprep.subr.bf16.mxu0 0
        %365 = vmatpush1.bf16.msra.mxu0 0
        %366 = vmatprep.subr.bf16.mxu0 0
        %367 = vmatpush1.bf16.msra.mxu0 0
        %368 = vmatprep.subr.bf16.mxu0 0
        %369 = vmatpush1.bf16.msra.mxu0 0
        %370 = vmatprep.subr.bf16.mxu0 0
        %371 = vmatpush1.bf16.msra.mxu0 0
        %372 = vmatprep.subr.bf16.mxu0 0
        %373 = vmatpush1.bf16.msra.mxu0 0
        %374 = vmatprep.subr.bf16.mxu0 0
        %375 = vmatpush1.bf16.msra.mxu0 0
        %376 = vmatprep.subr.bf16.mxu0 0
        %377 = vmatpush1.bf16.msra.mxu0 0
        %378 = vmatprep.subr.bf16.mxu0 0
        %379 = vmatpush1.bf16.msra.mxu0 0
        %380 = vmatprep.subr.bf16.mxu0 0
        %381 = vmatpush1.bf16.msra.mxu0 0
        %382 = vmatprep.subr.bf16.mxu0 0
        %383 = vmatpush1.bf16.msra.mxu0 0
        %384 = vmatprep.subr.bf16.mxu0 0
        %385 = vmatpush1.bf16.msra.mxu0 0
        %386 = vmatprep.subr.bf16.mxu0 0
        %387 = vmatpush1.bf16.msra.mxu0 0
        %388 = vmatprep.mubr.bf16.mxu0 0
        %389 = vmatmul.mubr.bf16.gmra.mrb[0].mxu0 %v354
        %v390 = vpop.f32.mrb[0].mxu0
        %v391 = vadd.f32 0.0, %v390
        %v392 = vpop.f32.mrb[0].mxu0
        %v393 = vpop.f32.mrb[0].mxu0
        %v394 = vpop.f32.mrb[0].mxu0
        %395 = vdwg.mxu0
        %v404 = vunpack.c.l.b16 %v298
        %v405 = vunpack.c.l.b16 %v299
        %v406 = vunpack.c.l.b16 %v300
        %v407 = vunpack.c.l.b16 %v301
        %v408 = vunpack.c.l.b16 %v302
        %v409 = vunpack.c.l.b16 %v303
        %v410 = vunpack.c.l.b16 %v304
        %v411 = vunpack.c.l.b16 %v305
        %v412 = vpack.c.b16 %v405, %v404
        %v413 = vpack.c.b16 %v407, %v406
        %v414 = vpack.c.b16 %v409, %v408
        %v415 = vpack.c.b16 %v411, %v410
        %v421 = vsel %vm352, %v297, 0
        %423 = vmatprep.subr.bf16.mxu0 0
        %424 = vmatpush1.bf16.msra.mxu0 %v412
        %425 = vmatprep.subr.bf16.mxu0 0
        %426 = vmatpush1.bf16.msra.mxu0 %v413
        %427 = vmatprep.subr.bf16.mxu0 0
        %428 = vmatpush1.bf16.msra.mxu0 %v414
        %429 = vmatprep.subr.bf16.mxu0 0
        %430 = vmatpush1.bf16.msra.mxu0 %v415
        %431 = vmatprep.subr.bf16.mxu0 0
        %432 = vmatpush1.bf16.msra.mxu0 0
        %433 = vmatprep.subr.bf16.mxu0 0
        %434 = vmatpush1.bf16.msra.mxu0 0
        %435 = vmatprep.subr.bf16.mxu0 0
        %436 = vmatpush1.bf16.msra.mxu0 0
        %437 = vmatprep.subr.bf16.mxu0 0
        %438 = vmatpush1.bf16.msra.mxu0 0
        %439 = vmatprep.subr.bf16.mxu0 0
        %440 = vmatpush1.bf16.msra.mxu0 0
        %441 = vmatprep.subr.bf16.mxu0 0
        %442 = vmatpush1.bf16.msra.mxu0 0
        %443 = vmatprep.subr.bf16.mxu0 0
        %444 = vmatpush1.bf16.msra.mxu0 0
        %445 = vmatprep.subr.bf16.mxu0 0
        %446 = vmatpush1.bf16.msra.mxu0 0
        %447 = vmatprep.subr.bf16.mxu0 0
        %448 = vmatpush1.bf16.msra.mxu0 0
        %449 = vmatprep.subr.bf16.mxu0 0
        %450 = vmatpush1.bf16.msra.mxu0 0
        %451 = vmatprep.subr.bf16.mxu0 0
        %452 = vmatpush1.bf16.msra.mxu0 0
        %453 = vmatprep.subr.bf16.mxu0 0
        %454 = vmatpush1.bf16.msra.mxu0 0
        %455 = vmatprep.mubr.bf16.mxu0 0
        %456 = vmatmul.mubr.bf16.gmra.mrb[0].mxu0 %v421
        %v457 = vpop.f32.mrb[0].mxu0
        %v458 = vadd.f32 %v391, %v457
        %v459 = vpop.f32.mrb[0].mxu0
        %v460 = vpop.f32.mrb[0].mxu0
        %v461 = vpop.f32.mrb[0].mxu0
        %462 = vdwg.mxu0
        %v463 = vld [vmem:[%s275] sm:$0xe]
        %s464 = scalar_lea.vmem %s1, 64
        %v465 = vld [vmem:[%s464] sm:$0xf]
        %v466 = vld [vmem:[%s464 + $0x4] sm:$0xf]
        %v467 = vld [vmem:[%s464 + $0x8] sm:$0xf]
        %v468 = vld [vmem:[%s464 + $0xc] sm:$0xf]
        %v469 = vld [vmem:[%s464 + $0x10] sm:$0xf]
        %v470 = vld [vmem:[%s464 + $0x14] sm:$0xf]
        %v471 = vld [vmem:[%s464 + $0x18] sm:$0xf]
        %v472 = vld [vmem:[%s464 + $0x1c] sm:$0xf]
        %v474 = vunpack.c.l.b16 %v463
        %v475 = vpack.c.b16 %v319, %v474
        %v476 = vrot.slane %v475, 1
        %v485 = vunpack.c.l.b16 %v465
        %v486 = vunpack.c.l.b16 %v466
        %v487 = vunpack.c.l.b16 %v467
        %v488 = vunpack.c.l.b16 %v468
        %v489 = vunpack.c.l.b16 %v469
        %v490 = vunpack.c.l.b16 %v470
        %v491 = vunpack.c.l.b16 %v471
        %v492 = vunpack.c.l.b16 %v472
        %v493 = vpack.c.b16 %v486, %v485
        %v494 = vpack.c.b16 %v488, %v487
        %v495 = vpack.c.b16 %v490, %v489
        %v496 = vpack.c.b16 %v492, %v491
        %v502 = vsel %vm352, %v476, 0
        %504 = vmatprep.subr.bf16.mxu0 0
        %505 = vmatpush1.bf16.msra.mxu0 %v493
        %506 = vmatprep.subr.bf16.mxu0 0
        %507 = vmatpush1.bf16.msra.mxu0 %v494
        %508 = vmatprep.subr.bf16.mxu0 0
        %509 = vmatpush1.bf16.msra.mxu0 %v495
        %510 = vmatprep.subr.bf16.mxu0 0
        %511 = vmatpush1.bf16.msra.mxu0 %v496
        %512 = vmatprep.subr.bf16.mxu0 0
        %513 = vmatpush1.bf16.msra.mxu0 0
        %514 = vmatprep.subr.bf16.mxu0 0
        %515 = vmatpush1.bf16.msra.mxu0 0
        %516 = vmatprep.subr.bf16.mxu0 0
        %517 = vmatpush1.bf16.msra.mxu0 0
        %518 = vmatprep.subr.bf16.mxu0 0
        %519 = vmatpush1.bf16.msra.mxu0 0
        %520 = vmatprep.subr.bf16.mxu0 0
        %521 = vmatpush1.bf16.msra.mxu0 0
        %522 = vmatprep.subr.bf16.mxu0 0
        %523 = vmatpush1.bf16.msra.mxu0 0
        %524 = vmatprep.subr.bf16.mxu0 0
        %525 = vmatpush1.bf16.msra.mxu0 0
        %526 = vmatprep.subr.bf16.mxu0 0
        %527 = vmatpush1.bf16.msra.mxu0 0
        %528 = vmatprep.subr.bf16.mxu0 0
        %529 = vmatpush1.bf16.msra.mxu0 0
        %530 = vmatprep.subr.bf16.mxu0 0
        %531 = vmatpush1.bf16.msra.mxu0 0
        %532 = vmatprep.subr.bf16.mxu0 0
        %533 = vmatpush1.bf16.msra.mxu0 0
        %534 = vmatprep.subr.bf16.mxu0 0
        %535 = vmatpush1.bf16.msra.mxu0 0
        %536 = vmatprep.mubr.bf16.mxu0 0
        %537 = vmatmul.mubr.bf16.gmra.mrb[0].mxu0 %v502
        %v538 = vpop.f32.mrb[0].mxu0
        %v539 = vadd.f32 0.0, %v538
        %v540 = vpop.f32.mrb[0].mxu0
        %v541 = vpop.f32.mrb[0].mxu0
        %v542 = vpop.f32.mrb[0].mxu0
        %543 = vdwg.mxu0
        %v544 = vadd.f32 %v458, %v539
        %v545 = vld [vmem:[%s275] sm:$0xc]
        %v546 = vld [vmem:[%s275 + $0x4] sm:$0x3]
        %s547 = scalar_lea.vmem %s1, 96
        %v548 = vld [vmem:[%s547] sm:$0xf]
        %v549 = vld [vmem:[%s547 + $0x4] sm:$0xf]
        %v550 = vld [vmem:[%s547 + $0x8] sm:$0xf]
        %v551 = vld [vmem:[%s547 + $0xc] sm:$0xf]
        %v552 = vld [vmem:[%s547 + $0x10] sm:$0xf]
        %v553 = vld [vmem:[%s547 + $0x14] sm:$0xf]
        %v554 = vld [vmem:[%s547 + $0x18] sm:$0xf]
        %v555 = vld [vmem:[%s547 + $0x1c] sm:$0xf]
        %v558 = vunpack.c.l.b16 %v545
        %v559 = vunpack.c.l.b16 %v546
        %v560 = vpack.c.b16 %v559, %v558
        %v561 = vrot.slane %v560, 2
        %v570 = vunpack.c.l.b16 %v548
        %v571 = vunpack.c.l.b16 %v549
        %v572 = vunpack.c.l.b16 %v550
        %v573 = vunpack.c.l.b16 %v551
        %v574 = vunpack.c.l.b16 %v552
        %v575 = vunpack.c.l.b16 %v553
        %v576 = vunpack.c.l.b16 %v554
        %v577 = vunpack.c.l.b16 %v555
        %v578 = vpack.c.b16 %v571, %v570
        %v579 = vpack.c.b16 %v573, %v572
        %v580 = vpack.c.b16 %v575, %v574
        %v581 = vpack.c.b16 %v577, %v576
        %v587 = vsel %vm352, %v561, 0
        %589 = vmatprep.subr.bf16.mxu0 0
        %590 = vmatpush1.bf16.msra.mxu0 %v578
        %591 = vmatprep.subr.bf16.mxu0 0
        %592 = vmatpush1.bf16.msra.mxu0 %v579
        %593 = vmatprep.subr.bf16.mxu0 0
        %594 = vmatpush1.bf16.msra.mxu0 %v580
        %595 = vmatprep.subr.bf16.mxu0 0
        %596 = vmatpush1.bf16.msra.mxu0 %v581
        %597 = vmatprep.subr.bf16.mxu0 0
        %598 = vmatpush1.bf16.msra.mxu0 0
        %599 = vmatprep.subr.bf16.mxu0 0
        %600 = vmatpush1.bf16.msra.mxu0 0
        %601 = vmatprep.subr.bf16.mxu0 0
        %602 = vmatpush1.bf16.msra.mxu0 0
        %603 = vmatprep.subr.bf16.mxu0 0
        %604 = vmatpush1.bf16.msra.mxu0 0
        %605 = vmatprep.subr.bf16.mxu0 0
        %606 = vmatpush1.bf16.msra.mxu0 0
        %607 = vmatprep.subr.bf16.mxu0 0
        %608 = vmatpush1.bf16.msra.mxu0 0
        %609 = vmatprep.subr.bf16.mxu0 0
        %610 = vmatpush1.bf16.msra.mxu0 0
        %611 = vmatprep.subr.bf16.mxu0 0
        %612 = vmatpush1.bf16.msra.mxu0 0
        %613 = vmatprep.subr.bf16.mxu0 0
        %614 = vmatpush1.bf16.msra.mxu0 0
        %615 = vmatprep.subr.bf16.mxu0 0
        %616 = vmatpush1.bf16.msra.mxu0 0
        %617 = vmatprep.subr.bf16.mxu0 0
        %618 = vmatpush1.bf16.msra.mxu0 0
        %619 = vmatprep.subr.bf16.mxu0 0
        %620 = vmatpush1.bf16.msra.mxu0 0
        %621 = vmatprep.mubr.bf16.mxu0 0
        %622 = vmatmul.mubr.bf16.gmra.mrb[0].mxu0 %v587
        %v623 = vpop.f32.mrb[0].mxu0
        %v624 = vadd.f32 0.0, %v623
        %v625 = vpop.f32.mrb[0].mxu0
        %v626 = vpop.f32.mrb[0].mxu0
        %v627 = vpop.f32.mrb[0].mxu0
        %628 = vdwg.mxu0
        %v629 = vadd.f32 %v544, %v624
        %v630 = vld [vmem:[%s275 + $0x4] sm:$0x7]
        %s631 = scalar_lea.vmem %s1, 128
        %v632 = vld [vmem:[%s631] sm:$0xf]
        %v633 = vld [vmem:[%s631 + $0x4] sm:$0xf]
        %v634 = vld [vmem:[%s631 + $0x8] sm:$0xf]
        %v635 = vld [vmem:[%s631 + $0xc] sm:$0xf]
        %v636 = vld [vmem:[%s631 + $0x10] sm:$0xf]
        %v637 = vld [vmem:[%s631 + $0x14] sm:$0xf]
        %v638 = vld [vmem:[%s631 + $0x18] sm:$0xf]
        %v639 = vld [vmem:[%s631 + $0x1c] sm:$0xf]
        %v641 = vunpack.c.l.b16 %v630
        %v642 = vpack.c.b16 %v641, %v558
        %v644 = vshrl.u32 %v642, 16
        %v646 = vrot.slane %v644, 2
        %v647 = vshll.u32 %v642, 16
        %v649 = vrot.slane %v647, 3
        %v650 = vor.u32 %v646, %v649
        %v659 = vunpack.c.l.b16 %v632
        %v660 = vunpack.c.l.b16 %v633
        %v661 = vunpack.c.l.b16 %v634
        %v662 = vunpack.c.l.b16 %v635
        %v663 = vunpack.c.l.b16 %v636
        %v664 = vunpack.c.l.b16 %v637
        %v665 = vunpack.c.l.b16 %v638
        %v666 = vunpack.c.l.b16 %v639
        %v667 = vpack.c.b16 %v660, %v659
        %v668 = vpack.c.b16 %v662, %v661
        %v669 = vpack.c.b16 %v664, %v663
        %v670 = vpack.c.b16 %v666, %v665
        %v676 = vsel %vm352, %v650, 0
        %678 = vmatprep.subr.bf16.mxu0 0
        %679 = vmatpush1.bf16.msra.mxu0 %v667
        %680 = vmatprep.subr.bf16.mxu0 0
        %681 = vmatpush1.bf16.msra.mxu0 %v668
        %682 = vmatprep.subr.bf16.mxu0 0
        %683 = vmatpush1.bf16.msra.mxu0 %v669
        %684 = vmatprep.subr.bf16.mxu0 0
        %685 = vmatpush1.bf16.msra.mxu0 %v670
        %686 = vmatprep.subr.bf16.mxu0 0
        %687 = vmatpush1.bf16.msra.mxu0 0
        %688 = vmatprep.subr.bf16.mxu0 0
        %689 = vmatpush1.bf16.msra.mxu0 0
        %690 = vmatprep.subr.bf16.mxu0 0
        %691 = vmatpush1.bf16.msra.mxu0 0
        %692 = vmatprep.subr.bf16.mxu0 0
        %693 = vmatpush1.bf16.msra.mxu0 0
        %694 = vmatprep.subr.bf16.mxu0 0
        %695 = vmatpush1.bf16.msra.mxu0 0
        %696 = vmatprep.subr.bf16.mxu0 0
        %697 = vmatpush1.bf16.msra.mxu0 0
        %698 = vmatprep.subr.bf16.mxu0 0
        %699 = vmatpush1.bf16.msra.mxu0 0
        %700 = vmatprep.subr.bf16.mxu0 0
        %701 = vmatpush1.bf16.msra.mxu0 0
        %702 = vmatprep.subr.bf16.mxu0 0
        %703 = vmatpush1.bf16.msra.mxu0 0
        %704 = vmatprep.subr.bf16.mxu0 0
        %705 = vmatpush1.bf16.msra.mxu0 0
        %706 = vmatprep.subr.bf16.mxu0 0
        %707 = vmatpush1.bf16.msra.mxu0 0
        %708 = vmatprep.subr.bf16.mxu0 0
        %709 = vmatpush1.bf16.msra.mxu0 0
        %710 = vmatprep.mubr.bf16.mxu0 0
        %711 = vmatmul.mubr.bf16.gmra.mrb[0].mxu0 %v676
        %v712 = vpop.f32.mrb[0].mxu0
        %v713 = vadd.f32 0.0, %v712
        %v714 = vpop.f32.mrb[0].mxu0
        %v715 = vpop.f32.mrb[0].mxu0
        %v716 = vpop.f32.mrb[0].mxu0
        %717 = vdwg.mxu0
        %v718 = vadd.f32 %v629, %v713
        %v719 = vld [vmem:[%s275] sm:$0x8]
        %s720 = scalar_lea.vmem %s1, 160
        %v721 = vld [vmem:[%s720] sm:$0xf]
        %v722 = vld [vmem:[%s720 + $0x4] sm:$0xf]
        %v723 = vld [vmem:[%s720 + $0x8] sm:$0xf]
        %v724 = vld [vmem:[%s720 + $0xc] sm:$0xf]
        %v725 = vld [vmem:[%s720 + $0x10] sm:$0xf]
        %v726 = vld [vmem:[%s720 + $0x14] sm:$0xf]
        %v727 = vld [vmem:[%s720 + $0x18] sm:$0xf]
        %v728 = vld [vmem:[%s720 + $0x1c] sm:$0xf]
        %v730 = vunpack.c.l.b16 %v719
        %v731 = vpack.c.b16 %v641, %v730
        %v732 = vrot.slane %v731, 3
        %v741 = vunpack.c.l.b16 %v721
        %v742 = vunpack.c.l.b16 %v722
        %v743 = vunpack.c.l.b16 %v723
        %v744 = vunpack.c.l.b16 %v724
        %v745 = vunpack.c.l.b16 %v725
        %v746 = vunpack.c.l.b16 %v726
        %v747 = vunpack.c.l.b16 %v727
        %v748 = vunpack.c.l.b16 %v728
        %v749 = vpack.c.b16 %v742, %v741
        %v750 = vpack.c.b16 %v744, %v743
        %v751 = vpack.c.b16 %v746, %v745
        %v752 = vpack.c.b16 %v748, %v747
        %v758 = vsel %vm352, %v732, 0
        %760 = vmatprep.subr.bf16.mxu0 0
        %761 = vmatpush1.bf16.msra.mxu0 %v749
        %762 = vmatprep.subr.bf16.mxu0 0
        %763 = vmatpush1.bf16.msra.mxu0 %v750
        %764 = vmatprep.subr.bf16.mxu0 0
        %765 = vmatpush1.bf16.msra.mxu0 %v751
        %766 = vmatprep.subr.bf16.mxu0 0
        %767 = vmatpush1.bf16.msra.mxu0 %v752
        %768 = vmatprep.subr.bf16.mxu0 0
        %769 = vmatpush1.bf16.msra.mxu0 0
        %770 = vmatprep.subr.bf16.mxu0 0
        %771 = vmatpush1.bf16.msra.mxu0 0
        %772 = vmatprep.subr.bf16.mxu0 0
        %773 = vmatpush1.bf16.msra.mxu0 0
        %774 = vmatprep.subr.bf16.mxu0 0
        %775 = vmatpush1.bf16.msra.mxu0 0
        %776 = vmatprep.subr.bf16.mxu0 0
        %777 = vmatpush1.bf16.msra.mxu0 0
        %778 = vmatprep.subr.bf16.mxu0 0
        %779 = vmatpush1.bf16.msra.mxu0 0
        %780 = vmatprep.subr.bf16.mxu0 0
        %781 = vmatpush1.bf16.msra.mxu0 0
        %782 = vmatprep.subr.bf16.mxu0 0
        %783 = vmatpush1.bf16.msra.mxu0 0
        %784 = vmatprep.subr.bf16.mxu0 0
        %785 = vmatpush1.bf16.msra.mxu0 0
        %786 = vmatprep.subr.bf16.mxu0 0
        %787 = vmatpush1.bf16.msra.mxu0 0
        %788 = vmatprep.subr.bf16.mxu0 0
        %789 = vmatpush1.bf16.msra.mxu0 0
        %790 = vmatprep.subr.bf16.mxu0 0
        %791 = vmatpush1.bf16.msra.mxu0 0
        %792 = vmatprep.mubr.bf16.mxu0 0
        %793 = vmatmul.mubr.bf16.gmra.mrb[0].mxu0 %v758
        %v794 = vpop.f32.mrb[0].mxu0
        %v795 = vadd.f32 0.0, %v794
        %v796 = vpop.f32.mrb[0].mxu0
        %v797 = vpop.f32.mrb[0].mxu0
        %v798 = vpop.f32.mrb[0].mxu0
        %799 = vdwg.mxu0
        %v800 = vadd.f32 %v718, %v795
        %v801 = vld [vmem:[%s275 + $0x4] sm:$0xf]
        %s802 = scalar_lea.vmem %s1, 192
        %v803 = vld [vmem:[%s802] sm:$0xf]
        %v804 = vld [vmem:[%s802 + $0x4] sm:$0xf]
        %v805 = vld [vmem:[%s802 + $0x8] sm:$0xf]
        %v806 = vld [vmem:[%s802 + $0xc] sm:$0xf]
        %v807 = vld [vmem:[%s802 + $0x10] sm:$0xf]
        %v808 = vld [vmem:[%s802 + $0x14] sm:$0xf]
        %v809 = vld [vmem:[%s802 + $0x18] sm:$0xf]
        %v810 = vld [vmem:[%s802 + $0x1c] sm:$0xf]
        %v819 = vunpack.c.l.b16 %v803
        %v820 = vunpack.c.l.b16 %v804
        %v821 = vunpack.c.l.b16 %v805
        %v822 = vunpack.c.l.b16 %v806
        %v823 = vunpack.c.l.b16 %v807
        %v824 = vunpack.c.l.b16 %v808
        %v825 = vunpack.c.l.b16 %v809
        %v826 = vunpack.c.l.b16 %v810
        %v827 = vpack.c.b16 %v820, %v819
        %v828 = vpack.c.b16 %v822, %v821
        %v829 = vpack.c.b16 %v824, %v823
        %v830 = vpack.c.b16 %v826, %v825
        %v836 = vsel %vm352, %v801, 0
        %838 = vmatprep.subr.bf16.mxu0 0
        %839 = vmatpush1.bf16.msra.mxu0 %v827
        %840 = vmatprep.subr.bf16.mxu0 0
        %841 = vmatpush1.bf16.msra.mxu0 %v828
        %842 = vmatprep.subr.bf16.mxu0 0
        %843 = vmatpush1.bf16.msra.mxu0 %v829
        %844 = vmatprep.subr.bf16.mxu0 0
        %845 = vmatpush1.bf16.msra.mxu0 %v830
        %846 = vmatprep.subr.bf16.mxu0 0
        %847 = vmatpush1.bf16.msra.mxu0 0
        %848 = vmatprep.subr.bf16.mxu0 0
        %849 = vmatpush1.bf16.msra.mxu0 0
        %850 = vmatprep.subr.bf16.mxu0 0
        %851 = vmatpush1.bf16.msra.mxu0 0
        %852 = vmatprep.subr.bf16.mxu0 0
        %853 = vmatpush1.bf16.msra.mxu0 0
        %854 = vmatprep.subr.bf16.mxu0 0
        %855 = vmatpush1.bf16.msra.mxu0 0
        %856 = vmatprep.subr.bf16.mxu0 0
        %857 = vmatpush1.bf16.msra.mxu0 0
        %858 = vmatprep.subr.bf16.mxu0 0
        %859 = vmatpush1.bf16.msra.mxu0 0
        %860 = vmatprep.subr.bf16.mxu0 0
        %861 = vmatpush1.bf16.msra.mxu0 0
        %862 = vmatprep.subr.bf16.mxu0 0
        %863 = vmatpush1.bf16.msra.mxu0 0
        %864 = vmatprep.subr.bf16.mxu0 0
        %865 = vmatpush1.bf16.msra.mxu0 0
        %866 = vmatprep.subr.bf16.mxu0 0
        %867 = vmatpush1.bf16.msra.mxu0 0
        %868 = vmatprep.subr.bf16.mxu0 0
        %869 = vmatpush1.bf16.msra.mxu0 0
        %870 = vmatprep.mubr.bf16.mxu0 0
        %871 = vmatmul.mubr.bf16.gmra.mrb[0].mxu0 %v836
        %v872 = vpop.f32.mrb[0].mxu0
        %v873 = vadd.f32 0.0, %v872
        %v874 = vpop.f32.mrb[0].mxu0
        %v875 = vpop.f32.mrb[0].mxu0
        %v876 = vpop.f32.mrb[0].mxu0
        %877 = vdwg.mxu0
        %v878 = vadd.f32 %v800, %v873
        %v879 = vld [vmem:[%s275 + $0x4] sm:$0xf]
        %v880 = vld [vmem:[%s275 + $0x8] sm:$0x1]
        %s881 = scalar_lea.vmem %s1, 224
        %v882 = vld [vmem:[%s881] sm:$0xf]
        %v883 = vld [vmem:[%s881 + $0x4] sm:$0xf]
        %v884 = vld [vmem:[%s881 + $0x8] sm:$0xf]
        %v885 = vld [vmem:[%s881 + $0xc] sm:$0xf]
        %v886 = vld [vmem:[%s881 + $0x10] sm:$0xf]
        %v887 = vld [vmem:[%s881 + $0x14] sm:$0xf]
        %v888 = vld [vmem:[%s881 + $0x18] sm:$0xf]
        %v889 = vld [vmem:[%s881 + $0x1c] sm:$0xf]
        %v892 = vunpack.c.l.b16 %v879
        %v893 = vunpack.c.l.b16 %v880
        %v894 = vpack.c.b16 %v893, %v892
        %v896 = vshrl.u32 %v894, 16
        %v898 = vshll.u32 %v894, 16
        %v900 = vrot.slane %v898, 1
        %v901 = vor.u32 %v896, %v900
        %v910 = vunpack.c.l.b16 %v882
        %v911 = vunpack.c.l.b16 %v883
        %v912 = vunpack.c.l.b16 %v884
        %v913 = vunpack.c.l.b16 %v885
        %v914 = vunpack.c.l.b16 %v886
        %v915 = vunpack.c.l.b16 %v887
        %v916 = vunpack.c.l.b16 %v888
        %v917 = vunpack.c.l.b16 %v889
        %v918 = vpack.c.b16 %v911, %v910
        %v919 = vpack.c.b16 %v913, %v912
        %v920 = vpack.c.b16 %v915, %v914
        %v921 = vpack.c.b16 %v917, %v916
        %v927 = vsel %vm352, %v901, 0
        %929 = vmatprep.subr.bf16.mxu0 0
        %930 = vmatpush1.bf16.msra.mxu0 %v918
        %931 = vmatprep.subr.bf16.mxu0 0
        %932 = vmatpush1.bf16.msra.mxu0 %v919
        %933 = vmatprep.subr.bf16.mxu0 0
        %934 = vmatpush1.bf16.msra.mxu0 %v920
        %935 = vmatprep.subr.bf16.mxu0 0
        %936 = vmatpush1.bf16.msra.mxu0 %v921
        %937 = vmatprep.subr.bf16.mxu0 0
        %938 = vmatpush1.bf16.msra.mxu0 0
        %939 = vmatprep.subr.bf16.mxu0 0
        %940 = vmatpush1.bf16.msra.mxu0 0
        %941 = vmatprep.subr.bf16.mxu0 0
        %942 = vmatpush1.bf16.msra.mxu0 0
        %943 = vmatprep.subr.bf16.mxu0 0
        %944 = vmatpush1.bf16.msra.mxu0 0
        %945 = vmatprep.subr.bf16.mxu0 0
        %946 = vmatpush1.bf16.msra.mxu0 0
        %947 = vmatprep.subr.bf16.mxu0 0
        %948 = vmatpush1.bf16.msra.mxu0 0
        %949 = vmatprep.subr.bf16.mxu0 0
        %950 = vmatpush1.bf16.msra.mxu0 0
        %951 = vmatprep.subr.bf16.mxu0 0
        %952 = vmatpush1.bf16.msra.mxu0 0
        %953 = vmatprep.subr.bf16.mxu0 0
        %954 = vmatpush1.bf16.msra.mxu0 0
        %955 = vmatprep.subr.bf16.mxu0 0
        %956 = vmatpush1.bf16.msra.mxu0 0
        %957 = vmatprep.subr.bf16.mxu0 0
        %958 = vmatpush1.bf16.msra.mxu0 0
        %959 = vmatprep.subr.bf16.mxu0 0
        %960 = vmatpush1.bf16.msra.mxu0 0
        %961 = vmatprep.mubr.bf16.mxu0 0
        %962 = vmatmul.mubr.bf16.gmra.mrb[0].mxu0 %v927
        %v963 = vpop.f32.mrb[0].mxu0
        %v964 = vadd.f32 0.0, %v963
        %v965 = vpop.f32.mrb[0].mxu0
        %v966 = vpop.f32.mrb[0].mxu0
        %v967 = vpop.f32.mrb[0].mxu0
        %968 = vdwg.mxu0
        %v969 = vadd.f32 %v878, %v964
        %v970 = vld [vmem:[%s275 + $0x4] sm:$0xe]
        %s971 = scalar_lea.vmem %s1, 256
        %v972 = vld [vmem:[%s971] sm:$0xf]
        %v973 = vld [vmem:[%s971 + $0x4] sm:$0xf]
        %v974 = vld [vmem:[%s971 + $0x8] sm:$0xf]
        %v975 = vld [vmem:[%s971 + $0xc] sm:$0xf]
        %v976 = vld [vmem:[%s971 + $0x10] sm:$0xf]
        %v977 = vld [vmem:[%s971 + $0x14] sm:$0xf]
        %v978 = vld [vmem:[%s971 + $0x18] sm:$0xf]
        %v979 = vld [vmem:[%s971 + $0x1c] sm:$0xf]
        %v981 = vunpack.c.l.b16 %v970
        %v982 = vpack.c.b16 %v893, %v981
        %v983 = vrot.slane %v982, 1
        %v992 = vunpack.c.l.b16 %v972
        %v993 = vunpack.c.l.b16 %v973
        %v994 = vunpack.c.l.b16 %v974
        %v995 = vunpack.c.l.b16 %v975
        %v996 = vunpack.c.l.b16 %v976
        %v997 = vunpack.c.l.b16 %v977
        %v998 = vunpack.c.l.b16 %v978
        %v999 = vunpack.c.l.b16 %v979
        %v1000 = vpack.c.b16 %v993, %v992
        %v1001 = vpack.c.b16 %v995, %v994
        %v1002 = vpack.c.b16 %v997, %v996
        %v1003 = vpack.c.b16 %v999, %v998
        %v1009 = vsel %vm352, %v983, 0
        %1011 = vmatprep.subr.bf16.mxu0 0
        %1012 = vmatpush1.bf16.msra.mxu0 %v1000
        %1013 = vmatprep.subr.bf16.mxu0 0
        %1014 = vmatpush1.bf16.msra.mxu0 %v1001
        %1015 = vmatprep.subr.bf16.mxu0 0
        %1016 = vmatpush1.bf16.msra.mxu0 %v1002
        %1017 = vmatprep.subr.bf16.mxu0 0
        %1018 = vmatpush1.bf16.msra.mxu0 %v1003
        %1019 = vmatprep.subr.bf16.mxu0 0
        %1020 = vmatpush1.bf16.msra.mxu0 0
        %1021 = vmatprep.subr.bf16.mxu0 0
        %1022 = vmatpush1.bf16.msra.mxu0 0
        %1023 = vmatprep.subr.bf16.mxu0 0
        %1024 = vmatpush1.bf16.msra.mxu0 0
        %1025 = vmatprep.subr.bf16.mxu0 0
        %1026 = vmatpush1.bf16.msra.mxu0 0
        %1027 = vmatprep.subr.bf16.mxu0 0
        %1028 = vmatpush1.bf16.msra.mxu0 0
        %1029 = vmatprep.subr.bf16.mxu0 0
        %1030 = vmatpush1.bf16.msra.mxu0 0
        %1031 = vmatprep.subr.bf16.mxu0 0
        %1032 = vmatpush1.bf16.msra.mxu0 0
        %1033 = vmatprep.subr.bf16.mxu0 0
        %1034 = vmatpush1.bf16.msra.mxu0 0
        %1035 = vmatprep.subr.bf16.mxu0 0
        %1036 = vmatpush1.bf16.msra.mxu0 0
        %1037 = vmatprep.subr.bf16.mxu0 0
        %1038 = vmatpush1.bf16.msra.mxu0 0
        %1039 = vmatprep.subr.bf16.mxu0 0
        %1040 = vmatpush1.bf16.msra.mxu0 0
        %1041 = vmatprep.subr.bf16.mxu0 0
        %1042 = vmatpush1.bf16.msra.mxu0 0
        %1043 = vmatprep.mubr.bf16.mxu0 0
        %1044 = vmatmul.mubr.bf16.gmra.mrb[0].mxu0 %v1009
        %v1045 = vpop.f32.mrb[0].mxu0
        %v1046 = vadd.f32 0.0, %v1045
        %v1047 = vpop.f32.mrb[0].mxu0
        %v1048 = vpop.f32.mrb[0].mxu0
        %v1049 = vpop.f32.mrb[0].mxu0
        %1050 = vdwg.mxu0
        %v1051 = vadd.f32 %v969, %v1046
        %v1052 = vld [vmem:[%s2] sm:$0x1]
        %v1054 = vlaneseq
        %v1055 = vshrl.u32 %v1054, 7
        %v1056 = vsub.s32 0, %v1055
        %v1057 = vrot.slane %v1052, %v1056
        %v1059 = vadd.f32 %v1051, %v1057
        %s1060 = smul.u32 %s22, 8
        %s1061 = scalar_lea.vmem [#allocation2], %s1060
        %1062 = vst.msk [vmem:[%s1061] sm:$0xff] %vm352, %v1059
        %v1063 = vld [vmem:[%s5] sm:$0xff]
        %1065 = vset.pattern.permute.xlu0 0
        %1066 = vperm.xlu0 %1065, %v1063
        %v1067 = vpop.permute.xlu0 %1066
        %v1069 = vmul.f32 %v1059, %v1067
        %v1070 = vld [vmem:[#allocation3] sm:$0x1]
        %v1071 = vsel %vm352, %v1069, 0.0
        %v1072 = vrot.slane %v1071, 4
        %v1073 = vadd.f32 %v1071, %v1072
        %v1074 = vrot.slane %v1073, 2
        %v1075 = vadd.f32 %v1073, %v1074
        %v1076 = vrot.slane %v1075, 1
        %v1077 = vadd.f32 %v1075, %v1076
        %v1078 = vadd.f32 %v1070, %v1077
        %vm1079 = vcmask 516096
        %1080 = vst.msk [vmem:[#allocation3] sm:$0x1] %vm1079, %v1078
      $region48: #{convnet_nopool_forward.6} parent=43 // pred_fallthru
        _
      %p1081 = scmp.eq.s32.totalorder %s21, 1
      // Predicated region
      $region53: #{convnet_nopool_forward.6} parent=43 // pred_check
        %p1082 = pneg %p1081
      $region54: #{convnet_nopool_forward.6} parent=43 // pred_check_branch
        %1084 = sbr.rel (%p1082) target = $region56
      $region55: #{convnet_nopool_forward.6} parent=43 // pred_region
        %p1085 = scmp.eq.s32.totalorder %s22, 0
        // Predicated region
        $region57: #{convnet_nopool_forward.6} parent=55 // pred_check
          %p1086 = pneg %p1085
        $region58: #{convnet_nopool_forward.6} parent=55 // pred_check_branch
          %1088 = sbr.rel (%p1086) target = $region60
        $region59: #{convnet_nopool_forward.6} parent=55 // pred_region
          %vm1089 = vcmask 516096
          %1090 = vst.msk [vmem:[#allocation4] sm:$0x1] %vm1089, 0.0
        $region60: #{convnet_nopool_forward.6} parent=55 // pred_fallthru
          _
        %v1091 = vld [vmem:[#allocation3] sm:$0x1]
        %v1092 = vmul.f32 %v1091, 0.125
        %s1093 = smul.u32 %s22, 8
        %s1094 = scalar_lea.vmem [#allocation2], %s1093
        %v1095 = vld [vmem:[%s1094] sm:$0xff]
        %v1097 = vlaneseq
        %v1098 = vshrl.u32 %v1097, 7
        %v1099 = vsub.s32 0, %v1098
        %v1100 = vrot.slane %v1092, %v1099
        %v1102 = vsub.f32 %v1095, %v1100
        %v1103 = vld [vmem:[%s5] sm:$0xff]
        %1105 = vset.pattern.permute.xlu0 0
        %1106 = vperm.xlu0 %1105, %v1103
        %v1107 = vpop.permute.xlu0 %1106
        %v1109 = vmul.f32 %v1102, %v1107
        %v1110 = vld [vmem:[#allocation4] sm:$0x1]
        %v1111 = vmul.f32 %v1109, %v1109
        %vm1112 = vcmask 523264
        %v1113 = vsel %vm1112, %v1111, 0.0
        %v1114 = vrot.slane %v1113, 4
        %v1115 = vadd.f32 %v1113, %v1114
        %v1116 = vrot.slane %v1115, 2
        %v1117 = vadd.f32 %v1115, %v1116
        %v1118 = vrot.slane %v1117, 1
        %v1119 = vadd.f32 %v1117, %v1118
        %v1120 = vadd.f32 %v1110, %v1119
        %vm1121 = vcmask 516096
        %1122 = vst.msk [vmem:[#allocation4] sm:$0x1] %vm1121, %v1120
      $region56: #{convnet_nopool_forward.6} parent=43 // pred_fallthru
        _
      %p1123 = scmp.eq.s32.totalorder %s21, 2
      // Predicated region
      $region61: #{convnet_nopool_forward.6} parent=43 // pred_check
        %p1124 = pneg %p1123
      $region62: #{convnet_nopool_forward.6} parent=43 // pred_check_branch
        %1126 = sbr.rel (%p1124) target = $region64
      $region63: #{convnet_nopool_forward.6} parent=43 // pred_region
        %v1127 = vld [vmem:[#allocation3] sm:$0x1]
        %v1128 = vmul.f32 %v1127, 0.125
        %v1129 = vld [vmem:[#allocation4] sm:$0x1]
        %v1130 = vmul.f32 %v1129, 0.125
        %v1131 = vadd.f32 %v1130, 1e-05
        %v1132 = vrsqrt.pop %v1131
        %v1133 = vld [vmem:[%s3] sm:$0x1]
        %v1134 = vmul.f32 %v1133, %v1132
        %v1135 = vld [vmem:[%s4] sm:$0x1]
        %v1136 = vmul.f32 %v1128, %v1134
        %v1137 = vsub.f32 %v1135, %v1136
        %s1138 = smul.u32 %s22, 8
        %s1139 = scalar_lea.vmem [#allocation2], %s1138
        %v1140 = vld [vmem:[%s1139] sm:$0xff]
        %v1142 = vlaneseq
        %v1143 = vshrl.u32 %v1142, 7
        %v1144 = vsub.s32 0, %v1143
        %v1145 = vrot.slane %v1134, %v1144
        %v1147 = vmul.f32 %v1140, %v1145
        %v1149 = vlaneseq
        %v1150 = vshrl.u32 %v1149, 7
        %v1151 = vsub.s32 0, %v1150
        %v1152 = vrot.slane %v1137, %v1151
        %v1154 = vadd.f32 %v1147, %v1152
        %v1155 = vmax.f32 %v1154, 0.0
        %v1156 = vpack.c.bf16 %v1155, %v1155
        %vm1157 = vcmask 516096
        %1158 = vst.msk [vmem:[%s283] sm:$0x1] %vm1157, %v1156
        %v1161 = vunpack.c.l.s4 1966171168
        %v1162 = vunpack.c.0.s8 %v1161
        %v1163 = vlaneseq
        %v1164 = vshrl.u32 %v1163, 7
        %v1165 = vsub.s32 %v1162, %v1164
        %v1166 = vrot.slane %v1156, %v1165
        %v1168 = vunpack.c.l.s4 1966171168
        %v1169 = vunpack.c.0.s8 %v1168
        %v1170 = vlaneseq
        %v1171 = vshrl.u32 %v1170, 7
        %v1172 = vsub.s32 %v1169, %v1171
        %v1173 = vrot.slane %v1166, %v1172
        %v1174 = vcombine.high %v1173, %v1173
        %s1176 = scalar_lea.vmem %s283, 1
        %1177 = vst.msk [vmem:[%s1176] sm:$0x1] %vm1157, %v1174
      $region64: #{convnet_nopool_forward.6} parent=43 // pred_fallthru
        _
      %p1178 = scmp.eq.s32.totalorder %s21, 2
      %s1179 = scalar_select %p1178, %s22, 0
      %p1180 = scmp.lt.s32.totalorder %s1179, 1
      %s1181 = scalar_select %p1180, %s1179, 1
      %s1182 = smul.addr %s1181, 2
      %s1183 = scalar_lea.vmem %s6, %s1182
      // Predicated region
      $region65: #{convnet_nopool_forward.6} parent=43 // pred_check
        %p1184 = pneg %p186
      $region66: #{convnet_nopool_forward.6} parent=43 // pred_check_branch
        %1186 = sbr.rel (%p1184) target = $region68
      $region67: #{convnet_nopool_forward.6} parent=43 // pred_region
        %p1187 = scmp.eq.s32.totalorder %s21, 2
        %s1188 = scalar_select %p1187, %s22, 0
      $region68: #{convnet_nopool_forward.6} parent=43 // pred_fallthru
        _
    $region44: #{convnet_nopool_forward.6} parent=5 // pred_fallthru
      _
    %p1189 = scmp.le.s32.totalorder 2, %s12
    // Predicated region
    $region69: #{convnet_nopool_forward.6} parent=5 // pred_check
      %p1190 = pneg %p1189
    $region70: #{convnet_nopool_forward.6} parent=5 // pred_check_branch
      %1192 = sbr.rel (%p1190) target = $region72
    $region71: #{convnet_nopool_forward.6} parent=5 // pred_region
      %s1193 = ssub.s32 %s12, 2
      // Predicated region
      $region73: #{convnet_nopool_forward.6} parent=71 // pred_check
        %p1194 = pneg %p192
      $region74: #{convnet_nopool_forward.6} parent=71 // pred_check_branch
        %1196 = sbr.rel (%p1194) target = $region76
      $region75: #{convnet_nopool_forward.6} parent=71 // pred_region
        %p1197 = scmp.eq.s32.totalorder %s23, 2
        %s1198 = scalar_select %p1197, %s24, 0
        %p1199 = scmp.lt.s32.totalorder %s1198, 1
        %s1200 = scalar_select %p1199, %s1198, 1
        %s1201 = smul.addr %s1200, 2
        %s1202 = scalar_lea.vmem %s6, %s1201
      $region76: #{convnet_nopool_forward.6} parent=71 // pred_fallthru
        _
    $region72: #{convnet_nopool_forward.6} parent=5 // pred_fallthru
      _
  $region6: #{convnet_nopool_forward.6} parent=0 // loop_footer
    %s16 = sadd.s32 1, %s12
  $region7: #{convnet_nopool_forward.6} parent=0 // loop_footer_branch
    %11 = sbr.rel target = $region3
  $region8: #{convnet_nopool_forward.6} parent=0 // loop_exit
    _

// kernel: convnet_nopool_forward.4
$region0: #{convnet_nopool_forward.4}
  #allocation0 [shape = 'u32[]', space=smem, size = 0x4, offset = 0x4, fixed_abs, tag = 'smem constant byte address 0x4 - core index']
  #allocation1 [shape = 'u32[144,128]{1,0:T(1,128)}', space=vmem, size = 0x12000, scoped, tag = 'internal scratch']
  #allocation2 [shape = 'f32[2,224,64]{2,1,0:T(8,128)}', space=vmem, size = 0x38000, scoped, tag = 'scratch operand']
  #allocation3 [shape = 'f32[1,64]{1,0:T(1,128)}', space=vmem, size = 0x200, scoped, tag = 'scratch operand']
  #allocation4 [shape = 'f32[1,64]{1,0:T(1,128)}', space=vmem, size = 0x200, scoped, tag = 'scratch operand']
  %s0 = inlined_call_operand.vmem [shape: bf16[2,272,3], index: 0, kind: input, shape index: {}]
  %s1 = inlined_call_operand.vmem [shape: bf16[9,3,64], index: 1, kind: input, shape index: {}]
  %s2 = inlined_call_operand.vmem [shape: f32[1,64], index: 2, kind: input, shape index: {}]
  %s3 = inlined_call_operand.vmem [shape: f32[1,64], index: 3, kind: input, shape index: {}]
  %s4 = inlined_call_operand.vmem [shape: f32[1,64], index: 4, kind: input, shape index: {}]
  %s5 = inlined_call_operand.vmem [shape: f32[224,1], index: 5, kind: input, shape index: {}]
  %s6 = inlined_call_operand.vmem [shape: bf16[2,14,14,64], index: 6, kind: output, shape index: {}]
  %s7 = sld [smem:[#allocation0]]
  $region77: #{convnet_nopool_forward.4} parent=0
    _
  %s9 = ssub.s32 1, %s7
  %s10 = scalar_select 0, %s9, %s7
  loop: start=0, step=1, limit=8
  $region2: #{convnet_nopool_forward.4} parent=0 // loop_pre_header
    _
  $region3: #{convnet_nopool_forward.4} parent=0 // loop_header
    %s12 = sphi 0, %s16
    %p13 = scmp.ge.s32.totalorder %s12, 8
    %s19 = sphi 0, %s31
    %s20 = sphi 0, %s27
    %s21 = sphi 0, %s19
    %s22 = sphi 0, %s20
    %s23 = sphi 0, %s21
    %s24 = sphi 0, %s22
    %s38 = sphi 0, %s40
    %s41 = sphi 0, %s38
    %s42 = sphi 0, %s41
    %s58 = sphi 0, %s42
    %s62 = sphi 0, %s62
    %s64 = sphi 0, %s62
    %s65 = sphi 0, %s64
    %s79 = sphi 0, %s65
    %s83 = sphi 0, %s83
    %s85 = sphi 0, %s83
    %s86 = sphi 0, %s85
    %s100 = sphi 0, %s86
    %s104 = sphi 0, %s104
    %s106 = sphi 0, %s104
    %s107 = sphi 0, %s106
    %s121 = sphi 0, %s107
    %s125 = sphi 0, %s125
    %s127 = sphi 0, %s125
    %s128 = sphi 0, %s127
    %s142 = sphi 0, %s128
    %s146 = sphi 0, %s146
    %s148 = sphi 0, %s146
    %s149 = sphi 0, %s148
    %s163 = sphi 0, %s149
    %s173 = sphi 0, %s175
    %s176 = sphi 0, %s173
    %s177 = sphi 0, %s176
    %s193 = sphi 0, %s177
  $region4: #{convnet_nopool_forward.4} parent=0 // loop_header_branch
    %15 = sbr.rel (%p13) target = $region8
  $region5: #{convnet_nopool_forward.4} parent=0 // loop_body
    %s17 = ssub.s32 %s12, 1
    %s18 = ssub.s32 %s12, 2
    %s25 = sadd.s32 1, %s20
    %p26 = scmp.ge.s32.totalorder %s25, 2
    %s27 = scalar_select %p26, 0, %s25
    %s28 = sadd.s32 1, %s19
    %s29 = scalar_select %p26, %s28, %s19
    %p30 = scmp.ge.s32.totalorder %s29, 3
    %s31 = scalar_select %p30, 0, %s29
    %p32 = scmp.eq.s32.totalorder %s19, 0
    %s33 = scalar_select %p32, %s20, 1
    %p34 = scmp.eq.s32.totalorder %s31, 0
    %s35 = scalar_select %p34, %s27, 1
    %s36 = ssub.s32 %s33, %s35
    %p37 = scmp.eq.s32.totalorder %s36, 0
    %s39 = sadd.s32 %s38, 1
    %s40 = scalar_select %p37, %s38, %s39
    %p43 = pneg %p37
    %p44 = scmp.eq.s32.totalorder %s12, 5
    %p45 = por %p43, %p44
    %p46 = scmp.ne.s32.totalorder %s38, %s41
    %p47 = scmp.eq.s32.totalorder %s12, 0
    %p48 = por %p46, %p47
    %p49 = scmp.ne.s32.totalorder %s38, %s41
    %p50 = scmp.eq.s32.totalorder %s17, 5
    %p51 = por %p49, %p50
    %p52 = scmp.ne.s32.totalorder %s41, %s42
    %p53 = scmp.eq.s32.totalorder %s17, 0
    %p54 = por %p52, %p53
    %p55 = scmp.ne.s32.totalorder %s41, %s42
    %p56 = scmp.eq.s32.totalorder %s18, 5
    %p57 = por %p55, %p56
    %p59 = scmp.ne.s32.totalorder %s42, %s58
    %p60 = scmp.eq.s32.totalorder %s18, 0
    %p61 = por %p59, %p60
    %s63 = sadd.s32 %s62, 1
    %p66 = scmp.eq.s32.totalorder %s12, 5
    %p67 = scmp.ne.s32.totalorder %s62, %s64
    %p68 = scmp.eq.s32.totalorder %s12, 0
    %p69 = por %p67, %p68
    %p70 = scmp.ne.s32.totalorder %s62, %s64
    %p71 = scmp.eq.s32.totalorder %s17, 5
    %p72 = por %p70, %p71
    %p73 = scmp.ne.s32.totalorder %s64, %s65
    %p74 = scmp.eq.s32.totalorder %s17, 0
    %p75 = por %p73, %p74
    %p76 = scmp.ne.s32.totalorder %s64, %s65
    %p77 = scmp.eq.s32.totalorder %s18, 5
    %p78 = por %p76, %p77
    %p80 = scmp.ne.s32.totalorder %s65, %s79
    %p81 = scmp.eq.s32.totalorder %s18, 0
    %p82 = por %p80, %p81
    %s84 = sadd.s32 %s83, 1
    %p87 = scmp.eq.s32.totalorder %s12, 5
    %p88 = scmp.ne.s32.totalorder %s83, %s85
    %p89 = scmp.eq.s32.totalorder %s12, 0
    %p90 = por %p88, %p89
    %p91 = scmp.ne.s32.totalorder %s83, %s85
    %p92 = scmp.eq.s32.totalorder %s17, 5
    %p93 = por %p91, %p92
    %p94 = scmp.ne.s32.totalorder %s85, %s86
    %p95 = scmp.eq.s32.totalorder %s17, 0
    %p96 = por %p94, %p95
    %p97 = scmp.ne.s32.totalorder %s85, %s86
    %p98 = scmp.eq.s32.totalorder %s18, 5
    %p99 = por %p97, %p98
    %p101 = scmp.ne.s32.totalorder %s86, %s100
    %p102 = scmp.eq.s32.totalorder %s18, 0
    %p103 = por %p101, %p102
    %s105 = sadd.s32 %s104, 1
    %p108 = scmp.eq.s32.totalorder %s12, 5
    %p109 = scmp.ne.s32.totalorder %s104, %s106
    %p110 = scmp.eq.s32.totalorder %s12, 0
    %p111 = por %p109, %p110
    %p112 = scmp.ne.s32.totalorder %s104, %s106
    %p113 = scmp.eq.s32.totalorder %s17, 5
    %p114 = por %p112, %p113
    %p115 = scmp.ne.s32.totalorder %s106, %s107
    %p116 = scmp.eq.s32.totalorder %s17, 0
    %p117 = por %p115, %p116
    %p118 = scmp.ne.s32.totalorder %s106, %s107
    %p119 = scmp.eq.s32.totalorder %s18, 5
    %p120 = por %p118, %p119
    %p122 = scmp.ne.s32.totalorder %s107, %s121
    %p123 = scmp.eq.s32.totalorder %s18, 0
    %p124 = por %p122, %p123
    %s126 = sadd.s32 %s125, 1
    %p129 = scmp.eq.s32.totalorder %s12, 5
    %p130 = scmp.ne.s32.totalorder %s125, %s127
    %p131 = scmp.eq.s32.totalorder %s12, 0
    %p132 = por %p130, %p131
    %p133 = scmp.ne.s32.totalorder %s125, %s127
    %p134 = scmp.eq.s32.totalorder %s17, 5
    %p135 = por %p133, %p134
    %p136 = scmp.ne.s32.totalorder %s127, %s128
    %p137 = scmp.eq.s32.totalorder %s17, 0
    %p138 = por %p136, %p137
    %p139 = scmp.ne.s32.totalorder %s127, %s128
    %p140 = scmp.eq.s32.totalorder %s18, 5
    %p141 = por %p139, %p140
    %p143 = scmp.ne.s32.totalorder %s128, %s142
    %p144 = scmp.eq.s32.totalorder %s18, 0
    %p145 = por %p143, %p144
    %s147 = sadd.s32 %s146, 1
    %p150 = scmp.eq.s32.totalorder %s12, 5
    %p151 = scmp.ne.s32.totalorder %s146, %s148
    %p152 = scmp.eq.s32.totalorder %s12, 0
    %p153 = por %p151, %p152
    %p154 = scmp.ne.s32.totalorder %s146, %s148
    %p155 = scmp.eq.s32.totalorder %s17, 5
    %p156 = por %p154, %p155
    %p157 = scmp.ne.s32.totalorder %s148, %s149
    %p158 = scmp.eq.s32.totalorder %s17, 0
    %p159 = por %p157, %p158
    %p160 = scmp.ne.s32.totalorder %s148, %s149
    %p161 = scmp.eq.s32.totalorder %s18, 5
    %p162 = por %p160, %p161
    %p164 = scmp.ne.s32.totalorder %s149, %s163
    %p165 = scmp.eq.s32.totalorder %s18, 0
    %p166 = por %p164, %p165
    %p167 = scmp.eq.s32.totalorder %s19, 2
    %s168 = scalar_select %p167, %s20, 0
    %p169 = scmp.eq.s32.totalorder %s31, 2
    %s170 = scalar_select %p169, %s27, 0
    %s171 = ssub.s32 %s168, %s170
    %p172 = scmp.eq.s32.totalorder %s171, 0
    %s174 = sadd.s32 %s173, 1
    %s175 = scalar_select %p172, %s173, %s174
    %p178 = pneg %p172
    %p179 = scmp.eq.s32.totalorder %s12, 5
    %p180 = por %p178, %p179
    %p181 = scmp.ne.s32.totalorder %s173, %s176
    %p182 = scmp.eq.s32.totalorder %s12, 0
    %p183 = por %p181, %p182
    %p184 = scmp.ne.s32.totalorder %s173, %s176
    %p185 = scmp.eq.s32.totalorder %s17, 5
    %p186 = por %p184, %p185
    %p187 = scmp.ne.s32.totalorder %s176, %s177
    %p188 = scmp.eq.s32.totalorder %s17, 0
    %p189 = por %p187, %p188
    %p190 = scmp.ne.s32.totalorder %s176, %s177
    %p191 = scmp.eq.s32.totalorder %s18, 5
    %p192 = por %p190, %p191
    %p194 = scmp.ne.s32.totalorder %s177, %s193
    %p195 = scmp.eq.s32.totalorder %s18, 0
    %p196 = por %p194, %p195
    %p197 = scmp.le.s32.totalorder 1, %s12
    %p198 = scmp.lt.s32.totalorder %s12, 7
    %p199 = pnand %p197, %p198
    %p200 = pneg %p199
    // Predicated region
    $region9: #{convnet_nopool_forward.4} parent=5 // pred_check
      _
    $region10: #{convnet_nopool_forward.4} parent=5 // pred_check_branch
      %202 = sbr.rel (%p199) target = $region12
    $region11: #{convnet_nopool_forward.4} parent=5 // pred_region
      %s203 = ssub.s32 %s12, 1
      // Predicated region
      $region13: #{convnet_nopool_forward.4} parent=11 // pred_check
        %p204 = pneg %p75
      $region14: #{convnet_nopool_forward.4} parent=11 // pred_check_branch
        %206 = sbr.rel (%p204) target = $region16
      $region15: #{convnet_nopool_forward.4} parent=11 // pred_region
        _
      $region16: #{convnet_nopool_forward.4} parent=11 // pred_fallthru
        _
      // Predicated region
      $region17: #{convnet_nopool_forward.4} parent=11 // pred_check
        %p207 = pneg %p96
      $region18: #{convnet_nopool_forward.4} parent=11 // pred_check_branch
        %209 = sbr.rel (%p207) target = $region20
      $region19: #{convnet_nopool_forward.4} parent=11 // pred_region
        _
      $region20: #{convnet_nopool_forward.4} parent=11 // pred_fallthru
        _
      // Predicated region
      $region21: #{convnet_nopool_forward.4} parent=11 // pred_check
        %p210 = pneg %p117
      $region22: #{convnet_nopool_forward.4} parent=11 // pred_check_branch
        %212 = sbr.rel (%p210) target = $region24
      $region23: #{convnet_nopool_forward.4} parent=11 // pred_region
        _
      $region24: #{convnet_nopool_forward.4} parent=11 // pred_fallthru
        _
      // Predicated region
      $region25: #{convnet_nopool_forward.4} parent=11 // pred_check
        %p213 = pneg %p138
      $region26: #{convnet_nopool_forward.4} parent=11 // pred_check_branch
        %215 = sbr.rel (%p213) target = $region28
      $region27: #{convnet_nopool_forward.4} parent=11 // pred_region
        _
      $region28: #{convnet_nopool_forward.4} parent=11 // pred_fallthru
        _
      // Predicated region
      $region29: #{convnet_nopool_forward.4} parent=11 // pred_check
        %p216 = pneg %p159
      $region30: #{convnet_nopool_forward.4} parent=11 // pred_check_branch
        %218 = sbr.rel (%p216) target = $region32
      $region31: #{convnet_nopool_forward.4} parent=11 // pred_region
        _
      $region32: #{convnet_nopool_forward.4} parent=11 // pred_fallthru
        _
    $region12: #{convnet_nopool_forward.4} parent=5 // pred_fallthru
      _
    %p219 = scmp.lt.s32.totalorder %s12, 6
    // Predicated region
    $region33: #{convnet_nopool_forward.4} parent=5 // pred_check
      %p220 = pneg %p219
    $region34: #{convnet_nopool_forward.4} parent=5 // pred_check_branch
      %222 = sbr.rel (%p220) target = $region36
    $region35: #{convnet_nopool_forward.4} parent=5 // pred_region
      // Predicated region
      $region37: #{convnet_nopool_forward.4} parent=35 // pred_check
        %p223 = pneg %p48
      $region38: #{convnet_nopool_forward.4} parent=35 // pred_check_branch
        %225 = sbr.rel (%p223) target = $region40
      $region39: #{convnet_nopool_forward.4} parent=35 // pred_region
        %p226 = scmp.eq.s32.totalorder %s19, 0
        %s227 = scalar_select %p226, %s20, 1
        %p228 = scmp.lt.s32.totalorder %s227, 1
        %s229 = scalar_select %p228, %s227, 1
        %s230 = smul.addr %s229, 34
        %s231 = smul.addr %s230, 4
        %s232 = scalar_lea.vmem %s0, %s231
        %p233 = scmp.eq.s32.totalorder %s19, 0
        %s234 = scalar_select %p233, %s20, 1
      $region40: #{convnet_nopool_forward.4} parent=35 // pred_fallthru
        _
    $region36: #{convnet_nopool_forward.4} parent=5 // pred_fallthru
      _
    %p235 = scmp.le.s32.totalorder 1, %s12
    %p236 = scmp.lt.s32.totalorder %s12, 7
    %p237 = pnand %p235, %p236
    %p238 = pneg %p237
    // Predicated region
    $region41: #{convnet_nopool_forward.4} parent=5 // pred_check
      _
    $region42: #{convnet_nopool_forward.4} parent=5 // pred_check_branch
      %240 = sbr.rel (%p237) target = $region44
    $region43: #{convnet_nopool_forward.4} parent=5 // pred_region
      %s241 = ssub.s32 %s12, 1
      %p242 = scmp.eq.s32.totalorder %s21, 0
      %s243 = scalar_select %p242, %s22, 1
      %p244 = scmp.lt.s32.totalorder %s243, 1
      %s245 = scalar_select %p244, %s243, 1
      %s246 = smul.addr %s245, 34
      %s247 = smul.addr %s246, 4
      %s248 = scalar_lea.vmem %s0, %s247
      %p249 = pneg %p54
      %p250 = pneg %p51
      %p251 = pneg %p75
      %p252 = pneg %p72
      %p253 = pneg %p96
      %p254 = pneg %p93
      %p255 = pneg %p117
      %p256 = pneg %p114
      %p257 = pneg %p138
      %p258 = pneg %p135
      %p259 = pneg %p159
      %p260 = pneg %p156
      %p261 = pneg %p189
      %p262 = pneg %p186
      %p263 = scmp.eq.s32.totalorder %s21, 2
      %s264 = scalar_select %p263, %s22, 0
      %p265 = scmp.lt.s32.totalorder %s264, 1
      %s266 = scalar_select %p265, %s264, 1
      %s267 = smul.addr %s266, 28
      %s268 = smul.addr %s267, 4
      %s269 = scalar_lea.vmem %s6, %s268
      %p270 = scmp.eq.s32.totalorder %s21, 0
      %s271 = scalar_select %p270, %s22, 1
      %p272 = scmp.lt.s32.totalorder %s271, 1
      %s273 = scalar_select %p272, %s271, 1
      %s274 = smul.addr %s273, 34
      %s275 = smul.addr %s274, 4
      %s276 = scalar_lea.vmem %s0, %s275
      %p277 = scmp.eq.s32.totalorder %s21, 0
      %s278 = scalar_select %p277, %s22, 1
      %p279 = scmp.eq.s32.totalorder %s21, 2
      %s280 = scalar_select %p279, %s22, 0
      %p281 = scmp.lt.s32.totalorder %s280, 1
      %s282 = scalar_select %p281, %s280, 1
      %s283 = smul.addr %s282, 28
      %s284 = smul.addr %s283, 4
      %s285 = scalar_lea.vmem %s6, %s284
      %p286 = scmp.eq.s32.totalorder %s21, 2
      %s287 = scalar_select %p286, %s22, 0
      %p289 = scmp.eq.s32.totalorder %s21, 0
      // Predicated region
      $region45: #{convnet_nopool_forward.4} parent=43 // pred_check
        %p290 = pneg %p289
      $region46: #{convnet_nopool_forward.4} parent=43 // pred_check_branch
        %292 = sbr.rel (%p290) target = $region48
      $region47: #{convnet_nopool_forward.4} parent=43 // pred_region
        %p293 = scmp.eq.s32.totalorder %s22, 0
        // Predicated region
        $region49: #{convnet_nopool_forward.4} parent=47 // pred_check
          %p294 = pneg %p293
        $region50: #{convnet_nopool_forward.4} parent=47 // pred_check_branch
          %296 = sbr.rel (%p294) target = $region52
        $region51: #{convnet_nopool_forward.4} parent=47 // pred_region
          %vm297 = vcmask 516096
          %298 = vst.msk [vmem:[#allocation3] sm:$0x1] %vm297, 0.0
        $region52: #{convnet_nopool_forward.4} parent=47 // pred_fallthru
          _
        %v299 = vld [vmem:[%s276] sm:$0xf]
        %v300 = vld [vmem:[%s276 + $0x4] sm:$0xf]
        %v301 = vld [vmem:[%s276 + $0x8] sm:$0xf]
        %v302 = vld [vmem:[%s276 + $0xc] sm:$0xf]
        %v303 = vld [vmem:[%s276 + $0x10] sm:$0xf]
        %v304 = vld [vmem:[%s276 + $0x14] sm:$0xf]
        %v305 = vld [vmem:[%s276 + $0x18] sm:$0xf]
        %v306 = vld [vmem:[%s276 + $0x1c] sm:$0xf]
        %v307 = vld [vmem:[%s276 + $0x20] sm:$0xf]
        %v308 = vld [vmem:[%s276 + $0x24] sm:$0xf]
        %v309 = vld [vmem:[%s276 + $0x28] sm:$0xf]
        %v310 = vld [vmem:[%s276 + $0x2c] sm:$0xf]
        %v311 = vld [vmem:[%s276 + $0x30] sm:$0xf]
        %v312 = vld [vmem:[%s276 + $0x34] sm:$0xf]
        %v313 = vld [vmem:[%s276 + $0x38] sm:$0xf]
        %v314 = vld [vmem:[%s276 + $0x3c] sm:$0xf]
        %v315 = vld [vmem:[%s276 + $0x40] sm:$0xf]
        %v316 = vld [vmem:[%s276 + $0x44] sm:$0xf]
        %v317 = vld [vmem:[%s276 + $0x48] sm:$0xf]
        %v318 = vld [vmem:[%s276 + $0x4c] sm:$0xf]
        %v319 = vld [vmem:[%s276 + $0x50] sm:$0xf]
        %v320 = vld [vmem:[%s276 + $0x54] sm:$0xf]
        %v321 = vld [vmem:[%s276 + $0x58] sm:$0xf]
        %v322 = vld [vmem:[%s276 + $0x5c] sm:$0xf]
        %v323 = vld [vmem:[%s276 + $0x60] sm:$0xf]
        %v324 = vld [vmem:[%s276 + $0x64] sm:$0xf]
        %v325 = vld [vmem:[%s276 + $0x68] sm:$0xf]
        %v326 = vld [vmem:[%s276 + $0x6c] sm:$0xf]
        %v327 = vld [vmem:[%s1] sm:$0x3]
        %v328 = vld [vmem:[%s276 + $0x70] sm:$0x1]
        %s329 = scalar_lea.vmem %s1, 2
        %v330 = vld [vmem:[%s329] sm:$0x3]
        %v360 = vunpack.c.l.b16 %v299
        %v361 = vunpack.c.l.b16 %v300
        %v362 = vunpack.c.l.b16 %v301
        %v363 = vunpack.c.l.b16 %v302
        %v364 = vunpack.c.l.b16 %v303
        %v365 = vunpack.c.l.b16 %v304
        %v366 = vunpack.c.l.b16 %v305
        %v367 = vunpack.c.l.b16 %v306
        %v368 = vunpack.c.l.b16 %v307
        %v369 = vunpack.c.l.b16 %v308
        %v370 = vunpack.c.l.b16 %v309
        %v371 = vunpack.c.l.b16 %v310
        %v372 = vunpack.c.l.b16 %v311
        %v373 = vunpack.c.l.b16 %v312
        %v374 = vunpack.c.l.b16 %v313
        %v375 = vunpack.c.l.b16 %v314
        %v376 = vunpack.c.l.b16 %v315
        %v377 = vunpack.c.l.b16 %v316
        %v378 = vunpack.c.l.b16 %v317
        %v379 = vunpack.c.l.b16 %v318
        %v380 = vunpack.c.l.b16 %v319
        %v381 = vunpack.c.l.b16 %v320
        %v382 = vunpack.c.l.b16 %v321
        %v383 = vunpack.c.l.b16 %v322
        %v384 = vunpack.c.l.b16 %v323
        %v385 = vunpack.c.l.b16 %v324
        %v386 = vunpack.c.l.b16 %v325
        %v387 = vunpack.c.l.b16 %v326
        %v388 = vunpack.c.l.b16 %v328
        %v389 = vpack.c.b16 %v361, %v360
        %v390 = vpack.c.b16 %v363, %v362
        %v391 = vpack.c.b16 %v365, %v364
        %v392 = vpack.c.b16 %v367, %v366
        %v393 = vpack.c.b16 %v369, %v368
        %v394 = vpack.c.b16 %v371, %v370
        %v395 = vpack.c.b16 %v373, %v372
        %v396 = vpack.c.b16 %v375, %v374
        %v397 = vpack.c.b16 %v377, %v376
        %v398 = vpack.c.b16 %v379, %v378
        %v399 = vpack.c.b16 %v381, %v380
        %v400 = vpack.c.b16 %v383, %v382
        %v401 = vpack.c.b16 %v385, %v384
        %v402 = vpack.c.b16 %v387, %v386
        %v403 = vpack.c.b16 %v388, %v388
        %vm404 = vsmask.f32 7424
        %v406 = vshrl.u32 %v389, 16
        %v408 = vshll.u32 %v389, 16
        %v410 = vrot.slane %v408, 1
        %v411 = vor.u32 %v406, %v410
        %v413 = vshll.u32 %v390, 16
        %v415 = vrot.slane %v413, 1
        %v416 = vsel %vm404, %v411, %v415
        %v417 = vshrl.u32 %v390, 16
        %v419 = vor.u32 %v417, %v415
        %v421 = vshll.u32 %v391, 16
        %v423 = vrot.slane %v421, 1
        %v424 = vsel %vm404, %v419, %v423
        %v425 = vshrl.u32 %v391, 16
        %v427 = vor.u32 %v425, %v423
        %v429 = vshll.u32 %v392, 16
        %v431 = vrot.slane %v429, 1
        %v432 = vsel %vm404, %v427, %v431
        %v433 = vshrl.u32 %v392, 16
        %v435 = vor.u32 %v433, %v431
        %v437 = vshll.u32 %v393, 16
        %v439 = vrot.slane %v437, 1
        %v440 = vsel %vm404, %v435, %v439
        %v441 = vshrl.u32 %v393, 16
        %v443 = vor.u32 %v441, %v439
        %v445 = vshll.u32 %v394, 16
        %v447 = vrot.slane %v445, 1
        %v448 = vsel %vm404, %v443, %v447
        %v449 = vshrl.u32 %v394, 16
        %v451 = vor.u32 %v449, %v447
        %v453 = vshll.u32 %v395, 16
        %v455 = vrot.slane %v453, 1
        %v456 = vsel %vm404, %v451, %v455
        %v457 = vshrl.u32 %v395, 16
        %v459 = vor.u32 %v457, %v455
        %v461 = vshll.u32 %v396, 16
        %v463 = vrot.slane %v461, 1
        %v464 = vsel %vm404, %v459, %v463
        %v465 = vshrl.u32 %v396, 16
        %v467 = vor.u32 %v465, %v463
        %v469 = vshll.u32 %v397, 16
        %v471 = vrot.slane %v469, 1
        %v472 = vsel %vm404, %v467, %v471
        %v473 = vshrl.u32 %v397, 16
        %v475 = vor.u32 %v473, %v471
        %v477 = vshll.u32 %v398, 16
        %v479 = vrot.slane %v477, 1
        %v480 = vsel %vm404, %v475, %v479
        %v481 = vshrl.u32 %v398, 16
        %v483 = vor.u32 %v481, %v479
        %v485 = vshll.u32 %v399, 16
        %v487 = vrot.slane %v485, 1
        %v488 = vsel %vm404, %v483, %v487
        %v489 = vshrl.u32 %v399, 16
        %v491 = vor.u32 %v489, %v487
        %v493 = vshll.u32 %v400, 16
        %v495 = vrot.slane %v493, 1
        %v496 = vsel %vm404, %v491, %v495
        %v497 = vshrl.u32 %v400, 16
        %v499 = vor.u32 %v497, %v495
        %v501 = vshll.u32 %v401, 16
        %v503 = vrot.slane %v501, 1
        %v504 = vsel %vm404, %v499, %v503
        %v505 = vshrl.u32 %v401, 16
        %v507 = vor.u32 %v505, %v503
        %v509 = vshll.u32 %v402, 16
        %v511 = vrot.slane %v509, 1
        %v512 = vsel %vm404, %v507, %v511
        %v513 = vshrl.u32 %v402, 16
        %v515 = vor.u32 %v513, %v511
        %v517 = vshll.u32 %v403, 16
        %v519 = vrot.slane %v517, 1
        %v520 = vsel %vm404, %v515, %v519
        %vm521 = vcmask 23552
        %v523 = vsel %vm521, %v416, 0
        %v526 = vsel %vm521, %v424, 0
        %v529 = vsel %vm521, %v432, 0
        %v532 = vsel %vm521, %v440, 0
        %v535 = vsel %vm521, %v448, 0
        %v538 = vsel %vm521, %v456, 0
        %v541 = vsel %vm521, %v464, 0
        %v544 = vsel %vm521, %v472, 0
        %v547 = vsel %vm521, %v480, 0
        %v550 = vsel %vm521, %v488, 0
        %v553 = vsel %vm521, %v496, 0
        %v556 = vsel %vm521, %v504, 0
        %v559 = vsel %vm521, %v512, 0
        %v562 = vsel %vm521, %v520, 0
        %vm564 = vcmask 1040384
        %vm565 = vcmask 1041408
        %v566 = vsel %vm564, 4294967295, 65535
        %v567 = vsel %vm565, %v566, 0
        %v569 = vand.u32 %v330, %v567
        %571 = vmatprep.subr.bf16.mxu0 0
        %572 = vmatpush1.bf16.msra.mxu0 %v569
        %573 = vmatprep.subr.bf16.mxu0 0
        %574 = vmatpush1.bf16.msra.mxu0 0
        %575 = vmatprep.subr.bf16.mxu0 0
        %576 = vmatpush1.bf16.msra.mxu0 0
        %577 = vmatprep.subr.bf16.mxu0 0
        %578 = vmatpush1.bf16.msra.mxu0 0
        %579 = vmatprep.subr.bf16.mxu0 0
        %580 = vmatpush1.bf16.msra.mxu0 0
        %581 = vmatprep.subr.bf16.mxu0 0
        %582 = vmatpush1.bf16.msra.mxu0 0
        %583 = vmatprep.subr.bf16.mxu0 0
        %584 = vmatpush1.bf16.msra.mxu0 0
        %585 = vmatprep.subr.bf16.mxu0 0
        %586 = vmatpush1.bf16.msra.mxu0 0
        %587 = vmatprep.subr.bf16.mxu0 0
        %588 = vmatpush1.bf16.msra.mxu0 0
        %589 = vmatprep.subr.bf16.mxu0 0
        %590 = vmatpush1.bf16.msra.mxu0 0
        %591 = vmatprep.subr.bf16.mxu0 0
        %592 = vmatpush1.bf16.msra.mxu0 0
        %593 = vmatprep.subr.bf16.mxu0 0
        %594 = vmatpush1.bf16.msra.mxu0 0
        %595 = vmatprep.subr.bf16.mxu0 0
        %596 = vmatpush1.bf16.msra.mxu0 0
        %597 = vmatprep.subr.bf16.mxu0 0
        %598 = vmatpush1.bf16.msra.mxu0 0
        %599 = vmatprep.subr.bf16.mxu0 0
        %600 = vmatpush1.bf16.msra.mxu0 0
        %601 = vmatprep.subr.bf16.mxu0 0
        %602 = vmatpush1.bf16.msra.mxu0 0
        %603 = vmatprep.mubr.bf16.mxu0 0
        %604 = vmatmul.mubr.bf16.gmra.mrb[0].mxu0 %v523
        %v605 = vpop.f32.mrb[0].mxu0
        %v606 = vadd.f32 0.0, %v605
        %v607 = vpop.f32.mrb[0].mxu0
        %v608 = vpop.f32.mrb[0].mxu0
        %v609 = vadd.f32 0.0, %v608
        %v610 = vpop.f32.mrb[0].mxu0
        %611 = vmatprep.mubr.bf16.mxu0 0
        %612 = vmatmul.mubr.bf16.gmra.mrb[0].mxu0 %v526
        %v613 = vpop.f32.mrb[0].mxu0
        %v614 = vadd.f32 0.0, %v613
        %v615 = vpop.f32.mrb[0].mxu0
        %v616 = vpop.f32.mrb[0].mxu0
        %v617 = vadd.f32 0.0, %v616
        %v618 = vpop.f32.mrb[0].mxu0
        %619 = vmatprep.mubr.bf16.mxu0 0
        %620 = vmatmul.mubr.bf16.gmra.mrb[0].mxu0 %v529
        %v621 = vpop.f32.mrb[0].mxu0
        %v622 = vadd.f32 0.0, %v621
        %v623 = vpop.f32.mrb[0].mxu0
        %v624 = vpop.f32.mrb[0].mxu0
        %v625 = vadd.f32 0.0, %v624
        %v626 = vpop.f32.mrb[0].mxu0
        %627 = vmatprep.mubr.bf16.mxu0 0
        %628 = vmatmul.mubr.bf16.gmra.mrb[0].mxu0 %v532
        %v629 = vpop.f32.mrb[0].mxu0
        %v630 = vadd.f32 0.0, %v629
        %v631 = vpop.f32.mrb[0].mxu0
        %v632 = vpop.f32.mrb[0].mxu0
        %v633 = vadd.f32 0.0, %v632
        %v634 = vpop.f32.mrb[0].mxu0
        %635 = vmatprep.mubr.bf16.mxu0 0
        %636 = vmatmul.mubr.bf16.gmra.mrb[0].mxu0 %v535
        %v637 = vpop.f32.mrb[0].mxu0
        %v638 = vadd.f32 0.0, %v637
        %v639 = vpop.f32.mrb[0].mxu0
        %v640 = vpop.f32.mrb[0].mxu0
        %v641 = vadd.f32 0.0, %v640
        %v642 = vpop.f32.mrb[0].mxu0
        %643 = vmatprep.mubr.bf16.mxu0 0
        %644 = vmatmul.mubr.bf16.gmra.mrb[0].mxu0 %v538
        %v645 = vpop.f32.mrb[0].mxu0
        %v646 = vadd.f32 0.0, %v645
        %v647 = vpop.f32.mrb[0].mxu0
        %v648 = vpop.f32.mrb[0].mxu0
        %v649 = vadd.f32 0.0, %v648
        %v650 = vpop.f32.mrb[0].mxu0
        %651 = vmatprep.mubr.bf16.mxu0 0
        %652 = vmatmul.mubr.bf16.gmra.mrb[0].mxu0 %v541
        %v653 = vpop.f32.mrb[0].mxu0
        %v654 = vadd.f32 0.0, %v653
        %v655 = vpop.f32.mrb[0].mxu0
        %v656 = vpop.f32.mrb[0].mxu0
        %v657 = vadd.f32 0.0, %v656
        %v658 = vpop.f32.mrb[0].mxu0
        %659 = vmatprep.mubr.bf16.mxu0 0
        %660 = vmatmul.mubr.bf16.gmra.mrb[0].mxu0 %v544
        %v661 = vpop.f32.mrb[0].mxu0
        %v662 = vadd.f32 0.0, %v661
        %v663 = vpop.f32.mrb[0].mxu0
        %v664 = vpop.f32.mrb[0].mxu0
        %v665 = vadd.f32 0.0, %v664
        %v666 = vpop.f32.mrb[0].mxu0
        %667 = vmatprep.mubr.bf16.mxu0 0
        %668 = vmatmul.mubr.bf16.gmra.mrb[0].mxu0 %v547
        %v669 = vpop.f32.mrb[0].mxu0
        %v670 = vadd.f32 0.0, %v669
        %v671 = vpop.f32.mrb[0].mxu0
        %v672 = vpop.f32.mrb[0].mxu0
        %v673 = vadd.f32 0.0, %v672
        %v674 = vpop.f32.mrb[0].mxu0
        %675 = vmatprep.mubr.bf16.mxu0 0
        %676 = vmatmul.mubr.bf16.gmra.mrb[0].mxu0 %v550
        %v677 = vpop.f32.mrb[0].mxu0
        %v678 = vadd.f32 0.0, %v677
        %v679 = vpop.f32.mrb[0].mxu0
        %v680 = vpop.f32.mrb[0].mxu0
        %v681 = vadd.f32 0.0, %v680
        %v682 = vpop.f32.mrb[0].mxu0
        %683 = vmatprep.mubr.bf16.mxu0 0
        %684 = vmatmul.mubr.bf16.gmra.mrb[0].mxu0 %v553
        %v685 = vpop.f32.mrb[0].mxu0
        %v686 = vadd.f32 0.0, %v685
        %v687 = vpop.f32.mrb[0].mxu0
        %v688 = vpop.f32.mrb[0].mxu0
        %v689 = vadd.f32 0.0, %v688
        %v690 = vpop.f32.mrb[0].mxu0
        %691 = vmatprep.mubr.bf16.mxu0 0
        %692 = vmatmul.mubr.bf16.gmra.mrb[0].mxu0 %v556
        %v693 = vpop.f32.mrb[0].mxu0
        %v694 = vadd.f32 0.0, %v693
        %v695 = vpop.f32.mrb[0].mxu0
        %v696 = vpop.f32.mrb[0].mxu0
        %v697 = vadd.f32 0.0, %v696
        %v698 = vpop.f32.mrb[0].mxu0
        %699 = vmatprep.mubr.bf16.mxu0 0
        %700 = vmatmul.mubr.bf16.gmra.mrb[0].mxu0 %v559
        %v701 = vpop.f32.mrb[0].mxu0
        %v702 = vadd.f32 0.0, %v701
        %v703 = vpop.f32.mrb[0].mxu0
        %v704 = vpop.f32.mrb[0].mxu0
        %v705 = vadd.f32 0.0, %v704
        %v706 = vpop.f32.mrb[0].mxu0
        %707 = vmatprep.mubr.bf16.mxu0 0
        %708 = vmatmul.mubr.bf16.gmra.mrb[0].mxu0 %v562
        %v709 = vpop.f32.mrb[0].mxu0
        %v710 = vadd.f32 0.0, %v709
        %v711 = vpop.f32.mrb[0].mxu0
        %v712 = vpop.f32.mrb[0].mxu0
        %v713 = vadd.f32 0.0, %v712
        %v714 = vpop.f32.mrb[0].mxu0
        %715 = vdwg.mxu0
        %v716 = vsel %vm521, %v389, 0
        %v718 = vsel %vm521, %v390, 0
        %v720 = vsel %vm521, %v391, 0
        %v722 = vsel %vm521, %v392, 0
        %v724 = vsel %vm521, %v393, 0
        %v726 = vsel %vm521, %v394, 0
        %v728 = vsel %vm521, %v395, 0
        %v730 = vsel %vm521, %v396, 0
        %v732 = vsel %vm521, %v397, 0
        %v734 = vsel %vm521, %v398, 0
        %v736 = vsel %vm521, %v399, 0
        %v738 = vsel %vm521, %v400, 0
        %v740 = vsel %vm521, %v401, 0
        %v742 = vsel %vm521, %v402, 0
        %v745 = vand.u32 %v327, %v567
        %747 = vmatprep.subr.bf16.mxu0 0
        %748 = vmatpush1.bf16.msra.mxu0 %v745
        %749 = vmatprep.subr.bf16.mxu0 0
        %750 = vmatpush1.bf16.msra.mxu0 0
        %751 = vmatprep.subr.bf16.mxu0 0
        %752 = vmatpush1.bf16.msra.mxu0 0
        %753 = vmatprep.subr.bf16.mxu0 0
        %754 = vmatpush1.bf16.msra.mxu0 0
        %755 = vmatprep.subr.bf16.mxu0 0
        %756 = vmatpush1.bf16.msra.mxu0 0
        %757 = vmatprep.subr.bf16.mxu0 0
        %758 = vmatpush1.bf16.msra.mxu0 0
        %759 = vmatprep.subr.bf16.mxu0 0
        %760 = vmatpush1.bf16.msra.mxu0 0
        %761 = vmatprep.subr.bf16.mxu0 0
        %762 = vmatpush1.bf16.msra.mxu0 0
        %763 = vmatprep.subr.bf16.mxu0 0
        %764 = vmatpush1.bf16.msra.mxu0 0
        %765 = vmatprep.subr.bf16.mxu0 0
        %766 = vmatpush1.bf16.msra.mxu0 0
        %767 = vmatprep.subr.bf16.mxu0 0
        %768 = vmatpush1.bf16.msra.mxu0 0
        %769 = vmatprep.subr.bf16.mxu0 0
        %770 = vmatpush1.bf16.msra.mxu0 0
        %771 = vmatprep.subr.bf16.mxu0 0
        %772 = vmatpush1.bf16.msra.mxu0 0
        %773 = vmatprep.subr.bf16.mxu0 0
        %774 = vmatpush1.bf16.msra.mxu0 0
        %775 = vmatprep.subr.bf16.mxu0 0
        %776 = vmatpush1.bf16.msra.mxu0 0
        %777 = vmatprep.subr.bf16.mxu0 0
        %778 = vmatpush1.bf16.msra.mxu0 0
        %779 = vmatprep.mubr.bf16.mxu0 0
        %780 = vmatmul.mubr.bf16.gmra.mrb[0].mxu0 %v716
        %v781 = vpop.f32.mrb[0].mxu0
        %v782 = vadd.f32 %v606, %v781
        %v783 = vpop.f32.mrb[0].mxu0
        %v784 = vpop.f32.mrb[0].mxu0
        %v785 = vadd.f32 %v609, %v784
        %v786 = vpop.f32.mrb[0].mxu0
        %787 = vmatprep.mubr.bf16.mxu0 0
        %788 = vmatmul.mubr.bf16.gmra.mrb[0].mxu0 %v718
        %v789 = vpop.f32.mrb[0].mxu0
        %v790 = vadd.f32 %v614, %v789
        %v791 = vpop.f32.mrb[0].mxu0
        %v792 = vpop.f32.mrb[0].mxu0
        %v793 = vadd.f32 %v617, %v792
        %v794 = vpop.f32.mrb[0].mxu0
        %795 = vmatprep.mubr.bf16.mxu0 0
        %796 = vmatmul.mubr.bf16.gmra.mrb[0].mxu0 %v720
        %v797 = vpop.f32.mrb[0].mxu0
        %v798 = vadd.f32 %v622, %v797
        %v799 = vpop.f32.mrb[0].mxu0
        %v800 = vpop.f32.mrb[0].mxu0
        %v801 = vadd.f32 %v625, %v800
        %v802 = vpop.f32.mrb[0].mxu0
        %803 = vmatprep.mubr.bf16.mxu0 0
        %804 = vmatmul.mubr.bf16.gmra.mrb[0].mxu0 %v722
        %v805 = vpop.f32.mrb[0].mxu0
        %v806 = vadd.f32 %v630, %v805
        %v807 = vpop.f32.mrb[0].mxu0
        %v808 = vpop.f32.mrb[0].mxu0
        %v809 = vadd.f32 %v633, %v808
        %v810 = vpop.f32.mrb[0].mxu0
        %811 = vmatprep.mubr.bf16.mxu0 0
        %812 = vmatmul.mubr.bf16.gmra.mrb[0].mxu0 %v724
        %v813 = vpop.f32.mrb[0].mxu0
        %v814 = vadd.f32 %v638, %v813
        %v815 = vpop.f32.mrb[0].mxu0
        %v816 = vpop.f32.mrb[0].mxu0
        %v817 = vadd.f32 %v641, %v816
        %v818 = vpop.f32.mrb[0].mxu0
        %819 = vmatprep.mubr.bf16.mxu0 0
        %820 = vmatmul.mubr.bf16.gmra.mrb[0].mxu0 %v726
        %v821 = vpop.f32.mrb[0].mxu0
        %v822 = vadd.f32 %v646, %v821
        %v823 = vpop.f32.mrb[0].mxu0
        %v824 = vpop.f32.mrb[0].mxu0
        %v825 = vadd.f32 %v649, %v824
        %v826 = vpop.f32.mrb[0].mxu0
        %827 = vmatprep.mubr.bf16.mxu0 0
        %828 = vmatmul.mubr.bf16.gmra.mrb[0].mxu0 %v728
        %v829 = vpop.f32.mrb[0].mxu0
        %v830 = vadd.f32 %v654, %v829
        %v831 = vpop.f32.mrb[0].mxu0
        %v832 = vpop.f32.mrb[0].mxu0
        %v833 = vadd.f32 %v657, %v832
        %v834 = vpop.f32.mrb[0].mxu0
        %835 = vmatprep.mubr.bf16.mxu0 0
        %836 = vmatmul.mubr.bf16.gmra.mrb[0].mxu0 %v730
        %v837 = vpop.f32.mrb[0].mxu0
        %v838 = vadd.f32 %v662, %v837
        %v839 = vpop.f32.mrb[0].mxu0
        %v840 = vpop.f32.mrb[0].mxu0
        %v841 = vadd.f32 %v665, %v840
        %v842 = vpop.f32.mrb[0].mxu0
        %843 = vmatprep.mubr.bf16.mxu0 0
        %844 = vmatmul.mubr.bf16.gmra.mrb[0].mxu0 %v732
        %v845 = vpop.f32.mrb[0].mxu0
        %v846 = vadd.f32 %v670, %v845
        %v847 = vpop.f32.mrb[0].mxu0
        %v848 = vpop.f32.mrb[0].mxu0
        %v849 = vadd.f32 %v673, %v848
        %v850 = vpop.f32.mrb[0].mxu0
        %851 = vmatprep.mubr.bf16.mxu0 0
        %852 = vmatmul.mubr.bf16.gmra.mrb[0].mxu0 %v734
        %v853 = vpop.f32.mrb[0].mxu0
        %v854 = vadd.f32 %v678, %v853
        %v855 = vpop.f32.mrb[0].mxu0
        %v856 = vpop.f32.mrb[0].mxu0
        %v857 = vadd.f32 %v681, %v856
        %v858 = vpop.f32.mrb[0].mxu0
        %859 = vmatprep.mubr.bf16.mxu0 0
        %860 = vmatmul.mubr.bf16.gmra.mrb[0].mxu0 %v736
        %v861 = vpop.f32.mrb[0].mxu0
        %v862 = vadd.f32 %v686, %v861
        %v863 = vpop.f32.mrb[0].mxu0
        %v864 = vpop.f32.mrb[0].mxu0
        %v865 = vadd.f32 %v689, %v864
        %v866 = vpop.f32.mrb[0].mxu0
        %867 = vmatprep.mubr.bf16.mxu0 0
        %868 = vmatmul.mubr.bf16.gmra.mrb[0].mxu0 %v738
        %v869 = vpop.f32.mrb[0].mxu0
        %v870 = vadd.f32 %v694, %v869
        %v871 = vpop.f32.mrb[0].mxu0
        %v872 = vpop.f32.mrb[0].mxu0
        %v873 = vadd.f32 %v697, %v872
        %v874 = vpop.f32.mrb[0].mxu0
        %875 = vmatprep.mubr.bf16.mxu0 0
        %876 = vmatmul.mubr.bf16.gmra.mrb[0].mxu0 %v740
        %v877 = vpop.f32.mrb[0].mxu0
        %v878 = vadd.f32 %v702, %v877
        %v879 = vpop.f32.mrb[0].mxu0
        %v880 = vpop.f32.mrb[0].mxu0
        %v881 = vadd.f32 %v705, %v880
        %v882 = vpop.f32.mrb[0].mxu0
        %883 = vmatprep.mubr.bf16.mxu0 0
        %884 = vmatmul.mubr.bf16.gmra.mrb[0].mxu0 %v742
        %v885 = vpop.f32.mrb[0].mxu0
        %v886 = vadd.f32 %v710, %v885
        %v887 = vpop.f32.mrb[0].mxu0
        %v888 = vpop.f32.mrb[0].mxu0
        %v889 = vadd.f32 %v713, %v888
        %v890 = vpop.f32.mrb[0].mxu0
        %891 = vdwg.mxu0
        %v892 = vld [vmem:[%s276] sm:$0xe]
        %s893 = scalar_lea.vmem %s1, 4
        %v894 = vld [vmem:[%s893] sm:$0x3]
        %v896 = vunpack.c.l.b16 %v892
        %v897 = vpack.c.b16 %v361, %v896
        %vm898 = vcmask 1046528
        %v899 = vrot.slane %v897, 1
        %v900 = vrot.slane %v390, 1
        %v901 = vsel %vm898, %v899, %v900
        %v902 = vrot.slane %v391, 1
        %v903 = vsel %vm898, %v900, %v902
        %v904 = vrot.slane %v392, 1
        %v905 = vsel %vm898, %v902, %v904
        %v906 = vrot.slane %v393, 1
        %v907 = vsel %vm898, %v904, %v906
        %v908 = vrot.slane %v394, 1
        %v909 = vsel %vm898, %v906, %v908
        %v910 = vrot.slane %v395, 1
        %v911 = vsel %vm898, %v908, %v910
        %v912 = vrot.slane %v396, 1
        %v913 = vsel %vm898, %v910, %v912
        %v914 = vrot.slane %v397, 1
        %v915 = vsel %vm898, %v912, %v914
        %v916 = vrot.slane %v398, 1
        %v917 = vsel %vm898, %v914, %v916
        %v918 = vrot.slane %v399, 1
        %v919 = vsel %vm898, %v916, %v918
        %v920 = vrot.slane %v400, 1
        %v921 = vsel %vm898, %v918, %v920
        %v922 = vrot.slane %v401, 1
        %v923 = vsel %vm898, %v920, %v922
        %v924 = vrot.slane %v402, 1
        %v925 = vsel %vm898, %v922, %v924
        %v926 = vrot.slane %v403, 1
        %v927 = vsel %vm898, %v924, %v926
        %v929 = vsel %vm521, %v901, 0
        %v932 = vsel %vm521, %v903, 0
        %v935 = vsel %vm521, %v905, 0
        %v938 = vsel %vm521, %v907, 0
        %v941 = vsel %vm521, %v909, 0
        %v944 = vsel %vm521, %v911, 0
        %v947 = vsel %vm521, %v913, 0
        %v950 = vsel %vm521, %v915, 0
        %v953 = vsel %vm521, %v917, 0
        %v956 = vsel %vm521, %v919, 0
        %v959 = vsel %vm521, %v921, 0
        %v962 = vsel %vm521, %v923, 0
        %v965 = vsel %vm521, %v925, 0
        %v968 = vsel %vm521, %v927, 0
        %v971 = vand.u32 %v894, %v567
        %973 = vmatprep.subr.bf16.mxu0 0
        %974 = vmatpush1.bf16.msra.mxu0 %v971
        %975 = vmatprep.subr.bf16.mxu0 0
        %976 = vmatpush1.bf16.msra.mxu0 0
        %977 = vmatprep.subr.bf16.mxu0 0
        %978 = vmatpush1.bf16.msra.mxu0 0
        %979 = vmatprep.subr.bf16.mxu0 0
        %980 = vmatpush1.bf16.msra.mxu0 0
        %981 = vmatprep.subr.bf16.mxu0 0
        %982 = vmatpush1.bf16.msra.mxu0 0
        %983 = vmatprep.subr.bf16.mxu0 0
        %984 = vmatpush1.bf16.msra.mxu0 0
        %985 = vmatprep.subr.bf16.mxu0 0
        %986 = vmatpush1.bf16.msra.mxu0 0
        %987 = vmatprep.subr.bf16.mxu0 0
        %988 = vmatpush1.bf16.msra.mxu0 0
        %989 = vmatprep.subr.bf16.mxu0 0
        %990 = vmatpush1.bf16.msra.mxu0 0
        %991 = vmatprep.subr.bf16.mxu0 0
        %992 = vmatpush1.bf16.msra.mxu0 0
        %993 = vmatprep.subr.bf16.mxu0 0
        %994 = vmatpush1.bf16.msra.mxu0 0
        %995 = vmatprep.subr.bf16.mxu0 0
        %996 = vmatpush1.bf16.msra.mxu0 0
        %997 = vmatprep.subr.bf16.mxu0 0
        %998 = vmatpush1.bf16.msra.mxu0 0
        %999 = vmatprep.subr.bf16.mxu0 0
        %1000 = vmatpush1.bf16.msra.mxu0 0
        %1001 = vmatprep.subr.bf16.mxu0 0
        %1002 = vmatpush1.bf16.msra.mxu0 0
        %1003 = vmatprep.subr.bf16.mxu0 0
        %1004 = vmatpush1.bf16.msra.mxu0 0
        %1005 = vmatprep.mubr.bf16.mxu0 0
        %1006 = vmatmul.mubr.bf16.gmra.mrb[0].mxu0 %v929
        %v1007 = vpop.f32.mrb[0].mxu0
        %v1008 = vadd.f32 0.0, %v1007
        %v1009 = vpop.f32.mrb[0].mxu0
        %v1010 = vpop.f32.mrb[0].mxu0
        %v1011 = vadd.f32 0.0, %v1010
        %v1012 = vpop.f32.mrb[0].mxu0
        %1013 = vmatprep.mubr.bf16.mxu0 0
        %1014 = vmatmul.mubr.bf16.gmra.mrb[0].mxu0 %v932
        %v1015 = vpop.f32.mrb[0].mxu0
        %v1016 = vadd.f32 0.0, %v1015
        %v1017 = vpop.f32.mrb[0].mxu0
        %v1018 = vpop.f32.mrb[0].mxu0
        %v1019 = vadd.f32 0.0, %v1018
        %v1020 = vpop.f32.mrb[0].mxu0
        %1021 = vmatprep.mubr.bf16.mxu0 0
        %1022 = vmatmul.mubr.bf16.gmra.mrb[0].mxu0 %v935
        %v1023 = vpop.f32.mrb[0].mxu0
        %v1024 = vadd.f32 0.0, %v1023
        %v1025 = vpop.f32.mrb[0].mxu0
        %v1026 = vpop.f32.mrb[0].mxu0
        %v1027 = vadd.f32 0.0, %v1026
        %v1028 = vpop.f32.mrb[0].mxu0
        %1029 = vmatprep.mubr.bf16.mxu0 0
        %1030 = vmatmul.mubr.bf16.gmra.mrb[0].mxu0 %v938
        %v1031 = vpop.f32.mrb[0].mxu0
        %v1032 = vadd.f32 0.0, %v1031
        %v1033 = vpop.f32.mrb[0].mxu0
        %v1034 = vpop.f32.mrb[0].mxu0
        %v1035 = vadd.f32 0.0, %v1034
        %v1036 = vpop.f32.mrb[0].mxu0
        %1037 = vmatprep.mubr.bf16.mxu0 0
        %1038 = vmatmul.mubr.bf16.gmra.mrb[0].mxu0 %v941
        %v1039 = vpop.f32.mrb[0].mxu0
        %v1040 = vadd.f32 0.0, %v1039
        %v1041 = vpop.f32.mrb[0].mxu0
        %v1042 = vpop.f32.mrb[0].mxu0
        %v1043 = vadd.f32 0.0, %v1042
        %v1044 = vpop.f32.mrb[0].mxu0
        %1045 = vmatprep.mubr.bf16.mxu0 0
        %1046 = vmatmul.mubr.bf16.gmra.mrb[0].mxu0 %v944
        %v1047 = vpop.f32.mrb[0].mxu0
        %v1048 = vadd.f32 0.0, %v1047
        %v1049 = vpop.f32.mrb[0].mxu0
        %v1050 = vpop.f32.mrb[0].mxu0
        %v1051 = vadd.f32 0.0, %v1050
        %v1052 = vpop.f32.mrb[0].mxu0
        %1053 = vmatprep.mubr.bf16.mxu0 0
        %1054 = vmatmul.mubr.bf16.gmra.mrb[0].mxu0 %v947
        %v1055 = vpop.f32.mrb[0].mxu0
        %v1056 = vadd.f32 0.0, %v1055
        %v1057 = vpop.f32.mrb[0].mxu0
        %v1058 = vpop.f32.mrb[0].mxu0
        %v1059 = vadd.f32 0.0, %v1058
        %v1060 = vpop.f32.mrb[0].mxu0
        %1061 = vmatprep.mubr.bf16.mxu0 0
        %1062 = vmatmul.mubr.bf16.gmra.mrb[0].mxu0 %v950
        %v1063 = vpop.f32.mrb[0].mxu0
        %v1064 = vadd.f32 0.0, %v1063
        %v1065 = vpop.f32.mrb[0].mxu0
        %v1066 = vpop.f32.mrb[0].mxu0
        %v1067 = vadd.f32 0.0, %v1066
        %v1068 = vpop.f32.mrb[0].mxu0
        %1069 = vmatprep.mubr.bf16.mxu0 0
        %1070 = vmatmul.mubr.bf16.gmra.mrb[0].mxu0 %v953
        %v1071 = vpop.f32.mrb[0].mxu0
        %v1072 = vadd.f32 0.0, %v1071
        %v1073 = vpop.f32.mrb[0].mxu0
        %v1074 = vpop.f32.mrb[0].mxu0
        %v1075 = vadd.f32 0.0, %v1074
        %v1076 = vpop.f32.mrb[0].mxu0
        %1077 = vmatprep.mubr.bf16.mxu0 0
        %1078 = vmatmul.mubr.bf16.gmra.mrb[0].mxu0 %v956
        %v1079 = vpop.f32.mrb[0].mxu0
        %v1080 = vadd.f32 0.0, %v1079
        %v1081 = vpop.f32.mrb[0].mxu0
        %v1082 = vpop.f32.mrb[0].mxu0
        %v1083 = vadd.f32 0.0, %v1082
        %v1084 = vpop.f32.mrb[0].mxu0
        %1085 = vmatprep.mubr.bf16.mxu0 0
        %1086 = vmatmul.mubr.bf16.gmra.mrb[0].mxu0 %v959
        %v1087 = vpop.f32.mrb[0].mxu0
        %v1088 = vadd.f32 0.0, %v1087
        %v1089 = vpop.f32.mrb[0].mxu0
        %v1090 = vpop.f32.mrb[0].mxu0
        %v1091 = vadd.f32 0.0, %v1090
        %v1092 = vpop.f32.mrb[0].mxu0
        %1093 = vmatprep.mubr.bf16.mxu0 0
        %1094 = vmatmul.mubr.bf16.gmra.mrb[0].mxu0 %v962
        %v1095 = vpop.f32.mrb[0].mxu0
        %v1096 = vadd.f32 0.0, %v1095
        %v1097 = vpop.f32.mrb[0].mxu0
        %v1098 = vpop.f32.mrb[0].mxu0
        %v1099 = vadd.f32 0.0, %v1098
        %v1100 = vpop.f32.mrb[0].mxu0
        %1101 = vmatprep.mubr.bf16.mxu0 0
        %1102 = vmatmul.mubr.bf16.gmra.mrb[0].mxu0 %v965
        %v1103 = vpop.f32.mrb[0].mxu0
        %v1104 = vadd.f32 0.0, %v1103
        %v1105 = vpop.f32.mrb[0].mxu0
        %v1106 = vpop.f32.mrb[0].mxu0
        %v1107 = vadd.f32 0.0, %v1106
        %v1108 = vpop.f32.mrb[0].mxu0
        %1109 = vmatprep.mubr.bf16.mxu0 0
        %1110 = vmatmul.mubr.bf16.gmra.mrb[0].mxu0 %v968
        %v1111 = vpop.f32.mrb[0].mxu0
        %v1112 = vadd.f32 0.0, %v1111
        %v1113 = vpop.f32.mrb[0].mxu0
        %v1114 = vpop.f32.mrb[0].mxu0
        %v1115 = vadd.f32 0.0, %v1114
        %v1116 = vpop.f32.mrb[0].mxu0
        %1117 = vdwg.mxu0
        %v1118 = vadd.f32 %v782, %v1008
        %v1119 = vadd.f32 %v785, %v1011
        %v1120 = vadd.f32 %v790, %v1016
        %v1121 = vadd.f32 %v793, %v1019
        %v1122 = vadd.f32 %v798, %v1024
        %v1123 = vadd.f32 %v801, %v1027
        %v1124 = vadd.f32 %v806, %v1032
        %v1125 = vadd.f32 %v809, %v1035
        %v1126 = vadd.f32 %v814, %v1040
        %v1127 = vadd.f32 %v817, %v1043
        %v1128 = vadd.f32 %v822, %v1048
        %v1129 = vadd.f32 %v825, %v1051
        %v1130 = vadd.f32 %v830, %v1056
        %v1131 = vadd.f32 %v833, %v1059
        %v1132 = vadd.f32 %v838, %v1064
        %v1133 = vadd.f32 %v841, %v1067
        %v1134 = vadd.f32 %v846, %v1072
        %v1135 = vadd.f32 %v849, %v1075
        %v1136 = vadd.f32 %v854, %v1080
        %v1137 = vadd.f32 %v857, %v1083
        %v1138 = vadd.f32 %v862, %v1088
        %v1139 = vadd.f32 %v865, %v1091
        %v1140 = vadd.f32 %v870, %v1096
        %v1141 = vadd.f32 %v873, %v1099
        %v1142 = vadd.f32 %v878, %v1104
        %v1143 = vadd.f32 %v881, %v1107
        %v1144 = vadd.f32 %v886, %v1112
        %v1145 = vadd.f32 %v889, %v1115
        %v1146 = vld [vmem:[%s276 + $0x8] sm:$0xf]
        %v1147 = vld [vmem:[%s276 + $0xc] sm:$0xf]
        %v1148 = vld [vmem:[%s276 + $0x10] sm:$0xf]
        %v1149 = vld [vmem:[%s276 + $0x14] sm:$0xf]
        %v1150 = vld [vmem:[%s276 + $0x18] sm:$0xf]
        %v1151 = vld [vmem:[%s276 + $0x1c] sm:$0xf]
        %v1152 = vld [vmem:[%s276 + $0x20] sm:$0xf]
        %v1153 = vld [vmem:[%s276 + $0x24] sm:$0xf]
        %v1154 = vld [vmem:[%s276 + $0x28] sm:$0xf]
        %v1155 = vld [vmem:[%s276 + $0x2c] sm:$0xf]
        %v1156 = vld [vmem:[%s276 + $0x30] sm:$0xf]
        %v1157 = vld [vmem:[%s276 + $0x34] sm:$0xf]
        %v1158 = vld [vmem:[%s276 + $0x38] sm:$0xf]
        %v1159 = vld [vmem:[%s276 + $0x3c] sm:$0xf]
        %v1160 = vld [vmem:[%s276 + $0x40] sm:$0xf]
        %v1161 = vld [vmem:[%s276 + $0x44] sm:$0xf]
        %v1162 = vld [vmem:[%s276 + $0x48] sm:$0xf]
        %v1163 = vld [vmem:[%s276 + $0x4c] sm:$0xf]
        %v1164 = vld [vmem:[%s276 + $0x50] sm:$0xf]
        %v1165 = vld [vmem:[%s276 + $0x54] sm:$0xf]
        %v1166 = vld [vmem:[%s276 + $0x58] sm:$0xf]
        %v1167 = vld [vmem:[%s276 + $0x5c] sm:$0xf]
        %v1168 = vld [vmem:[%s276 + $0x60] sm:$0xf]
        %v1169 = vld [vmem:[%s276 + $0x64] sm:$0xf]
        %v1170 = vld [vmem:[%s276 + $0x68] sm:$0xf]
        %v1171 = vld [vmem:[%s276 + $0x6c] sm:$0xf]
        %v1172 = vld [vmem:[%s276 + $0x70] sm:$0xf]
        %v1173 = vld [vmem:[%s276 + $0x74] sm:$0xf]
        %s1174 = scalar_lea.vmem %s1, 6
        %v1175 = vld [vmem:[%s1174] sm:$0x3]
        %v1204 = vunpack.c.l.b16 %v1146
        %v1205 = vunpack.c.l.b16 %v1147
        %v1206 = vunpack.c.l.b16 %v1148
        %v1207 = vunpack.c.l.b16 %v1149
        %v1208 = vunpack.c.l.b16 %v1150
        %v1209 = vunpack.c.l.b16 %v1151
        %v1210 = vunpack.c.l.b16 %v1152
        %v1211 = vunpack.c.l.b16 %v1153
        %v1212 = vunpack.c.l.b16 %v1154
        %v1213 = vunpack.c.l.b16 %v1155
        %v1214 = vunpack.c.l.b16 %v1156
        %v1215 = vunpack.c.l.b16 %v1157
        %v1216 = vunpack.c.l.b16 %v1158
        %v1217 = vunpack.c.l.b16 %v1159
        %v1218 = vunpack.c.l.b16 %v1160
        %v1219 = vunpack.c.l.b16 %v1161
        %v1220 = vunpack.c.l.b16 %v1162
        %v1221 = vunpack.c.l.b16 %v1163
        %v1222 = vunpack.c.l.b16 %v1164
        %v1223 = vunpack.c.l.b16 %v1165
        %v1224 = vunpack.c.l.b16 %v1166
        %v1225 = vunpack.c.l.b16 %v1167
        %v1226 = vunpack.c.l.b16 %v1168
        %v1227 = vunpack.c.l.b16 %v1169
        %v1228 = vunpack.c.l.b16 %v1170
        %v1229 = vunpack.c.l.b16 %v1171
        %v1230 = vunpack.c.l.b16 %v1172
        %v1231 = vunpack.c.l.b16 %v1173
        %v1232 = vpack.c.b16 %v1205, %v1204
        %v1233 = vpack.c.b16 %v1207, %v1206
        %v1234 = vpack.c.b16 %v1209, %v1208
        %v1235 = vpack.c.b16 %v1211, %v1210
        %v1236 = vpack.c.b16 %v1213, %v1212
        %v1237 = vpack.c.b16 %v1215, %v1214
        %v1238 = vpack.c.b16 %v1217, %v1216
        %v1239 = vpack.c.b16 %v1219, %v1218
        %v1240 = vpack.c.b16 %v1221, %v1220
        %v1241 = vpack.c.b16 %v1223, %v1222
        %v1242 = vpack.c.b16 %v1225, %v1224
        %v1243 = vpack.c.b16 %v1227, %v1226
        %v1244 = vpack.c.b16 %v1229, %v1228
        %v1245 = vpack.c.b16 %v1231, %v1230
        %v1247 = vsel %vm521, %v1232, 0
        %v1250 = vsel %vm521, %v1233, 0
        %v1253 = vsel %vm521, %v1234, 0
        %v1256 = vsel %vm521, %v1235, 0
        %v1259 = vsel %vm521, %v1236, 0
        %v1262 = vsel %vm521, %v1237, 0
        %v1265 = vsel %vm521, %v1238, 0
        %v1268 = vsel %vm521, %v1239, 0
        %v1271 = vsel %vm521, %v1240, 0
        %v1274 = vsel %vm521, %v1241, 0
        %v1277 = vsel %vm521, %v1242, 0
        %v1280 = vsel %vm521, %v1243, 0
        %v1283 = vsel %vm521, %v1244, 0
        %v1286 = vsel %vm521, %v1245, 0
        %v1289 = vand.u32 %v1175, %v567
        %1291 = vmatprep.subr.bf16.mxu0 0
        %1292 = vmatpush1.bf16.msra.mxu0 %v1289
        %1293 = vmatprep.subr.bf16.mxu0 0
        %1294 = vmatpush1.bf16.msra.mxu0 0
        %1295 = vmatprep.subr.bf16.mxu0 0
        %1296 = vmatpush1.bf16.msra.mxu0 0
        %1297 = vmatprep.subr.bf16.mxu0 0
        %1298 = vmatpush1.bf16.msra.mxu0 0
        %1299 = vmatprep.subr.bf16.mxu0 0
        %1300 = vmatpush1.bf16.msra.mxu0 0
        %1301 = vmatprep.subr.bf16.mxu0 0
        %1302 = vmatpush1.bf16.msra.mxu0 0
        %1303 = vmatprep.subr.bf16.mxu0 0
        %1304 = vmatpush1.bf16.msra.mxu0 0
        %1305 = vmatprep.subr.bf16.mxu0 0
        %1306 = vmatpush1.bf16.msra.mxu0 0
        %1307 = vmatprep.subr.bf16.mxu0 0
        %1308 = vmatpush1.bf16.msra.mxu0 0
        %1309 = vmatprep.subr.bf16.mxu0 0
        %1310 = vmatpush1.bf16.msra.mxu0 0
        %1311 = vmatprep.subr.bf16.mxu0 0
        %1312 = vmatpush1.bf16.msra.mxu0 0
        %1313 = vmatprep.subr.bf16.mxu0 0
        %1314 = vmatpush1.bf16.msra.mxu0 0
        %1315 = vmatprep.subr.bf16.mxu0 0
        %1316 = vmatpush1.bf16.msra.mxu0 0
        %1317 = vmatprep.subr.bf16.mxu0 0
        %1318 = vmatpush1.bf16.msra.mxu0 0
        %1319 = vmatprep.subr.bf16.mxu0 0
        %1320 = vmatpush1.bf16.msra.mxu0 0
        %1321 = vmatprep.subr.bf16.mxu0 0
        %1322 = vmatpush1.bf16.msra.mxu0 0
        %1323 = vmatprep.mubr.bf16.mxu0 0
        %1324 = vmatmul.mubr.bf16.gmra.mrb[0].mxu0 %v1247
        %v1325 = vpop.f32.mrb[0].mxu0
        %v1326 = vadd.f32 0.0, %v1325
        %v1327 = vpop.f32.mrb[0].mxu0
        %v1328 = vpop.f32.mrb[0].mxu0
        %v1329 = vadd.f32 0.0, %v1328
        %v1330 = vpop.f32.mrb[0].mxu0
        %1331 = vmatprep.mubr.bf16.mxu0 0
        %1332 = vmatmul.mubr.bf16.gmra.mrb[0].mxu0 %v1250
        %v1333 = vpop.f32.mrb[0].mxu0
        %v1334 = vadd.f32 0.0, %v1333
        %v1335 = vpop.f32.mrb[0].mxu0
        %v1336 = vpop.f32.mrb[0].mxu0
        %v1337 = vadd.f32 0.0, %v1336
        %v1338 = vpop.f32.mrb[0].mxu0
        %1339 = vmatprep.mubr.bf16.mxu0 0
        %1340 = vmatmul.mubr.bf16.gmra.mrb[0].mxu0 %v1253
        %v1341 = vpop.f32.mrb[0].mxu0
        %v1342 = vadd.f32 0.0, %v1341
        %v1343 = vpop.f32.mrb[0].mxu0
        %v1344 = vpop.f32.mrb[0].mxu0
        %v1345 = vadd.f32 0.0, %v1344
        %v1346 = vpop.f32.mrb[0].mxu0
        %1347 = vmatprep.mubr.bf16.mxu0 0
        %1348 = vmatmul.mubr.bf16.gmra.mrb[0].mxu0 %v1256
        %v1349 = vpop.f32.mrb[0].mxu0
        %v1350 = vadd.f32 0.0, %v1349
        %v1351 = vpop.f32.mrb[0].mxu0
        %v1352 = vpop.f32.mrb[0].mxu0
        %v1353 = vadd.f32 0.0, %v1352
        %v1354 = vpop.f32.mrb[0].mxu0
        %1355 = vmatprep.mubr.bf16.mxu0 0
        %1356 = vmatmul.mubr.bf16.gmra.mrb[0].mxu0 %v1259
        %v1357 = vpop.f32.mrb[0].mxu0
        %v1358 = vadd.f32 0.0, %v1357
        %v1359 = vpop.f32.mrb[0].mxu0
        %v1360 = vpop.f32.mrb[0].mxu0
        %v1361 = vadd.f32 0.0, %v1360
        %v1362 = vpop.f32.mrb[0].mxu0
        %1363 = vmatprep.mubr.bf16.mxu0 0
        %1364 = vmatmul.mubr.bf16.gmra.mrb[0].mxu0 %v1262
        %v1365 = vpop.f32.mrb[0].mxu0
        %v1366 = vadd.f32 0.0, %v1365
        %v1367 = vpop.f32.mrb[0].mxu0
        %v1368 = vpop.f32.mrb[0].mxu0
        %v1369 = vadd.f32 0.0, %v1368
        %v1370 = vpop.f32.mrb[0].mxu0
        %1371 = vmatprep.mubr.bf16.mxu0 0
        %1372 = vmatmul.mubr.bf16.gmra.mrb[0].mxu0 %v1265
        %v1373 = vpop.f32.mrb[0].mxu0
        %v1374 = vadd.f32 0.0, %v1373
        %v1375 = vpop.f32.mrb[0].mxu0
        %v1376 = vpop.f32.mrb[0].mxu0
        %v1377 = vadd.f32 0.0, %v1376
        %v1378 = vpop.f32.mrb[0].mxu0
        %1379 = vmatprep.mubr.bf16.mxu0 0
        %1380 = vmatmul.mubr.bf16.gmra.mrb[0].mxu0 %v1268
        %v1381 = vpop.f32.mrb[0].mxu0
        %v1382 = vadd.f32 0.0, %v1381
        %v1383 = vpop.f32.mrb[0].mxu0
        %v1384 = vpop.f32.mrb[0].mxu0
        %v1385 = vadd.f32 0.0, %v1384
        %v1386 = vpop.f32.mrb[0].mxu0
        %1387 = vmatprep.mubr.bf16.mxu0 0
        %1388 = vmatmul.mubr.bf16.gmra.mrb[0].mxu0 %v1271
        %v1389 = vpop.f32.mrb[0].mxu0
        %v1390 = vadd.f32 0.0, %v1389
        %v1391 = vpop.f32.mrb[0].mxu0
        %v1392 = vpop.f32.mrb[0].mxu0
        %v1393 = vadd.f32 0.0, %v1392
        %v1394 = vpop.f32.mrb[0].mxu0
        %1395 = vmatprep.mubr.bf16.mxu0 0
        %1396 = vmatmul.mubr.bf16.gmra.mrb[0].mxu0 %v1274
        %v1397 = vpop.f32.mrb[0].mxu0
        %v1398 = vadd.f32 0.0, %v1397
        %v1399 = vpop.f32.mrb[0].mxu0
        %v1400 = vpop.f32.mrb[0].mxu0
        %v1401 = vadd.f32 0.0, %v1400
        %v1402 = vpop.f32.mrb[0].mxu0
        %1403 = vmatprep.mubr.bf16.mxu0 0
        %1404 = vmatmul.mubr.bf16.gmra.mrb[0].mxu0 %v1277
        %v1405 = vpop.f32.mrb[0].mxu0
        %v1406 = vadd.f32 0.0, %v1405
        %v1407 = vpop.f32.mrb[0].mxu0
        %v1408 = vpop.f32.mrb[0].mxu0
        %v1409 = vadd.f32 0.0, %v1408
        %v1410 = vpop.f32.mrb[0].mxu0
        %1411 = vmatprep.mubr.bf16.mxu0 0
        %1412 = vmatmul.mubr.bf16.gmra.mrb[0].mxu0 %v1280
        %v1413 = vpop.f32.mrb[0].mxu0
        %v1414 = vadd.f32 0.0, %v1413
        %v1415 = vpop.f32.mrb[0].mxu0
        %v1416 = vpop.f32.mrb[0].mxu0
        %v1417 = vadd.f32 0.0, %v1416
        %v1418 = vpop.f32.mrb[0].mxu0
        %1419 = vmatprep.mubr.bf16.mxu0 0
        %1420 = vmatmul.mubr.bf16.gmra.mrb[0].mxu0 %v1283
        %v1421 = vpop.f32.mrb[0].mxu0
        %v1422 = vadd.f32 0.0, %v1421
        %v1423 = vpop.f32.mrb[0].mxu0
        %v1424 = vpop.f32.mrb[0].mxu0
        %v1425 = vadd.f32 0.0, %v1424
        %v1426 = vpop.f32.mrb[0].mxu0
        %1427 = vmatprep.mubr.bf16.mxu0 0
        %1428 = vmatmul.mubr.bf16.gmra.mrb[0].mxu0 %v1286
        %v1429 = vpop.f32.mrb[0].mxu0
        %v1430 = vadd.f32 0.0, %v1429
        %v1431 = vpop.f32.mrb[0].mxu0
        %v1432 = vpop.f32.mrb[0].mxu0
        %v1433 = vadd.f32 0.0, %v1432
        %v1434 = vpop.f32.mrb[0].mxu0
        %1435 = vdwg.mxu0
        %v1436 = vadd.f32 %v1118, %v1326
        %v1437 = vadd.f32 %v1119, %v1329
        %v1438 = vadd.f32 %v1120, %v1334
        %v1439 = vadd.f32 %v1121, %v1337
        %v1440 = vadd.f32 %v1122, %v1342
        %v1441 = vadd.f32 %v1123, %v1345
        %v1442 = vadd.f32 %v1124, %v1350
        %v1443 = vadd.f32 %v1125, %v1353
        %v1444 = vadd.f32 %v1126, %v1358
        %v1445 = vadd.f32 %v1127, %v1361
        %v1446 = vadd.f32 %v1128, %v1366
        %v1447 = vadd.f32 %v1129, %v1369
        %v1448 = vadd.f32 %v1130, %v1374
        %v1449 = vadd.f32 %v1131, %v1377
        %v1450 = vadd.f32 %v1132, %v1382
        %v1451 = vadd.f32 %v1133, %v1385
        %v1452 = vadd.f32 %v1134, %v1390
        %v1453 = vadd.f32 %v1135, %v1393
        %v1454 = vadd.f32 %v1136, %v1398
        %v1455 = vadd.f32 %v1137, %v1401
        %v1456 = vadd.f32 %v1138, %v1406
        %v1457 = vadd.f32 %v1139, %v1409
        %v1458 = vadd.f32 %v1140, %v1414
        %v1459 = vadd.f32 %v1141, %v1417
        %v1460 = vadd.f32 %v1142, %v1422
        %v1461 = vadd.f32 %v1143, %v1425
        %v1462 = vadd.f32 %v1144, %v1430
        %v1463 = vadd.f32 %v1145, %v1433
        %v1464 = vld [vmem:[%s276 + $0x8] sm:$0xf]
        %v1465 = vld [vmem:[%s276 + $0xc] sm:$0xf]
        %v1466 = vld [vmem:[%s276 + $0x10] sm:$0xf]
        %v1467 = vld [vmem:[%s276 + $0x14] sm:$0xf]
        %v1468 = vld [vmem:[%s276 + $0x18] sm:$0xf]
        %v1469 = vld [vmem:[%s276 + $0x1c] sm:$0xf]
        %v1470 = vld [vmem:[%s276 + $0x20] sm:$0xf]
        %v1471 = vld [vmem:[%s276 + $0x24] sm:$0xf]
        %v1472 = vld [vmem:[%s276 + $0x28] sm:$0xf]
        %v1473 = vld [vmem:[%s276 + $0x2c] sm:$0xf]
        %v1474 = vld [vmem:[%s276 + $0x30] sm:$0xf]
        %v1475 = vld [vmem:[%s276 + $0x34] sm:$0xf]
        %v1476 = vld [vmem:[%s276 + $0x38] sm:$0xf]
        %v1477 = vld [vmem:[%s276 + $0x3c] sm:$0xf]
        %v1478 = vld [vmem:[%s276 + $0x40] sm:$0xf]
        %v1479 = vld [vmem:[%s276 + $0x44] sm:$0xf]
        %v1480 = vld [vmem:[%s276 + $0x48] sm:$0xf]
        %v1481 = vld [vmem:[%s276 + $0x4c] sm:$0xf]
        %v1482 = vld [vmem:[%s276 + $0x50] sm:$0xf]
        %v1483 = vld [vmem:[%s276 + $0x54] sm:$0xf]
        %v1484 = vld [vmem:[%s276 + $0x58] sm:$0xf]
        %v1485 = vld [vmem:[%s276 + $0x5c] sm:$0xf]
        %v1486 = vld [vmem:[%s276 + $0x60] sm:$0xf]
        %v1487 = vld [vmem:[%s276 + $0x64] sm:$0xf]
        %v1488 = vld [vmem:[%s276 + $0x68] sm:$0xf]
        %v1489 = vld [vmem:[%s276 + $0x6c] sm:$0xf]
        %v1490 = vld [vmem:[%s276 + $0x70] sm:$0xf]
        %v1491 = vld [vmem:[%s276 + $0x74] sm:$0xf]
        %v1492 = vld [vmem:[%s276 + $0x78] sm:$0x1]
        %s1493 = scalar_lea.vmem %s1, 8
        %v1494 = vld [vmem:[%s1493] sm:$0x3]
        %v1524 = vunpack.c.l.b16 %v1464
        %v1525 = vunpack.c.l.b16 %v1465
        %v1526 = vunpack.c.l.b16 %v1466
        %v1527 = vunpack.c.l.b16 %v1467
        %v1528 = vunpack.c.l.b16 %v1468
        %v1529 = vunpack.c.l.b16 %v1469
        %v1530 = vunpack.c.l.b16 %v1470
        %v1531 = vunpack.c.l.b16 %v1471
        %v1532 = vunpack.c.l.b16 %v1472
        %v1533 = vunpack.c.l.b16 %v1473
        %v1534 = vunpack.c.l.b16 %v1474
        %v1535 = vunpack.c.l.b16 %v1475
        %v1536 = vunpack.c.l.b16 %v1476
        %v1537 = vunpack.c.l.b16 %v1477
        %v1538 = vunpack.c.l.b16 %v1478
        %v1539 = vunpack.c.l.b16 %v1479
        %v1540 = vunpack.c.l.b16 %v1480
        %v1541 = vunpack.c.l.b16 %v1481
        %v1542 = vunpack.c.l.b16 %v1482
        %v1543 = vunpack.c.l.b16 %v1483
        %v1544 = vunpack.c.l.b16 %v1484
        %v1545 = vunpack.c.l.b16 %v1485
        %v1546 = vunpack.c.l.b16 %v1486
        %v1547 = vunpack.c.l.b16 %v1487
        %v1548 = vunpack.c.l.b16 %v1488
        %v1549 = vunpack.c.l.b16 %v1489
        %v1550 = vunpack.c.l.b16 %v1490
        %v1551 = vunpack.c.l.b16 %v1491
        %v1552 = vunpack.c.l.b16 %v1492
        %v1553 = vpack.c.b16 %v1525, %v1524
        %v1554 = vpack.c.b16 %v1527, %v1526
        %v1555 = vpack.c.b16 %v1529, %v1528
        %v1556 = vpack.c.b16 %v1531, %v1530
        %v1557 = vpack.c.b16 %v1533, %v1532
        %v1558 = vpack.c.b16 %v1535, %v1534
        %v1559 = vpack.c.b16 %v1537, %v1536
        %v1560 = vpack.c.b16 %v1539, %v1538
        %v1561 = vpack.c.b16 %v1541, %v1540
        %v1562 = vpack.c.b16 %v1543, %v1542
        %v1563 = vpack.c.b16 %v1545, %v1544
        %v1564 = vpack.c.b16 %v1547, %v1546
        %v1565 = vpack.c.b16 %v1549, %v1548
        %v1566 = vpack.c.b16 %v1551, %v1550
        %v1567 = vpack.c.b16 %v1552, %v1552
        %v1569 = vshrl.u32 %v1553, 16
        %v1571 = vshll.u32 %v1553, 16
        %v1573 = vrot.slane %v1571, 1
        %v1574 = vor.u32 %v1569, %v1573
        %v1576 = vshll.u32 %v1554, 16
        %v1578 = vrot.slane %v1576, 1
        %v1579 = vsel %vm404, %v1574, %v1578
        %v1580 = vshrl.u32 %v1554, 16
        %v1582 = vor.u32 %v1580, %v1578
        %v1584 = vshll.u32 %v1555, 16
        %v1586 = vrot.slane %v1584, 1
        %v1587 = vsel %vm404, %v1582, %v1586
        %v1588 = vshrl.u32 %v1555, 16
        %v1590 = vor.u32 %v1588, %v1586
        %v1592 = vshll.u32 %v1556, 16
        %v1594 = vrot.slane %v1592, 1
        %v1595 = vsel %vm404, %v1590, %v1594
        %v1596 = vshrl.u32 %v1556, 16
        %v1598 = vor.u32 %v1596, %v1594
        %v1600 = vshll.u32 %v1557, 16
        %v1602 = vrot.slane %v1600, 1
        %v1603 = vsel %vm404, %v1598, %v1602
        %v1604 = vshrl.u32 %v1557, 16
        %v1606 = vor.u32 %v1604, %v1602
        %v1608 = vshll.u32 %v1558, 16
        %v1610 = vrot.slane %v1608, 1
        %v1611 = vsel %vm404, %v1606, %v1610
        %v1612 = vshrl.u32 %v1558, 16
        %v1614 = vor.u32 %v1612, %v1610
        %v1616 = vshll.u32 %v1559, 16
        %v1618 = vrot.slane %v1616, 1
        %v1619 = vsel %vm404, %v1614, %v1618
        %v1620 = vshrl.u32 %v1559, 16
        %v1622 = vor.u32 %v1620, %v1618
        %v1624 = vshll.u32 %v1560, 16
        %v1626 = vrot.slane %v1624, 1
        %v1627 = vsel %vm404, %v1622, %v1626
        %v1628 = vshrl.u32 %v1560, 16
        %v1630 = vor.u32 %v1628, %v1626
        %v1632 = vshll.u32 %v1561, 16
        %v1634 = vrot.slane %v1632, 1
        %v1635 = vsel %vm404, %v1630, %v1634
        %v1636 = vshrl.u32 %v1561, 16
        %v1638 = vor.u32 %v1636, %v1634
        %v1640 = vshll.u32 %v1562, 16
        %v1642 = vrot.slane %v1640, 1
        %v1643 = vsel %vm404, %v1638, %v1642
        %v1644 = vshrl.u32 %v1562, 16
        %v1646 = vor.u32 %v1644, %v1642
        %v1648 = vshll.u32 %v1563, 16
        %v1650 = vrot.slane %v1648, 1
        %v1651 = vsel %vm404, %v1646, %v1650
        %v1652 = vshrl.u32 %v1563, 16
        %v1654 = vor.u32 %v1652, %v1650
        %v1656 = vshll.u32 %v1564, 16
        %v1658 = vrot.slane %v1656, 1
        %v1659 = vsel %vm404, %v1654, %v1658
        %v1660 = vshrl.u32 %v1564, 16
        %v1662 = vor.u32 %v1660, %v1658
        %v1664 = vshll.u32 %v1565, 16
        %v1666 = vrot.slane %v1664, 1
        %v1667 = vsel %vm404, %v1662, %v1666
        %v1668 = vshrl.u32 %v1565, 16
        %v1670 = vor.u32 %v1668, %v1666
        %v1672 = vshll.u32 %v1566, 16
        %v1674 = vrot.slane %v1672, 1
        %v1675 = vsel %vm404, %v1670, %v1674
        %v1676 = vshrl.u32 %v1566, 16
        %v1678 = vor.u32 %v1676, %v1674
        %v1680 = vshll.u32 %v1567, 16
        %v1682 = vrot.slane %v1680, 1
        %v1683 = vsel %vm404, %v1678, %v1682
        %v1685 = vsel %vm521, %v1579, 0
        %v1688 = vsel %vm521, %v1587, 0
        %v1691 = vsel %vm521, %v1595, 0
        %v1694 = vsel %vm521, %v1603, 0
        %v1697 = vsel %vm521, %v1611, 0
        %v1700 = vsel %vm521, %v1619, 0
        %v1703 = vsel %vm521, %v1627, 0
        %v1706 = vsel %vm521, %v1635, 0
        %v1709 = vsel %vm521, %v1643, 0
        %v1712 = vsel %vm521, %v1651, 0
        %v1715 = vsel %vm521, %v1659, 0
        %v1718 = vsel %vm521, %v1667, 0
        %v1721 = vsel %vm521, %v1675, 0
        %v1724 = vsel %vm521, %v1683, 0
        %v1727 = vand.u32 %v1494, %v567
        %1729 = vmatprep.subr.bf16.mxu0 0
        %1730 = vmatpush1.bf16.msra.mxu0 %v1727
        %1731 = vmatprep.subr.bf16.mxu0 0
        %1732 = vmatpush1.bf16.msra.mxu0 0
        %1733 = vmatprep.subr.bf16.mxu0 0
        %1734 = vmatpush1.bf16.msra.mxu0 0
        %1735 = vmatprep.subr.bf16.mxu0 0
        %1736 = vmatpush1.bf16.msra.mxu0 0
        %1737 = vmatprep.subr.bf16.mxu0 0
        %1738 = vmatpush1.bf16.msra.mxu0 0
        %1739 = vmatprep.subr.bf16.mxu0 0
        %1740 = vmatpush1.bf16.msra.mxu0 0
        %1741 = vmatprep.subr.bf16.mxu0 0
        %1742 = vmatpush1.bf16.msra.mxu0 0
        %1743 = vmatprep.subr.bf16.mxu0 0
        %1744 = vmatpush1.bf16.msra.mxu0 0
        %1745 = vmatprep.subr.bf16.mxu0 0
        %1746 = vmatpush1.bf16.msra.mxu0 0
        %1747 = vmatprep.subr.bf16.mxu0 0
        %1748 = vmatpush1.bf16.msra.mxu0 0
        %1749 = vmatprep.subr.bf16.mxu0 0
        %1750 = vmatpush1.bf16.msra.mxu0 0
        %1751 = vmatprep.subr.bf16.mxu0 0
        %1752 = vmatpush1.bf16.msra.mxu0 0
        %1753 = vmatprep.subr.bf16.mxu0 0
        %1754 = vmatpush1.bf16.msra.mxu0 0
        %1755 = vmatprep.subr.bf16.mxu0 0
        %1756 = vmatpush1.bf16.msra.mxu0 0
        %1757 = vmatprep.subr.bf16.mxu0 0
        %1758 = vmatpush1.bf16.msra.mxu0 0
        %1759 = vmatprep.subr.bf16.mxu0 0
        %1760 = vmatpush1.bf16.msra.mxu0 0
        %1761 = vmatprep.mubr.bf16.mxu0 0
        %1762 = vmatmul.mubr.bf16.gmra.mrb[0].mxu0 %v1685
        %v1763 = vpop.f32.mrb[0].mxu0
        %v1764 = vadd.f32 0.0, %v1763
        %v1765 = vpop.f32.mrb[0].mxu0
        %v1766 = vpop.f32.mrb[0].mxu0
        %v1767 = vadd.f32 0.0, %v1766
        %v1768 = vpop.f32.mrb[0].mxu0
        %1769 = vmatprep.mubr.bf16.mxu0 0
        %1770 = vmatmul.mubr.bf16.gmra.mrb[0].mxu0 %v1688
        %v1771 = vpop.f32.mrb[0].mxu0
        %v1772 = vadd.f32 0.0, %v1771
        %v1773 = vpop.f32.mrb[0].mxu0
        %v1774 = vpop.f32.mrb[0].mxu0
        %v1775 = vadd.f32 0.0, %v1774
        %v1776 = vpop.f32.mrb[0].mxu0
        %1777 = vmatprep.mubr.bf16.mxu0 0
        %1778 = vmatmul.mubr.bf16.gmra.mrb[0].mxu0 %v1691
        %v1779 = vpop.f32.mrb[0].mxu0
        %v1780 = vadd.f32 0.0, %v1779
        %v1781 = vpop.f32.mrb[0].mxu0
        %v1782 = vpop.f32.mrb[0].mxu0
        %v1783 = vadd.f32 0.0, %v1782
        %v1784 = vpop.f32.mrb[0].mxu0
        %1785 = vmatprep.mubr.bf16.mxu0 0
        %1786 = vmatmul.mubr.bf16.gmra.mrb[0].mxu0 %v1694
        %v1787 = vpop.f32.mrb[0].mxu0
        %v1788 = vadd.f32 0.0, %v1787
        %v1789 = vpop.f32.mrb[0].mxu0
        %v1790 = vpop.f32.mrb[0].mxu0
        %v1791 = vadd.f32 0.0, %v1790
        %v1792 = vpop.f32.mrb[0].mxu0
        %1793 = vmatprep.mubr.bf16.mxu0 0
        %1794 = vmatmul.mubr.bf16.gmra.mrb[0].mxu0 %v1697
        %v1795 = vpop.f32.mrb[0].mxu0
        %v1796 = vadd.f32 0.0, %v1795
        %v1797 = vpop.f32.mrb[0].mxu0
        %v1798 = vpop.f32.mrb[0].mxu0
        %v1799 = vadd.f32 0.0, %v1798
        %v1800 = vpop.f32.mrb[0].mxu0
        %1801 = vmatprep.mubr.bf16.mxu0 0
        %1802 = vmatmul.mubr.bf16.gmra.mrb[0].mxu0 %v1700
        %v1803 = vpop.f32.mrb[0].mxu0
        %v1804 = vadd.f32 0.0, %v1803
        %v1805 = vpop.f32.mrb[0].mxu0
        %v1806 = vpop.f32.mrb[0].mxu0
        %v1807 = vadd.f32 0.0, %v1806
        %v1808 = vpop.f32.mrb[0].mxu0
        %1809 = vmatprep.mubr.bf16.mxu0 0
        %1810 = vmatmul.mubr.bf16.gmra.mrb[0].mxu0 %v1703
        %v1811 = vpop.f32.mrb[0].mxu0
        %v1812 = vadd.f32 0.0, %v1811
        %v1813 = vpop.f32.mrb[0].mxu0
        %v1814 = vpop.f32.mrb[0].mxu0
        %v1815 = vadd.f32 0.0, %v1814
        %v1816 = vpop.f32.mrb[0].mxu0
        %1817 = vmatprep.mubr.bf16.mxu0 0
        %1818 = vmatmul.mubr.bf16.gmra.mrb[0].mxu0 %v1706
        %v1819 = vpop.f32.mrb[0].mxu0
        %v1820 = vadd.f32 0.0, %v1819
        %v1821 = vpop.f32.mrb[0].mxu0
        %v1822 = vpop.f32.mrb[0].mxu0
        %v1823 = vadd.f32 0.0, %v1822
        %v1824 = vpop.f32.mrb[0].mxu0
        %1825 = vmatprep.mubr.bf16.mxu0 0
        %1826 = vmatmul.mubr.bf16.gmra.mrb[0].mxu0 %v1709
        %v1827 = vpop.f32.mrb[0].mxu0
        %v1828 = vadd.f32 0.0, %v1827
        %v1829 = vpop.f32.mrb[0].mxu0
        %v1830 = vpop.f32.mrb[0].mxu0
        %v1831 = vadd.f32 0.0, %v1830
        %v1832 = vpop.f32.mrb[0].mxu0
        %1833 = vmatprep.mubr.bf16.mxu0 0
        %1834 = vmatmul.mubr.bf16.gmra.mrb[0].mxu0 %v1712
        %v1835 = vpop.f32.mrb[0].mxu0
        %v1836 = vadd.f32 0.0, %v1835
        %v1837 = vpop.f32.mrb[0].mxu0
        %v1838 = vpop.f32.mrb[0].mxu0
        %v1839 = vadd.f32 0.0, %v1838
        %v1840 = vpop.f32.mrb[0].mxu0
        %1841 = vmatprep.mubr.bf16.mxu0 0
        %1842 = vmatmul.mubr.bf16.gmra.mrb[0].mxu0 %v1715
        %v1843 = vpop.f32.mrb[0].mxu0
        %v1844 = vadd.f32 0.0, %v1843
        %v1845 = vpop.f32.mrb[0].mxu0
        %v1846 = vpop.f32.mrb[0].mxu0
        %v1847 = vadd.f32 0.0, %v1846
        %v1848 = vpop.f32.mrb[0].mxu0
        %1849 = vmatprep.mubr.bf16.mxu0 0
        %1850 = vmatmul.mubr.bf16.gmra.mrb[0].mxu0 %v1718
        %v1851 = vpop.f32.mrb[0].mxu0
        %v1852 = vadd.f32 0.0, %v1851
        %v1853 = vpop.f32.mrb[0].mxu0
        %v1854 = vpop.f32.mrb[0].mxu0
        %v1855 = vadd.f32 0.0, %v1854
        %v1856 = vpop.f32.mrb[0].mxu0
        %1857 = vmatprep.mubr.bf16.mxu0 0
        %1858 = vmatmul.mubr.bf16.gmra.mrb[0].mxu0 %v1721
        %v1859 = vpop.f32.mrb[0].mxu0
        %v1860 = vadd.f32 0.0, %v1859
        %v1861 = vpop.f32.mrb[0].mxu0
        %v1862 = vpop.f32.mrb[0].mxu0
        %v1863 = vadd.f32 0.0, %v1862
        %v1864 = vpop.f32.mrb[0].mxu0
        %1865 = vmatprep.mubr.bf16.mxu0 0
        %1866 = vmatmul.mubr.bf16.gmra.mrb[0].mxu0 %v1724
        %v1867 = vpop.f32.mrb[0].mxu0
        %v1868 = vadd.f32 0.0, %v1867
        %v1869 = vpop.f32.mrb[0].mxu0
        %v1870 = vpop.f32.mrb[0].mxu0
        %v1871 = vadd.f32 0.0, %v1870
        %v1872 = vpop.f32.mrb[0].mxu0
        %1873 = vdwg.mxu0
        %v1874 = vadd.f32 %v1436, %v1764
        %v1875 = vadd.f32 %v1437, %v1767
        %v1876 = vadd.f32 %v1438, %v1772
        %v1877 = vadd.f32 %v1439, %v1775
        %v1878 = vadd.f32 %v1440, %v1780
        %v1879 = vadd.f32 %v1441, %v1783
        %v1880 = vadd.f32 %v1442, %v1788
        %v1881 = vadd.f32 %v1443, %v1791
        %v1882 = vadd.f32 %v1444, %v1796
        %v1883 = vadd.f32 %v1445, %v1799
        %v1884 = vadd.f32 %v1446, %v1804
        %v1885 = vadd.f32 %v1447, %v1807
        %v1886 = vadd.f32 %v1448, %v1812
        %v1887 = vadd.f32 %v1449, %v1815
        %v1888 = vadd.f32 %v1450, %v1820
        %v1889 = vadd.f32 %v1451, %v1823
        %v1890 = vadd.f32 %v1452, %v1828
        %v1891 = vadd.f32 %v1453, %v1831
        %v1892 = vadd.f32 %v1454, %v1836
        %v1893 = vadd.f32 %v1455, %v1839
        %v1894 = vadd.f32 %v1456, %v1844
        %v1895 = vadd.f32 %v1457, %v1847
        %v1896 = vadd.f32 %v1458, %v1852
        %v1897 = vadd.f32 %v1459, %v1855
        %v1898 = vadd.f32 %v1460, %v1860
        %v1899 = vadd.f32 %v1461, %v1863
        %v1900 = vadd.f32 %v1462, %v1868
        %v1901 = vadd.f32 %v1463, %v1871
        %v1902 = vld [vmem:[%s276 + $0x8] sm:$0xe]
        %s1903 = scalar_lea.vmem %s1, 10
        %v1904 = vld [vmem:[%s1903] sm:$0x3]
        %v1906 = vunpack.c.l.b16 %v1902
        %v1907 = vpack.c.b16 %v1525, %v1906
        %v1908 = vrot.slane %v1907, 1
        %v1909 = vrot.slane %v1554, 1
        %v1910 = vsel %vm898, %v1908, %v1909
        %v1911 = vrot.slane %v1555, 1
        %v1912 = vsel %vm898, %v1909, %v1911
        %v1913 = vrot.slane %v1556, 1
        %v1914 = vsel %vm898, %v1911, %v1913
        %v1915 = vrot.slane %v1557, 1
        %v1916 = vsel %vm898, %v1913, %v1915
        %v1917 = vrot.slane %v1558, 1
        %v1918 = vsel %vm898, %v1915, %v1917
        %v1919 = vrot.slane %v1559, 1
        %v1920 = vsel %vm898, %v1917, %v1919
        %v1921 = vrot.slane %v1560, 1
        %v1922 = vsel %vm898, %v1919, %v1921
        %v1923 = vrot.slane %v1561, 1
        %v1924 = vsel %vm898, %v1921, %v1923
        %v1925 = vrot.slane %v1562, 1
        %v1926 = vsel %vm898, %v1923, %v1925
        %v1927 = vrot.slane %v1563, 1
        %v1928 = vsel %vm898, %v1925, %v1927
        %v1929 = vrot.slane %v1564, 1
        %v1930 = vsel %vm898, %v1927, %v1929
        %v1931 = vrot.slane %v1565, 1
        %v1932 = vsel %vm898, %v1929, %v1931
        %v1933 = vrot.slane %v1566, 1
        %v1934 = vsel %vm898, %v1931, %v1933
        %v1935 = vrot.slane %v1567, 1
        %v1936 = vsel %vm898, %v1933, %v1935
        %v1938 = vsel %vm521, %v1910, 0
        %v1941 = vsel %vm521, %v1912, 0
        %v1944 = vsel %vm521, %v1914, 0
        %v1947 = vsel %vm521, %v1916, 0
        %v1950 = vsel %vm521, %v1918, 0
        %v1953 = vsel %vm521, %v1920, 0
        %v1956 = vsel %vm521, %v1922, 0
        %v1959 = vsel %vm521, %v1924, 0
        %v1962 = vsel %vm521, %v1926, 0
        %v1965 = vsel %vm521, %v1928, 0
        %v1968 = vsel %vm521, %v1930, 0
        %v1971 = vsel %vm521, %v1932, 0
        %v1974 = vsel %vm521, %v1934, 0
        %v1977 = vsel %vm521, %v1936, 0
        %v1980 = vand.u32 %v1904, %v567
        %1982 = vmatprep.subr.bf16.mxu0 0
        %1983 = vmatpush1.bf16.msra.mxu0 %v1980
        %1984 = vmatprep.subr.bf16.mxu0 0
        %1985 = vmatpush1.bf16.msra.mxu0 0
        %1986 = vmatprep.subr.bf16.mxu0 0
        %1987 = vmatpush1.bf16.msra.mxu0 0
        %1988 = vmatprep.subr.bf16.mxu0 0
        %1989 = vmatpush1.bf16.msra.mxu0 0
        %1990 = vmatprep.subr.bf16.mxu0 0
        %1991 = vmatpush1.bf16.msra.mxu0 0
        %1992 = vmatprep.subr.bf16.mxu0 0
        %1993 = vmatpush1.bf16.msra.mxu0 0
        %1994 = vmatprep.subr.bf16.mxu0 0
        %1995 = vmatpush1.bf16.msra.mxu0 0
        %1996 = vmatprep.subr.bf16.mxu0 0
        %1997 = vmatpush1.bf16.msra.mxu0 0
        %1998 = vmatprep.subr.bf16.mxu0 0
        %1999 = vmatpush1.bf16.msra.mxu0 0
        %2000 = vmatprep.subr.bf16.mxu0 0
        %2001 = vmatpush1.bf16.msra.mxu0 0
        %2002 = vmatprep.subr.bf16.mxu0 0
        %2003 = vmatpush1.bf16.msra.mxu0 0
        %2004 = vmatprep.subr.bf16.mxu0 0
        %2005 = vmatpush1.bf16.msra.mxu0 0
        %2006 = vmatprep.subr.bf16.mxu0 0
        %2007 = vmatpush1.bf16.msra.mxu0 0
        %2008 = vmatprep.subr.bf16.mxu0 0
        %2009 = vmatpush1.bf16.msra.mxu0 0
        %2010 = vmatprep.subr.bf16.mxu0 0
        %2011 = vmatpush1.bf16.msra.mxu0 0
        %2012 = vmatprep.subr.bf16.mxu0 0
        %2013 = vmatpush1.bf16.msra.mxu0 0
        %2014 = vmatprep.mubr.bf16.mxu0 0
        %2015 = vmatmul.mubr.bf16.gmra.mrb[0].mxu0 %v1938
        %v2016 = vpop.f32.mrb[0].mxu0
        %v2017 = vadd.f32 0.0, %v2016
        %v2018 = vpop.f32.mrb[0].mxu0
        %v2019 = vpop.f32.mrb[0].mxu0
        %v2020 = vadd.f32 0.0, %v2019
        %v2021 = vpop.f32.mrb[0].mxu0
        %2022 = vmatprep.mubr.bf16.mxu0 0
        %2023 = vmatmul.mubr.bf16.gmra.mrb[0].mxu0 %v1941
        %v2024 = vpop.f32.mrb[0].mxu0
        %v2025 = vadd.f32 0.0, %v2024
        %v2026 = vpop.f32.mrb[0].mxu0
        %v2027 = vpop.f32.mrb[0].mxu0
        %v2028 = vadd.f32 0.0, %v2027
        %v2029 = vpop.f32.mrb[0].mxu0
        %2030 = vmatprep.mubr.bf16.mxu0 0
        %2031 = vmatmul.mubr.bf16.gmra.mrb[0].mxu0 %v1944
        %v2032 = vpop.f32.mrb[0].mxu0
        %v2033 = vadd.f32 0.0, %v2032
        %v2034 = vpop.f32.mrb[0].mxu0
        %v2035 = vpop.f32.mrb[0].mxu0
        %v2036 = vadd.f32 0.0, %v2035
        %v2037 = vpop.f32.mrb[0].mxu0
        %2038 = vmatprep.mubr.bf16.mxu0 0
        %2039 = vmatmul.mubr.bf16.gmra.mrb[0].mxu0 %v1947
        %v2040 = vpop.f32.mrb[0].mxu0
        %v2041 = vadd.f32 0.0, %v2040
        %v2042 = vpop.f32.mrb[0].mxu0
        %v2043 = vpop.f32.mrb[0].mxu0
        %v2044 = vadd.f32 0.0, %v2043
        %v2045 = vpop.f32.mrb[0].mxu0
        %2046 = vmatprep.mubr.bf16.mxu0 0
        %2047 = vmatmul.mubr.bf16.gmra.mrb[0].mxu0 %v1950
        %v2048 = vpop.f32.mrb[0].mxu0
        %v2049 = vadd.f32 0.0, %v2048
        %v2050 = vpop.f32.mrb[0].mxu0
        %v2051 = vpop.f32.mrb[0].mxu0
        %v2052 = vadd.f32 0.0, %v2051
        %v2053 = vpop.f32.mrb[0].mxu0
        %2054 = vmatprep.mubr.bf16.mxu0 0
        %2055 = vmatmul.mubr.bf16.gmra.mrb[0].mxu0 %v1953
        %v2056 = vpop.f32.mrb[0].mxu0
        %v2057 = vadd.f32 0.0, %v2056
        %v2058 = vpop.f32.mrb[0].mxu0
        %v2059 = vpop.f32.mrb[0].mxu0
        %v2060 = vadd.f32 0.0, %v2059
        %v2061 = vpop.f32.mrb[0].mxu0
        %2062 = vmatprep.mubr.bf16.mxu0 0
        %2063 = vmatmul.mubr.bf16.gmra.mrb[0].mxu0 %v1956
        %v2064 = vpop.f32.mrb[0].mxu0
        %v2065 = vadd.f32 0.0, %v2064
        %v2066 = vpop.f32.mrb[0].mxu0
        %v2067 = vpop.f32.mrb[0].mxu0
        %v2068 = vadd.f32 0.0, %v2067
        %v2069 = vpop.f32.mrb[0].mxu0
        %2070 = vmatprep.mubr.bf16.mxu0 0
        %2071 = vmatmul.mubr.bf16.gmra.mrb[0].mxu0 %v1959
        %v2072 = vpop.f32.mrb[0].mxu0
        %v2073 = vadd.f32 0.0, %v2072
        %v2074 = vpop.f32.mrb[0].mxu0
        %v2075 = vpop.f32.mrb[0].mxu0
        %v2076 = vadd.f32 0.0, %v2075
        %v2077 = vpop.f32.mrb[0].mxu0
        %2078 = vmatprep.mubr.bf16.mxu0 0
        %2079 = vmatmul.mubr.bf16.gmra.mrb[0].mxu0 %v1962
        %v2080 = vpop.f32.mrb[0].mxu0
        %v2081 = vadd.f32 0.0, %v2080
        %v2082 = vpop.f32.mrb[0].mxu0
        %v2083 = vpop.f32.mrb[0].mxu0
        %v2084 = vadd.f32 0.0, %v2083
        %v2085 = vpop.f32.mrb[0].mxu0
        %2086 = vmatprep.mubr.bf16.mxu0 0
        %2087 = vmatmul.mubr.bf16.gmra.mrb[0].mxu0 %v1965
        %v2088 = vpop.f32.mrb[0].mxu0
        %v2089 = vadd.f32 0.0, %v2088
        %v2090 = vpop.f32.mrb[0].mxu0
        %v2091 = vpop.f32.mrb[0].mxu0
        %v2092 = vadd.f32 0.0, %v2091
        %v2093 = vpop.f32.mrb[0].mxu0
        %2094 = vmatprep.mubr.bf16.mxu0 0
        %2095 = vmatmul.mubr.bf16.gmra.mrb[0].mxu0 %v1968
        %v2096 = vpop.f32.mrb[0].mxu0
        %v2097 = vadd.f32 0.0, %v2096
        %v2098 = vpop.f32.mrb[0].mxu0
        %v2099 = vpop.f32.mrb[0].mxu0
        %v2100 = vadd.f32 0.0, %v2099
        %v2101 = vpop.f32.mrb[0].mxu0
        %2102 = vmatprep.mubr.bf16.mxu0 0
        %2103 = vmatmul.mubr.bf16.gmra.mrb[0].mxu0 %v1971
        %v2104 = vpop.f32.mrb[0].mxu0
        %v2105 = vadd.f32 0.0, %v2104
        %v2106 = vpop.f32.mrb[0].mxu0
        %v2107 = vpop.f32.mrb[0].mxu0
        %v2108 = vadd.f32 0.0, %v2107
        %v2109 = vpop.f32.mrb[0].mxu0
        %2110 = vmatprep.mubr.bf16.mxu0 0
        %2111 = vmatmul.mubr.bf16.gmra.mrb[0].mxu0 %v1974
        %v2112 = vpop.f32.mrb[0].mxu0
        %v2113 = vadd.f32 0.0, %v2112
        %v2114 = vpop.f32.mrb[0].mxu0
        %v2115 = vpop.f32.mrb[0].mxu0
        %v2116 = vadd.f32 0.0, %v2115
        %v2117 = vpop.f32.mrb[0].mxu0
        %2118 = vmatprep.mubr.bf16.mxu0 0
        %2119 = vmatmul.mubr.bf16.gmra.mrb[0].mxu0 %v1977
        %v2120 = vpop.f32.mrb[0].mxu0
        %v2121 = vadd.f32 0.0, %v2120
        %v2122 = vpop.f32.mrb[0].mxu0
        %v2123 = vpop.f32.mrb[0].mxu0
        %v2124 = vadd.f32 0.0, %v2123
        %v2125 = vpop.f32.mrb[0].mxu0
        %2126 = vdwg.mxu0
        %v2127 = vadd.f32 %v1874, %v2017
        %v2128 = vadd.f32 %v1875, %v2020
        %v2129 = vadd.f32 %v1876, %v2025
        %v2130 = vadd.f32 %v1877, %v2028
        %v2131 = vadd.f32 %v1878, %v2033
        %v2132 = vadd.f32 %v1879, %v2036
        %v2133 = vadd.f32 %v1880, %v2041
        %v2134 = vadd.f32 %v1881, %v2044
        %v2135 = vadd.f32 %v1882, %v2049
        %v2136 = vadd.f32 %v1883, %v2052
        %v2137 = vadd.f32 %v1884, %v2057
        %v2138 = vadd.f32 %v1885, %v2060
        %v2139 = vadd.f32 %v1886, %v2065
        %v2140 = vadd.f32 %v1887, %v2068
        %v2141 = vadd.f32 %v1888, %v2073
        %v2142 = vadd.f32 %v1889, %v2076
        %v2143 = vadd.f32 %v1890, %v2081
        %v2144 = vadd.f32 %v1891, %v2084
        %v2145 = vadd.f32 %v1892, %v2089
        %v2146 = vadd.f32 %v1893, %v2092
        %v2147 = vadd.f32 %v1894, %v2097
        %v2148 = vadd.f32 %v1895, %v2100
        %v2149 = vadd.f32 %v1896, %v2105
        %v2150 = vadd.f32 %v1897, %v2108
        %v2151 = vadd.f32 %v1898, %v2113
        %v2152 = vadd.f32 %v1899, %v2116
        %v2153 = vadd.f32 %v1900, %v2121
        %v2154 = vadd.f32 %v1901, %v2124
        %v2155 = vld [vmem:[%s276 + $0x10] sm:$0xf]
        %v2156 = vld [vmem:[%s276 + $0x14] sm:$0xf]
        %v2157 = vld [vmem:[%s276 + $0x18] sm:$0xf]
        %v2158 = vld [vmem:[%s276 + $0x1c] sm:$0xf]
        %v2159 = vld [vmem:[%s276 + $0x20] sm:$0xf]
        %v2160 = vld [vmem:[%s276 + $0x24] sm:$0xf]
        %v2161 = vld [vmem:[%s276 + $0x28] sm:$0xf]
        %v2162 = vld [vmem:[%s276 + $0x2c] sm:$0xf]
        %v2163 = vld [vmem:[%s276 + $0x30] sm:$0xf]
        %v2164 = vld [vmem:[%s276 + $0x34] sm:$0xf]
        %v2165 = vld [vmem:[%s276 + $0x38] sm:$0xf]
        %v2166 = vld [vmem:[%s276 + $0x3c] sm:$0xf]
        %v2167 = vld [vmem:[%s276 + $0x40] sm:$0xf]
        %v2168 = vld [vmem:[%s276 + $0x44] sm:$0xf]
        %v2169 = vld [vmem:[%s276 + $0x48] sm:$0xf]
        %v2170 = vld [vmem:[%s276 + $0x4c] sm:$0xf]
        %v2171 = vld [vmem:[%s276 + $0x50] sm:$0xf]
        %v2172 = vld [vmem:[%s276 + $0x54] sm:$0xf]
        %v2173 = vld [vmem:[%s276 + $0x58] sm:$0xf]
        %v2174 = vld [vmem:[%s276 + $0x5c] sm:$0xf]
        %v2175 = vld [vmem:[%s276 + $0x60] sm:$0xf]
        %v2176 = vld [vmem:[%s276 + $0x64] sm:$0xf]
        %v2177 = vld [vmem:[%s276 + $0x68] sm:$0xf]
        %v2178 = vld [vmem:[%s276 + $0x6c] sm:$0xf]
        %v2179 = vld [vmem:[%s276 + $0x70] sm:$0xf]
        %v2180 = vld [vmem:[%s276 + $0x74] sm:$0xf]
        %v2181 = vld [vmem:[%s276 + $0x78] sm:$0xf]
        %v2182 = vld [vmem:[%s276 + $0x7c] sm:$0xf]
        %s2183 = scalar_lea.vmem %s1, 12
        %v2184 = vld [vmem:[%s2183] sm:$0x3]
        %v2213 = vunpack.c.l.b16 %v2155
        %v2214 = vunpack.c.l.b16 %v2156
        %v2215 = vunpack.c.l.b16 %v2157
        %v2216 = vunpack.c.l.b16 %v2158
        %v2217 = vunpack.c.l.b16 %v2159
        %v2218 = vunpack.c.l.b16 %v2160
        %v2219 = vunpack.c.l.b16 %v2161
        %v2220 = vunpack.c.l.b16 %v2162
        %v2221 = vunpack.c.l.b16 %v2163
        %v2222 = vunpack.c.l.b16 %v2164
        %v2223 = vunpack.c.l.b16 %v2165
        %v2224 = vunpack.c.l.b16 %v2166
        %v2225 = vunpack.c.l.b16 %v2167
        %v2226 = vunpack.c.l.b16 %v2168
        %v2227 = vunpack.c.l.b16 %v2169
        %v2228 = vunpack.c.l.b16 %v2170
        %v2229 = vunpack.c.l.b16 %v2171
        %v2230 = vunpack.c.l.b16 %v2172
        %v2231 = vunpack.c.l.b16 %v2173
        %v2232 = vunpack.c.l.b16 %v2174
        %v2233 = vunpack.c.l.b16 %v2175
        %v2234 = vunpack.c.l.b16 %v2176
        %v2235 = vunpack.c.l.b16 %v2177
        %v2236 = vunpack.c.l.b16 %v2178
        %v2237 = vunpack.c.l.b16 %v2179
        %v2238 = vunpack.c.l.b16 %v2180
        %v2239 = vunpack.c.l.b16 %v2181
        %v2240 = vunpack.c.l.b16 %v2182
        %v2241 = vpack.c.b16 %v2214, %v2213
        %v2242 = vpack.c.b16 %v2216, %v2215
        %v2243 = vpack.c.b16 %v2218, %v2217
        %v2244 = vpack.c.b16 %v2220, %v2219
        %v2245 = vpack.c.b16 %v2222, %v2221
        %v2246 = vpack.c.b16 %v2224, %v2223
        %v2247 = vpack.c.b16 %v2226, %v2225
        %v2248 = vpack.c.b16 %v2228, %v2227
        %v2249 = vpack.c.b16 %v2230, %v2229
        %v2250 = vpack.c.b16 %v2232, %v2231
        %v2251 = vpack.c.b16 %v2234, %v2233
        %v2252 = vpack.c.b16 %v2236, %v2235
        %v2253 = vpack.c.b16 %v2238, %v2237
        %v2254 = vpack.c.b16 %v2240, %v2239
        %v2256 = vsel %vm521, %v2241, 0
        %v2259 = vsel %vm521, %v2242, 0
        %v2262 = vsel %vm521, %v2243, 0
        %v2265 = vsel %vm521, %v2244, 0
        %v2268 = vsel %vm521, %v2245, 0
        %v2271 = vsel %vm521, %v2246, 0
        %v2274 = vsel %vm521, %v2247, 0
        %v2277 = vsel %vm521, %v2248, 0
        %v2280 = vsel %vm521, %v2249, 0
        %v2283 = vsel %vm521, %v2250, 0
        %v2286 = vsel %vm521, %v2251, 0
        %v2289 = vsel %vm521, %v2252, 0
        %v2292 = vsel %vm521, %v2253, 0
        %v2295 = vsel %vm521, %v2254, 0
        %v2298 = vand.u32 %v2184, %v567
        %2300 = vmatprep.subr.bf16.mxu0 0
        %2301 = vmatpush1.bf16.msra.mxu0 %v2298
        %2302 = vmatprep.subr.bf16.mxu0 0
        %2303 = vmatpush1.bf16.msra.mxu0 0
        %2304 = vmatprep.subr.bf16.mxu0 0
        %2305 = vmatpush1.bf16.msra.mxu0 0
        %2306 = vmatprep.subr.bf16.mxu0 0
        %2307 = vmatpush1.bf16.msra.mxu0 0
        %2308 = vmatprep.subr.bf16.mxu0 0
        %2309 = vmatpush1.bf16.msra.mxu0 0
        %2310 = vmatprep.subr.bf16.mxu0 0
        %2311 = vmatpush1.bf16.msra.mxu0 0
        %2312 = vmatprep.subr.bf16.mxu0 0
        %2313 = vmatpush1.bf16.msra.mxu0 0
        %2314 = vmatprep.subr.bf16.mxu0 0
        %2315 = vmatpush1.bf16.msra.mxu0 0
        %2316 = vmatprep.subr.bf16.mxu0 0
        %2317 = vmatpush1.bf16.msra.mxu0 0
        %2318 = vmatprep.subr.bf16.mxu0 0
        %2319 = vmatpush1.bf16.msra.mxu0 0
        %2320 = vmatprep.subr.bf16.mxu0 0
        %2321 = vmatpush1.bf16.msra.mxu0 0
        %2322 = vmatprep.subr.bf16.mxu0 0
        %2323 = vmatpush1.bf16.msra.mxu0 0
        %2324 = vmatprep.subr.bf16.mxu0 0
        %2325 = vmatpush1.bf16.msra.mxu0 0
        %2326 = vmatprep.subr.bf16.mxu0 0
        %2327 = vmatpush1.bf16.msra.mxu0 0
        %2328 = vmatprep.subr.bf16.mxu0 0
        %2329 = vmatpush1.bf16.msra.mxu0 0
        %2330 = vmatprep.subr.bf16.mxu0 0
        %2331 = vmatpush1.bf16.msra.mxu0 0
        %2332 = vmatprep.mubr.bf16.mxu0 0
        %2333 = vmatmul.mubr.bf16.gmra.mrb[0].mxu0 %v2256
        %v2334 = vpop.f32.mrb[0].mxu0
        %v2335 = vadd.f32 0.0, %v2334
        %v2336 = vpop.f32.mrb[0].mxu0
        %v2337 = vpop.f32.mrb[0].mxu0
        %v2338 = vadd.f32 0.0, %v2337
        %v2339 = vpop.f32.mrb[0].mxu0
        %2340 = vmatprep.mubr.bf16.mxu0 0
        %2341 = vmatmul.mubr.bf16.gmra.mrb[0].mxu0 %v2259
        %v2342 = vpop.f32.mrb[0].mxu0
        %v2343 = vadd.f32 0.0, %v2342
        %v2344 = vpop.f32.mrb[0].mxu0
        %v2345 = vpop.f32.mrb[0].mxu0
        %v2346 = vadd.f32 0.0, %v2345
        %v2347 = vpop.f32.mrb[0].mxu0
        %2348 = vmatprep.mubr.bf16.mxu0 0
        %2349 = vmatmul.mubr.bf16.gmra.mrb[0].mxu0 %v2262
        %v2350 = vpop.f32.mrb[0].mxu0
        %v2351 = vadd.f32 0.0, %v2350
        %v2352 = vpop.f32.mrb[0].mxu0
        %v2353 = vpop.f32.mrb[0].mxu0
        %v2354 = vadd.f32 0.0, %v2353
        %v2355 = vpop.f32.mrb[0].mxu0
        %2356 = vmatprep.mubr.bf16.mxu0 0
        %2357 = vmatmul.mubr.bf16.gmra.mrb[0].mxu0 %v2265
        %v2358 = vpop.f32.mrb[0].mxu0
        %v2359 = vadd.f32 0.0, %v2358
        %v2360 = vpop.f32.mrb[0].mxu0
        %v2361 = vpop.f32.mrb[0].mxu0
        %v2362 = vadd.f32 0.0, %v2361
        %v2363 = vpop.f32.mrb[0].mxu0
        %2364 = vmatprep.mubr.bf16.mxu0 0
        %2365 = vmatmul.mubr.bf16.gmra.mrb[0].mxu0 %v2268
        %v2366 = vpop.f32.mrb[0].mxu0
        %v2367 = vadd.f32 0.0, %v2366
        %v2368 = vpop.f32.mrb[0].mxu0
        %v2369 = vpop.f32.mrb[0].mxu0
        %v2370 = vadd.f32 0.0, %v2369
        %v2371 = vpop.f32.mrb[0].mxu0
        %2372 = vmatprep.mubr.bf16.mxu0 0
        %2373 = vmatmul.mubr.bf16.gmra.mrb[0].mxu0 %v2271
        %v2374 = vpop.f32.mrb[0].mxu0
        %v2375 = vadd.f32 0.0, %v2374
        %v2376 = vpop.f32.mrb[0].mxu0
        %v2377 = vpop.f32.mrb[0].mxu0
        %v2378 = vadd.f32 0.0, %v2377
        %v2379 = vpop.f32.mrb[0].mxu0
        %2380 = vmatprep.mubr.bf16.mxu0 0
        %2381 = vmatmul.mubr.bf16.gmra.mrb[0].mxu0 %v2274
        %v2382 = vpop.f32.mrb[0].mxu0
        %v2383 = vadd.f32 0.0, %v2382
        %v2384 = vpop.f32.mrb[0].mxu0
        %v2385 = vpop.f32.mrb[0].mxu0
        %v2386 = vadd.f32 0.0, %v2385
        %v2387 = vpop.f32.mrb[0].mxu0
        %2388 = vmatprep.mubr.bf16.mxu0 0
        %2389 = vmatmul.mubr.bf16.gmra.mrb[0].mxu0 %v2277
        %v2390 = vpop.f32.mrb[0].mxu0
        %v2391 = vadd.f32 0.0, %v2390
        %v2392 = vpop.f32.mrb[0].mxu0
        %v2393 = vpop.f32.mrb[0].mxu0
        %v2394 = vadd.f32 0.0, %v2393
        %v2395 = vpop.f32.mrb[0].mxu0
        %2396 = vmatprep.mubr.bf16.mxu0 0
        %2397 = vmatmul.mubr.bf16.gmra.mrb[0].mxu0 %v2280
        %v2398 = vpop.f32.mrb[0].mxu0
        %v2399 = vadd.f32 0.0, %v2398
        %v2400 = vpop.f32.mrb[0].mxu0
        %v2401 = vpop.f32.mrb[0].mxu0
        %v2402 = vadd.f32 0.0, %v2401
        %v2403 = vpop.f32.mrb[0].mxu0
        %2404 = vmatprep.mubr.bf16.mxu0 0
        %2405 = vmatmul.mubr.bf16.gmra.mrb[0].mxu0 %v2283
        %v2406 = vpop.f32.mrb[0].mxu0
        %v2407 = vadd.f32 0.0, %v2406
        %v2408 = vpop.f32.mrb[0].mxu0
        %v2409 = vpop.f32.mrb[0].mxu0
        %v2410 = vadd.f32 0.0, %v2409
        %v2411 = vpop.f32.mrb[0].mxu0
        %2412 = vmatprep.mubr.bf16.mxu0 0
        %2413 = vmatmul.mubr.bf16.gmra.mrb[0].mxu0 %v2286
        %v2414 = vpop.f32.mrb[0].mxu0
        %v2415 = vadd.f32 0.0, %v2414
        %v2416 = vpop.f32.mrb[0].mxu0
        %v2417 = vpop.f32.mrb[0].mxu0
        %v2418 = vadd.f32 0.0, %v2417
        %v2419 = vpop.f32.mrb[0].mxu0
        %2420 = vmatprep.mubr.bf16.mxu0 0
        %2421 = vmatmul.mubr.bf16.gmra.mrb[0].mxu0 %v2289
        %v2422 = vpop.f32.mrb[0].mxu0
        %v2423 = vadd.f32 0.0, %v2422
        %v2424 = vpop.f32.mrb[0].mxu0
        %v2425 = vpop.f32.mrb[0].mxu0
        %v2426 = vadd.f32 0.0, %v2425
        %v2427 = vpop.f32.mrb[0].mxu0
        %2428 = vmatprep.mubr.bf16.mxu0 0
        %2429 = vmatmul.mubr.bf16.gmra.mrb[0].mxu0 %v2292
        %v2430 = vpop.f32.mrb[0].mxu0
        %v2431 = vadd.f32 0.0, %v2430
        %v2432 = vpop.f32.mrb[0].mxu0
        %v2433 = vpop.f32.mrb[0].mxu0
        %v2434 = vadd.f32 0.0, %v2433
        %v2435 = vpop.f32.mrb[0].mxu0
        %2436 = vmatprep.mubr.bf16.mxu0 0
        %2437 = vmatmul.mubr.bf16.gmra.mrb[0].mxu0 %v2295
        %v2438 = vpop.f32.mrb[0].mxu0
        %v2439 = vadd.f32 0.0, %v2438
        %v2440 = vpop.f32.mrb[0].mxu0
        %v2441 = vpop.f32.mrb[0].mxu0
        %v2442 = vadd.f32 0.0, %v2441
        %v2443 = vpop.f32.mrb[0].mxu0
        %2444 = vdwg.mxu0
        %v2445 = vadd.f32 %v2127, %v2335
        %v2446 = vadd.f32 %v2128, %v2338
        %v2447 = vadd.f32 %v2129, %v2343
        %v2448 = vadd.f32 %v2130, %v2346
        %v2449 = vadd.f32 %v2131, %v2351
        %v2450 = vadd.f32 %v2132, %v2354
        %v2451 = vadd.f32 %v2133, %v2359
        %v2452 = vadd.f32 %v2134, %v2362
        %v2453 = vadd.f32 %v2135, %v2367
        %v2454 = vadd.f32 %v2136, %v2370
        %v2455 = vadd.f32 %v2137, %v2375
        %v2456 = vadd.f32 %v2138, %v2378
        %v2457 = vadd.f32 %v2139, %v2383
        %v2458 = vadd.f32 %v2140, %v2386
        %v2459 = vadd.f32 %v2141, %v2391
        %v2460 = vadd.f32 %v2142, %v2394
        %v2461 = vadd.f32 %v2143, %v2399
        %v2462 = vadd.f32 %v2144, %v2402
        %v2463 = vadd.f32 %v2145, %v2407
        %v2464 = vadd.f32 %v2146, %v2410
        %v2465 = vadd.f32 %v2147, %v2415
        %v2466 = vadd.f32 %v2148, %v2418
        %v2467 = vadd.f32 %v2149, %v2423
        %v2468 = vadd.f32 %v2150, %v2426
        %v2469 = vadd.f32 %v2151, %v2431
        %v2470 = vadd.f32 %v2152, %v2434
        %v2471 = vadd.f32 %v2153, %v2439
        %v2472 = vadd.f32 %v2154, %v2442
        %v2473 = vld [vmem:[%s276 + $0x10] sm:$0xf]
        %v2474 = vld [vmem:[%s276 + $0x14] sm:$0xf]
        %v2475 = vld [vmem:[%s276 + $0x18] sm:$0xf]
        %v2476 = vld [vmem:[%s276 + $0x1c] sm:$0xf]
        %v2477 = vld [vmem:[%s276 + $0x20] sm:$0xf]
        %v2478 = vld [vmem:[%s276 + $0x24] sm:$0xf]
        %v2479 = vld [vmem:[%s276 + $0x28] sm:$0xf]
        %v2480 = vld [vmem:[%s276 + $0x2c] sm:$0xf]
        %v2481 = vld [vmem:[%s276 + $0x30] sm:$0xf]
        %v2482 = vld [vmem:[%s276 + $0x34] sm:$0xf]
        %v2483 = vld [vmem:[%s276 + $0x38] sm:$0xf]
        %v2484 = vld [vmem:[%s276 + $0x3c] sm:$0xf]
        %v2485 = vld [vmem:[%s276 + $0x40] sm:$0xf]
        %v2486 = vld [vmem:[%s276 + $0x44] sm:$0xf]
        %v2487 = vld [vmem:[%s276 + $0x48] sm:$0xf]
        %v2488 = vld [vmem:[%s276 + $0x4c] sm:$0xf]
        %v2489 = vld [vmem:[%s276 + $0x50] sm:$0xf]
        %v2490 = vld [vmem:[%s276 + $0x54] sm:$0xf]
        %v2491 = vld [vmem:[%s276 + $0x58] sm:$0xf]
        %v2492 = vld [vmem:[%s276 + $0x5c] sm:$0xf]
        %v2493 = vld [vmem:[%s276 + $0x60] sm:$0xf]
        %v2494 = vld [vmem:[%s276 + $0x64] sm:$0xf]
        %v2495 = vld [vmem:[%s276 + $0x68] sm:$0xf]
        %v2496 = vld [vmem:[%s276 + $0x6c] sm:$0xf]
        %v2497 = vld [vmem:[%s276 + $0x70] sm:$0xf]
        %v2498 = vld [vmem:[%s276 + $0x74] sm:$0xf]
        %v2499 = vld [vmem:[%s276 + $0x78] sm:$0xf]
        %v2500 = vld [vmem:[%s276 + $0x7c] sm:$0xf]
        %v2501 = vld [vmem:[%s276 + $0x80] sm:$0x1]
        %s2502 = scalar_lea.vmem %s1, 14
        %v2503 = vld [vmem:[%s2502] sm:$0x3]
        %v2533 = vunpack.c.l.b16 %v2473
        %v2534 = vunpack.c.l.b16 %v2474
        %v2535 = vunpack.c.l.b16 %v2475
        %v2536 = vunpack.c.l.b16 %v2476
        %v2537 = vunpack.c.l.b16 %v2477
        %v2538 = vunpack.c.l.b16 %v2478
        %v2539 = vunpack.c.l.b16 %v2479
        %v2540 = vunpack.c.l.b16 %v2480
        %v2541 = vunpack.c.l.b16 %v2481
        %v2542 = vunpack.c.l.b16 %v2482
        %v2543 = vunpack.c.l.b16 %v2483
        %v2544 = vunpack.c.l.b16 %v2484
        %v2545 = vunpack.c.l.b16 %v2485
        %v2546 = vunpack.c.l.b16 %v2486
        %v2547 = vunpack.c.l.b16 %v2487
        %v2548 = vunpack.c.l.b16 %v2488
        %v2549 = vunpack.c.l.b16 %v2489
        %v2550 = vunpack.c.l.b16 %v2490
        %v2551 = vunpack.c.l.b16 %v2491
        %v2552 = vunpack.c.l.b16 %v2492
        %v2553 = vunpack.c.l.b16 %v2493
        %v2554 = vunpack.c.l.b16 %v2494
        %v2555 = vunpack.c.l.b16 %v2495
        %v2556 = vunpack.c.l.b16 %v2496
        %v2557 = vunpack.c.l.b16 %v2497
        %v2558 = vunpack.c.l.b16 %v2498
        %v2559 = vunpack.c.l.b16 %v2499
        %v2560 = vunpack.c.l.b16 %v2500
        %v2561 = vunpack.c.l.b16 %v2501
        %v2562 = vpack.c.b16 %v2534, %v2533
        %v2563 = vpack.c.b16 %v2536, %v2535
        %v2564 = vpack.c.b16 %v2538, %v2537
        %v2565 = vpack.c.b16 %v2540, %v2539
        %v2566 = vpack.c.b16 %v2542, %v2541
        %v2567 = vpack.c.b16 %v2544, %v2543
        %v2568 = vpack.c.b16 %v2546, %v2545
        %v2569 = vpack.c.b16 %v2548, %v2547
        %v2570 = vpack.c.b16 %v2550, %v2549
        %v2571 = vpack.c.b16 %v2552, %v2551
        %v2572 = vpack.c.b16 %v2554, %v2553
        %v2573 = vpack.c.b16 %v2556, %v2555
        %v2574 = vpack.c.b16 %v2558, %v2557
        %v2575 = vpack.c.b16 %v2560, %v2559
        %v2576 = vpack.c.b16 %v2561, %v2561
        %v2578 = vshrl.u32 %v2562, 16
        %v2580 = vshll.u32 %v2562, 16
        %v2582 = vrot.slane %v2580, 1
        %v2583 = vor.u32 %v2578, %v2582
        %v2585 = vshll.u32 %v2563, 16
        %v2587 = vrot.slane %v2585, 1
        %v2588 = vsel %vm404, %v2583, %v2587
        %v2589 = vshrl.u32 %v2563, 16
        %v2591 = vor.u32 %v2589, %v2587
        %v2593 = vshll.u32 %v2564, 16
        %v2595 = vrot.slane %v2593, 1
        %v2596 = vsel %vm404, %v2591, %v2595
        %v2597 = vshrl.u32 %v2564, 16
        %v2599 = vor.u32 %v2597, %v2595
        %v2601 = vshll.u32 %v2565, 16
        %v2603 = vrot.slane %v2601, 1
        %v2604 = vsel %vm404, %v2599, %v2603
        %v2605 = vshrl.u32 %v2565, 16
        %v2607 = vor.u32 %v2605, %v2603
        %v2609 = vshll.u32 %v2566, 16
        %v2611 = vrot.slane %v2609, 1
        %v2612 = vsel %vm404, %v2607, %v2611
        %v2613 = vshrl.u32 %v2566, 16
        %v2615 = vor.u32 %v2613, %v2611
        %v2617 = vshll.u32 %v2567, 16
        %v2619 = vrot.slane %v2617, 1
        %v2620 = vsel %vm404, %v2615, %v2619
        %v2621 = vshrl.u32 %v2567, 16
        %v2623 = vor.u32 %v2621, %v2619
        %v2625 = vshll.u32 %v2568, 16
        %v2627 = vrot.slane %v2625, 1
        %v2628 = vsel %vm404, %v2623, %v2627
        %v2629 = vshrl.u32 %v2568, 16
        %v2631 = vor.u32 %v2629, %v2627
        %v2633 = vshll.u32 %v2569, 16
        %v2635 = vrot.slane %v2633, 1
        %v2636 = vsel %vm404, %v2631, %v2635
        %v2637 = vshrl.u32 %v2569, 16
        %v2639 = vor.u32 %v2637, %v2635
        %v2641 = vshll.u32 %v2570, 16
        %v2643 = vrot.slane %v2641, 1
        %v2644 = vsel %vm404, %v2639, %v2643
        %v2645 = vshrl.u32 %v2570, 16
        %v2647 = vor.u32 %v2645, %v2643
        %v2649 = vshll.u32 %v2571, 16
        %v2651 = vrot.slane %v2649, 1
        %v2652 = vsel %vm404, %v2647, %v2651
        %v2653 = vshrl.u32 %v2571, 16
        %v2655 = vor.u32 %v2653, %v2651
        %v2657 = vshll.u32 %v2572, 16
        %v2659 = vrot.slane %v2657, 1
        %v2660 = vsel %vm404, %v2655, %v2659
        %v2661 = vshrl.u32 %v2572, 16
        %v2663 = vor.u32 %v2661, %v2659
        %v2665 = vshll.u32 %v2573, 16
        %v2667 = vrot.slane %v2665, 1
        %v2668 = vsel %vm404, %v2663, %v2667
        %v2669 = vshrl.u32 %v2573, 16
        %v2671 = vor.u32 %v2669, %v2667
        %v2673 = vshll.u32 %v2574, 16
        %v2675 = vrot.slane %v2673, 1
        %v2676 = vsel %vm404, %v2671, %v2675
        %v2677 = vshrl.u32 %v2574, 16
        %v2679 = vor.u32 %v2677, %v2675
        %v2681 = vshll.u32 %v2575, 16
        %v2683 = vrot.slane %v2681, 1
        %v2684 = vsel %vm404, %v2679, %v2683
        %v2685 = vshrl.u32 %v2575, 16
        %v2687 = vor.u32 %v2685, %v2683
        %v2689 = vshll.u32 %v2576, 16
        %v2691 = vrot.slane %v2689, 1
        %v2692 = vsel %vm404, %v2687, %v2691
        %v2694 = vsel %vm521, %v2588, 0
        %v2697 = vsel %vm521, %v2596, 0
        %v2700 = vsel %vm521, %v2604, 0
        %v2703 = vsel %vm521, %v2612, 0
        %v2706 = vsel %vm521, %v2620, 0
        %v2709 = vsel %vm521, %v2628, 0
        %v2712 = vsel %vm521, %v2636, 0
        %v2715 = vsel %vm521, %v2644, 0
        %v2718 = vsel %vm521, %v2652, 0
        %v2721 = vsel %vm521, %v2660, 0
        %v2724 = vsel %vm521, %v2668, 0
        %v2727 = vsel %vm521, %v2676, 0
        %v2730 = vsel %vm521, %v2684, 0
        %v2733 = vsel %vm521, %v2692, 0
        %v2736 = vand.u32 %v2503, %v567
        %2738 = vmatprep.subr.bf16.mxu0 0
        %2739 = vmatpush1.bf16.msra.mxu0 %v2736
        %2740 = vmatprep.subr.bf16.mxu0 0
        %2741 = vmatpush1.bf16.msra.mxu0 0
        %2742 = vmatprep.subr.bf16.mxu0 0
        %2743 = vmatpush1.bf16.msra.mxu0 0
        %2744 = vmatprep.subr.bf16.mxu0 0
        %2745 = vmatpush1.bf16.msra.mxu0 0
        %2746 = vmatprep.subr.bf16.mxu0 0
        %2747 = vmatpush1.bf16.msra.mxu0 0
        %2748 = vmatprep.subr.bf16.mxu0 0
        %2749 = vmatpush1.bf16.msra.mxu0 0
        %2750 = vmatprep.subr.bf16.mxu0 0
        %2751 = vmatpush1.bf16.msra.mxu0 0
        %2752 = vmatprep.subr.bf16.mxu0 0
        %2753 = vmatpush1.bf16.msra.mxu0 0
        %2754 = vmatprep.subr.bf16.mxu0 0
        %2755 = vmatpush1.bf16.msra.mxu0 0
        %2756 = vmatprep.subr.bf16.mxu0 0
        %2757 = vmatpush1.bf16.msra.mxu0 0
        %2758 = vmatprep.subr.bf16.mxu0 0
        %2759 = vmatpush1.bf16.msra.mxu0 0
        %2760 = vmatprep.subr.bf16.mxu0 0
        %2761 = vmatpush1.bf16.msra.mxu0 0
        %2762 = vmatprep.subr.bf16.mxu0 0
        %2763 = vmatpush1.bf16.msra.mxu0 0
        %2764 = vmatprep.subr.bf16.mxu0 0
        %2765 = vmatpush1.bf16.msra.mxu0 0
        %2766 = vmatprep.subr.bf16.mxu0 0
        %2767 = vmatpush1.bf16.msra.mxu0 0
        %2768 = vmatprep.subr.bf16.mxu0 0
        %2769 = vmatpush1.bf16.msra.mxu0 0
        %2770 = vmatprep.mubr.bf16.mxu0 0
        %2771 = vmatmul.mubr.bf16.gmra.mrb[0].mxu0 %v2694
        %v2772 = vpop.f32.mrb[0].mxu0
        %v2773 = vadd.f32 0.0, %v2772
        %v2774 = vpop.f32.mrb[0].mxu0
        %v2775 = vpop.f32.mrb[0].mxu0
        %v2776 = vadd.f32 0.0, %v2775
        %v2777 = vpop.f32.mrb[0].mxu0
        %2778 = vmatprep.mubr.bf16.mxu0 0
        %2779 = vmatmul.mubr.bf16.gmra.mrb[0].mxu0 %v2697
        %v2780 = vpop.f32.mrb[0].mxu0
        %v2781 = vadd.f32 0.0, %v2780
        %v2782 = vpop.f32.mrb[0].mxu0
        %v2783 = vpop.f32.mrb[0].mxu0
        %v2784 = vadd.f32 0.0, %v2783
        %v2785 = vpop.f32.mrb[0].mxu0
        %2786 = vmatprep.mubr.bf16.mxu0 0
        %2787 = vmatmul.mubr.bf16.gmra.mrb[0].mxu0 %v2700
        %v2788 = vpop.f32.mrb[0].mxu0
        %v2789 = vadd.f32 0.0, %v2788
        %v2790 = vpop.f32.mrb[0].mxu0
        %v2791 = vpop.f32.mrb[0].mxu0
        %v2792 = vadd.f32 0.0, %v2791
        %v2793 = vpop.f32.mrb[0].mxu0
        %2794 = vmatprep.mubr.bf16.mxu0 0
        %2795 = vmatmul.mubr.bf16.gmra.mrb[0].mxu0 %v2703
        %v2796 = vpop.f32.mrb[0].mxu0
        %v2797 = vadd.f32 0.0, %v2796
        %v2798 = vpop.f32.mrb[0].mxu0
        %v2799 = vpop.f32.mrb[0].mxu0
        %v2800 = vadd.f32 0.0, %v2799
        %v2801 = vpop.f32.mrb[0].mxu0
        %2802 = vmatprep.mubr.bf16.mxu0 0
        %2803 = vmatmul.mubr.bf16.gmra.mrb[0].mxu0 %v2706
        %v2804 = vpop.f32.mrb[0].mxu0
        %v2805 = vadd.f32 0.0, %v2804
        %v2806 = vpop.f32.mrb[0].mxu0
        %v2807 = vpop.f32.mrb[0].mxu0
        %v2808 = vadd.f32 0.0, %v2807
        %v2809 = vpop.f32.mrb[0].mxu0
        %2810 = vmatprep.mubr.bf16.mxu0 0
        %2811 = vmatmul.mubr.bf16.gmra.mrb[0].mxu0 %v2709
        %v2812 = vpop.f32.mrb[0].mxu0
        %v2813 = vadd.f32 0.0, %v2812
        %v2814 = vpop.f32.mrb[0].mxu0
        %v2815 = vpop.f32.mrb[0].mxu0
        %v2816 = vadd.f32 0.0, %v2815
        %v2817 = vpop.f32.mrb[0].mxu0
        %2818 = vmatprep.mubr.bf16.mxu0 0
        %2819 = vmatmul.mubr.bf16.gmra.mrb[0].mxu0 %v2712
        %v2820 = vpop.f32.mrb[0].mxu0
        %v2821 = vadd.f32 0.0, %v2820
        %v2822 = vpop.f32.mrb[0].mxu0
        %v2823 = vpop.f32.mrb[0].mxu0
        %v2824 = vadd.f32 0.0, %v2823
        %v2825 = vpop.f32.mrb[0].mxu0
        %2826 = vmatprep.mubr.bf16.mxu0 0
        %2827 = vmatmul.mubr.bf16.gmra.mrb[0].mxu0 %v2715
        %v2828 = vpop.f32.mrb[0].mxu0
        %v2829 = vadd.f32 0.0, %v2828
        %v2830 = vpop.f32.mrb[0].mxu0
        %v2831 = vpop.f32.mrb[0].mxu0
        %v2832 = vadd.f32 0.0, %v2831
        %v2833 = vpop.f32.mrb[0].mxu0
        %2834 = vmatprep.mubr.bf16.mxu0 0
        %2835 = vmatmul.mubr.bf16.gmra.mrb[0].mxu0 %v2718
        %v2836 = vpop.f32.mrb[0].mxu0
        %v2837 = vadd.f32 0.0, %v2836
        %v2838 = vpop.f32.mrb[0].mxu0
        %v2839 = vpop.f32.mrb[0].mxu0
        %v2840 = vadd.f32 0.0, %v2839
        %v2841 = vpop.f32.mrb[0].mxu0
        %2842 = vmatprep.mubr.bf16.mxu0 0
        %2843 = vmatmul.mubr.bf16.gmra.mrb[0].mxu0 %v2721
        %v2844 = vpop.f32.mrb[0].mxu0
        %v2845 = vadd.f32 0.0, %v2844
        %v2846 = vpop.f32.mrb[0].mxu0
        %v2847 = vpop.f32.mrb[0].mxu0
        %v2848 = vadd.f32 0.0, %v2847
        %v2849 = vpop.f32.mrb[0].mxu0
        %2850 = vmatprep.mubr.bf16.mxu0 0
        %2851 = vmatmul.mubr.bf16.gmra.mrb[0].mxu0 %v2724
        %v2852 = vpop.f32.mrb[0].mxu0
        %v2853 = vadd.f32 0.0, %v2852
        %v2854 = vpop.f32.mrb[0].mxu0
        %v2855 = vpop.f32.mrb[0].mxu0
        %v2856 = vadd.f32 0.0, %v2855
        %v2857 = vpop.f32.mrb[0].mxu0
        %2858 = vmatprep.mubr.bf16.mxu0 0
        %2859 = vmatmul.mubr.bf16.gmra.mrb[0].mxu0 %v2727
        %v2860 = vpop.f32.mrb[0].mxu0
        %v2861 = vadd.f32 0.0, %v2860
        %v2862 = vpop.f32.mrb[0].mxu0
        %v2863 = vpop.f32.mrb[0].mxu0
        %v2864 = vadd.f32 0.0, %v2863
        %v2865 = vpop.f32.mrb[0].mxu0
        %2866 = vmatprep.mubr.bf16.mxu0 0
        %2867 = vmatmul.mubr.bf16.gmra.mrb[0].mxu0 %v2730
        %v2868 = vpop.f32.mrb[0].mxu0
        %v2869 = vadd.f32 0.0, %v2868
        %v2870 = vpop.f32.mrb[0].mxu0
        %v2871 = vpop.f32.mrb[0].mxu0
        %v2872 = vadd.f32 0.0, %v2871
        %v2873 = vpop.f32.mrb[0].mxu0
        %2874 = vmatprep.mubr.bf16.mxu0 0
        %2875 = vmatmul.mubr.bf16.gmra.mrb[0].mxu0 %v2733
        %v2876 = vpop.f32.mrb[0].mxu0
        %v2877 = vadd.f32 0.0, %v2876
        %v2878 = vpop.f32.mrb[0].mxu0
        %v2879 = vpop.f32.mrb[0].mxu0
        %v2880 = vadd.f32 0.0, %v2879
        %v2881 = vpop.f32.mrb[0].mxu0
        %2882 = vdwg.mxu0
        %v2883 = vadd.f32 %v2445, %v2773
        %v2884 = vadd.f32 %v2446, %v2776
        %v2885 = vadd.f32 %v2447, %v2781
        %v2886 = vadd.f32 %v2448, %v2784
        %v2887 = vadd.f32 %v2449, %v2789
        %v2888 = vadd.f32 %v2450, %v2792
        %v2889 = vadd.f32 %v2451, %v2797
        %v2890 = vadd.f32 %v2452, %v2800
        %v2891 = vadd.f32 %v2453, %v2805
        %v2892 = vadd.f32 %v2454, %v2808
        %v2893 = vadd.f32 %v2455, %v2813
        %v2894 = vadd.f32 %v2456, %v2816
        %v2895 = vadd.f32 %v2457, %v2821
        %v2896 = vadd.f32 %v2458, %v2824
        %v2897 = vadd.f32 %v2459, %v2829
        %v2898 = vadd.f32 %v2460, %v2832
        %v2899 = vadd.f32 %v2461, %v2837
        %v2900 = vadd.f32 %v2462, %v2840
        %v2901 = vadd.f32 %v2463, %v2845
        %v2902 = vadd.f32 %v2464, %v2848
        %v2903 = vadd.f32 %v2465, %v2853
        %v2904 = vadd.f32 %v2466, %v2856
        %v2905 = vadd.f32 %v2467, %v2861
        %v2906 = vadd.f32 %v2468, %v2864
        %v2907 = vadd.f32 %v2469, %v2869
        %v2908 = vadd.f32 %v2470, %v2872
        %v2909 = vadd.f32 %v2471, %v2877
        %v2910 = vadd.f32 %v2472, %v2880
        %v2911 = vld [vmem:[%s276 + $0x10] sm:$0xe]
        %s2912 = scalar_lea.vmem %s1, 16
        %v2913 = vld [vmem:[%s2912] sm:$0x3]
        %v2915 = vunpack.c.l.b16 %v2911
        %v2916 = vpack.c.b16 %v2534, %v2915
        %v2917 = vrot.slane %v2916, 1
        %v2918 = vrot.slane %v2563, 1
        %v2919 = vsel %vm898, %v2917, %v2918
        %v2920 = vrot.slane %v2564, 1
        %v2921 = vsel %vm898, %v2918, %v2920
        %v2922 = vrot.slane %v2565, 1
        %v2923 = vsel %vm898, %v2920, %v2922
        %v2924 = vrot.slane %v2566, 1
        %v2925 = vsel %vm898, %v2922, %v2924
        %v2926 = vrot.slane %v2567, 1
        %v2927 = vsel %vm898, %v2924, %v2926
        %v2928 = vrot.slane %v2568, 1
        %v2929 = vsel %vm898, %v2926, %v2928
        %v2930 = vrot.slane %v2569, 1
        %v2931 = vsel %vm898, %v2928, %v2930
        %v2932 = vrot.slane %v2570, 1
        %v2933 = vsel %vm898, %v2930, %v2932
        %v2934 = vrot.slane %v2571, 1
        %v2935 = vsel %vm898, %v2932, %v2934
        %v2936 = vrot.slane %v2572, 1
        %v2937 = vsel %vm898, %v2934, %v2936
        %v2938 = vrot.slane %v2573, 1
        %v2939 = vsel %vm898, %v2936, %v2938
        %v2940 = vrot.slane %v2574, 1
        %v2941 = vsel %vm898, %v2938, %v2940
        %v2942 = vrot.slane %v2575, 1
        %v2943 = vsel %vm898, %v2940, %v2942
        %v2944 = vrot.slane %v2576, 1
        %v2945 = vsel %vm898, %v2942, %v2944
        %v2947 = vsel %vm521, %v2919, 0
        %v2950 = vsel %vm521, %v2921, 0
        %v2953 = vsel %vm521, %v2923, 0
        %v2956 = vsel %vm521, %v2925, 0
        %v2959 = vsel %vm521, %v2927, 0
        %v2962 = vsel %vm521, %v2929, 0
        %v2965 = vsel %vm521, %v2931, 0
        %v2968 = vsel %vm521, %v2933, 0
        %v2971 = vsel %vm521, %v2935, 0
        %v2974 = vsel %vm521, %v2937, 0
        %v2977 = vsel %vm521, %v2939, 0
        %v2980 = vsel %vm521, %v2941, 0
        %v2983 = vsel %vm521, %v2943, 0
        %v2986 = vsel %vm521, %v2945, 0
        %v2989 = vand.u32 %v2913, %v567
        %2991 = vmatprep.subr.bf16.mxu0 0
        %2992 = vmatpush1.bf16.msra.mxu0 %v2989
        %2993 = vmatprep.subr.bf16.mxu0 0
        %2994 = vmatpush1.bf16.msra.mxu0 0
        %2995 = vmatprep.subr.bf16.mxu0 0
        %2996 = vmatpush1.bf16.msra.mxu0 0
        %2997 = vmatprep.subr.bf16.mxu0 0
        %2998 = vmatpush1.bf16.msra.mxu0 0
        %2999 = vmatprep.subr.bf16.mxu0 0
        %3000 = vmatpush1.bf16.msra.mxu0 0
        %3001 = vmatprep.subr.bf16.mxu0 0
        %3002 = vmatpush1.bf16.msra.mxu0 0
        %3003 = vmatprep.subr.bf16.mxu0 0
        %3004 = vmatpush1.bf16.msra.mxu0 0
        %3005 = vmatprep.subr.bf16.mxu0 0
        %3006 = vmatpush1.bf16.msra.mxu0 0
        %3007 = vmatprep.subr.bf16.mxu0 0
        %3008 = vmatpush1.bf16.msra.mxu0 0
        %3009 = vmatprep.subr.bf16.mxu0 0
        %3010 = vmatpush1.bf16.msra.mxu0 0
        %3011 = vmatprep.subr.bf16.mxu0 0
        %3012 = vmatpush1.bf16.msra.mxu0 0
        %3013 = vmatprep.subr.bf16.mxu0 0
        %3014 = vmatpush1.bf16.msra.mxu0 0
        %3015 = vmatprep.subr.bf16.mxu0 0
        %3016 = vmatpush1.bf16.msra.mxu0 0
        %3017 = vmatprep.subr.bf16.mxu0 0
        %3018 = vmatpush1.bf16.msra.mxu0 0
        %3019 = vmatprep.subr.bf16.mxu0 0
        %3020 = vmatpush1.bf16.msra.mxu0 0
        %3021 = vmatprep.subr.bf16.mxu0 0
        %3022 = vmatpush1.bf16.msra.mxu0 0
        %3023 = vmatprep.mubr.bf16.mxu0 0
        %3024 = vmatmul.mubr.bf16.gmra.mrb[0].mxu0 %v2947
        %v3025 = vpop.f32.mrb[0].mxu0
        %v3026 = vadd.f32 0.0, %v3025
        %v3027 = vpop.f32.mrb[0].mxu0
        %v3028 = vpop.f32.mrb[0].mxu0
        %v3029 = vadd.f32 0.0, %v3028
        %v3030 = vpop.f32.mrb[0].mxu0
        %3031 = vmatprep.mubr.bf16.mxu0 0
        %3032 = vmatmul.mubr.bf16.gmra.mrb[0].mxu0 %v2950
        %v3033 = vpop.f32.mrb[0].mxu0
        %v3034 = vadd.f32 0.0, %v3033
        %v3035 = vpop.f32.mrb[0].mxu0
        %v3036 = vpop.f32.mrb[0].mxu0
        %v3037 = vadd.f32 0.0, %v3036
        %v3038 = vpop.f32.mrb[0].mxu0
        %3039 = vmatprep.mubr.bf16.mxu0 0
        %3040 = vmatmul.mubr.bf16.gmra.mrb[0].mxu0 %v2953
        %v3041 = vpop.f32.mrb[0].mxu0
        %v3042 = vadd.f32 0.0, %v3041
        %v3043 = vpop.f32.mrb[0].mxu0
        %v3044 = vpop.f32.mrb[0].mxu0
        %v3045 = vadd.f32 0.0, %v3044
        %v3046 = vpop.f32.mrb[0].mxu0
        %3047 = vmatprep.mubr.bf16.mxu0 0
        %3048 = vmatmul.mubr.bf16.gmra.mrb[0].mxu0 %v2956
        %v3049 = vpop.f32.mrb[0].mxu0
        %v3050 = vadd.f32 0.0, %v3049
        %v3051 = vpop.f32.mrb[0].mxu0
        %v3052 = vpop.f32.mrb[0].mxu0
        %v3053 = vadd.f32 0.0, %v3052
        %v3054 = vpop.f32.mrb[0].mxu0
        %3055 = vmatprep.mubr.bf16.mxu0 0
        %3056 = vmatmul.mubr.bf16.gmra.mrb[0].mxu0 %v2959
        %v3057 = vpop.f32.mrb[0].mxu0
        %v3058 = vadd.f32 0.0, %v3057
        %v3059 = vpop.f32.mrb[0].mxu0
        %v3060 = vpop.f32.mrb[0].mxu0
        %v3061 = vadd.f32 0.0, %v3060
        %v3062 = vpop.f32.mrb[0].mxu0
        %3063 = vmatprep.mubr.bf16.mxu0 0
        %3064 = vmatmul.mubr.bf16.gmra.mrb[0].mxu0 %v2962
        %v3065 = vpop.f32.mrb[0].mxu0
        %v3066 = vadd.f32 0.0, %v3065
        %v3067 = vpop.f32.mrb[0].mxu0
        %v3068 = vpop.f32.mrb[0].mxu0
        %v3069 = vadd.f32 0.0, %v3068
        %v3070 = vpop.f32.mrb[0].mxu0
        %3071 = vmatprep.mubr.bf16.mxu0 0
        %3072 = vmatmul.mubr.bf16.gmra.mrb[0].mxu0 %v2965
        %v3073 = vpop.f32.mrb[0].mxu0
        %v3074 = vadd.f32 0.0, %v3073
        %v3075 = vpop.f32.mrb[0].mxu0
        %v3076 = vpop.f32.mrb[0].mxu0
        %v3077 = vadd.f32 0.0, %v3076
        %v3078 = vpop.f32.mrb[0].mxu0
        %3079 = vmatprep.mubr.bf16.mxu0 0
        %3080 = vmatmul.mubr.bf16.gmra.mrb[0].mxu0 %v2968
        %v3081 = vpop.f32.mrb[0].mxu0
        %v3082 = vadd.f32 0.0, %v3081
        %v3083 = vpop.f32.mrb[0].mxu0
        %v3084 = vpop.f32.mrb[0].mxu0
        %v3085 = vadd.f32 0.0, %v3084
        %v3086 = vpop.f32.mrb[0].mxu0
        %3087 = vmatprep.mubr.bf16.mxu0 0
        %3088 = vmatmul.mubr.bf16.gmra.mrb[0].mxu0 %v2971
        %v3089 = vpop.f32.mrb[0].mxu0
        %v3090 = vadd.f32 0.0, %v3089
        %v3091 = vpop.f32.mrb[0].mxu0
        %v3092 = vpop.f32.mrb[0].mxu0
        %v3093 = vadd.f32 0.0, %v3092
        %v3094 = vpop.f32.mrb[0].mxu0
        %3095 = vmatprep.mubr.bf16.mxu0 0
        %3096 = vmatmul.mubr.bf16.gmra.mrb[0].mxu0 %v2974
        %v3097 = vpop.f32.mrb[0].mxu0
        %v3098 = vadd.f32 0.0, %v3097
        %v3099 = vpop.f32.mrb[0].mxu0
        %v3100 = vpop.f32.mrb[0].mxu0
        %v3101 = vadd.f32 0.0, %v3100
        %v3102 = vpop.f32.mrb[0].mxu0
        %3103 = vmatprep.mubr.bf16.mxu0 0
        %3104 = vmatmul.mubr.bf16.gmra.mrb[0].mxu0 %v2977
        %v3105 = vpop.f32.mrb[0].mxu0
        %v3106 = vadd.f32 0.0, %v3105
        %v3107 = vpop.f32.mrb[0].mxu0
        %v3108 = vpop.f32.mrb[0].mxu0
        %v3109 = vadd.f32 0.0, %v3108
        %v3110 = vpop.f32.mrb[0].mxu0
        %3111 = vmatprep.mubr.bf16.mxu0 0
        %3112 = vmatmul.mubr.bf16.gmra.mrb[0].mxu0 %v2980
        %v3113 = vpop.f32.mrb[0].mxu0
        %v3114 = vadd.f32 0.0, %v3113
        %v3115 = vpop.f32.mrb[0].mxu0
        %v3116 = vpop.f32.mrb[0].mxu0
        %v3117 = vadd.f32 0.0, %v3116
        %v3118 = vpop.f32.mrb[0].mxu0
        %3119 = vmatprep.mubr.bf16.mxu0 0
        %3120 = vmatmul.mubr.bf16.gmra.mrb[0].mxu0 %v2983
        %v3121 = vpop.f32.mrb[0].mxu0
        %v3122 = vadd.f32 0.0, %v3121
        %v3123 = vpop.f32.mrb[0].mxu0
        %v3124 = vpop.f32.mrb[0].mxu0
        %v3125 = vadd.f32 0.0, %v3124
        %v3126 = vpop.f32.mrb[0].mxu0
        %3127 = vmatprep.mubr.bf16.mxu0 0
        %3128 = vmatmul.mubr.bf16.gmra.mrb[0].mxu0 %v2986
        %v3129 = vpop.f32.mrb[0].mxu0
        %v3130 = vadd.f32 0.0, %v3129
        %v3131 = vpop.f32.mrb[0].mxu0
        %v3132 = vpop.f32.mrb[0].mxu0
        %v3133 = vadd.f32 0.0, %v3132
        %v3134 = vpop.f32.mrb[0].mxu0
        %3135 = vdwg.mxu0
        %v3136 = vadd.f32 %v2883, %v3026
        %v3137 = vadd.f32 %v2884, %v3029
        %v3138 = vadd.f32 %v2885, %v3034
        %v3139 = vadd.f32 %v2886, %v3037
        %v3140 = vadd.f32 %v2887, %v3042
        %v3141 = vadd.f32 %v2888, %v3045
        %v3142 = vadd.f32 %v2889, %v3050
        %v3143 = vadd.f32 %v2890, %v3053
        %v3144 = vadd.f32 %v2891, %v3058
        %v3145 = vadd.f32 %v2892, %v3061
        %v3146 = vadd.f32 %v2893, %v3066
        %v3147 = vadd.f32 %v2894, %v3069
        %v3148 = vadd.f32 %v2895, %v3074
        %v3149 = vadd.f32 %v2896, %v3077
        %v3150 = vadd.f32 %v2897, %v3082
        %v3151 = vadd.f32 %v2898, %v3085
        %v3152 = vadd.f32 %v2899, %v3090
        %v3153 = vadd.f32 %v2900, %v3093
        %v3154 = vadd.f32 %v2901, %v3098
        %v3155 = vadd.f32 %v2902, %v3101
        %v3156 = vadd.f32 %v2903, %v3106
        %v3157 = vadd.f32 %v2904, %v3109
        %v3158 = vadd.f32 %v2905, %v3114
        %v3159 = vadd.f32 %v2906, %v3117
        %v3160 = vadd.f32 %v2907, %v3122
        %v3161 = vadd.f32 %v2908, %v3125
        %v3162 = vadd.f32 %v2909, %v3130
        %v3163 = vadd.f32 %v2910, %v3133
        %v3164 = vld [vmem:[%s2] sm:$0x1]
        %v3166 = vlaneseq
        %v3167 = vshrl.u32 %v3166, 7
        %v3168 = vsub.s32 0, %v3167
        %v3169 = vrot.slane %v3164, %v3168
        %v3171 = vadd.f32 %v3136, %v3169
        %v3172 = vadd.f32 %v3137, %v3169
        %v3173 = vadd.f32 %v3138, %v3169
        %v3174 = vadd.f32 %v3139, %v3169
        %v3175 = vadd.f32 %v3140, %v3169
        %v3176 = vadd.f32 %v3141, %v3169
        %v3177 = vadd.f32 %v3142, %v3169
        %v3178 = vadd.f32 %v3143, %v3169
        %v3179 = vadd.f32 %v3144, %v3169
        %v3180 = vadd.f32 %v3145, %v3169
        %v3181 = vadd.f32 %v3146, %v3169
        %v3182 = vadd.f32 %v3147, %v3169
        %v3183 = vadd.f32 %v3148, %v3169
        %v3184 = vadd.f32 %v3149, %v3169
        %v3185 = vadd.f32 %v3150, %v3169
        %v3186 = vadd.f32 %v3151, %v3169
        %v3187 = vadd.f32 %v3152, %v3169
        %v3188 = vadd.f32 %v3153, %v3169
        %v3189 = vadd.f32 %v3154, %v3169
        %v3190 = vadd.f32 %v3155, %v3169
        %v3191 = vadd.f32 %v3156, %v3169
        %v3192 = vadd.f32 %v3157, %v3169
        %v3193 = vadd.f32 %v3158, %v3169
        %v3194 = vadd.f32 %v3159, %v3169
        %v3195 = vadd.f32 %v3160, %v3169
        %v3196 = vadd.f32 %v3161, %v3169
        %v3197 = vadd.f32 %v3162, %v3169
        %v3198 = vadd.f32 %v3163, %v3169
        %s3199 = smul.u32 %s22, 224
        %s3200 = scalar_lea.vmem [#allocation2], %s3199
        %vm3201 = vcmask 523264
        %3202 = vst.msk [vmem:[%s3200] sm:$0xff] %vm3201, %v3171
        %3203 = vst.msk [vmem:[%s3200 + $0x8] sm:$0xff] %vm3201, %v3172
        %3204 = vst.msk [vmem:[%s3200 + $0x10] sm:$0xff] %vm3201, %v3173
        %3205 = vst.msk [vmem:[%s3200 + $0x18] sm:$0xff] %vm3201, %v3174
        %3206 = vst.msk [vmem:[%s3200 + $0x20] sm:$0xff] %vm3201, %v3175
        %3207 = vst.msk [vmem:[%s3200 + $0x28] sm:$0xff] %vm3201, %v3176
        %3208 = vst.msk [vmem:[%s3200 + $0x30] sm:$0xff] %vm3201, %v3177
        %3209 = vst.msk [vmem:[%s3200 + $0x38] sm:$0xff] %vm3201, %v3178
        %3210 = vst.msk [vmem:[%s3200 + $0x40] sm:$0xff] %vm3201, %v3179
        %3211 = vst.msk [vmem:[%s3200 + $0x48] sm:$0xff] %vm3201, %v3180
        %3212 = vst.msk [vmem:[%s3200 + $0x50] sm:$0xff] %vm3201, %v3181
        %3213 = vst.msk [vmem:[%s3200 + $0x58] sm:$0xff] %vm3201, %v3182
        %3214 = vst.msk [vmem:[%s3200 + $0x60] sm:$0xff] %vm3201, %v3183
        %3215 = vst.msk [vmem:[%s3200 + $0x68] sm:$0xff] %vm3201, %v3184
        %3216 = vst.msk [vmem:[%s3200 + $0x70] sm:$0xff] %vm3201, %v3185
        %3217 = vst.msk [vmem:[%s3200 + $0x78] sm:$0xff] %vm3201, %v3186
        %3218 = vst.msk [vmem:[%s3200 + $0x80] sm:$0xff] %vm3201, %v3187
        %3219 = vst.msk [vmem:[%s3200 + $0x88] sm:$0xff] %vm3201, %v3188
        %3220 = vst.msk [vmem:[%s3200 + $0x90] sm:$0xff] %vm3201, %v3189
        %3221 = vst.msk [vmem:[%s3200 + $0x98] sm:$0xff] %vm3201, %v3190
        %3222 = vst.msk [vmem:[%s3200 + $0xa0] sm:$0xff] %vm3201, %v3191
        %3223 = vst.msk [vmem:[%s3200 + $0xa8] sm:$0xff] %vm3201, %v3192
        %3224 = vst.msk [vmem:[%s3200 + $0xb0] sm:$0xff] %vm3201, %v3193
        %3225 = vst.msk [vmem:[%s3200 + $0xb8] sm:$0xff] %vm3201, %v3194
        %3226 = vst.msk [vmem:[%s3200 + $0xc0] sm:$0xff] %vm3201, %v3195
        %3227 = vst.msk [vmem:[%s3200 + $0xc8] sm:$0xff] %vm3201, %v3196
        %3228 = vst.msk [vmem:[%s3200 + $0xd0] sm:$0xff] %vm3201, %v3197
        %3229 = vst.msk [vmem:[%s3200 + $0xd8] sm:$0xff] %vm3201, %v3198
        %v3230 = vld [vmem:[%s5] sm:$0xff]
        %v3231 = vld [vmem:[%s5 + $0x8] sm:$0xff]
        %v3232 = vld [vmem:[%s5 + $0x10] sm:$0xff]
        %v3233 = vld [vmem:[%s5 + $0x18] sm:$0xff]
        %v3234 = vld [vmem:[%s5 + $0x20] sm:$0xff]
        %v3235 = vld [vmem:[%s5 + $0x28] sm:$0xff]
        %v3236 = vld [vmem:[%s5 + $0x30] sm:$0xff]
        %v3237 = vld [vmem:[%s5 + $0x38] sm:$0xff]
        %v3238 = vld [vmem:[%s5 + $0x40] sm:$0xff]
        %v3239 = vld [vmem:[%s5 + $0x48] sm:$0xff]
        %v3240 = vld [vmem:[%s5 + $0x50] sm:$0xff]
        %v3241 = vld [vmem:[%s5 + $0x58] sm:$0xff]
        %v3242 = vld [vmem:[%s5 + $0x60] sm:$0xff]
        %v3243 = vld [vmem:[%s5 + $0x68] sm:$0xff]
        %v3244 = vld [vmem:[%s5 + $0x70] sm:$0xff]
        %v3245 = vld [vmem:[%s5 + $0x78] sm:$0xff]
        %v3246 = vld [vmem:[%s5 + $0x80] sm:$0xff]
        %v3247 = vld [vmem:[%s5 + $0x88] sm:$0xff]
        %v3248 = vld [vmem:[%s5 + $0x90] sm:$0xff]
        %v3249 = vld [vmem:[%s5 + $0x98] sm:$0xff]
        %v3250 = vld [vmem:[%s5 + $0xa0] sm:$0xff]
        %v3251 = vld [vmem:[%s5 + $0xa8] sm:$0xff]
        %v3252 = vld [vmem:[%s5 + $0xb0] sm:$0xff]
        %v3253 = vld [vmem:[%s5 + $0xb8] sm:$0xff]
        %v3254 = vld [vmem:[%s5 + $0xc0] sm:$0xff]
        %v3255 = vld [vmem:[%s5 + $0xc8] sm:$0xff]
        %v3256 = vld [vmem:[%s5 + $0xd0] sm:$0xff]
        %v3257 = vld [vmem:[%s5 + $0xd8] sm:$0xff]
        %3259 = vset.pattern.permute.xlu0 0
        %3260 = vperm.xlu0 %3259, %v3230
        %v3261 = vpop.permute.xlu0 %3260
        %3264 = vset.pattern.permute.xlu0 0
        %3265 = vperm.xlu0 %3264, %v3231
        %v3266 = vpop.permute.xlu0 %3265
        %3269 = vset.pattern.permute.xlu0 0
        %3270 = vperm.xlu0 %3269, %v3232
        %v3271 = vpop.permute.xlu0 %3270
        %3274 = vset.pattern.permute.xlu0 0
        %3275 = vperm.xlu0 %3274, %v3233
        %v3276 = vpop.permute.xlu0 %3275
        %3279 = vset.pattern.permute.xlu0 0
        %3280 = vperm.xlu0 %3279, %v3234
        %v3281 = vpop.permute.xlu0 %3280
        %3284 = vset.pattern.permute.xlu0 0
        %3285 = vperm.xlu0 %3284, %v3235
        %v3286 = vpop.permute.xlu0 %3285
        %3289 = vset.pattern.permute.xlu0 0
        %3290 = vperm.xlu0 %3289, %v3236
        %v3291 = vpop.permute.xlu0 %3290
        %3294 = vset.pattern.permute.xlu0 0
        %3295 = vperm.xlu0 %3294, %v3237
        %v3296 = vpop.permute.xlu0 %3295
        %3299 = vset.pattern.permute.xlu0 0
        %3300 = vperm.xlu0 %3299, %v3238
        %v3301 = vpop.permute.xlu0 %3300
        %3304 = vset.pattern.permute.xlu0 0
        %3305 = vperm.xlu0 %3304, %v3239
        %v3306 = vpop.permute.xlu0 %3305
        %3309 = vset.pattern.permute.xlu0 0
        %3310 = vperm.xlu0 %3309, %v3240
        %v3311 = vpop.permute.xlu0 %3310
        %3314 = vset.pattern.permute.xlu0 0
        %3315 = vperm.xlu0 %3314, %v3241
        %v3316 = vpop.permute.xlu0 %3315
        %3319 = vset.pattern.permute.xlu0 0
        %3320 = vperm.xlu0 %3319, %v3242
        %v3321 = vpop.permute.xlu0 %3320
        %3324 = vset.pattern.permute.xlu0 0
        %3325 = vperm.xlu0 %3324, %v3243
        %v3326 = vpop.permute.xlu0 %3325
        %3329 = vset.pattern.permute.xlu0 0
        %3330 = vperm.xlu0 %3329, %v3244
        %v3331 = vpop.permute.xlu0 %3330
        %3334 = vset.pattern.permute.xlu0 0
        %3335 = vperm.xlu0 %3334, %v3245
        %v3336 = vpop.permute.xlu0 %3335
        %3339 = vset.pattern.permute.xlu0 0
        %3340 = vperm.xlu0 %3339, %v3246
        %v3341 = vpop.permute.xlu0 %3340
        %3344 = vset.pattern.permute.xlu0 0
        %3345 = vperm.xlu0 %3344, %v3247
        %v3346 = vpop.permute.xlu0 %3345
        %3349 = vset.pattern.permute.xlu0 0
        %3350 = vperm.xlu0 %3349, %v3248
        %v3351 = vpop.permute.xlu0 %3350
        %3354 = vset.pattern.permute.xlu0 0
        %3355 = vperm.xlu0 %3354, %v3249
        %v3356 = vpop.permute.xlu0 %3355
        %3359 = vset.pattern.permute.xlu0 0
        %3360 = vperm.xlu0 %3359, %v3250
        %v3361 = vpop.permute.xlu0 %3360
        %3364 = vset.pattern.permute.xlu0 0
        %3365 = vperm.xlu0 %3364, %v3251
        %v3366 = vpop.permute.xlu0 %3365
        %3369 = vset.pattern.permute.xlu0 0
        %3370 = vperm.xlu0 %3369, %v3252
        %v3371 = vpop.permute.xlu0 %3370
        %3374 = vset.pattern.permute.xlu0 0
        %3375 = vperm.xlu0 %3374, %v3253
        %v3376 = vpop.permute.xlu0 %3375
        %3379 = vset.pattern.permute.xlu0 0
        %3380 = vperm.xlu0 %3379, %v3254
        %v3381 = vpop.permute.xlu0 %3380
        %3384 = vset.pattern.permute.xlu0 0
        %3385 = vperm.xlu0 %3384, %v3255
        %v3386 = vpop.permute.xlu0 %3385
        %3389 = vset.pattern.permute.xlu0 0
        %3390 = vperm.xlu0 %3389, %v3256
        %v3391 = vpop.permute.xlu0 %3390
        %3394 = vset.pattern.permute.xlu0 0
        %3395 = vperm.xlu0 %3394, %v3257
        %v3396 = vpop.permute.xlu0 %3395
        %v3398 = vmul.f32 %v3171, %v3261
        %v3399 = vmul.f32 %v3172, %v3266
        %v3400 = vmul.f32 %v3173, %v3271
        %v3401 = vmul.f32 %v3174, %v3276
        %v3402 = vmul.f32 %v3175, %v3281
        %v3403 = vmul.f32 %v3176, %v3286
        %v3404 = vmul.f32 %v3177, %v3291
        %v3405 = vmul.f32 %v3178, %v3296
        %v3406 = vmul.f32 %v3179, %v3301
        %v3407 = vmul.f32 %v3180, %v3306
        %v3408 = vmul.f32 %v3181, %v3311
        %v3409 = vmul.f32 %v3182, %v3316
        %v3410 = vmul.f32 %v3183, %v3321
        %v3411 = vmul.f32 %v3184, %v3326
        %v3412 = vmul.f32 %v3185, %v3331
        %v3413 = vmul.f32 %v3186, %v3336
        %v3414 = vmul.f32 %v3187, %v3341
        %v3415 = vmul.f32 %v3188, %v3346
        %v3416 = vmul.f32 %v3189, %v3351
        %v3417 = vmul.f32 %v3190, %v3356
        %v3418 = vmul.f32 %v3191, %v3361
        %v3419 = vmul.f32 %v3192, %v3366
        %v3420 = vmul.f32 %v3193, %v3371
        %v3421 = vmul.f32 %v3194, %v3376
        %v3422 = vmul.f32 %v3195, %v3381
        %v3423 = vmul.f32 %v3196, %v3386
        %v3424 = vmul.f32 %v3197, %v3391
        %v3425 = vmul.f32 %v3198, %v3396
        %v3426 = vld [vmem:[#allocation3] sm:$0x1]
        %v3427 = vsel %vm3201, %v3398, 0.0
        %v3428 = vsel %vm3201, %v3399, 0.0
        %v3429 = vadd.f32 %v3427, %v3428
        %v3430 = vsel %vm3201, %v3400, 0.0
        %v3431 = vadd.f32 %v3429, %v3430
        %v3432 = vsel %vm3201, %v3401, 0.0
        %v3433 = vadd.f32 %v3431, %v3432
        %v3434 = vsel %vm3201, %v3402, 0.0
        %v3435 = vadd.f32 %v3433, %v3434
        %v3436 = vsel %vm3201, %v3403, 0.0
        %v3437 = vadd.f32 %v3435, %v3436
        %v3438 = vsel %vm3201, %v3404, 0.0
        %v3439 = vadd.f32 %v3437, %v3438
        %v3440 = vsel %vm3201, %v3405, 0.0
        %v3441 = vadd.f32 %v3439, %v3440
        %v3442 = vsel %vm3201, %v3406, 0.0
        %v3443 = vadd.f32 %v3441, %v3442
        %v3444 = vsel %vm3201, %v3407, 0.0
        %v3445 = vadd.f32 %v3443, %v3444
        %v3446 = vsel %vm3201, %v3408, 0.0
        %v3447 = vadd.f32 %v3445, %v3446
        %v3448 = vsel %vm3201, %v3409, 0.0
        %v3449 = vadd.f32 %v3447, %v3448
        %v3450 = vsel %vm3201, %v3410, 0.0
        %v3451 = vadd.f32 %v3449, %v3450
        %v3452 = vsel %vm3201, %v3411, 0.0
        %v3453 = vadd.f32 %v3451, %v3452
        %v3454 = vsel %vm3201, %v3412, 0.0
        %v3455 = vadd.f32 %v3453, %v3454
        %v3456 = vsel %vm3201, %v3413, 0.0
        %v3457 = vadd.f32 %v3455, %v3456
        %v3458 = vsel %vm3201, %v3414, 0.0
        %v3459 = vadd.f32 %v3457, %v3458
        %v3460 = vsel %vm3201, %v3415, 0.0
        %v3461 = vadd.f32 %v3459, %v3460
        %v3462 = vsel %vm3201, %v3416, 0.0
        %v3463 = vadd.f32 %v3461, %v3462
        %v3464 = vsel %vm3201, %v3417, 0.0
        %v3465 = vadd.f32 %v3463, %v3464
        %v3466 = vsel %vm3201, %v3418, 0.0
        %v3467 = vadd.f32 %v3465, %v3466
        %v3468 = vsel %vm3201, %v3419, 0.0
        %v3469 = vadd.f32 %v3467, %v3468
        %v3470 = vsel %vm3201, %v3420, 0.0
        %v3471 = vadd.f32 %v3469, %v3470
        %v3472 = vsel %vm3201, %v3421, 0.0
        %v3473 = vadd.f32 %v3471, %v3472
        %v3474 = vsel %vm3201, %v3422, 0.0
        %v3475 = vadd.f32 %v3473, %v3474
        %v3476 = vsel %vm3201, %v3423, 0.0
        %v3477 = vadd.f32 %v3475, %v3476
        %v3478 = vsel %vm3201, %v3424, 0.0
        %v3479 = vadd.f32 %v3477, %v3478
        %v3480 = vsel %vm3201, %v3425, 0.0
        %v3481 = vadd.f32 %v3479, %v3480
        %v3482 = vrot.slane %v3481, 4
        %v3483 = vadd.f32 %v3481, %v3482
        %v3484 = vrot.slane %v3483, 2
        %v3485 = vadd.f32 %v3483, %v3484
        %v3486 = vrot.slane %v3485, 1
        %v3487 = vadd.f32 %v3485, %v3486
        %v3488 = vadd.f32 %v3426, %v3487
        %vm3489 = vcmask 516096
        %3490 = vst.msk [vmem:[#allocation3] sm:$0x1] %vm3489, %v3488
      $region48: #{convnet_nopool_forward.4} parent=43 // pred_fallthru
        _
      %p3491 = scmp.eq.s32.totalorder %s21, 1
      // Predicated region
      $region53: #{convnet_nopool_forward.4} parent=43 // pred_check
        %p3492 = pneg %p3491
      $region54: #{convnet_nopool_forward.4} parent=43 // pred_check_branch
        %3494 = sbr.rel (%p3492) target = $region56
      $region55: #{convnet_nopool_forward.4} parent=43 // pred_region
        %p3495 = scmp.eq.s32.totalorder %s22, 0
        // Predicated region
        $region57: #{convnet_nopool_forward.4} parent=55 // pred_check
          %p3496 = pneg %p3495
        $region58: #{convnet_nopool_forward.4} parent=55 // pred_check_branch
          %3498 = sbr.rel (%p3496) target = $region60
        $region59: #{convnet_nopool_forward.4} parent=55 // pred_region
          %vm3499 = vcmask 516096
          %3500 = vst.msk [vmem:[#allocation4] sm:$0x1] %vm3499, 0.0
        $region60: #{convnet_nopool_forward.4} parent=55 // pred_fallthru
          _
        %v3501 = vld [vmem:[#allocation3] sm:$0x1]
        %v3502 = vmul.f32 %v3501, 0.0025510204
        %s3503 = smul.u32 %s22, 224
        %s3504 = scalar_lea.vmem [#allocation2], %s3503
        %v3505 = vld [vmem:[%s3504] sm:$0xff]
        %v3506 = vld [vmem:[%s3504 + $0x8] sm:$0xff]
        %v3507 = vld [vmem:[%s3504 + $0x10] sm:$0xff]
        %v3508 = vld [vmem:[%s3504 + $0x18] sm:$0xff]
        %v3509 = vld [vmem:[%s3504 + $0x20] sm:$0xff]
        %v3510 = vld [vmem:[%s3504 + $0x28] sm:$0xff]
        %v3511 = vld [vmem:[%s3504 + $0x30] sm:$0xff]
        %v3512 = vld [vmem:[%s3504 + $0x38] sm:$0xff]
        %v3513 = vld [vmem:[%s3504 + $0x40] sm:$0xff]
        %v3514 = vld [vmem:[%s3504 + $0x48] sm:$0xff]
        %v3515 = vld [vmem:[%s3504 + $0x50] sm:$0xff]
        %v3516 = vld [vmem:[%s3504 + $0x58] sm:$0xff]
        %v3517 = vld [vmem:[%s3504 + $0x60] sm:$0xff]
        %v3518 = vld [vmem:[%s3504 + $0x68] sm:$0xff]
        %v3519 = vld [vmem:[%s3504 + $0x70] sm:$0xff]
        %v3520 = vld [vmem:[%s3504 + $0x78] sm:$0xff]
        %v3521 = vld [vmem:[%s3504 + $0x80] sm:$0xff]
        %v3522 = vld [vmem:[%s3504 + $0x88] sm:$0xff]
        %v3523 = vld [vmem:[%s3504 + $0x90] sm:$0xff]
        %v3524 = vld [vmem:[%s3504 + $0x98] sm:$0xff]
        %v3525 = vld [vmem:[%s3504 + $0xa0] sm:$0xff]
        %v3526 = vld [vmem:[%s3504 + $0xa8] sm:$0xff]
        %v3527 = vld [vmem:[%s3504 + $0xb0] sm:$0xff]
        %v3528 = vld [vmem:[%s3504 + $0xb8] sm:$0xff]
        %v3529 = vld [vmem:[%s3504 + $0xc0] sm:$0xff]
        %v3530 = vld [vmem:[%s3504 + $0xc8] sm:$0xff]
        %v3531 = vld [vmem:[%s3504 + $0xd0] sm:$0xff]
        %v3532 = vld [vmem:[%s3504 + $0xd8] sm:$0xff]
        %v3534 = vlaneseq
        %v3535 = vshrl.u32 %v3534, 7
        %v3536 = vsub.s32 0, %v3535
        %v3537 = vrot.slane %v3502, %v3536
        %v3539 = vsub.f32 %v3505, %v3537
        %v3540 = vsub.f32 %v3506, %v3537
        %v3541 = vsub.f32 %v3507, %v3537
        %v3542 = vsub.f32 %v3508, %v3537
        %v3543 = vsub.f32 %v3509, %v3537
        %v3544 = vsub.f32 %v3510, %v3537
        %v3545 = vsub.f32 %v3511, %v3537
        %v3546 = vsub.f32 %v3512, %v3537
        %v3547 = vsub.f32 %v3513, %v3537
        %v3548 = vsub.f32 %v3514, %v3537
        %v3549 = vsub.f32 %v3515, %v3537
        %v3550 = vsub.f32 %v3516, %v3537
        %v3551 = vsub.f32 %v3517, %v3537
        %v3552 = vsub.f32 %v3518, %v3537
        %v3553 = vsub.f32 %v3519, %v3537
        %v3554 = vsub.f32 %v3520, %v3537
        %v3555 = vsub.f32 %v3521, %v3537
        %v3556 = vsub.f32 %v3522, %v3537
        %v3557 = vsub.f32 %v3523, %v3537
        %v3558 = vsub.f32 %v3524, %v3537
        %v3559 = vsub.f32 %v3525, %v3537
        %v3560 = vsub.f32 %v3526, %v3537
        %v3561 = vsub.f32 %v3527, %v3537
        %v3562 = vsub.f32 %v3528, %v3537
        %v3563 = vsub.f32 %v3529, %v3537
        %v3564 = vsub.f32 %v3530, %v3537
        %v3565 = vsub.f32 %v3531, %v3537
        %v3566 = vsub.f32 %v3532, %v3537
        %v3567 = vld [vmem:[%s5] sm:$0xff]
        %v3568 = vld [vmem:[%s5 + $0x8] sm:$0xff]
        %v3569 = vld [vmem:[%s5 + $0x10] sm:$0xff]
        %v3570 = vld [vmem:[%s5 + $0x18] sm:$0xff]
        %v3571 = vld [vmem:[%s5 + $0x20] sm:$0xff]
        %v3572 = vld [vmem:[%s5 + $0x28] sm:$0xff]
        %v3573 = vld [vmem:[%s5 + $0x30] sm:$0xff]
        %v3574 = vld [vmem:[%s5 + $0x38] sm:$0xff]
        %v3575 = vld [vmem:[%s5 + $0x40] sm:$0xff]
        %v3576 = vld [vmem:[%s5 + $0x48] sm:$0xff]
        %v3577 = vld [vmem:[%s5 + $0x50] sm:$0xff]
        %v3578 = vld [vmem:[%s5 + $0x58] sm:$0xff]
        %v3579 = vld [vmem:[%s5 + $0x60] sm:$0xff]
        %v3580 = vld [vmem:[%s5 + $0x68] sm:$0xff]
        %v3581 = vld [vmem:[%s5 + $0x70] sm:$0xff]
        %v3582 = vld [vmem:[%s5 + $0x78] sm:$0xff]
        %v3583 = vld [vmem:[%s5 + $0x80] sm:$0xff]
        %v3584 = vld [vmem:[%s5 + $0x88] sm:$0xff]
        %v3585 = vld [vmem:[%s5 + $0x90] sm:$0xff]
        %v3586 = vld [vmem:[%s5 + $0x98] sm:$0xff]
        %v3587 = vld [vmem:[%s5 + $0xa0] sm:$0xff]
        %v3588 = vld [vmem:[%s5 + $0xa8] sm:$0xff]
        %v3589 = vld [vmem:[%s5 + $0xb0] sm:$0xff]
        %v3590 = vld [vmem:[%s5 + $0xb8] sm:$0xff]
        %v3591 = vld [vmem:[%s5 + $0xc0] sm:$0xff]
        %v3592 = vld [vmem:[%s5 + $0xc8] sm:$0xff]
        %v3593 = vld [vmem:[%s5 + $0xd0] sm:$0xff]
        %v3594 = vld [vmem:[%s5 + $0xd8] sm:$0xff]
        %3596 = vset.pattern.permute.xlu0 0
        %3597 = vperm.xlu0 %3596, %v3567
        %v3598 = vpop.permute.xlu0 %3597
        %3601 = vset.pattern.permute.xlu0 0
        %3602 = vperm.xlu0 %3601, %v3568
        %v3603 = vpop.permute.xlu0 %3602
        %3606 = vset.pattern.permute.xlu0 0
        %3607 = vperm.xlu0 %3606, %v3569
        %v3608 = vpop.permute.xlu0 %3607
        %3611 = vset.pattern.permute.xlu0 0
        %3612 = vperm.xlu0 %3611, %v3570
        %v3613 = vpop.permute.xlu0 %3612
        %3616 = vset.pattern.permute.xlu0 0
        %3617 = vperm.xlu0 %3616, %v3571
        %v3618 = vpop.permute.xlu0 %3617
        %3621 = vset.pattern.permute.xlu0 0
        %3622 = vperm.xlu0 %3621, %v3572
        %v3623 = vpop.permute.xlu0 %3622
        %3626 = vset.pattern.permute.xlu0 0
        %3627 = vperm.xlu0 %3626, %v3573
        %v3628 = vpop.permute.xlu0 %3627
        %3631 = vset.pattern.permute.xlu0 0
        %3632 = vperm.xlu0 %3631, %v3574
        %v3633 = vpop.permute.xlu0 %3632
        %3636 = vset.pattern.permute.xlu0 0
        %3637 = vperm.xlu0 %3636, %v3575
        %v3638 = vpop.permute.xlu0 %3637
        %3641 = vset.pattern.permute.xlu0 0
        %3642 = vperm.xlu0 %3641, %v3576
        %v3643 = vpop.permute.xlu0 %3642
        %3646 = vset.pattern.permute.xlu0 0
        %3647 = vperm.xlu0 %3646, %v3577
        %v3648 = vpop.permute.xlu0 %3647
        %3651 = vset.pattern.permute.xlu0 0
        %3652 = vperm.xlu0 %3651, %v3578
        %v3653 = vpop.permute.xlu0 %3652
        %3656 = vset.pattern.permute.xlu0 0
        %3657 = vperm.xlu0 %3656, %v3579
        %v3658 = vpop.permute.xlu0 %3657
        %3661 = vset.pattern.permute.xlu0 0
        %3662 = vperm.xlu0 %3661, %v3580
        %v3663 = vpop.permute.xlu0 %3662
        %3666 = vset.pattern.permute.xlu0 0
        %3667 = vperm.xlu0 %3666, %v3581
        %v3668 = vpop.permute.xlu0 %3667
        %3671 = vset.pattern.permute.xlu0 0
        %3672 = vperm.xlu0 %3671, %v3582
        %v3673 = vpop.permute.xlu0 %3672
        %3676 = vset.pattern.permute.xlu0 0
        %3677 = vperm.xlu0 %3676, %v3583
        %v3678 = vpop.permute.xlu0 %3677
        %3681 = vset.pattern.permute.xlu0 0
        %3682 = vperm.xlu0 %3681, %v3584
        %v3683 = vpop.permute.xlu0 %3682
        %3686 = vset.pattern.permute.xlu0 0
        %3687 = vperm.xlu0 %3686, %v3585
        %v3688 = vpop.permute.xlu0 %3687
        %3691 = vset.pattern.permute.xlu0 0
        %3692 = vperm.xlu0 %3691, %v3586
        %v3693 = vpop.permute.xlu0 %3692
        %3696 = vset.pattern.permute.xlu0 0
        %3697 = vperm.xlu0 %3696, %v3587
        %v3698 = vpop.permute.xlu0 %3697
        %3701 = vset.pattern.permute.xlu0 0
        %3702 = vperm.xlu0 %3701, %v3588
        %v3703 = vpop.permute.xlu0 %3702
        %3706 = vset.pattern.permute.xlu0 0
        %3707 = vperm.xlu0 %3706, %v3589
        %v3708 = vpop.permute.xlu0 %3707
        %3711 = vset.pattern.permute.xlu0 0
        %3712 = vperm.xlu0 %3711, %v3590
        %v3713 = vpop.permute.xlu0 %3712
        %3716 = vset.pattern.permute.xlu0 0
        %3717 = vperm.xlu0 %3716, %v3591
        %v3718 = vpop.permute.xlu0 %3717
        %3721 = vset.pattern.permute.xlu0 0
        %3722 = vperm.xlu0 %3721, %v3592
        %v3723 = vpop.permute.xlu0 %3722
        %3726 = vset.pattern.permute.xlu0 0
        %3727 = vperm.xlu0 %3726, %v3593
        %v3728 = vpop.permute.xlu0 %3727
        %3731 = vset.pattern.permute.xlu0 0
        %3732 = vperm.xlu0 %3731, %v3594
        %v3733 = vpop.permute.xlu0 %3732
        %v3735 = vmul.f32 %v3539, %v3598
        %v3736 = vmul.f32 %v3540, %v3603
        %v3737 = vmul.f32 %v3541, %v3608
        %v3738 = vmul.f32 %v3542, %v3613
        %v3739 = vmul.f32 %v3543, %v3618
        %v3740 = vmul.f32 %v3544, %v3623
        %v3741 = vmul.f32 %v3545, %v3628
        %v3742 = vmul.f32 %v3546, %v3633
        %v3743 = vmul.f32 %v3547, %v3638
        %v3744 = vmul.f32 %v3548, %v3643
        %v3745 = vmul.f32 %v3549, %v3648
        %v3746 = vmul.f32 %v3550, %v3653
        %v3747 = vmul.f32 %v3551, %v3658
        %v3748 = vmul.f32 %v3552, %v3663
        %v3749 = vmul.f32 %v3553, %v3668
        %v3750 = vmul.f32 %v3554, %v3673
        %v3751 = vmul.f32 %v3555, %v3678
        %v3752 = vmul.f32 %v3556, %v3683
        %v3753 = vmul.f32 %v3557, %v3688
        %v3754 = vmul.f32 %v3558, %v3693
        %v3755 = vmul.f32 %v3559, %v3698
        %v3756 = vmul.f32 %v3560, %v3703
        %v3757 = vmul.f32 %v3561, %v3708
        %v3758 = vmul.f32 %v3562, %v3713
        %v3759 = vmul.f32 %v3563, %v3718
        %v3760 = vmul.f32 %v3564, %v3723
        %v3761 = vmul.f32 %v3565, %v3728
        %v3762 = vmul.f32 %v3566, %v3733
        %v3763 = vld [vmem:[#allocation4] sm:$0x1]
        %v3764 = vmul.f32 %v3735, %v3735
        %v3765 = vmul.f32 %v3736, %v3736
        %v3766 = vmul.f32 %v3737, %v3737
        %v3767 = vmul.f32 %v3738, %v3738
        %v3768 = vmul.f32 %v3739, %v3739
        %v3769 = vmul.f32 %v3740, %v3740
        %v3770 = vmul.f32 %v3741, %v3741
        %v3771 = vmul.f32 %v3742, %v3742
        %v3772 = vmul.f32 %v3743, %v3743
        %v3773 = vmul.f32 %v3744, %v3744
        %v3774 = vmul.f32 %v3745, %v3745
        %v3775 = vmul.f32 %v3746, %v3746
        %v3776 = vmul.f32 %v3747, %v3747
        %v3777 = vmul.f32 %v3748, %v3748
        %v3778 = vmul.f32 %v3749, %v3749
        %v3779 = vmul.f32 %v3750, %v3750
        %v3780 = vmul.f32 %v3751, %v3751
        %v3781 = vmul.f32 %v3752, %v3752
        %v3782 = vmul.f32 %v3753, %v3753
        %v3783 = vmul.f32 %v3754, %v3754
        %v3784 = vmul.f32 %v3755, %v3755
        %v3785 = vmul.f32 %v3756, %v3756
        %v3786 = vmul.f32 %v3757, %v3757
        %v3787 = vmul.f32 %v3758, %v3758
        %v3788 = vmul.f32 %v3759, %v3759
        %v3789 = vmul.f32 %v3760, %v3760
        %v3790 = vmul.f32 %v3761, %v3761
        %v3791 = vmul.f32 %v3762, %v3762
        %vm3792 = vcmask 523264
        %v3793 = vsel %vm3792, %v3764, 0.0
        %v3794 = vsel %vm3792, %v3765, 0.0
        %v3795 = vadd.f32 %v3793, %v3794
        %v3796 = vsel %vm3792, %v3766, 0.0
        %v3797 = vadd.f32 %v3795, %v3796
        %v3798 = vsel %vm3792, %v3767, 0.0
        %v3799 = vadd.f32 %v3797, %v3798
        %v3800 = vsel %vm3792, %v3768, 0.0
        %v3801 = vadd.f32 %v3799, %v3800
        %v3802 = vsel %vm3792, %v3769, 0.0
        %v3803 = vadd.f32 %v3801, %v3802
        %v3804 = vsel %vm3792, %v3770, 0.0
        %v3805 = vadd.f32 %v3803, %v3804
        %v3806 = vsel %vm3792, %v3771, 0.0
        %v3807 = vadd.f32 %v3805, %v3806
        %v3808 = vsel %vm3792, %v3772, 0.0
        %v3809 = vadd.f32 %v3807, %v3808
        %v3810 = vsel %vm3792, %v3773, 0.0
        %v3811 = vadd.f32 %v3809, %v3810
        %v3812 = vsel %vm3792, %v3774, 0.0
        %v3813 = vadd.f32 %v3811, %v3812
        %v3814 = vsel %vm3792, %v3775, 0.0
        %v3815 = vadd.f32 %v3813, %v3814
        %v3816 = vsel %vm3792, %v3776, 0.0
        %v3817 = vadd.f32 %v3815, %v3816
        %v3818 = vsel %vm3792, %v3777, 0.0
        %v3819 = vadd.f32 %v3817, %v3818
        %v3820 = vsel %vm3792, %v3778, 0.0
        %v3821 = vadd.f32 %v3819, %v3820
        %v3822 = vsel %vm3792, %v3779, 0.0
        %v3823 = vadd.f32 %v3821, %v3822
        %v3824 = vsel %vm3792, %v3780, 0.0
        %v3825 = vadd.f32 %v3823, %v3824
        %v3826 = vsel %vm3792, %v3781, 0.0
        %v3827 = vadd.f32 %v3825, %v3826
        %v3828 = vsel %vm3792, %v3782, 0.0
        %v3829 = vadd.f32 %v3827, %v3828
        %v3830 = vsel %vm3792, %v3783, 0.0
        %v3831 = vadd.f32 %v3829, %v3830
        %v3832 = vsel %vm3792, %v3784, 0.0
        %v3833 = vadd.f32 %v3831, %v3832
        %v3834 = vsel %vm3792, %v3785, 0.0
        %v3835 = vadd.f32 %v3833, %v3834
        %v3836 = vsel %vm3792, %v3786, 0.0
        %v3837 = vadd.f32 %v3835, %v3836
        %v3838 = vsel %vm3792, %v3787, 0.0
        %v3839 = vadd.f32 %v3837, %v3838
        %v3840 = vsel %vm3792, %v3788, 0.0
        %v3841 = vadd.f32 %v3839, %v3840
        %v3842 = vsel %vm3792, %v3789, 0.0
        %v3843 = vadd.f32 %v3841, %v3842
        %v3844 = vsel %vm3792, %v3790, 0.0
        %v3845 = vadd.f32 %v3843, %v3844
        %v3846 = vsel %vm3792, %v3791, 0.0
        %v3847 = vadd.f32 %v3845, %v3846
        %v3848 = vrot.slane %v3847, 4
        %v3849 = vadd.f32 %v3847, %v3848
        %v3850 = vrot.slane %v3849, 2
        %v3851 = vadd.f32 %v3849, %v3850
        %v3852 = vrot.slane %v3851, 1
        %v3853 = vadd.f32 %v3851, %v3852
        %v3854 = vadd.f32 %v3763, %v3853
        %vm3855 = vcmask 516096
        %3856 = vst.msk [vmem:[#allocation4] sm:$0x1] %vm3855, %v3854
      $region56: #{convnet_nopool_forward.4} parent=43 // pred_fallthru
        _
      %p3857 = scmp.eq.s32.totalorder %s21, 2
      // Predicated region
      $region61: #{convnet_nopool_forward.4} parent=43 // pred_check
        %p3858 = pneg %p3857
      $region62: #{convnet_nopool_forward.4} parent=43 // pred_check_branch
        %3860 = sbr.rel (%p3858) target = $region64
      $region63: #{convnet_nopool_forward.4} parent=43 // pred_region
        %v3861 = vld [vmem:[#allocation3] sm:$0x1]
        %v3862 = vmul.f32 %v3861, 0.0025510204
        %v3863 = vld [vmem:[#allocation4] sm:$0x1]
        %v3864 = vmul.f32 %v3863, 0.0025510204
        %v3865 = vadd.f32 %v3864, 1e-05
        %v3866 = vrsqrt.pop %v3865
        %v3867 = vld [vmem:[%s3] sm:$0x1]
        %v3868 = vmul.f32 %v3867, %v3866
        %v3869 = vld [vmem:[%s4] sm:$0x1]
        %v3870 = vmul.f32 %v3862, %v3868
        %v3871 = vsub.f32 %v3869, %v3870
        %s3872 = smul.u32 %s22, 224
        %s3873 = scalar_lea.vmem [#allocation2], %s3872
        %v3874 = vld [vmem:[%s3873] sm:$0xff]
        %v3875 = vld [vmem:[%s3873 + $0x8] sm:$0xff]
        %v3876 = vld [vmem:[%s3873 + $0x10] sm:$0xff]
        %v3877 = vld [vmem:[%s3873 + $0x18] sm:$0xff]
        %v3878 = vld [vmem:[%s3873 + $0x20] sm:$0xff]
        %v3879 = vld [vmem:[%s3873 + $0x28] sm:$0xff]
        %v3880 = vld [vmem:[%s3873 + $0x30] sm:$0xff]
        %v3881 = vld [vmem:[%s3873 + $0x38] sm:$0xff]
        %v3882 = vld [vmem:[%s3873 + $0x40] sm:$0xff]
        %v3883 = vld [vmem:[%s3873 + $0x48] sm:$0xff]
        %v3884 = vld [vmem:[%s3873 + $0x50] sm:$0xff]
        %v3885 = vld [vmem:[%s3873 + $0x58] sm:$0xff]
        %v3886 = vld [vmem:[%s3873 + $0x60] sm:$0xff]
        %v3887 = vld [vmem:[%s3873 + $0x68] sm:$0xff]
        %v3888 = vld [vmem:[%s3873 + $0x70] sm:$0xff]
        %v3889 = vld [vmem:[%s3873 + $0x78] sm:$0xff]
        %v3890 = vld [vmem:[%s3873 + $0x80] sm:$0xff]
        %v3891 = vld [vmem:[%s3873 + $0x88] sm:$0xff]
        %v3892 = vld [vmem:[%s3873 + $0x90] sm:$0xff]
        %v3893 = vld [vmem:[%s3873 + $0x98] sm:$0xff]
        %v3894 = vld [vmem:[%s3873 + $0xa0] sm:$0xff]
        %v3895 = vld [vmem:[%s3873 + $0xa8] sm:$0xff]
        %v3896 = vld [vmem:[%s3873 + $0xb0] sm:$0xff]
        %v3897 = vld [vmem:[%s3873 + $0xb8] sm:$0xff]
        %v3898 = vld [vmem:[%s3873 + $0xc0] sm:$0xff]
        %v3899 = vld [vmem:[%s3873 + $0xc8] sm:$0xff]
        %v3900 = vld [vmem:[%s3873 + $0xd0] sm:$0xff]
        %v3901 = vld [vmem:[%s3873 + $0xd8] sm:$0xff]
        %v3903 = vlaneseq
        %v3904 = vshrl.u32 %v3903, 7
        %v3905 = vsub.s32 0, %v3904
        %v3906 = vrot.slane %v3868, %v3905
        %v3908 = vmul.f32 %v3874, %v3906
        %v3909 = vmul.f32 %v3875, %v3906
        %v3910 = vmul.f32 %v3876, %v3906
        %v3911 = vmul.f32 %v3877, %v3906
        %v3912 = vmul.f32 %v3878, %v3906
        %v3913 = vmul.f32 %v3879, %v3906
        %v3914 = vmul.f32 %v3880, %v3906
        %v3915 = vmul.f32 %v3881, %v3906
        %v3916 = vmul.f32 %v3882, %v3906
        %v3917 = vmul.f32 %v3883, %v3906
        %v3918 = vmul.f32 %v3884, %v3906
        %v3919 = vmul.f32 %v3885, %v3906
        %v3920 = vmul.f32 %v3886, %v3906
        %v3921 = vmul.f32 %v3887, %v3906
        %v3922 = vmul.f32 %v3888, %v3906
        %v3923 = vmul.f32 %v3889, %v3906
        %v3924 = vmul.f32 %v3890, %v3906
        %v3925 = vmul.f32 %v3891, %v3906
        %v3926 = vmul.f32 %v3892, %v3906
        %v3927 = vmul.f32 %v3893, %v3906
        %v3928 = vmul.f32 %v3894, %v3906
        %v3929 = vmul.f32 %v3895, %v3906
        %v3930 = vmul.f32 %v3896, %v3906
        %v3931 = vmul.f32 %v3897, %v3906
        %v3932 = vmul.f32 %v3898, %v3906
        %v3933 = vmul.f32 %v3899, %v3906
        %v3934 = vmul.f32 %v3900, %v3906
        %v3935 = vmul.f32 %v3901, %v3906
        %v3937 = vlaneseq
        %v3938 = vshrl.u32 %v3937, 7
        %v3939 = vsub.s32 0, %v3938
        %v3940 = vrot.slane %v3871, %v3939
        %v3942 = vadd.f32 %v3908, %v3940
        %v3943 = vadd.f32 %v3909, %v3940
        %v3944 = vadd.f32 %v3910, %v3940
        %v3945 = vadd.f32 %v3911, %v3940
        %v3946 = vadd.f32 %v3912, %v3940
        %v3947 = vadd.f32 %v3913, %v3940
        %v3948 = vadd.f32 %v3914, %v3940
        %v3949 = vadd.f32 %v3915, %v3940
        %v3950 = vadd.f32 %v3916, %v3940
        %v3951 = vadd.f32 %v3917, %v3940
        %v3952 = vadd.f32 %v3918, %v3940
        %v3953 = vadd.f32 %v3919, %v3940
        %v3954 = vadd.f32 %v3920, %v3940
        %v3955 = vadd.f32 %v3921, %v3940
        %v3956 = vadd.f32 %v3922, %v3940
        %v3957 = vadd.f32 %v3923, %v3940
        %v3958 = vadd.f32 %v3924, %v3940
        %v3959 = vadd.f32 %v3925, %v3940
        %v3960 = vadd.f32 %v3926, %v3940
        %v3961 = vadd.f32 %v3927, %v3940
        %v3962 = vadd.f32 %v3928, %v3940
        %v3963 = vadd.f32 %v3929, %v3940
        %v3964 = vadd.f32 %v3930, %v3940
        %v3965 = vadd.f32 %v3931, %v3940
        %v3966 = vadd.f32 %v3932, %v3940
        %v3967 = vadd.f32 %v3933, %v3940
        %v3968 = vadd.f32 %v3934, %v3940
        %v3969 = vadd.f32 %v3935, %v3940
        %v3970 = vmax.f32 %v3942, 0.0
        %v3971 = vmax.f32 %v3943, 0.0
        %v3972 = vmax.f32 %v3944, 0.0
        %v3973 = vmax.f32 %v3945, 0.0
        %v3974 = vmax.f32 %v3946, 0.0
        %v3975 = vmax.f32 %v3947, 0.0
        %v3976 = vmax.f32 %v3948, 0.0
        %v3977 = vmax.f32 %v3949, 0.0
        %v3978 = vmax.f32 %v3950, 0.0
        %v3979 = vmax.f32 %v3951, 0.0
        %v3980 = vmax.f32 %v3952, 0.0
        %v3981 = vmax.f32 %v3953, 0.0
        %v3982 = vmax.f32 %v3954, 0.0
        %v3983 = vmax.f32 %v3955, 0.0
        %v3984 = vmax.f32 %v3956, 0.0
        %v3985 = vmax.f32 %v3957, 0.0
        %v3986 = vmax.f32 %v3958, 0.0
        %v3987 = vmax.f32 %v3959, 0.0
        %v3988 = vmax.f32 %v3960, 0.0
        %v3989 = vmax.f32 %v3961, 0.0
        %v3990 = vmax.f32 %v3962, 0.0
        %v3991 = vmax.f32 %v3963, 0.0
        %v3992 = vmax.f32 %v3964, 0.0
        %v3993 = vmax.f32 %v3965, 0.0
        %v3994 = vmax.f32 %v3966, 0.0
        %v3995 = vmax.f32 %v3967, 0.0
        %v3996 = vmax.f32 %v3968, 0.0
        %v3997 = vmax.f32 %v3969, 0.0
        %v3998 = vpack.c.bf16 %v3971, %v3970
        %v4000 = vunpack.c.l.b16 %v3998
        %v4001 = vunpack.c.h.b16 %v3998
        %v4002 = vpack.c.b16 %v4000, %v4000
        %v4003 = vpack.c.b16 %v4001, %v4001
        %vm4006 = vcmask 519168
        %4007 = vst.msk [vmem:[%s285] sm:$0xf] %vm4006, %v4002
        %vm4008 = vcmask 518144
        %4009 = vst.msk [vmem:[%s285 + $0x4] sm:$0x7] %vm4008, %v4003
        %v4010 = vpack.c.bf16 %v3973, %v3972
        %v4012 = vunpack.c.l.b16 %v4010
        %v4013 = vunpack.c.h.b16 %v4010
        %v4014 = vpack.c.b16 %v4012, %v4012
        %v4015 = vpack.c.b16 %v4013, %v4013
        %s4018 = scalar_lea.vmem %s285, 8
        %4019 = vst.msk [vmem:[%s4018] sm:$0xf] %vm4006, %v4014
        %4020 = vst.msk [vmem:[%s4018 + $0x4] sm:$0x7] %vm4008, %v4015
        %v4021 = vpack.c.bf16 %v3975, %v3974
        %v4023 = vunpack.c.l.b16 %v4021
        %v4024 = vunpack.c.h.b16 %v4021
        %v4025 = vpack.c.b16 %v4023, %v4023
        %v4026 = vpack.c.b16 %v4024, %v4024
        %s4029 = scalar_lea.vmem %s285, 16
        %4030 = vst.msk [vmem:[%s4029] sm:$0xf] %vm4006, %v4025
        %4031 = vst.msk [vmem:[%s4029 + $0x4] sm:$0x7] %vm4008, %v4026
        %v4032 = vpack.c.bf16 %v3977, %v3976
        %v4034 = vunpack.c.l.b16 %v4032
        %v4035 = vunpack.c.h.b16 %v4032
        %v4036 = vpack.c.b16 %v4034, %v4034
        %v4037 = vpack.c.b16 %v4035, %v4035
        %s4040 = scalar_lea.vmem %s285, 24
        %4041 = vst.msk [vmem:[%s4040] sm:$0xf] %vm4006, %v4036
        %4042 = vst.msk [vmem:[%s4040 + $0x4] sm:$0x7] %vm4008, %v4037
        %v4043 = vpack.c.bf16 %v3979, %v3978
        %v4045 = vunpack.c.l.b16 %v4043
        %v4046 = vunpack.c.h.b16 %v4043
        %v4047 = vpack.c.b16 %v4045, %v4045
        %v4048 = vpack.c.b16 %v4046, %v4046
        %s4051 = scalar_lea.vmem %s285, 32
        %4052 = vst.msk [vmem:[%s4051] sm:$0xf] %vm4006, %v4047
        %4053 = vst.msk [vmem:[%s4051 + $0x4] sm:$0x7] %vm4008, %v4048
        %v4054 = vpack.c.bf16 %v3981, %v3980
        %v4056 = vunpack.c.l.b16 %v4054
        %v4057 = vunpack.c.h.b16 %v4054
        %v4058 = vpack.c.b16 %v4056, %v4056
        %v4059 = vpack.c.b16 %v4057, %v4057
        %s4062 = scalar_lea.vmem %s285, 40
        %4063 = vst.msk [vmem:[%s4062] sm:$0xf] %vm4006, %v4058
        %4064 = vst.msk [vmem:[%s4062 + $0x4] sm:$0x7] %vm4008, %v4059
        %v4065 = vpack.c.bf16 %v3983, %v3982
        %v4067 = vunpack.c.l.b16 %v4065
        %v4068 = vunpack.c.h.b16 %v4065
        %v4069 = vpack.c.b16 %v4067, %v4067
        %v4070 = vpack.c.b16 %v4068, %v4068
        %s4073 = scalar_lea.vmem %s285, 48
        %4074 = vst.msk [vmem:[%s4073] sm:$0xf] %vm4006, %v4069
        %4075 = vst.msk [vmem:[%s4073 + $0x4] sm:$0x7] %vm4008, %v4070
        %v4076 = vpack.c.bf16 %v3985, %v3984
        %v4078 = vunpack.c.l.b16 %v4076
        %v4079 = vunpack.c.h.b16 %v4076
        %v4080 = vpack.c.b16 %v4078, %v4078
        %v4081 = vpack.c.b16 %v4079, %v4079
        %s4084 = scalar_lea.vmem %s285, 56
        %4085 = vst.msk [vmem:[%s4084] sm:$0xf] %vm4006, %v4080
        %4086 = vst.msk [vmem:[%s4084 + $0x4] sm:$0x7] %vm4008, %v4081
        %v4087 = vpack.c.bf16 %v3987, %v3986
        %v4089 = vunpack.c.l.b16 %v4087
        %v4090 = vunpack.c.h.b16 %v4087
        %v4091 = vpack.c.b16 %v4089, %v4089
        %v4092 = vpack.c.b16 %v4090, %v4090
        %s4095 = scalar_lea.vmem %s285, 64
        %4096 = vst.msk [vmem:[%s4095] sm:$0xf] %vm4006, %v4091
        %4097 = vst.msk [vmem:[%s4095 + $0x4] sm:$0x7] %vm4008, %v4092
        %v4098 = vpack.c.bf16 %v3989, %v3988
        %v4100 = vunpack.c.l.b16 %v4098
        %v4101 = vunpack.c.h.b16 %v4098
        %v4102 = vpack.c.b16 %v4100, %v4100
        %v4103 = vpack.c.b16 %v4101, %v4101
        %s4106 = scalar_lea.vmem %s285, 72
        %4107 = vst.msk [vmem:[%s4106] sm:$0xf] %vm4006, %v4102
        %4108 = vst.msk [vmem:[%s4106 + $0x4] sm:$0x7] %vm4008, %v4103
        %v4109 = vpack.c.bf16 %v3991, %v3990
        %v4111 = vunpack.c.l.b16 %v4109
        %v4112 = vunpack.c.h.b16 %v4109
        %v4113 = vpack.c.b16 %v4111, %v4111
        %v4114 = vpack.c.b16 %v4112, %v4112
        %s4117 = scalar_lea.vmem %s285, 80
        %4118 = vst.msk [vmem:[%s4117] sm:$0xf] %vm4006, %v4113
        %4119 = vst.msk [vmem:[%s4117 + $0x4] sm:$0x7] %vm4008, %v4114
        %v4120 = vpack.c.bf16 %v3993, %v3992
        %v4122 = vunpack.c.l.b16 %v4120
        %v4123 = vunpack.c.h.b16 %v4120
        %v4124 = vpack.c.b16 %v4122, %v4122
        %v4125 = vpack.c.b16 %v4123, %v4123
        %s4128 = scalar_lea.vmem %s285, 88
        %4129 = vst.msk [vmem:[%s4128] sm:$0xf] %vm4006, %v4124
        %4130 = vst.msk [vmem:[%s4128 + $0x4] sm:$0x7] %vm4008, %v4125
        %v4131 = vpack.c.bf16 %v3995, %v3994
        %v4133 = vunpack.c.l.b16 %v4131
        %v4134 = vunpack.c.h.b16 %v4131
        %v4135 = vpack.c.b16 %v4133, %v4133
        %v4136 = vpack.c.b16 %v4134, %v4134
        %s4139 = scalar_lea.vmem %s285, 96
        %4140 = vst.msk [vmem:[%s4139] sm:$0xf] %vm4006, %v4135
        %4141 = vst.msk [vmem:[%s4139 + $0x4] sm:$0x7] %vm4008, %v4136
        %v4142 = vpack.c.bf16 %v3997, %v3996
        %v4144 = vunpack.c.l.b16 %v4142
        %v4145 = vunpack.c.h.b16 %v4142
        %v4146 = vpack.c.b16 %v4144, %v4144
        %v4147 = vpack.c.b16 %v4145, %v4145
        %s4150 = scalar_lea.vmem %s285, 104
        %4151 = vst.msk [vmem:[%s4150] sm:$0xf] %vm4006, %v4146
        %4152 = vst.msk [vmem:[%s4150 + $0x4] sm:$0x7] %vm4008, %v4147
      $region64: #{convnet_nopool_forward.4} parent=43 // pred_fallthru
        _
      %p4153 = scmp.eq.s32.totalorder %s21, 2
      %s4154 = scalar_select %p4153, %s22, 0
      %p4155 = scmp.lt.s32.totalorder %s4154, 1
      %s4156 = scalar_select %p4155, %s4154, 1
      %s4157 = smul.addr %s4156, 28
      %s4158 = smul.addr %s4157, 4
      %s4159 = scalar_lea.vmem %s6, %s4158
      // Predicated region
      $region65: #{convnet_nopool_forward.4} parent=43 // pred_check
        %p4160 = pneg %p186
      $region66: #{convnet_nopool_forward.4} parent=43 // pred_check_branch
        %4162 = sbr.rel (%p4160) target = $region68
      $region67: #{convnet_nopool_forward.4} parent=43 // pred_region
        %p4163 = scmp.eq.s32.totalorder %s21, 2
        %s4164 = scalar_select %p4163, %s22, 0
      $region68: #{convnet_nopool_forward.4} parent=43 // pred_fallthru
        _
    $region44: #{convnet_nopool_forward.4} parent=5 // pred_fallthru
      _
    %p4165 = scmp.le.s32.totalorder 2, %s12
    // Predicated region
    $region69: #{convnet_nopool_forward.4} parent=5 // pred_check
      %p4166 = pneg %p4165
    $region70: #{convnet_nopool_forward.4} parent=5 // pred_check_branch
      %4168 = sbr.rel (%p4166) target = $region72
    $region71: #{convnet_nopool_forward.4} parent=5 // pred_region
      %s4169 = ssub.s32 %s12, 2
      // Predicated region
      $region73: #{convnet_nopool_forward.4} parent=71 // pred_check
        %p4170 = pneg %p192
      $region74: #{convnet_nopool_forward.4} parent=71 // pred_check_branch
        %4172 = sbr.rel (%p4170) target = $region76
      $region75: #{convnet_nopool_forward.4} parent=71 // pred_region
        %p4173 = scmp.eq.s32.totalorder %s23, 2
        %s4174 = scalar_select %p4173, %s24, 0
        %p4175 = scmp.lt.s32.totalorder %s4174, 1
        %s4176 = scalar_select %p4175, %s4174, 1
        %s4177 = smul.addr %s4176, 28
        %s4178 = smul.addr %s4177, 4
        %s4179 = scalar_lea.vmem %s6, %s4178
      $region76: #{convnet_nopool_forward.4} parent=71 // pred_fallthru
        _
    $region72: #{convnet_nopool_forward.4} parent=5 // pred_fallthru
      _
  $region6: #{convnet_nopool_forward.4} parent=0 // loop_footer
    %s16 = sadd.s32 1, %s12
  $region7: #{convnet_nopool_forward.4} parent=0 // loop_footer_branch
    %11 = sbr.rel target = $region3
  $region8: #{convnet_nopool_forward.4} parent=0 // loop_exit
    _

</llo_original>
